<compile_context>
chip_gen: v7x
topology: tpu7x:2x2x1
jax: 0.10.0
libtpu: 0.0.40
codegen_flags: <defaults>
</compile_context>

<pallas_src>
import jax
import jax.numpy as jnp
import numpy as np
from jax.experimental import pallas as pl
from jax.experimental.pallas import tpu as pltpu

HIDDEN_SIZE = 20
INPUT_SIZE = 1
NUM_CLASSES = 1
NUM_LAYERS = 3

HP = 128          # padded per-gate lane width (>= HIDDEN_SIZE, lane aligned)
G4 = 4 * HP       # padded [i|f|g|o] concat width


# ----------------------------- Pallas kernel ------------------------------- #

def _fused_lstm_fc_kernel(x_ref,
                          wih0_ref, whh0_ref, b0_ref,
                          wih1_ref, whh1_ref, b1_ref,
                          wih2_ref, whh2_ref, b2_ref,
                          fcw_ref, fcb_ref,
                          out_ref,
                          hseq_ref):
    """hseq_ref: VMEM scratch (T*B, HP); row block [t*B, (t+1)*B) = h at step t."""
    B, T, _ = x_ref.shape

    def run_layer(gx_fn, whh_v, write_seq):
        """Serial recurrence. gx_fn(t) -> (B, 4*HP) precomputed input proj + bias."""
        h = jnp.zeros((B, HP), jnp.float32)
        c = jnp.zeros((B, HP), jnp.float32)
        for t in range(T):                    # static unroll (T small, known)
            gates = gx_fn(t) + jnp.dot(
                h, whh_v, preferred_element_type=jnp.float32)     # (B, 4*HP)
            # Lane-aligned gate slices (offsets 0 / 128 / 256 / 384).
            i_g = jax.nn.sigmoid(gates[:, 0 * HP:1 * HP])
            f_g = jax.nn.sigmoid(gates[:, 1 * HP:2 * HP])
            g_g = jnp.tanh(gates[:, 2 * HP:3 * HP])
            o_g = jax.nn.sigmoid(gates[:, 3 * HP:4 * HP])
            c = f_g * c + i_g * g_g
            h = o_g * jnp.tanh(c)
            if write_seq:
                hseq_ref[t * B:(t + 1) * B, :] = h
            t_last = t  # noqa: F841 (keep loop variable explicit)
        return h

    # ---- Layer 0: input_size == 1 -> x @ W_ih is an outer product (VPU). ----
    xv = x_ref[...].astype(jnp.float32)                 # (B, T, 1)
    w0 = wih0_ref[...]                                  # (1, 4*HP)
    b0 = b0_ref[...]                                    # (1, 4*HP)
    last_h = run_layer(lambda t: xv[:, t, :] * w0 + b0,
                       whh0_ref[...], write_seq=True)

    # ---- Layers 1..2: whole-sequence input projection as one matmul. ----
    layer_params = ((wih1_ref, whh1_ref, b1_ref, True),
                    (wih2_ref, whh2_ref, b2_ref, False))
    for wih_ref, whh_ref, b_ref, write_seq in layer_params:
        # Read the whole previous-layer sequence BEFORE this layer overwrites it.
        gx_all = jnp.dot(hseq_ref[...], wih_ref[...],
                         preferred_element_type=jnp.float32) + b_ref[...]
        last_h = run_layer(lambda t, g=gx_all: g[t * B:(t + 1) * B, :],
                           whh_ref[...], write_seq=write_seq)

    # ---- FC head on the final hidden state (padded h lanes are exactly 0
    #      and padded FC-weight rows are 0, so this is exact). ----
    out_ref[...] = (jnp.dot(last_h, fcw_ref[...],
                            preferred_element_type=jnp.float32)
                    + fcb_ref[...]).astype(out_ref.dtype)


# ------------------------------- Wrapper ------------------------------------ #

def _lstm_forward(x, kp):
    """x: (B, T, INPUT_SIZE) batch-first, matching the PyTorch module."""
    B, T, _ = x.shape
    (w0, u0, b0), (w1, u1, b1), (w2, u2, b2) = kp["lstm"]
    vmem = pl.BlockSpec(memory_space=pltpu.MemorySpace.VMEM)
    return pl.pallas_call(
        _fused_lstm_fc_kernel,
        out_shape=jax.ShapeDtypeStruct((B, NUM_CLASSES), jnp.float32),
        in_specs=[vmem] * 12,
        out_specs=vmem,
        scratch_shapes=[pltpu.VMEM((T * B, HP), jnp.float32)],
    )(x, w0, u0, b0, w1, u1, b1, w2, u2, b2, kp["fc_w_t"], kp["fc_b"])


lstm_forward = jax.jit(_lstm_forward)


# --------------------------- Parameter handling ----------------------------- #

def init_raw_params(key):
    """Raw torch-layout parameters: w_ih (4H, D), w_hh (4H, H), b_ih, b_hh."""
    raw = {"lstm": []}
    bound = 1.0 / np.sqrt(HIDDEN_SIZE)
    for layer in range(NUM_LAYERS):
        d_in = INPUT_SIZE if layer == 0 else HIDDEN_SIZE
        key, k1, k2, k3, k4 = jax.random.split(key, 5)
        w_ih = jax.random.uniform(k1, (4 * HIDDEN_SIZE, d_in), jnp.float32, -bound, bound)
        w_hh = jax.random.uniform(k2, (4 * HIDDEN_SIZE, HIDDEN_SIZE), jnp.float32, -bound, bound)
        b_ih = jax.random.uniform(k3, (4 * HIDDEN_SIZE,), jnp.float32, -bound, bound)
        b_hh = jax.random.uniform(k4, (4 * HIDDEN_SIZE,), jnp.float32, -bound, bound)
        raw["lstm"].append((w_ih, w_hh, b_ih, b_hh))
    key, k5, k6 = jax.random.split(key, 3)
    fc_w = jax.random.uniform(k5, (NUM_CLASSES, HIDDEN_SIZE), jnp.float32, -bound, bound)
    fc_b = jax.random.uniform(k6, (NUM_CLASSES,), jnp.float32, -bound, bound)
    raw["fc"] = (fc_w, fc_b)
    return raw


def _pad_gate_matrix(w, d_in_pad):
    """(4H, D) torch layout -> (d_in_pad, 4*HP), gate k at cols [k*HP, k*HP+H)."""
    h = HIDDEN_SIZE
    d_in = w.shape[1]
    w_t = np.asarray(w).T                              # (D, 4H)
    out = np.zeros((d_in_pad, G4), np.float32)
    for k in range(4):
        out[:d_in, k * HP:k * HP + h] = w_t[:, k * h:(k + 1) * h]
    return jnp.asarray(out)


def _pad_gate_bias(b_ih, b_hh):
    h = HIDDEN_SIZE
    b = np.asarray(b_ih) + np.asarray(b_hh)
    out = np.zeros((1, G4), np.float32)
    for k in range(4):
        out[0, k * HP:k * HP + h] = b[k * h:(k + 1) * h]
    return jnp.asarray(out)


def pad_params(raw):
    """Kernel-side padded parameters (lane-aligned gate blocks)."""
    kp = {"lstm": []}
    for layer, (w_ih, w_hh, b_ih, b_hh) in enumerate(raw["lstm"]):
        d_in_pad = INPUT_SIZE if layer == 0 else HP
        kp["lstm"].append((
            _pad_gate_matrix(w_ih, d_in_pad),          # (D_pad, 4*HP)
            _pad_gate_matrix(w_hh, HP),                # (HP, 4*HP)
            _pad_gate_bias(b_ih, b_hh),                # (1, 4*HP)
        ))
    fc_w, fc_b = raw["fc"]
    fcw = np.zeros((HP, NUM_CLASSES), np.float32)
    fcw[:HIDDEN_SIZE, :] = np.asarray(fc_w).T
    kp["fc_w_t"] = jnp.asarray(fcw)
    kp["fc_b"] = jnp.asarray(np.asarray(fc_b).reshape(1, NUM_CLASSES))
    return kp


# -------------------------- Pure-JAX reference ------------------------------ #

def reference_forward(x, raw):
    x_seq = jnp.transpose(x, (1, 0, 2)).astype(jnp.float32)     # (T, B, D)
    H = HIDDEN_SIZE
    for (w_ih, w_hh, b_ih, b_hh) in raw["lstm"]:
        w_ih_t = w_ih.T
        w_hh_t = w_hh.T
        bias = (b_ih + b_hh)[None, :]
        B = x_seq.shape[1]
        h = jnp.zeros((B, H), jnp.float32)
        c = jnp.zeros((B, H), jnp.float32)

        def step(carry, x_t):
            h, c = carry
            gates = x_t @ w_ih_t + h @ w_hh_t + bias
            i = jax.nn.sigmoid(gates[:, 0 * H:1 * H])
            f = jax.nn.sigmoid(gates[:, 1 * H:2 * H])
            g = jnp.tanh(gates[:, 2 * H:3 * H])
            o = jax.nn.sigmoid(gates[:, 3 * H:4 * H])
            c = f * c + i * g
            h = o * jnp.tanh(c)
            return (h, c), h

        (_, _), hs = jax.lax.scan(step, (h, c), x_seq)
        x_seq = hs
    fc_w, fc_b = raw["fc"]
    return x_seq[-1] @ fc_w.T + fc_b[None, :]


# ------------------------------- Main --------------------------------------- #

if __name__ == "__main__":
    key = jax.random.PRNGKey(0)
    key, pkey, xkey = jax.random.split(key, 3)

    raw_params = init_raw_params(pkey)
    kparams = pad_params(raw_params)

    batch, seq = 2, 8
    x = jax.random.normal(xkey, (batch, seq, INPUT_SIZE), jnp.float32)

    out = jax.block_until_ready(lstm_forward(x, kparams))

    ref = reference_forward(x, raw_params)
    np.testing.assert_allclose(np.asarray(out), np.asarray(ref), rtol=1e-3, atol=1e-3)

    assert out.shape == (batch, NUM_CLASSES)
    print("KERNEL_OK")
</pallas_src>

<mosaic_0001>
module attributes {stable_mosaic.version = 11 : i64} {
  func.func @_fused_lstm_fc_kernel(%arg0: memref<2x8x1xf32, #tpu.memory_space<vmem>>, %arg1: memref<1x512xf32, #tpu.memory_space<vmem>>, %arg2: memref<128x512xf32, #tpu.memory_space<vmem>>, %arg3: memref<1x512xf32, #tpu.memory_space<vmem>>, %arg4: memref<128x512xf32, #tpu.memory_space<vmem>>, %arg5: memref<128x512xf32, #tpu.memory_space<vmem>>, %arg6: memref<1x512xf32, #tpu.memory_space<vmem>>, %arg7: memref<128x512xf32, #tpu.memory_space<vmem>>, %arg8: memref<128x512xf32, #tpu.memory_space<vmem>>, %arg9: memref<1x512xf32, #tpu.memory_space<vmem>>, %arg10: memref<128x1xf32, #tpu.memory_space<vmem>>, %arg11: memref<1x1xf32, #tpu.memory_space<vmem>>, %arg12: memref<2x1xf32, #tpu.memory_space<vmem>>, %arg13: memref<16x128xf32, #tpu.memory_space<vmem>>) attributes {dimension_semantics = [], scalar_prefetch = 0 : i64, scratch_operands = 1 : i64, tpu.core_type = #tpu.core_type<tc>} {
    %c0 = arith.constant 0 : index
    %c0_0 = arith.constant 0 : index
    %c0_1 = arith.constant 0 : index
    %0 = vector.load %arg0[%c0, %c0_0, %c0_1] : memref<2x8x1xf32, #tpu.memory_space<vmem>>, vector<2x8x1xf32>
    %c0_2 = arith.constant 0 : index
    %c0_3 = arith.constant 0 : index
    %1 = vector.load %arg1[%c0_2, %c0_3] : memref<1x512xf32, #tpu.memory_space<vmem>>, vector<1x512xf32>
    %c0_4 = arith.constant 0 : index
    %c0_5 = arith.constant 0 : index
    %2 = vector.load %arg3[%c0_4, %c0_5] : memref<1x512xf32, #tpu.memory_space<vmem>>, vector<1x512xf32>
    %c0_6 = arith.constant 0 : index
    %c0_7 = arith.constant 0 : index
    %3 = vector.load %arg2[%c0_6, %c0_7] : memref<128x512xf32, #tpu.memory_space<vmem>>, vector<128x512xf32>
    %cst = arith.constant 0.000000e+00 : f32
    %4 = vector.broadcast %cst : f32 to vector<2x128xf32>
    %cst_8 = arith.constant 0.000000e+00 : f32
    %5 = vector.broadcast %cst_8 : f32 to vector<2x128xf32>
    %6 = vector.extract_strided_slice %0 {offsets = [0, 0, 0], sizes = [2, 1, 1], strides = [1, 1, 1]} : vector<2x8x1xf32> to vector<2x1x1xf32>
    %7 = vector.shape_cast %6 : vector<2x1x1xf32> to vector<2x1xf32>
    %8 = vector.broadcast %7 : vector<2x1xf32> to vector<2x512xf32>
    %9 = vector.broadcast %1 : vector<1x512xf32> to vector<2x512xf32>
    %10 = arith.mulf %8, %9 : vector<2x512xf32>
    %11 = vector.broadcast %2 : vector<1x512xf32> to vector<2x512xf32>
    %12 = arith.addf %10, %11 : vector<2x512xf32>
    %cst_9 = arith.constant dense<0.000000e+00> : vector<2x512xf32>
    %13 = tpu.matmul %4, %3, %cst_9 {dimension_numbers = #tpu.dot_dimension_numbers<[1], [0], [0], [1], [0, 0, 1, 1], [], []>} : vector<2x128xf32>, vector<128x512xf32>, vector<2x512xf32> -> vector<2x512xf32>
    %14 = arith.addf %12, %13 : vector<2x512xf32>
    %15 = vector.extract_strided_slice %14 {offsets = [0, 0], sizes = [2, 128], strides = [1, 1]} : vector<2x512xf32> to vector<2x128xf32>
    %16 = arith.negf %15 : vector<2x128xf32>
    %17 = math.exp %16 : vector<2x128xf32>
    %cst_10 = arith.constant 1.000000e+00 : f32
    %18 = vector.broadcast %cst_10 : f32 to vector<2x128xf32>
    %19 = arith.addf %18, %17 : vector<2x128xf32>
    %20 = arith.divf %18, %19 : vector<2x128xf32>
    %21 = vector.extract_strided_slice %14 {offsets = [0, 128], sizes = [2, 128], strides = [1, 1]} : vector<2x512xf32> to vector<2x128xf32>
    %22 = arith.negf %21 : vector<2x128xf32>
    %23 = math.exp %22 : vector<2x128xf32>
    %cst_11 = arith.constant 1.000000e+00 : f32
    %24 = vector.broadcast %cst_11 : f32 to vector<2x128xf32>
    %25 = arith.addf %24, %23 : vector<2x128xf32>
    %26 = arith.divf %24, %25 : vector<2x128xf32>
    %27 = vector.extract_strided_slice %14 {offsets = [0, 256], sizes = [2, 128], strides = [1, 1]} : vector<2x512xf32> to vector<2x128xf32>
    %28 = math.tanh %27 : vector<2x128xf32>
    %29 = vector.extract_strided_slice %14 {offsets = [0, 384], sizes = [2, 128], strides = [1, 1]} : vector<2x512xf32> to vector<2x128xf32>
    %30 = arith.negf %29 : vector<2x128xf32>
    %31 = math.exp %30 : vector<2x128xf32>
    %cst_12 = arith.constant 1.000000e+00 : f32
    %32 = vector.broadcast %cst_12 : f32 to vector<2x128xf32>
    %33 = arith.addf %32, %31 : vector<2x128xf32>
    %34 = arith.divf %32, %33 : vector<2x128xf32>
    %35 = arith.mulf %26, %5 : vector<2x128xf32>
    %36 = arith.mulf %20, %28 : vector<2x128xf32>
    %37 = arith.addf %35, %36 : vector<2x128xf32>
    %38 = math.tanh %37 : vector<2x128xf32>
    %39 = arith.mulf %34, %38 : vector<2x128xf32>
    %c0_13 = arith.constant 0 : index
    %c0_14 = arith.constant 0 : index
    %40 = vector.load %arg13[%c0_13, %c0_14] : memref<16x128xf32, #tpu.memory_space<vmem>>, vector<2x128xf32>
    tpu.vector_store %arg13[%c0_13, %c0_14], %39 {strides = array<i32>} : memref<16x128xf32, #tpu.memory_space<vmem>>, vector<2x128xf32>,
    %41 = vector.extract_strided_slice %0 {offsets = [0, 1, 0], sizes = [2, 1, 1], strides = [1, 1, 1]} : vector<2x8x1xf32> to vector<2x1x1xf32>
    %42 = vector.shape_cast %41 : vector<2x1x1xf32> to vector<2x1xf32>
    %43 = vector.broadcast %42 : vector<2x1xf32> to vector<2x512xf32>
    %44 = vector.broadcast %1 : vector<1x512xf32> to vector<2x512xf32>
    %45 = arith.mulf %43, %44 : vector<2x512xf32>
    %46 = vector.broadcast %2 : vector<1x512xf32> to vector<2x512xf32>
    %47 = arith.addf %45, %46 : vector<2x512xf32>
    %cst_15 = arith.constant dense<0.000000e+00> : vector<2x512xf32>
    %48 = tpu.matmul %39, %3, %cst_15 {dimension_numbers = #tpu.dot_dimension_numbers<[1], [0], [0], [1], [0, 0, 1, 1], [], []>} : vector<2x128xf32>, vector<128x512xf32>, vector<2x512xf32> -> vector<2x512xf32>
    %49 = arith.addf %47, %48 : vector<2x512xf32>
    %50 = vector.extract_strided_slice %49 {offsets = [0, 0], sizes = [2, 128], strides = [1, 1]} : vector<2x512xf32> to vector<2x128xf32>
    %51 = arith.negf %50 : vector<2x128xf32>
    %52 = math.exp %51 : vector<2x128xf32>
    %cst_16 = arith.constant 1.000000e+00 : f32
    %53 = vector.broadcast %cst_16 : f32 to vector<2x128xf32>
    %54 = arith.addf %53, %52 : vector<2x128xf32>
    %55 = arith.divf %53, %54 : vector<2x128xf32>
    %56 = vector.extract_strided_slice %49 {offsets = [0, 128], sizes = [2, 128], strides = [1, 1]} : vector<2x512xf32> to vector<2x128xf32>
    %57 = arith.negf %56 : vector<2x128xf32>
    %58 = math.exp %57 : vector<2x128xf32>
    %cst_17 = arith.constant 1.000000e+00 : f32
    %59 = vector.broadcast %cst_17 : f32 to vector<2x128xf32>
    %60 = arith.addf %59, %58 : vector<2x128xf32>
    %61 = arith.divf %59, %60 : vector<2x128xf32>
    %62 = vector.extract_strided_slice %49 {offsets = [0, 256], sizes = [2, 128], strides = [1, 1]} : vector<2x512xf32> to vector<2x128xf32>
    %63 = math.tanh %62 : vector<2x128xf32>
    %64 = vector.extract_strided_slice %49 {offsets = [0, 384], sizes = [2, 128], strides = [1, 1]} : vector<2x512xf32> to vector<2x128xf32>
    %65 = arith.negf %64 : vector<2x128xf32>
    %66 = math.exp %65 : vector<2x128xf32>
    %cst_18 = arith.constant 1.000000e+00 : f32
    %67 = vector.broadcast %cst_18 : f32 to vector<2x128xf32>
    %68 = arith.addf %67, %66 : vector<2x128xf32>
    %69 = arith.divf %67, %68 : vector<2x128xf32>
    %70 = arith.mulf %61, %37 : vector<2x128xf32>
    %71 = arith.mulf %55, %63 : vector<2x128xf32>
    %72 = arith.addf %70, %71 : vector<2x128xf32>
    %73 = math.tanh %72 : vector<2x128xf32>
    %74 = arith.mulf %69, %73 : vector<2x128xf32>
    %c2 = arith.constant 2 : index
    %c0_19 = arith.constant 0 : index
    %75 = vector.load %arg13[%c2, %c0_19] : memref<16x128xf32, #tpu.memory_space<vmem>>, vector<2x128xf32>
    tpu.vector_store %arg13[%c2, %c0_19], %74 {strides = array<i32>} : memref<16x128xf32, #tpu.memory_space<vmem>>, vector<2x128xf32>,
    %76 = vector.extract_strided_slice %0 {offsets = [0, 2, 0], sizes = [2, 1, 1], strides = [1, 1, 1]} : vector<2x8x1xf32> to vector<2x1x1xf32>
    %77 = vector.shape_cast %76 : vector<2x1x1xf32> to vector<2x1xf32>
    %78 = vector.broadcast %77 : vector<2x1xf32> to vector<2x512xf32>
    %79 = vector.broadcast %1 : vector<1x512xf32> to vector<2x512xf32>
    %80 = arith.mulf %78, %79 : vector<2x512xf32>
    %81 = vector.broadcast %2 : vector<1x512xf32> to vector<2x512xf32>
    %82 = arith.addf %80, %81 : vector<2x512xf32>
    %cst_20 = arith.constant dense<0.000000e+00> : vector<2x512xf32>
    %83 = tpu.matmul %74, %3, %cst_20 {dimension_numbers = #tpu.dot_dimension_numbers<[1], [0], [0], [1], [0, 0, 1, 1], [], []>} : vector<2x128xf32>, vector<128x512xf32>, vector<2x512xf32> -> vector<2x512xf32>
    %84 = arith.addf %82, %83 : vector<2x512xf32>
    %85 = vector.extract_strided_slice %84 {offsets = [0, 0], sizes = [2, 128], strides = [1, 1]} : vector<2x512xf32> to vector<2x128xf32>
    %86 = arith.negf %85 : vector<2x128xf32>
    %87 = math.exp %86 : vector<2x128xf32>
    %cst_21 = arith.constant 1.000000e+00 : f32
    %88 = vector.broadcast %cst_21 : f32 to vector<2x128xf32>
    %89 = arith.addf %88, %87 : vector<2x128xf32>
    %90 = arith.divf %88, %89 : vector<2x128xf32>
    %91 = vector.extract_strided_slice %84 {offsets = [0, 128], sizes = [2, 128], strides = [1, 1]} : vector<2x512xf32> to vector<2x128xf32>
    %92 = arith.negf %91 : vector<2x128xf32>
    %93 = math.exp %92 : vector<2x128xf32>
    %cst_22 = arith.constant 1.000000e+00 : f32
    %94 = vector.broadcast %cst_22 : f32 to vector<2x128xf32>
    %95 = arith.addf %94, %93 : vector<2x128xf32>
    %96 = arith.divf %94, %95 : vector<2x128xf32>
    %97 = vector.extract_strided_slice %84 {offsets = [0, 256], sizes = [2, 128], strides = [1, 1]} : vector<2x512xf32> to vector<2x128xf32>
    %98 = math.tanh %97 : vector<2x128xf32>
    %99 = vector.extract_strided_slice %84 {offsets = [0, 384], sizes = [2, 128], strides = [1, 1]} : vector<2x512xf32> to vector<2x128xf32>
    %100 = arith.negf %99 : vector<2x128xf32>
    %101 = math.exp %100 : vector<2x128xf32>
    %cst_23 = arith.constant 1.000000e+00 : f32
    %102 = vector.broadcast %cst_23 : f32 to vector<2x128xf32>
    %103 = arith.addf %102, %101 : vector<2x128xf32>
    %104 = arith.divf %102, %103 : vector<2x128xf32>
    %105 = arith.mulf %96, %72 : vector<2x128xf32>
    %106 = arith.mulf %90, %98 : vector<2x128xf32>
    %107 = arith.addf %105, %106 : vector<2x128xf32>
    %108 = math.tanh %107 : vector<2x128xf32>
    %109 = arith.mulf %104, %108 : vector<2x128xf32>
    %c4 = arith.constant 4 : index
    %c0_24 = arith.constant 0 : index
    %110 = vector.load %arg13[%c4, %c0_24] : memref<16x128xf32, #tpu.memory_space<vmem>>, vector<2x128xf32>
    tpu.vector_store %arg13[%c4, %c0_24], %109 {strides = array<i32>} : memref<16x128xf32, #tpu.memory_space<vmem>>, vector<2x128xf32>,
    %111 = vector.extract_strided_slice %0 {offsets = [0, 3, 0], sizes = [2, 1, 1], strides = [1, 1, 1]} : vector<2x8x1xf32> to vector<2x1x1xf32>
    %112 = vector.shape_cast %111 : vector<2x1x1xf32> to vector<2x1xf32>
    %113 = vector.broadcast %112 : vector<2x1xf32> to vector<2x512xf32>
    %114 = vector.broadcast %1 : vector<1x512xf32> to vector<2x512xf32>
    %115 = arith.mulf %113, %114 : vector<2x512xf32>
    %116 = vector.broadcast %2 : vector<1x512xf32> to vector<2x512xf32>
    %117 = arith.addf %115, %116 : vector<2x512xf32>
    %cst_25 = arith.constant dense<0.000000e+00> : vector<2x512xf32>
    %118 = tpu.matmul %109, %3, %cst_25 {dimension_numbers = #tpu.dot_dimension_numbers<[1], [0], [0], [1], [0, 0, 1, 1], [], []>} : vector<2x128xf32>, vector<128x512xf32>, vector<2x512xf32> -> vector<2x512xf32>
    %119 = arith.addf %117, %118 : vector<2x512xf32>
    %120 = vector.extract_strided_slice %119 {offsets = [0, 0], sizes = [2, 128], strides = [1, 1]} : vector<2x512xf32> to vector<2x128xf32>
    %121 = arith.negf %120 : vector<2x128xf32>
    %122 = math.exp %121 : vector<2x128xf32>
    %cst_26 = arith.constant 1.000000e+00 : f32
    %123 = vector.broadcast %cst_26 : f32 to vector<2x128xf32>
    %124 = arith.addf %123, %122 : vector<2x128xf32>
    %125 = arith.divf %123, %124 : vector<2x128xf32>
    %126 = vector.extract_strided_slice %119 {offsets = [0, 128], sizes = [2, 128], strides = [1, 1]} : vector<2x512xf32> to vector<2x128xf32>
    %127 = arith.negf %126 : vector<2x128xf32>
    %128 = math.exp %127 : vector<2x128xf32>
    %cst_27 = arith.constant 1.000000e+00 : f32
    %129 = vector.broadcast %cst_27 : f32 to vector<2x128xf32>
    %130 = arith.addf %129, %128 : vector<2x128xf32>
    %131 = arith.divf %129, %130 : vector<2x128xf32>
    %132 = vector.extract_strided_slice %119 {offsets = [0, 256], sizes = [2, 128], strides = [1, 1]} : vector<2x512xf32> to vector<2x128xf32>
    %133 = math.tanh %132 : vector<2x128xf32>
    %134 = vector.extract_strided_slice %119 {offsets = [0, 384], sizes = [2, 128], strides = [1, 1]} : vector<2x512xf32> to vector<2x128xf32>
    %135 = arith.negf %134 : vector<2x128xf32>
    %136 = math.exp %135 : vector<2x128xf32>
    %cst_28 = arith.constant 1.000000e+00 : f32
    %137 = vector.broadcast %cst_28 : f32 to vector<2x128xf32>
    %138 = arith.addf %137, %136 : vector<2x128xf32>
    %139 = arith.divf %137, %138 : vector<2x128xf32>
    %140 = arith.mulf %131, %107 : vector<2x128xf32>
    %141 = arith.mulf %125, %133 : vector<2x128xf32>
    %142 = arith.addf %140, %141 : vector<2x128xf32>
    %143 = math.tanh %142 : vector<2x128xf32>
    %144 = arith.mulf %139, %143 : vector<2x128xf32>
    %c6 = arith.constant 6 : index
    %c0_29 = arith.constant 0 : index
    %145 = vector.load %arg13[%c6, %c0_29] : memref<16x128xf32, #tpu.memory_space<vmem>>, vector<2x128xf32>
    tpu.vector_store %arg13[%c6, %c0_29], %144 {strides = array<i32>} : memref<16x128xf32, #tpu.memory_space<vmem>>, vector<2x128xf32>,
    %146 = vector.extract_strided_slice %0 {offsets = [0, 4, 0], sizes = [2, 1, 1], strides = [1, 1, 1]} : vector<2x8x1xf32> to vector<2x1x1xf32>
    %147 = vector.shape_cast %146 : vector<2x1x1xf32> to vector<2x1xf32>
    %148 = vector.broadcast %147 : vector<2x1xf32> to vector<2x512xf32>
    %149 = vector.broadcast %1 : vector<1x512xf32> to vector<2x512xf32>
    %150 = arith.mulf %148, %149 : vector<2x512xf32>
    %151 = vector.broadcast %2 : vector<1x512xf32> to vector<2x512xf32>
    %152 = arith.addf %150, %151 : vector<2x512xf32>
    %cst_30 = arith.constant dense<0.000000e+00> : vector<2x512xf32>
    %153 = tpu.matmul %144, %3, %cst_30 {dimension_numbers = #tpu.dot_dimension_numbers<[1], [0], [0], [1], [0, 0, 1, 1], [], []>} : vector<2x128xf32>, vector<128x512xf32>, vector<2x512xf32> -> vector<2x512xf32>
    %154 = arith.addf %152, %153 : vector<2x512xf32>
    %155 = vector.extract_strided_slice %154 {offsets = [0, 0], sizes = [2, 128], strides = [1, 1]} : vector<2x512xf32> to vector<2x128xf32>
    %156 = arith.negf %155 : vector<2x128xf32>
    %157 = math.exp %156 : vector<2x128xf32>
    %cst_31 = arith.constant 1.000000e+00 : f32
    %158 = vector.broadcast %cst_31 : f32 to vector<2x128xf32>
    %159 = arith.addf %158, %157 : vector<2x128xf32>
    %160 = arith.divf %158, %159 : vector<2x128xf32>
    %161 = vector.extract_strided_slice %154 {offsets = [0, 128], sizes = [2, 128], strides = [1, 1]} : vector<2x512xf32> to vector<2x128xf32>
    %162 = arith.negf %161 : vector<2x128xf32>
    %163 = math.exp %162 : vector<2x128xf32>
    %cst_32 = arith.constant 1.000000e+00 : f32
    %164 = vector.broadcast %cst_32 : f32 to vector<2x128xf32>
    %165 = arith.addf %164, %163 : vector<2x128xf32>
    %166 = arith.divf %164, %165 : vector<2x128xf32>
    %167 = vector.extract_strided_slice %154 {offsets = [0, 256], sizes = [2, 128], strides = [1, 1]} : vector<2x512xf32> to vector<2x128xf32>
    %168 = math.tanh %167 : vector<2x128xf32>
    %169 = vector.extract_strided_slice %154 {offsets = [0, 384], sizes = [2, 128], strides = [1, 1]} : vector<2x512xf32> to vector<2x128xf32>
    %170 = arith.negf %169 : vector<2x128xf32>
    %171 = math.exp %170 : vector<2x128xf32>
    %cst_33 = arith.constant 1.000000e+00 : f32
    %172 = vector.broadcast %cst_33 : f32 to vector<2x128xf32>
    %173 = arith.addf %172, %171 : vector<2x128xf32>
    %174 = arith.divf %172, %173 : vector<2x128xf32>
    %175 = arith.mulf %166, %142 : vector<2x128xf32>
    %176 = arith.mulf %160, %168 : vector<2x128xf32>
    %177 = arith.addf %175, %176 : vector<2x128xf32>
    %178 = math.tanh %177 : vector<2x128xf32>
    %179 = arith.mulf %174, %178 : vector<2x128xf32>
    %c8 = arith.constant 8 : index
    %c0_34 = arith.constant 0 : index
    %180 = vector.load %arg13[%c8, %c0_34] : memref<16x128xf32, #tpu.memory_space<vmem>>, vector<2x128xf32>
    tpu.vector_store %arg13[%c8, %c0_34], %179 {strides = array<i32>} : memref<16x128xf32, #tpu.memory_space<vmem>>, vector<2x128xf32>,
    %181 = vector.extract_strided_slice %0 {offsets = [0, 5, 0], sizes = [2, 1, 1], strides = [1, 1, 1]} : vector<2x8x1xf32> to vector<2x1x1xf32>
    %182 = vector.shape_cast %181 : vector<2x1x1xf32> to vector<2x1xf32>
    %183 = vector.broadcast %182 : vector<2x1xf32> to vector<2x512xf32>
    %184 = vector.broadcast %1 : vector<1x512xf32> to vector<2x512xf32>
    %185 = arith.mulf %183, %184 : vector<2x512xf32>
    %186 = vector.broadcast %2 : vector<1x512xf32> to vector<2x512xf32>
    %187 = arith.addf %185, %186 : vector<2x512xf32>
    %cst_35 = arith.constant dense<0.000000e+00> : vector<2x512xf32>
    %188 = tpu.matmul %179, %3, %cst_35 {dimension_numbers = #tpu.dot_dimension_numbers<[1], [0], [0], [1], [0, 0, 1, 1], [], []>} : vector<2x128xf32>, vector<128x512xf32>, vector<2x512xf32> -> vector<2x512xf32>
    %189 = arith.addf %187, %188 : vector<2x512xf32>
    %190 = vector.extract_strided_slice %189 {offsets = [0, 0], sizes = [2, 128], strides = [1, 1]} : vector<2x512xf32> to vector<2x128xf32>
    %191 = arith.negf %190 : vector<2x128xf32>
    %192 = math.exp %191 : vector<2x128xf32>
    %cst_36 = arith.constant 1.000000e+00 : f32
    %193 = vector.broadcast %cst_36 : f32 to vector<2x128xf32>
    %194 = arith.addf %193, %192 : vector<2x128xf32>
    %195 = arith.divf %193, %194 : vector<2x128xf32>
    %196 = vector.extract_strided_slice %189 {offsets = [0, 128], sizes = [2, 128], strides = [1, 1]} : vector<2x512xf32> to vector<2x128xf32>
    %197 = arith.negf %196 : vector<2x128xf32>
    %198 = math.exp %197 : vector<2x128xf32>
    %cst_37 = arith.constant 1.000000e+00 : f32
    %199 = vector.broadcast %cst_37 : f32 to vector<2x128xf32>
    %200 = arith.addf %199, %198 : vector<2x128xf32>
    %201 = arith.divf %199, %200 : vector<2x128xf32>
    %202 = vector.extract_strided_slice %189 {offsets = [0, 256], sizes = [2, 128], strides = [1, 1]} : vector<2x512xf32> to vector<2x128xf32>
    %203 = math.tanh %202 : vector<2x128xf32>
    %204 = vector.extract_strided_slice %189 {offsets = [0, 384], sizes = [2, 128], strides = [1, 1]} : vector<2x512xf32> to vector<2x128xf32>
    %205 = arith.negf %204 : vector<2x128xf32>
    %206 = math.exp %205 : vector<2x128xf32>
    %cst_38 = arith.constant 1.000000e+00 : f32
    %207 = vector.broadcast %cst_38 : f32 to vector<2x128xf32>
    %208 = arith.addf %207, %206 : vector<2x128xf32>
    %209 = arith.divf %207, %208 : vector<2x128xf32>
    %210 = arith.mulf %201, %177 : vector<2x128xf32>
    %211 = arith.mulf %195, %203 : vector<2x128xf32>
    %212 = arith.addf %210, %211 : vector<2x128xf32>
    %213 = math.tanh %212 : vector<2x128xf32>
    %214 = arith.mulf %209, %213 : vector<2x128xf32>
    %c10 = arith.constant 10 : index
    %c0_39 = arith.constant 0 : index
    %215 = vector.load %arg13[%c10, %c0_39] : memref<16x128xf32, #tpu.memory_space<vmem>>, vector<2x128xf32>
    tpu.vector_store %arg13[%c10, %c0_39], %214 {strides = array<i32>} : memref<16x128xf32, #tpu.memory_space<vmem>>, vector<2x128xf32>,
    %216 = vector.extract_strided_slice %0 {offsets = [0, 6, 0], sizes = [2, 1, 1], strides = [1, 1, 1]} : vector<2x8x1xf32> to vector<2x1x1xf32>
    %217 = vector.shape_cast %216 : vector<2x1x1xf32> to vector<2x1xf32>
    %218 = vector.broadcast %217 : vector<2x1xf32> to vector<2x512xf32>
    %219 = vector.broadcast %1 : vector<1x512xf32> to vector<2x512xf32>
    %220 = arith.mulf %218, %219 : vector<2x512xf32>
    %221 = vector.broadcast %2 : vector<1x512xf32> to vector<2x512xf32>
    %222 = arith.addf %220, %221 : vector<2x512xf32>
    %cst_40 = arith.constant dense<0.000000e+00> : vector<2x512xf32>
    %223 = tpu.matmul %214, %3, %cst_40 {dimension_numbers = #tpu.dot_dimension_numbers<[1], [0], [0], [1], [0, 0, 1, 1], [], []>} : vector<2x128xf32>, vector<128x512xf32>, vector<2x512xf32> -> vector<2x512xf32>
    %224 = arith.addf %222, %223 : vector<2x512xf32>
    %225 = vector.extract_strided_slice %224 {offsets = [0, 0], sizes = [2, 128], strides = [1, 1]} : vector<2x512xf32> to vector<2x128xf32>
    %226 = arith.negf %225 : vector<2x128xf32>
    %227 = math.exp %226 : vector<2x128xf32>
    %cst_41 = arith.constant 1.000000e+00 : f32
    %228 = vector.broadcast %cst_41 : f32 to vector<2x128xf32>
    %229 = arith.addf %228, %227 : vector<2x128xf32>
    %230 = arith.divf %228, %229 : vector<2x128xf32>
    %231 = vector.extract_strided_slice %224 {offsets = [0, 128], sizes = [2, 128], strides = [1, 1]} : vector<2x512xf32> to vector<2x128xf32>
    %232 = arith.negf %231 : vector<2x128xf32>
    %233 = math.exp %232 : vector<2x128xf32>
    %cst_42 = arith.constant 1.000000e+00 : f32
    %234 = vector.broadcast %cst_42 : f32 to vector<2x128xf32>
    %235 = arith.addf %234, %233 : vector<2x128xf32>
    %236 = arith.divf %234, %235 : vector<2x128xf32>
    %237 = vector.extract_strided_slice %224 {offsets = [0, 256], sizes = [2, 128], strides = [1, 1]} : vector<2x512xf32> to vector<2x128xf32>
    %238 = math.tanh %237 : vector<2x128xf32>
    %239 = vector.extract_strided_slice %224 {offsets = [0, 384], sizes = [2, 128], strides = [1, 1]} : vector<2x512xf32> to vector<2x128xf32>
    %240 = arith.negf %239 : vector<2x128xf32>
    %241 = math.exp %240 : vector<2x128xf32>
    %cst_43 = arith.constant 1.000000e+00 : f32
    %242 = vector.broadcast %cst_43 : f32 to vector<2x128xf32>
    %243 = arith.addf %242, %241 : vector<2x128xf32>
    %244 = arith.divf %242, %243 : vector<2x128xf32>
    %245 = arith.mulf %236, %212 : vector<2x128xf32>
    %246 = arith.mulf %230, %238 : vector<2x128xf32>
    %247 = arith.addf %245, %246 : vector<2x128xf32>
    %248 = math.tanh %247 : vector<2x128xf32>
    %249 = arith.mulf %244, %248 : vector<2x128xf32>
    %c12 = arith.constant 12 : index
    %c0_44 = arith.constant 0 : index
    %250 = vector.load %arg13[%c12, %c0_44] : memref<16x128xf32, #tpu.memory_space<vmem>>, vector<2x128xf32>
    tpu.vector_store %arg13[%c12, %c0_44], %249 {strides = array<i32>} : memref<16x128xf32, #tpu.memory_space<vmem>>, vector<2x128xf32>,
    %251 = vector.extract_strided_slice %0 {offsets = [0, 7, 0], sizes = [2, 1, 1], strides = [1, 1, 1]} : vector<2x8x1xf32> to vector<2x1x1xf32>
    %252 = vector.shape_cast %251 : vector<2x1x1xf32> to vector<2x1xf32>
    %253 = vector.broadcast %252 : vector<2x1xf32> to vector<2x512xf32>
    %254 = vector.broadcast %1 : vector<1x512xf32> to vector<2x512xf32>
    %255 = arith.mulf %253, %254 : vector<2x512xf32>
    %256 = vector.broadcast %2 : vector<1x512xf32> to vector<2x512xf32>
    %257 = arith.addf %255, %256 : vector<2x512xf32>
    %cst_45 = arith.constant dense<0.000000e+00> : vector<2x512xf32>
    %258 = tpu.matmul %249, %3, %cst_45 {dimension_numbers = #tpu.dot_dimension_numbers<[1], [0], [0], [1], [0, 0, 1, 1], [], []>} : vector<2x128xf32>, vector<128x512xf32>, vector<2x512xf32> -> vector<2x512xf32>
    %259 = arith.addf %257, %258 : vector<2x512xf32>
    %260 = vector.extract_strided_slice %259 {offsets = [0, 0], sizes = [2, 128], strides = [1, 1]} : vector<2x512xf32> to vector<2x128xf32>
    %261 = arith.negf %260 : vector<2x128xf32>
    %262 = math.exp %261 : vector<2x128xf32>
    %cst_46 = arith.constant 1.000000e+00 : f32
    %263 = vector.broadcast %cst_46 : f32 to vector<2x128xf32>
    %264 = arith.addf %263, %262 : vector<2x128xf32>
    %265 = arith.divf %263, %264 : vector<2x128xf32>
    %266 = vector.extract_strided_slice %259 {offsets = [0, 128], sizes = [2, 128], strides = [1, 1]} : vector<2x512xf32> to vector<2x128xf32>
    %267 = arith.negf %266 : vector<2x128xf32>
    %268 = math.exp %267 : vector<2x128xf32>
    %cst_47 = arith.constant 1.000000e+00 : f32
    %269 = vector.broadcast %cst_47 : f32 to vector<2x128xf32>
    %270 = arith.addf %269, %268 : vector<2x128xf32>
    %271 = arith.divf %269, %270 : vector<2x128xf32>
    %272 = vector.extract_strided_slice %259 {offsets = [0, 256], sizes = [2, 128], strides = [1, 1]} : vector<2x512xf32> to vector<2x128xf32>
    %273 = math.tanh %272 : vector<2x128xf32>
    %274 = vector.extract_strided_slice %259 {offsets = [0, 384], sizes = [2, 128], strides = [1, 1]} : vector<2x512xf32> to vector<2x128xf32>
    %275 = arith.negf %274 : vector<2x128xf32>
    %276 = math.exp %275 : vector<2x128xf32>
    %cst_48 = arith.constant 1.000000e+00 : f32
    %277 = vector.broadcast %cst_48 : f32 to vector<2x128xf32>
    %278 = arith.addf %277, %276 : vector<2x128xf32>
    %279 = arith.divf %277, %278 : vector<2x128xf32>
    %280 = arith.mulf %271, %247 : vector<2x128xf32>
    %281 = arith.mulf %265, %273 : vector<2x128xf32>
    %282 = arith.addf %280, %281 : vector<2x128xf32>
    %283 = math.tanh %282 : vector<2x128xf32>
    %284 = arith.mulf %279, %283 : vector<2x128xf32>
    %c14 = arith.constant 14 : index
    %c0_49 = arith.constant 0 : index
    %285 = vector.load %arg13[%c14, %c0_49] : memref<16x128xf32, #tpu.memory_space<vmem>>, vector<2x128xf32>
    tpu.vector_store %arg13[%c14, %c0_49], %284 {strides = array<i32>} : memref<16x128xf32, #tpu.memory_space<vmem>>, vector<2x128xf32>,
    %c0_50 = arith.constant 0 : index
    %c0_51 = arith.constant 0 : index
    %286 = vector.load %arg13[%c0_50, %c0_51] : memref<16x128xf32, #tpu.memory_space<vmem>>, vector<16x128xf32>
    %c0_52 = arith.constant 0 : index
    %c0_53 = arith.constant 0 : index
    %287 = vector.load %arg4[%c0_52, %c0_53] : memref<128x512xf32, #tpu.memory_space<vmem>>, vector<128x512xf32>
    %cst_54 = arith.constant dense<0.000000e+00> : vector<16x512xf32>
    %288 = tpu.matmul %286, %287, %cst_54 {dimension_numbers = #tpu.dot_dimension_numbers<[1], [0], [0], [1], [0, 0, 1, 1], [], []>} : vector<16x128xf32>, vector<128x512xf32>, vector<16x512xf32> -> vector<16x512xf32>
    %c0_55 = arith.constant 0 : index
    %c0_56 = arith.constant 0 : index
    %289 = vector.load %arg6[%c0_55, %c0_56] : memref<1x512xf32, #tpu.memory_space<vmem>>, vector<1x512xf32>
    %290 = vector.broadcast %289 : vector<1x512xf32> to vector<16x512xf32>
    %291 = arith.addf %288, %290 : vector<16x512xf32>
    %c0_57 = arith.constant 0 : index
    %c0_58 = arith.constant 0 : index
    %292 = vector.load %arg5[%c0_57, %c0_58] : memref<128x512xf32, #tpu.memory_space<vmem>>, vector<128x512xf32>
    %cst_59 = arith.constant 0.000000e+00 : f32
    %293 = vector.broadcast %cst_59 : f32 to vector<2x128xf32>
    %cst_60 = arith.constant 0.000000e+00 : f32
    %294 = vector.broadcast %cst_60 : f32 to vector<2x128xf32>
    %295 = vector.extract_strided_slice %291 {offsets = [0, 0], sizes = [2, 512], strides = [1, 1]} : vector<16x512xf32> to vector<2x512xf32>
    %cst_61 = arith.constant dense<0.000000e+00> : vector<2x512xf32>
    %296 = tpu.matmul %293, %292, %cst_61 {dimension_numbers = #tpu.dot_dimension_numbers<[1], [0], [0], [1], [0, 0, 1, 1], [], []>} : vector<2x128xf32>, vector<128x512xf32>, vector<2x512xf32> -> vector<2x512xf32>
    %297 = arith.addf %295, %296 : vector<2x512xf32>
    %298 = vector.extract_strided_slice %297 {offsets = [0, 0], sizes = [2, 128], strides = [1, 1]} : vector<2x512xf32> to vector<2x128xf32>
    %299 = arith.negf %298 : vector<2x128xf32>
    %300 = math.exp %299 : vector<2x128xf32>
    %cst_62 = arith.constant 1.000000e+00 : f32
    %301 = vector.broadcast %cst_62 : f32 to vector<2x128xf32>
    %302 = arith.addf %301, %300 : vector<2x128xf32>
    %303 = arith.divf %301, %302 : vector<2x128xf32>
    %304 = vector.extract_strided_slice %297 {offsets = [0, 128], sizes = [2, 128], strides = [1, 1]} : vector<2x512xf32> to vector<2x128xf32>
    %305 = arith.negf %304 : vector<2x128xf32>
    %306 = math.exp %305 : vector<2x128xf32>
    %cst_63 = arith.constant 1.000000e+00 : f32
    %307 = vector.broadcast %cst_63 : f32 to vector<2x128xf32>
    %308 = arith.addf %307, %306 : vector<2x128xf32>
    %309 = arith.divf %307, %308 : vector<2x128xf32>
    %310 = vector.extract_strided_slice %297 {offsets = [0, 256], sizes = [2, 128], strides = [1, 1]} : vector<2x512xf32> to vector<2x128xf32>
    %311 = math.tanh %310 : vector<2x128xf32>
    %312 = vector.extract_strided_slice %297 {offsets = [0, 384], sizes = [2, 128], strides = [1, 1]} : vector<2x512xf32> to vector<2x128xf32>
    %313 = arith.negf %312 : vector<2x128xf32>
    %314 = math.exp %313 : vector<2x128xf32>
    %cst_64 = arith.constant 1.000000e+00 : f32
    %315 = vector.broadcast %cst_64 : f32 to vector<2x128xf32>
    %316 = arith.addf %315, %314 : vector<2x128xf32>
    %317 = arith.divf %315, %316 : vector<2x128xf32>
    %318 = arith.mulf %309, %294 : vector<2x128xf32>
    %319 = arith.mulf %303, %311 : vector<2x128xf32>
    %320 = arith.addf %318, %319 : vector<2x128xf32>
    %321 = math.tanh %320 : vector<2x128xf32>
    %322 = arith.mulf %317, %321 : vector<2x128xf32>
    %c0_65 = arith.constant 0 : index
    %c0_66 = arith.constant 0 : index
    %323 = vector.load %arg13[%c0_65, %c0_66] : memref<16x128xf32, #tpu.memory_space<vmem>>, vector<2x128xf32>
    tpu.vector_store %arg13[%c0_65, %c0_66], %322 {strides = array<i32>} : memref<16x128xf32, #tpu.memory_space<vmem>>, vector<2x128xf32>,
    %324 = vector.extract_strided_slice %291 {offsets = [2, 0], sizes = [2, 512], strides = [1, 1]} : vector<16x512xf32> to vector<2x512xf32>
    %cst_67 = arith.constant dense<0.000000e+00> : vector<2x512xf32>
    %325 = tpu.matmul %322, %292, %cst_67 {dimension_numbers = #tpu.dot_dimension_numbers<[1], [0], [0], [1], [0, 0, 1, 1], [], []>} : vector<2x128xf32>, vector<128x512xf32>, vector<2x512xf32> -> vector<2x512xf32>
    %326 = arith.addf %324, %325 : vector<2x512xf32>
    %327 = vector.extract_strided_slice %326 {offsets = [0, 0], sizes = [2, 128], strides = [1, 1]} : vector<2x512xf32> to vector<2x128xf32>
    %328 = arith.negf %327 : vector<2x128xf32>
    %329 = math.exp %328 : vector<2x128xf32>
    %cst_68 = arith.constant 1.000000e+00 : f32
    %330 = vector.broadcast %cst_68 : f32 to vector<2x128xf32>
    %331 = arith.addf %330, %329 : vector<2x128xf32>
    %332 = arith.divf %330, %331 : vector<2x128xf32>
    %333 = vector.extract_strided_slice %326 {offsets = [0, 128], sizes = [2, 128], strides = [1, 1]} : vector<2x512xf32> to vector<2x128xf32>
    %334 = arith.negf %333 : vector<2x128xf32>
    %335 = math.exp %334 : vector<2x128xf32>
    %cst_69 = arith.constant 1.000000e+00 : f32
    %336 = vector.broadcast %cst_69 : f32 to vector<2x128xf32>
    %337 = arith.addf %336, %335 : vector<2x128xf32>
    %338 = arith.divf %336, %337 : vector<2x128xf32>
    %339 = vector.extract_strided_slice %326 {offsets = [0, 256], sizes = [2, 128], strides = [1, 1]} : vector<2x512xf32> to vector<2x128xf32>
    %340 = math.tanh %339 : vector<2x128xf32>
    %341 = vector.extract_strided_slice %326 {offsets = [0, 384], sizes = [2, 128], strides = [1, 1]} : vector<2x512xf32> to vector<2x128xf32>
    %342 = arith.negf %341 : vector<2x128xf32>
    %343 = math.exp %342 : vector<2x128xf32>
    %cst_70 = arith.constant 1.000000e+00 : f32
    %344 = vector.broadcast %cst_70 : f32 to vector<2x128xf32>
    %345 = arith.addf %344, %343 : vector<2x128xf32>
    %346 = arith.divf %344, %345 : vector<2x128xf32>
    %347 = arith.mulf %338, %320 : vector<2x128xf32>
    %348 = arith.mulf %332, %340 : vector<2x128xf32>
    %349 = arith.addf %347, %348 : vector<2x128xf32>
    %350 = math.tanh %349 : vector<2x128xf32>
    %351 = arith.mulf %346, %350 : vector<2x128xf32>
    %c2_71 = arith.constant 2 : index
    %c0_72 = arith.constant 0 : index
    %352 = vector.load %arg13[%c2_71, %c0_72] : memref<16x128xf32, #tpu.memory_space<vmem>>, vector<2x128xf32>
    tpu.vector_store %arg13[%c2_71, %c0_72], %351 {strides = array<i32>} : memref<16x128xf32, #tpu.memory_space<vmem>>, vector<2x128xf32>,
    %353 = vector.extract_strided_slice %291 {offsets = [4, 0], sizes = [2, 512], strides = [1, 1]} : vector<16x512xf32> to vector<2x512xf32>
    %cst_73 = arith.constant dense<0.000000e+00> : vector<2x512xf32>
    %354 = tpu.matmul %351, %292, %cst_73 {dimension_numbers = #tpu.dot_dimension_numbers<[1], [0], [0], [1], [0, 0, 1, 1], [], []>} : vector<2x128xf32>, vector<128x512xf32>, vector<2x512xf32> -> vector<2x512xf32>
    %355 = arith.addf %353, %354 : vector<2x512xf32>
    %356 = vector.extract_strided_slice %355 {offsets = [0, 0], sizes = [2, 128], strides = [1, 1]} : vector<2x512xf32> to vector<2x128xf32>
    %357 = arith.negf %356 : vector<2x128xf32>
    %358 = math.exp %357 : vector<2x128xf32>
    %cst_74 = arith.constant 1.000000e+00 : f32
    %359 = vector.broadcast %cst_74 : f32 to vector<2x128xf32>
    %360 = arith.addf %359, %358 : vector<2x128xf32>
    %361 = arith.divf %359, %360 : vector<2x128xf32>
    %362 = vector.extract_strided_slice %355 {offsets = [0, 128], sizes = [2, 128], strides = [1, 1]} : vector<2x512xf32> to vector<2x128xf32>
    %363 = arith.negf %362 : vector<2x128xf32>
    %364 = math.exp %363 : vector<2x128xf32>
    %cst_75 = arith.constant 1.000000e+00 : f32
    %365 = vector.broadcast %cst_75 : f32 to vector<2x128xf32>
    %366 = arith.addf %365, %364 : vector<2x128xf32>
    %367 = arith.divf %365, %366 : vector<2x128xf32>
    %368 = vector.extract_strided_slice %355 {offsets = [0, 256], sizes = [2, 128], strides = [1, 1]} : vector<2x512xf32> to vector<2x128xf32>
    %369 = math.tanh %368 : vector<2x128xf32>
    %370 = vector.extract_strided_slice %355 {offsets = [0, 384], sizes = [2, 128], strides = [1, 1]} : vector<2x512xf32> to vector<2x128xf32>
    %371 = arith.negf %370 : vector<2x128xf32>
    %372 = math.exp %371 : vector<2x128xf32>
    %cst_76 = arith.constant 1.000000e+00 : f32
    %373 = vector.broadcast %cst_76 : f32 to vector<2x128xf32>
    %374 = arith.addf %373, %372 : vector<2x128xf32>
    %375 = arith.divf %373, %374 : vector<2x128xf32>
    %376 = arith.mulf %367, %349 : vector<2x128xf32>
    %377 = arith.mulf %361, %369 : vector<2x128xf32>
    %378 = arith.addf %376, %377 : vector<2x128xf32>
    %379 = math.tanh %378 : vector<2x128xf32>
    %380 = arith.mulf %375, %379 : vector<2x128xf32>
    %c4_77 = arith.constant 4 : index
    %c0_78 = arith.constant 0 : index
    %381 = vector.load %arg13[%c4_77, %c0_78] : memref<16x128xf32, #tpu.memory_space<vmem>>, vector<2x128xf32>
    tpu.vector_store %arg13[%c4_77, %c0_78], %380 {strides = array<i32>} : memref<16x128xf32, #tpu.memory_space<vmem>>, vector<2x128xf32>,
    %382 = vector.extract_strided_slice %291 {offsets = [6, 0], sizes = [2, 512], strides = [1, 1]} : vector<16x512xf32> to vector<2x512xf32>
    %cst_79 = arith.constant dense<0.000000e+00> : vector<2x512xf32>
    %383 = tpu.matmul %380, %292, %cst_79 {dimension_numbers = #tpu.dot_dimension_numbers<[1], [0], [0], [1], [0, 0, 1, 1], [], []>} : vector<2x128xf32>, vector<128x512xf32>, vector<2x512xf32> -> vector<2x512xf32>
    %384 = arith.addf %382, %383 : vector<2x512xf32>
    %385 = vector.extract_strided_slice %384 {offsets = [0, 0], sizes = [2, 128], strides = [1, 1]} : vector<2x512xf32> to vector<2x128xf32>
    %386 = arith.negf %385 : vector<2x128xf32>
    %387 = math.exp %386 : vector<2x128xf32>
    %cst_80 = arith.constant 1.000000e+00 : f32
    %388 = vector.broadcast %cst_80 : f32 to vector<2x128xf32>
    %389 = arith.addf %388, %387 : vector<2x128xf32>
    %390 = arith.divf %388, %389 : vector<2x128xf32>
    %391 = vector.extract_strided_slice %384 {offsets = [0, 128], sizes = [2, 128], strides = [1, 1]} : vector<2x512xf32> to vector<2x128xf32>
    %392 = arith.negf %391 : vector<2x128xf32>
    %393 = math.exp %392 : vector<2x128xf32>
    %cst_81 = arith.constant 1.000000e+00 : f32
    %394 = vector.broadcast %cst_81 : f32 to vector<2x128xf32>
    %395 = arith.addf %394, %393 : vector<2x128xf32>
    %396 = arith.divf %394, %395 : vector<2x128xf32>
    %397 = vector.extract_strided_slice %384 {offsets = [0, 256], sizes = [2, 128], strides = [1, 1]} : vector<2x512xf32> to vector<2x128xf32>
    %398 = math.tanh %397 : vector<2x128xf32>
    %399 = vector.extract_strided_slice %384 {offsets = [0, 384], sizes = [2, 128], strides = [1, 1]} : vector<2x512xf32> to vector<2x128xf32>
    %400 = arith.negf %399 : vector<2x128xf32>
    %401 = math.exp %400 : vector<2x128xf32>
    %cst_82 = arith.constant 1.000000e+00 : f32
    %402 = vector.broadcast %cst_82 : f32 to vector<2x128xf32>
    %403 = arith.addf %402, %401 : vector<2x128xf32>
    %404 = arith.divf %402, %403 : vector<2x128xf32>
    %405 = arith.mulf %396, %378 : vector<2x128xf32>
    %406 = arith.mulf %390, %398 : vector<2x128xf32>
    %407 = arith.addf %405, %406 : vector<2x128xf32>
    %408 = math.tanh %407 : vector<2x128xf32>
    %409 = arith.mulf %404, %408 : vector<2x128xf32>
    %c6_83 = arith.constant 6 : index
    %c0_84 = arith.constant 0 : index
    %410 = vector.load %arg13[%c6_83, %c0_84] : memref<16x128xf32, #tpu.memory_space<vmem>>, vector<2x128xf32>
    tpu.vector_store %arg13[%c6_83, %c0_84], %409 {strides = array<i32>} : memref<16x128xf32, #tpu.memory_space<vmem>>, vector<2x128xf32>,
    %411 = vector.extract_strided_slice %291 {offsets = [8, 0], sizes = [2, 512], strides = [1, 1]} : vector<16x512xf32> to vector<2x512xf32>
    %cst_85 = arith.constant dense<0.000000e+00> : vector<2x512xf32>
    %412 = tpu.matmul %409, %292, %cst_85 {dimension_numbers = #tpu.dot_dimension_numbers<[1], [0], [0], [1], [0, 0, 1, 1], [], []>} : vector<2x128xf32>, vector<128x512xf32>, vector<2x512xf32> -> vector<2x512xf32>
    %413 = arith.addf %411, %412 : vector<2x512xf32>
    %414 = vector.extract_strided_slice %413 {offsets = [0, 0], sizes = [2, 128], strides = [1, 1]} : vector<2x512xf32> to vector<2x128xf32>
    %415 = arith.negf %414 : vector<2x128xf32>
    %416 = math.exp %415 : vector<2x128xf32>
    %cst_86 = arith.constant 1.000000e+00 : f32
    %417 = vector.broadcast %cst_86 : f32 to vector<2x128xf32>
    %418 = arith.addf %417, %416 : vector<2x128xf32>
    %419 = arith.divf %417, %418 : vector<2x128xf32>
    %420 = vector.extract_strided_slice %413 {offsets = [0, 128], sizes = [2, 128], strides = [1, 1]} : vector<2x512xf32> to vector<2x128xf32>
    %421 = arith.negf %420 : vector<2x128xf32>
    %422 = math.exp %421 : vector<2x128xf32>
    %cst_87 = arith.constant 1.000000e+00 : f32
    %423 = vector.broadcast %cst_87 : f32 to vector<2x128xf32>
    %424 = arith.addf %423, %422 : vector<2x128xf32>
    %425 = arith.divf %423, %424 : vector<2x128xf32>
    %426 = vector.extract_strided_slice %413 {offsets = [0, 256], sizes = [2, 128], strides = [1, 1]} : vector<2x512xf32> to vector<2x128xf32>
    %427 = math.tanh %426 : vector<2x128xf32>
    %428 = vector.extract_strided_slice %413 {offsets = [0, 384], sizes = [2, 128], strides = [1, 1]} : vector<2x512xf32> to vector<2x128xf32>
    %429 = arith.negf %428 : vector<2x128xf32>
    %430 = math.exp %429 : vector<2x128xf32>
    %cst_88 = arith.constant 1.000000e+00 : f32
    %431 = vector.broadcast %cst_88 : f32 to vector<2x128xf32>
    %432 = arith.addf %431, %430 : vector<2x128xf32>
    %433 = arith.divf %431, %432 : vector<2x128xf32>
    %434 = arith.mulf %425, %407 : vector<2x128xf32>
    %435 = arith.mulf %419, %427 : vector<2x128xf32>
    %436 = arith.addf %434, %435 : vector<2x128xf32>
    %437 = math.tanh %436 : vector<2x128xf32>
    %438 = arith.mulf %433, %437 : vector<2x128xf32>
    %c8_89 = arith.constant 8 : index
    %c0_90 = arith.constant 0 : index
    %439 = vector.load %arg13[%c8_89, %c0_90] : memref<16x128xf32, #tpu.memory_space<vmem>>, vector<2x128xf32>
    tpu.vector_store %arg13[%c8_89, %c0_90], %438 {strides = array<i32>} : memref<16x128xf32, #tpu.memory_space<vmem>>, vector<2x128xf32>,
    %440 = vector.extract_strided_slice %291 {offsets = [10, 0], sizes = [2, 512], strides = [1, 1]} : vector<16x512xf32> to vector<2x512xf32>
    %cst_91 = arith.constant dense<0.000000e+00> : vector<2x512xf32>
    %441 = tpu.matmul %438, %292, %cst_91 {dimension_numbers = #tpu.dot_dimension_numbers<[1], [0], [0], [1], [0, 0, 1, 1], [], []>} : vector<2x128xf32>, vector<128x512xf32>, vector<2x512xf32> -> vector<2x512xf32>
    %442 = arith.addf %440, %441 : vector<2x512xf32>
    %443 = vector.extract_strided_slice %442 {offsets = [0, 0], sizes = [2, 128], strides = [1, 1]} : vector<2x512xf32> to vector<2x128xf32>
    %444 = arith.negf %443 : vector<2x128xf32>
    %445 = math.exp %444 : vector<2x128xf32>
    %cst_92 = arith.constant 1.000000e+00 : f32
    %446 = vector.broadcast %cst_92 : f32 to vector<2x128xf32>
    %447 = arith.addf %446, %445 : vector<2x128xf32>
    %448 = arith.divf %446, %447 : vector<2x128xf32>
    %449 = vector.extract_strided_slice %442 {offsets = [0, 128], sizes = [2, 128], strides = [1, 1]} : vector<2x512xf32> to vector<2x128xf32>
    %450 = arith.negf %449 : vector<2x128xf32>
    %451 = math.exp %450 : vector<2x128xf32>
    %cst_93 = arith.constant 1.000000e+00 : f32
    %452 = vector.broadcast %cst_93 : f32 to vector<2x128xf32>
    %453 = arith.addf %452, %451 : vector<2x128xf32>
    %454 = arith.divf %452, %453 : vector<2x128xf32>
    %455 = vector.extract_strided_slice %442 {offsets = [0, 256], sizes = [2, 128], strides = [1, 1]} : vector<2x512xf32> to vector<2x128xf32>
    %456 = math.tanh %455 : vector<2x128xf32>
    %457 = vector.extract_strided_slice %442 {offsets = [0, 384], sizes = [2, 128], strides = [1, 1]} : vector<2x512xf32> to vector<2x128xf32>
    %458 = arith.negf %457 : vector<2x128xf32>
    %459 = math.exp %458 : vector<2x128xf32>
    %cst_94 = arith.constant 1.000000e+00 : f32
    %460 = vector.broadcast %cst_94 : f32 to vector<2x128xf32>
    %461 = arith.addf %460, %459 : vector<2x128xf32>
    %462 = arith.divf %460, %461 : vector<2x128xf32>
    %463 = arith.mulf %454, %436 : vector<2x128xf32>
    %464 = arith.mulf %448, %456 : vector<2x128xf32>
    %465 = arith.addf %463, %464 : vector<2x128xf32>
    %466 = math.tanh %465 : vector<2x128xf32>
    %467 = arith.mulf %462, %466 : vector<2x128xf32>
    %c10_95 = arith.constant 10 : index
    %c0_96 = arith.constant 0 : index
    %468 = vector.load %arg13[%c10_95, %c0_96] : memref<16x128xf32, #tpu.memory_space<vmem>>, vector<2x128xf32>
    tpu.vector_store %arg13[%c10_95, %c0_96], %467 {strides = array<i32>} : memref<16x128xf32, #tpu.memory_space<vmem>>, vector<2x128xf32>,
    %469 = vector.extract_strided_slice %291 {offsets = [12, 0], sizes = [2, 512], strides = [1, 1]} : vector<16x512xf32> to vector<2x512xf32>
    %cst_97 = arith.constant dense<0.000000e+00> : vector<2x512xf32>
    %470 = tpu.matmul %467, %292, %cst_97 {dimension_numbers = #tpu.dot_dimension_numbers<[1], [0], [0], [1], [0, 0, 1, 1], [], []>} : vector<2x128xf32>, vector<128x512xf32>, vector<2x512xf32> -> vector<2x512xf32>
    %471 = arith.addf %469, %470 : vector<2x512xf32>
    %472 = vector.extract_strided_slice %471 {offsets = [0, 0], sizes = [2, 128], strides = [1, 1]} : vector<2x512xf32> to vector<2x128xf32>
    %473 = arith.negf %472 : vector<2x128xf32>
    %474 = math.exp %473 : vector<2x128xf32>
    %cst_98 = arith.constant 1.000000e+00 : f32
    %475 = vector.broadcast %cst_98 : f32 to vector<2x128xf32>
    %476 = arith.addf %475, %474 : vector<2x128xf32>
    %477 = arith.divf %475, %476 : vector<2x128xf32>
    %478 = vector.extract_strided_slice %471 {offsets = [0, 128], sizes = [2, 128], strides = [1, 1]} : vector<2x512xf32> to vector<2x128xf32>
    %479 = arith.negf %478 : vector<2x128xf32>
    %480 = math.exp %479 : vector<2x128xf32>
    %cst_99 = arith.constant 1.000000e+00 : f32
    %481 = vector.broadcast %cst_99 : f32 to vector<2x128xf32>
    %482 = arith.addf %481, %480 : vector<2x128xf32>
    %483 = arith.divf %481, %482 : vector<2x128xf32>
    %484 = vector.extract_strided_slice %471 {offsets = [0, 256], sizes = [2, 128], strides = [1, 1]} : vector<2x512xf32> to vector<2x128xf32>
    %485 = math.tanh %484 : vector<2x128xf32>
    %486 = vector.extract_strided_slice %471 {offsets = [0, 384], sizes = [2, 128], strides = [1, 1]} : vector<2x512xf32> to vector<2x128xf32>
    %487 = arith.negf %486 : vector<2x128xf32>
    %488 = math.exp %487 : vector<2x128xf32>
    %cst_100 = arith.constant 1.000000e+00 : f32
    %489 = vector.broadcast %cst_100 : f32 to vector<2x128xf32>
    %490 = arith.addf %489, %488 : vector<2x128xf32>
    %491 = arith.divf %489, %490 : vector<2x128xf32>
    %492 = arith.mulf %483, %465 : vector<2x128xf32>
    %493 = arith.mulf %477, %485 : vector<2x128xf32>
    %494 = arith.addf %492, %493 : vector<2x128xf32>
    %495 = math.tanh %494 : vector<2x128xf32>
    %496 = arith.mulf %491, %495 : vector<2x128xf32>
    %c12_101 = arith.constant 12 : index
    %c0_102 = arith.constant 0 : index
    %497 = vector.load %arg13[%c12_101, %c0_102] : memref<16x128xf32, #tpu.memory_space<vmem>>, vector<2x128xf32>
    tpu.vector_store %arg13[%c12_101, %c0_102], %496 {strides = array<i32>} : memref<16x128xf32, #tpu.memory_space<vmem>>, vector<2x128xf32>,
    %498 = vector.extract_strided_slice %291 {offsets = [14, 0], sizes = [2, 512], strides = [1, 1]} : vector<16x512xf32> to vector<2x512xf32>
    %cst_103 = arith.constant dense<0.000000e+00> : vector<2x512xf32>
    %499 = tpu.matmul %496, %292, %cst_103 {dimension_numbers = #tpu.dot_dimension_numbers<[1], [0], [0], [1], [0, 0, 1, 1], [], []>} : vector<2x128xf32>, vector<128x512xf32>, vector<2x512xf32> -> vector<2x512xf32>
    %500 = arith.addf %498, %499 : vector<2x512xf32>
    %501 = vector.extract_strided_slice %500 {offsets = [0, 0], sizes = [2, 128], strides = [1, 1]} : vector<2x512xf32> to vector<2x128xf32>
    %502 = arith.negf %501 : vector<2x128xf32>
    %503 = math.exp %502 : vector<2x128xf32>
    %cst_104 = arith.constant 1.000000e+00 : f32
    %504 = vector.broadcast %cst_104 : f32 to vector<2x128xf32>
    %505 = arith.addf %504, %503 : vector<2x128xf32>
    %506 = arith.divf %504, %505 : vector<2x128xf32>
    %507 = vector.extract_strided_slice %500 {offsets = [0, 128], sizes = [2, 128], strides = [1, 1]} : vector<2x512xf32> to vector<2x128xf32>
    %508 = arith.negf %507 : vector<2x128xf32>
    %509 = math.exp %508 : vector<2x128xf32>
    %cst_105 = arith.constant 1.000000e+00 : f32
    %510 = vector.broadcast %cst_105 : f32 to vector<2x128xf32>
    %511 = arith.addf %510, %509 : vector<2x128xf32>
    %512 = arith.divf %510, %511 : vector<2x128xf32>
    %513 = vector.extract_strided_slice %500 {offsets = [0, 256], sizes = [2, 128], strides = [1, 1]} : vector<2x512xf32> to vector<2x128xf32>
    %514 = math.tanh %513 : vector<2x128xf32>
    %515 = vector.extract_strided_slice %500 {offsets = [0, 384], sizes = [2, 128], strides = [1, 1]} : vector<2x512xf32> to vector<2x128xf32>
    %516 = arith.negf %515 : vector<2x128xf32>
    %517 = math.exp %516 : vector<2x128xf32>
    %cst_106 = arith.constant 1.000000e+00 : f32
    %518 = vector.broadcast %cst_106 : f32 to vector<2x128xf32>
    %519 = arith.addf %518, %517 : vector<2x128xf32>
    %520 = arith.divf %518, %519 : vector<2x128xf32>
    %521 = arith.mulf %512, %494 : vector<2x128xf32>
    %522 = arith.mulf %506, %514 : vector<2x128xf32>
    %523 = arith.addf %521, %522 : vector<2x128xf32>
    %524 = math.tanh %523 : vector<2x128xf32>
    %525 = arith.mulf %520, %524 : vector<2x128xf32>
    %c14_107 = arith.constant 14 : index
    %c0_108 = arith.constant 0 : index
    %526 = vector.load %arg13[%c14_107, %c0_108] : memref<16x128xf32, #tpu.memory_space<vmem>>, vector<2x128xf32>
    tpu.vector_store %arg13[%c14_107, %c0_108], %525 {strides = array<i32>} : memref<16x128xf32, #tpu.memory_space<vmem>>, vector<2x128xf32>,
    %c0_109 = arith.constant 0 : index
    %c0_110 = arith.constant 0 : index
    %527 = vector.load %arg13[%c0_109, %c0_110] : memref<16x128xf32, #tpu.memory_space<vmem>>, vector<16x128xf32>
    %c0_111 = arith.constant 0 : index
    %c0_112 = arith.constant 0 : index
    %528 = vector.load %arg7[%c0_111, %c0_112] : memref<128x512xf32, #tpu.memory_space<vmem>>, vector<128x512xf32>
    %cst_113 = arith.constant dense<0.000000e+00> : vector<16x512xf32>
    %529 = tpu.matmul %527, %528, %cst_113 {dimension_numbers = #tpu.dot_dimension_numbers<[1], [0], [0], [1], [0, 0, 1, 1], [], []>} : vector<16x128xf32>, vector<128x512xf32>, vector<16x512xf32> -> vector<16x512xf32>
    %c0_114 = arith.constant 0 : index
    %c0_115 = arith.constant 0 : index
    %530 = vector.load %arg9[%c0_114, %c0_115] : memref<1x512xf32, #tpu.memory_space<vmem>>, vector<1x512xf32>
    %531 = vector.broadcast %530 : vector<1x512xf32> to vector<16x512xf32>
    %532 = arith.addf %529, %531 : vector<16x512xf32>
    %c0_116 = arith.constant 0 : index
    %c0_117 = arith.constant 0 : index
    %533 = vector.load %arg8[%c0_116, %c0_117] : memref<128x512xf32, #tpu.memory_space<vmem>>, vector<128x512xf32>
    %cst_118 = arith.constant 0.000000e+00 : f32
    %534 = vector.broadcast %cst_118 : f32 to vector<2x128xf32>
    %cst_119 = arith.constant 0.000000e+00 : f32
    %535 = vector.broadcast %cst_119 : f32 to vector<2x128xf32>
    %536 = vector.extract_strided_slice %532 {offsets = [0, 0], sizes = [2, 512], strides = [1, 1]} : vector<16x512xf32> to vector<2x512xf32>
    %cst_120 = arith.constant dense<0.000000e+00> : vector<2x512xf32>
    %537 = tpu.matmul %534, %533, %cst_120 {dimension_numbers = #tpu.dot_dimension_numbers<[1], [0], [0], [1], [0, 0, 1, 1], [], []>} : vector<2x128xf32>, vector<128x512xf32>, vector<2x512xf32> -> vector<2x512xf32>
    %538 = arith.addf %536, %537 : vector<2x512xf32>
    %539 = vector.extract_strided_slice %538 {offsets = [0, 0], sizes = [2, 128], strides = [1, 1]} : vector<2x512xf32> to vector<2x128xf32>
    %540 = arith.negf %539 : vector<2x128xf32>
    %541 = math.exp %540 : vector<2x128xf32>
    %cst_121 = arith.constant 1.000000e+00 : f32
    %542 = vector.broadcast %cst_121 : f32 to vector<2x128xf32>
    %543 = arith.addf %542, %541 : vector<2x128xf32>
    %544 = arith.divf %542, %543 : vector<2x128xf32>
    %545 = vector.extract_strided_slice %538 {offsets = [0, 128], sizes = [2, 128], strides = [1, 1]} : vector<2x512xf32> to vector<2x128xf32>
    %546 = arith.negf %545 : vector<2x128xf32>
    %547 = math.exp %546 : vector<2x128xf32>
    %cst_122 = arith.constant 1.000000e+00 : f32
    %548 = vector.broadcast %cst_122 : f32 to vector<2x128xf32>
    %549 = arith.addf %548, %547 : vector<2x128xf32>
    %550 = arith.divf %548, %549 : vector<2x128xf32>
    %551 = vector.extract_strided_slice %538 {offsets = [0, 256], sizes = [2, 128], strides = [1, 1]} : vector<2x512xf32> to vector<2x128xf32>
    %552 = math.tanh %551 : vector<2x128xf32>
    %553 = vector.extract_strided_slice %538 {offsets = [0, 384], sizes = [2, 128], strides = [1, 1]} : vector<2x512xf32> to vector<2x128xf32>
    %554 = arith.negf %553 : vector<2x128xf32>
    %555 = math.exp %554 : vector<2x128xf32>
    %cst_123 = arith.constant 1.000000e+00 : f32
    %556 = vector.broadcast %cst_123 : f32 to vector<2x128xf32>
    %557 = arith.addf %556, %555 : vector<2x128xf32>
    %558 = arith.divf %556, %557 : vector<2x128xf32>
    %559 = arith.mulf %550, %535 : vector<2x128xf32>
    %560 = arith.mulf %544, %552 : vector<2x128xf32>
    %561 = arith.addf %559, %560 : vector<2x128xf32>
    %562 = math.tanh %561 : vector<2x128xf32>
    %563 = arith.mulf %558, %562 : vector<2x128xf32>
    %564 = vector.extract_strided_slice %532 {offsets = [2, 0], sizes = [2, 512], strides = [1, 1]} : vector<16x512xf32> to vector<2x512xf32>
    %cst_124 = arith.constant dense<0.000000e+00> : vector<2x512xf32>
    %565 = tpu.matmul %563, %533, %cst_124 {dimension_numbers = #tpu.dot_dimension_numbers<[1], [0], [0], [1], [0, 0, 1, 1], [], []>} : vector<2x128xf32>, vector<128x512xf32>, vector<2x512xf32> -> vector<2x512xf32>
    %566 = arith.addf %564, %565 : vector<2x512xf32>
    %567 = vector.extract_strided_slice %566 {offsets = [0, 0], sizes = [2, 128], strides = [1, 1]} : vector<2x512xf32> to vector<2x128xf32>
    %568 = arith.negf %567 : vector<2x128xf32>
    %569 = math.exp %568 : vector<2x128xf32>
    %cst_125 = arith.constant 1.000000e+00 : f32
    %570 = vector.broadcast %cst_125 : f32 to vector<2x128xf32>
    %571 = arith.addf %570, %569 : vector<2x128xf32>
    %572 = arith.divf %570, %571 : vector<2x128xf32>
    %573 = vector.extract_strided_slice %566 {offsets = [0, 128], sizes = [2, 128], strides = [1, 1]} : vector<2x512xf32> to vector<2x128xf32>
    %574 = arith.negf %573 : vector<2x128xf32>
    %575 = math.exp %574 : vector<2x128xf32>
    %cst_126 = arith.constant 1.000000e+00 : f32
    %576 = vector.broadcast %cst_126 : f32 to vector<2x128xf32>
    %577 = arith.addf %576, %575 : vector<2x128xf32>
    %578 = arith.divf %576, %577 : vector<2x128xf32>
    %579 = vector.extract_strided_slice %566 {offsets = [0, 256], sizes = [2, 128], strides = [1, 1]} : vector<2x512xf32> to vector<2x128xf32>
    %580 = math.tanh %579 : vector<2x128xf32>
    %581 = vector.extract_strided_slice %566 {offsets = [0, 384], sizes = [2, 128], strides = [1, 1]} : vector<2x512xf32> to vector<2x128xf32>
    %582 = arith.negf %581 : vector<2x128xf32>
    %583 = math.exp %582 : vector<2x128xf32>
    %cst_127 = arith.constant 1.000000e+00 : f32
    %584 = vector.broadcast %cst_127 : f32 to vector<2x128xf32>
    %585 = arith.addf %584, %583 : vector<2x128xf32>
    %586 = arith.divf %584, %585 : vector<2x128xf32>
    %587 = arith.mulf %578, %561 : vector<2x128xf32>
    %588 = arith.mulf %572, %580 : vector<2x128xf32>
    %589 = arith.addf %587, %588 : vector<2x128xf32>
    %590 = math.tanh %589 : vector<2x128xf32>
    %591 = arith.mulf %586, %590 : vector<2x128xf32>
    %592 = vector.extract_strided_slice %532 {offsets = [4, 0], sizes = [2, 512], strides = [1, 1]} : vector<16x512xf32> to vector<2x512xf32>
    %cst_128 = arith.constant dense<0.000000e+00> : vector<2x512xf32>
    %593 = tpu.matmul %591, %533, %cst_128 {dimension_numbers = #tpu.dot_dimension_numbers<[1], [0], [0], [1], [0, 0, 1, 1], [], []>} : vector<2x128xf32>, vector<128x512xf32>, vector<2x512xf32> -> vector<2x512xf32>
    %594 = arith.addf %592, %593 : vector<2x512xf32>
    %595 = vector.extract_strided_slice %594 {offsets = [0, 0], sizes = [2, 128], strides = [1, 1]} : vector<2x512xf32> to vector<2x128xf32>
    %596 = arith.negf %595 : vector<2x128xf32>
    %597 = math.exp %596 : vector<2x128xf32>
    %cst_129 = arith.constant 1.000000e+00 : f32
    %598 = vector.broadcast %cst_129 : f32 to vector<2x128xf32>
    %599 = arith.addf %598, %597 : vector<2x128xf32>
    %600 = arith.divf %598, %599 : vector<2x128xf32>
    %601 = vector.extract_strided_slice %594 {offsets = [0, 128], sizes = [2, 128], strides = [1, 1]} : vector<2x512xf32> to vector<2x128xf32>
    %602 = arith.negf %601 : vector<2x128xf32>
    %603 = math.exp %602 : vector<2x128xf32>
    %cst_130 = arith.constant 1.000000e+00 : f32
    %604 = vector.broadcast %cst_130 : f32 to vector<2x128xf32>
    %605 = arith.addf %604, %603 : vector<2x128xf32>
    %606 = arith.divf %604, %605 : vector<2x128xf32>
    %607 = vector.extract_strided_slice %594 {offsets = [0, 256], sizes = [2, 128], strides = [1, 1]} : vector<2x512xf32> to vector<2x128xf32>
    %608 = math.tanh %607 : vector<2x128xf32>
    %609 = vector.extract_strided_slice %594 {offsets = [0, 384], sizes = [2, 128], strides = [1, 1]} : vector<2x512xf32> to vector<2x128xf32>
    %610 = arith.negf %609 : vector<2x128xf32>
    %611 = math.exp %610 : vector<2x128xf32>
    %cst_131 = arith.constant 1.000000e+00 : f32
    %612 = vector.broadcast %cst_131 : f32 to vector<2x128xf32>
    %613 = arith.addf %612, %611 : vector<2x128xf32>
    %614 = arith.divf %612, %613 : vector<2x128xf32>
    %615 = arith.mulf %606, %589 : vector<2x128xf32>
    %616 = arith.mulf %600, %608 : vector<2x128xf32>
    %617 = arith.addf %615, %616 : vector<2x128xf32>
    %618 = math.tanh %617 : vector<2x128xf32>
    %619 = arith.mulf %614, %618 : vector<2x128xf32>
    %620 = vector.extract_strided_slice %532 {offsets = [6, 0], sizes = [2, 512], strides = [1, 1]} : vector<16x512xf32> to vector<2x512xf32>
    %cst_132 = arith.constant dense<0.000000e+00> : vector<2x512xf32>
    %621 = tpu.matmul %619, %533, %cst_132 {dimension_numbers = #tpu.dot_dimension_numbers<[1], [0], [0], [1], [0, 0, 1, 1], [], []>} : vector<2x128xf32>, vector<128x512xf32>, vector<2x512xf32> -> vector<2x512xf32>
    %622 = arith.addf %620, %621 : vector<2x512xf32>
    %623 = vector.extract_strided_slice %622 {offsets = [0, 0], sizes = [2, 128], strides = [1, 1]} : vector<2x512xf32> to vector<2x128xf32>
    %624 = arith.negf %623 : vector<2x128xf32>
    %625 = math.exp %624 : vector<2x128xf32>
    %cst_133 = arith.constant 1.000000e+00 : f32
    %626 = vector.broadcast %cst_133 : f32 to vector<2x128xf32>
    %627 = arith.addf %626, %625 : vector<2x128xf32>
    %628 = arith.divf %626, %627 : vector<2x128xf32>
    %629 = vector.extract_strided_slice %622 {offsets = [0, 128], sizes = [2, 128], strides = [1, 1]} : vector<2x512xf32> to vector<2x128xf32>
    %630 = arith.negf %629 : vector<2x128xf32>
    %631 = math.exp %630 : vector<2x128xf32>
    %cst_134 = arith.constant 1.000000e+00 : f32
    %632 = vector.broadcast %cst_134 : f32 to vector<2x128xf32>
    %633 = arith.addf %632, %631 : vector<2x128xf32>
    %634 = arith.divf %632, %633 : vector<2x128xf32>
    %635 = vector.extract_strided_slice %622 {offsets = [0, 256], sizes = [2, 128], strides = [1, 1]} : vector<2x512xf32> to vector<2x128xf32>
    %636 = math.tanh %635 : vector<2x128xf32>
    %637 = vector.extract_strided_slice %622 {offsets = [0, 384], sizes = [2, 128], strides = [1, 1]} : vector<2x512xf32> to vector<2x128xf32>
    %638 = arith.negf %637 : vector<2x128xf32>
    %639 = math.exp %638 : vector<2x128xf32>
    %cst_135 = arith.constant 1.000000e+00 : f32
    %640 = vector.broadcast %cst_135 : f32 to vector<2x128xf32>
    %641 = arith.addf %640, %639 : vector<2x128xf32>
    %642 = arith.divf %640, %641 : vector<2x128xf32>
    %643 = arith.mulf %634, %617 : vector<2x128xf32>
    %644 = arith.mulf %628, %636 : vector<2x128xf32>
    %645 = arith.addf %643, %644 : vector<2x128xf32>
    %646 = math.tanh %645 : vector<2x128xf32>
    %647 = arith.mulf %642, %646 : vector<2x128xf32>
    %648 = vector.extract_strided_slice %532 {offsets = [8, 0], sizes = [2, 512], strides = [1, 1]} : vector<16x512xf32> to vector<2x512xf32>
    %cst_136 = arith.constant dense<0.000000e+00> : vector<2x512xf32>
    %649 = tpu.matmul %647, %533, %cst_136 {dimension_numbers = #tpu.dot_dimension_numbers<[1], [0], [0], [1], [0, 0, 1, 1], [], []>} : vector<2x128xf32>, vector<128x512xf32>, vector<2x512xf32> -> vector<2x512xf32>
    %650 = arith.addf %648, %649 : vector<2x512xf32>
    %651 = vector.extract_strided_slice %650 {offsets = [0, 0], sizes = [2, 128], strides = [1, 1]} : vector<2x512xf32> to vector<2x128xf32>
    %652 = arith.negf %651 : vector<2x128xf32>
    %653 = math.exp %652 : vector<2x128xf32>
    %cst_137 = arith.constant 1.000000e+00 : f32
    %654 = vector.broadcast %cst_137 : f32 to vector<2x128xf32>
    %655 = arith.addf %654, %653 : vector<2x128xf32>
    %656 = arith.divf %654, %655 : vector<2x128xf32>
    %657 = vector.extract_strided_slice %650 {offsets = [0, 128], sizes = [2, 128], strides = [1, 1]} : vector<2x512xf32> to vector<2x128xf32>
    %658 = arith.negf %657 : vector<2x128xf32>
    %659 = math.exp %658 : vector<2x128xf32>
    %cst_138 = arith.constant 1.000000e+00 : f32
    %660 = vector.broadcast %cst_138 : f32 to vector<2x128xf32>
    %661 = arith.addf %660, %659 : vector<2x128xf32>
    %662 = arith.divf %660, %661 : vector<2x128xf32>
    %663 = vector.extract_strided_slice %650 {offsets = [0, 256], sizes = [2, 128], strides = [1, 1]} : vector<2x512xf32> to vector<2x128xf32>
    %664 = math.tanh %663 : vector<2x128xf32>
    %665 = vector.extract_strided_slice %650 {offsets = [0, 384], sizes = [2, 128], strides = [1, 1]} : vector<2x512xf32> to vector<2x128xf32>
    %666 = arith.negf %665 : vector<2x128xf32>
    %667 = math.exp %666 : vector<2x128xf32>
    %cst_139 = arith.constant 1.000000e+00 : f32
    %668 = vector.broadcast %cst_139 : f32 to vector<2x128xf32>
    %669 = arith.addf %668, %667 : vector<2x128xf32>
    %670 = arith.divf %668, %669 : vector<2x128xf32>
    %671 = arith.mulf %662, %645 : vector<2x128xf32>
    %672 = arith.mulf %656, %664 : vector<2x128xf32>
    %673 = arith.addf %671, %672 : vector<2x128xf32>
    %674 = math.tanh %673 : vector<2x128xf32>
    %675 = arith.mulf %670, %674 : vector<2x128xf32>
    %676 = vector.extract_strided_slice %532 {offsets = [10, 0], sizes = [2, 512], strides = [1, 1]} : vector<16x512xf32> to vector<2x512xf32>
    %cst_140 = arith.constant dense<0.000000e+00> : vector<2x512xf32>
    %677 = tpu.matmul %675, %533, %cst_140 {dimension_numbers = #tpu.dot_dimension_numbers<[1], [0], [0], [1], [0, 0, 1, 1], [], []>} : vector<2x128xf32>, vector<128x512xf32>, vector<2x512xf32> -> vector<2x512xf32>
    %678 = arith.addf %676, %677 : vector<2x512xf32>
    %679 = vector.extract_strided_slice %678 {offsets = [0, 0], sizes = [2, 128], strides = [1, 1]} : vector<2x512xf32> to vector<2x128xf32>
    %680 = arith.negf %679 : vector<2x128xf32>
    %681 = math.exp %680 : vector<2x128xf32>
    %cst_141 = arith.constant 1.000000e+00 : f32
    %682 = vector.broadcast %cst_141 : f32 to vector<2x128xf32>
    %683 = arith.addf %682, %681 : vector<2x128xf32>
    %684 = arith.divf %682, %683 : vector<2x128xf32>
    %685 = vector.extract_strided_slice %678 {offsets = [0, 128], sizes = [2, 128], strides = [1, 1]} : vector<2x512xf32> to vector<2x128xf32>
    %686 = arith.negf %685 : vector<2x128xf32>
    %687 = math.exp %686 : vector<2x128xf32>
    %cst_142 = arith.constant 1.000000e+00 : f32
    %688 = vector.broadcast %cst_142 : f32 to vector<2x128xf32>
    %689 = arith.addf %688, %687 : vector<2x128xf32>
    %690 = arith.divf %688, %689 : vector<2x128xf32>
    %691 = vector.extract_strided_slice %678 {offsets = [0, 256], sizes = [2, 128], strides = [1, 1]} : vector<2x512xf32> to vector<2x128xf32>
    %692 = math.tanh %691 : vector<2x128xf32>
    %693 = vector.extract_strided_slice %678 {offsets = [0, 384], sizes = [2, 128], strides = [1, 1]} : vector<2x512xf32> to vector<2x128xf32>
    %694 = arith.negf %693 : vector<2x128xf32>
    %695 = math.exp %694 : vector<2x128xf32>
    %cst_143 = arith.constant 1.000000e+00 : f32
    %696 = vector.broadcast %cst_143 : f32 to vector<2x128xf32>
    %697 = arith.addf %696, %695 : vector<2x128xf32>
    %698 = arith.divf %696, %697 : vector<2x128xf32>
    %699 = arith.mulf %690, %673 : vector<2x128xf32>
    %700 = arith.mulf %684, %692 : vector<2x128xf32>
    %701 = arith.addf %699, %700 : vector<2x128xf32>
    %702 = math.tanh %701 : vector<2x128xf32>
    %703 = arith.mulf %698, %702 : vector<2x128xf32>
    %704 = vector.extract_strided_slice %532 {offsets = [12, 0], sizes = [2, 512], strides = [1, 1]} : vector<16x512xf32> to vector<2x512xf32>
    %cst_144 = arith.constant dense<0.000000e+00> : vector<2x512xf32>
    %705 = tpu.matmul %703, %533, %cst_144 {dimension_numbers = #tpu.dot_dimension_numbers<[1], [0], [0], [1], [0, 0, 1, 1], [], []>} : vector<2x128xf32>, vector<128x512xf32>, vector<2x512xf32> -> vector<2x512xf32>
    %706 = arith.addf %704, %705 : vector<2x512xf32>
    %707 = vector.extract_strided_slice %706 {offsets = [0, 0], sizes = [2, 128], strides = [1, 1]} : vector<2x512xf32> to vector<2x128xf32>
    %708 = arith.negf %707 : vector<2x128xf32>
    %709 = math.exp %708 : vector<2x128xf32>
    %cst_145 = arith.constant 1.000000e+00 : f32
    %710 = vector.broadcast %cst_145 : f32 to vector<2x128xf32>
    %711 = arith.addf %710, %709 : vector<2x128xf32>
    %712 = arith.divf %710, %711 : vector<2x128xf32>
    %713 = vector.extract_strided_slice %706 {offsets = [0, 128], sizes = [2, 128], strides = [1, 1]} : vector<2x512xf32> to vector<2x128xf32>
    %714 = arith.negf %713 : vector<2x128xf32>
    %715 = math.exp %714 : vector<2x128xf32>
    %cst_146 = arith.constant 1.000000e+00 : f32
    %716 = vector.broadcast %cst_146 : f32 to vector<2x128xf32>
    %717 = arith.addf %716, %715 : vector<2x128xf32>
    %718 = arith.divf %716, %717 : vector<2x128xf32>
    %719 = vector.extract_strided_slice %706 {offsets = [0, 256], sizes = [2, 128], strides = [1, 1]} : vector<2x512xf32> to vector<2x128xf32>
    %720 = math.tanh %719 : vector<2x128xf32>
    %721 = vector.extract_strided_slice %706 {offsets = [0, 384], sizes = [2, 128], strides = [1, 1]} : vector<2x512xf32> to vector<2x128xf32>
    %722 = arith.negf %721 : vector<2x128xf32>
    %723 = math.exp %722 : vector<2x128xf32>
    %cst_147 = arith.constant 1.000000e+00 : f32
    %724 = vector.broadcast %cst_147 : f32 to vector<2x128xf32>
    %725 = arith.addf %724, %723 : vector<2x128xf32>
    %726 = arith.divf %724, %725 : vector<2x128xf32>
    %727 = arith.mulf %718, %701 : vector<2x128xf32>
    %728 = arith.mulf %712, %720 : vector<2x128xf32>
    %729 = arith.addf %727, %728 : vector<2x128xf32>
    %730 = math.tanh %729 : vector<2x128xf32>
    %731 = arith.mulf %726, %730 : vector<2x128xf32>
    %732 = vector.extract_strided_slice %532 {offsets = [14, 0], sizes = [2, 512], strides = [1, 1]} : vector<16x512xf32> to vector<2x512xf32>
    %cst_148 = arith.constant dense<0.000000e+00> : vector<2x512xf32>
    %733 = tpu.matmul %731, %533, %cst_148 {dimension_numbers = #tpu.dot_dimension_numbers<[1], [0], [0], [1], [0, 0, 1, 1], [], []>} : vector<2x128xf32>, vector<128x512xf32>, vector<2x512xf32> -> vector<2x512xf32>
    %734 = arith.addf %732, %733 : vector<2x512xf32>
    %735 = vector.extract_strided_slice %734 {offsets = [0, 0], sizes = [2, 128], strides = [1, 1]} : vector<2x512xf32> to vector<2x128xf32>
    %736 = arith.negf %735 : vector<2x128xf32>
    %737 = math.exp %736 : vector<2x128xf32>
    %cst_149 = arith.constant 1.000000e+00 : f32
    %738 = vector.broadcast %cst_149 : f32 to vector<2x128xf32>
    %739 = arith.addf %738, %737 : vector<2x128xf32>
    %740 = arith.divf %738, %739 : vector<2x128xf32>
    %741 = vector.extract_strided_slice %734 {offsets = [0, 128], sizes = [2, 128], strides = [1, 1]} : vector<2x512xf32> to vector<2x128xf32>
    %742 = arith.negf %741 : vector<2x128xf32>
    %743 = math.exp %742 : vector<2x128xf32>
    %cst_150 = arith.constant 1.000000e+00 : f32
    %744 = vector.broadcast %cst_150 : f32 to vector<2x128xf32>
    %745 = arith.addf %744, %743 : vector<2x128xf32>
    %746 = arith.divf %744, %745 : vector<2x128xf32>
    %747 = vector.extract_strided_slice %734 {offsets = [0, 256], sizes = [2, 128], strides = [1, 1]} : vector<2x512xf32> to vector<2x128xf32>
    %748 = math.tanh %747 : vector<2x128xf32>
    %749 = vector.extract_strided_slice %734 {offsets = [0, 384], sizes = [2, 128], strides = [1, 1]} : vector<2x512xf32> to vector<2x128xf32>
    %750 = arith.negf %749 : vector<2x128xf32>
    %751 = math.exp %750 : vector<2x128xf32>
    %cst_151 = arith.constant 1.000000e+00 : f32
    %752 = vector.broadcast %cst_151 : f32 to vector<2x128xf32>
    %753 = arith.addf %752, %751 : vector<2x128xf32>
    %754 = arith.divf %752, %753 : vector<2x128xf32>
    %755 = arith.mulf %746, %729 : vector<2x128xf32>
    %756 = arith.mulf %740, %748 : vector<2x128xf32>
    %757 = arith.addf %755, %756 : vector<2x128xf32>
    %758 = math.tanh %757 : vector<2x128xf32>
    %759 = arith.mulf %754, %758 : vector<2x128xf32>
    %c0_152 = arith.constant 0 : index
    %c0_153 = arith.constant 0 : index
    %760 = vector.load %arg10[%c0_152, %c0_153] : memref<128x1xf32, #tpu.memory_space<vmem>>, vector<128x1xf32>
    %cst_154 = arith.constant dense<0.000000e+00> : vector<2x1xf32>
    %761 = tpu.matmul %759, %760, %cst_154 {dimension_numbers = #tpu.dot_dimension_numbers<[1], [0], [0], [1], [0, 0, 1, 1], [], []>} : vector<2x128xf32>, vector<128x1xf32>, vector<2x1xf32> -> vector<2x1xf32>
    %c0_155 = arith.constant 0 : index
    %c0_156 = arith.constant 0 : index
    %762 = vector.load %arg11[%c0_155, %c0_156] : memref<1x1xf32, #tpu.memory_space<vmem>>, vector<1x1xf32>
    %763 = vector.broadcast %762 : vector<1x1xf32> to vector<2x1xf32>
    %764 = arith.addf %761, %763 : vector<2x1xf32>
    %c0_157 = arith.constant 0 : index
    %c0_158 = arith.constant 0 : index
    %765 = vector.load %arg12[%c0_157, %c0_158] : memref<2x1xf32, #tpu.memory_space<vmem>>, vector<2x1xf32>
    tpu.vector_store %arg12[%c0_157, %c0_158], %764 {strides = array<i32>} : memref<2x1xf32, #tpu.memory_space<vmem>>, vector<2x1xf32>,
    return
  }
}

</mosaic_0001>

<llo_original>
// kernel: _lstm_forward.1
$region0: #{_lstm_forward.1}
  #allocation0 [shape = 'u32[]', space=smem, size = 0x4, offset = 0x4, fixed_abs, tag = 'smem constant byte address 0x4 - core index']
  #allocation1 [shape = 'u32[144,128]{1,0:T(1,128)}', space=vmem, size = 0x12000, scoped, tag = 'internal scratch']
  #allocation2 [shape = 'f32[16,128]{1,0:T(8,128)}', space=vmem, size = 0x2000, scoped, tag = 'scratch operand']
  #allocation3 [shape = 'f32[1,1]{1,0:T(1,128)S(1)}', space=vmem, size = 0x200, scoped, tag = 'scoped memory for _lstm_forward.1']
  %s0 = inlined_call_operand.vmem [shape: f32[2,8,1], index: 0, kind: input, shape index: {}]
  %s1 = inlined_call_operand.vmem [shape: f32[1,512], index: 1, kind: input, shape index: {}]
  %s2 = inlined_call_operand.hbm [shape: f32[128,512], index: 2, kind: input, shape index: {}]
  %s3 = inlined_call_operand.vmem [shape: f32[1,512], index: 3, kind: input, shape index: {}]
  %s4 = inlined_call_operand.hbm [shape: f32[128,512], index: 4, kind: input, shape index: {}]
  %s5 = inlined_call_operand.hbm [shape: f32[128,512], index: 5, kind: input, shape index: {}]
  %s6 = inlined_call_operand.vmem [shape: f32[1,512], index: 6, kind: input, shape index: {}]
  %s7 = inlined_call_operand.hbm [shape: f32[128,512], index: 7, kind: input, shape index: {}]
  %s8 = inlined_call_operand.hbm [shape: f32[128,512], index: 8, kind: input, shape index: {}]
  %s9 = inlined_call_operand.vmem [shape: f32[1,512], index: 9, kind: input, shape index: {}]
  %s10 = inlined_call_operand.vmem [shape: f32[128,1], index: 10, kind: input, shape index: {}]
  %s11 = inlined_call_operand.<no memory space> [shape: f32[1,1], index: 11, kind: input, shape index: {}]
  %s12 = inlined_call_operand.vmem [shape: f32[2,1], index: 12, kind: output, shape index: {}]
  %s13 = sld [smem:[#allocation0]]
  $region78: #{_lstm_forward.1} parent=0
    _
  %s15 = ssub.s32 1, %s13
  %s16 = scalar_select 0, %s15, %s13
  %v17 = vstv %s11
  %18 = vst [vmem:[#allocation3] sm:$0x1] %v17
  $region1: #{_lstm_forward.1} parent=0
    #allocation4 [shape = 'u8[262144]{0}', space=vmem, size = 0x40000, scoped, tag = 'input window, operand 2, single buffered']
    #allocation5 [shape = 's32[1]{0}', space=sflag, size = 0x4, scoped, tag = 'scoped memory for _lstm_forward.1']
    #allocation6 [shape = 'u8[262144]{0}', space=vmem, size = 0x40000, scoped, tag = 'input window, operand 4, single buffered']
    #allocation7 [shape = 's32[1]{0}', space=sflag, size = 0x4, scoped, tag = 'scoped memory for _lstm_forward.1']
    #allocation8 [shape = 'u8[262144]{0}', space=vmem, size = 0x40000, scoped, tag = 'input window, operand 5, single buffered']
    #allocation9 [shape = 'u8[262144]{0}', space=vmem, size = 0x40000, scoped, tag = 'input window, operand 7, single buffered']
    #allocation10 [shape = 's32[1]{0}', space=sflag, size = 0x4, scoped, tag = 'scoped memory for _lstm_forward.1']
    #allocation11 [shape = 'u8[262144]{0}', space=vmem, size = 0x40000, scoped, tag = 'input window, operand 8, single buffered']
    %19 = vsyncpa [#allocation5], 0
    %20 = vsyncpa [#allocation7], 0
    %21 = vsyncpa [#allocation10], 0
    // Predicated region
    $region2: #{_lstm_forward.1} parent=1 // pred_check
      _
    $region3: #{_lstm_forward.1} parent=1 // pred_check_branch
      %23 = sbr.rel (0) target = $region5
    $region4: #{_lstm_forward.1} parent=1 // pred_region
      _
    $region5: #{_lstm_forward.1} parent=1 // pred_fallthru
      _
    // Predicated region
    $region6: #{_lstm_forward.1} parent=1 // pred_check
      _
    $region7: #{_lstm_forward.1} parent=1 // pred_check_branch
      %25 = sbr.rel (0) target = $region9
    $region8: #{_lstm_forward.1} parent=1 // pred_region
      _
    $region9: #{_lstm_forward.1} parent=1 // pred_fallthru
      _
    // Predicated region
    $region10: #{_lstm_forward.1} parent=1 // pred_check
      _
    $region11: #{_lstm_forward.1} parent=1 // pred_check_branch
      %27 = sbr.rel (0) target = $region13
    $region12: #{_lstm_forward.1} parent=1 // pred_region
      %s29 = ssub.s32 8192, 8192
      %30 = vsyncadd [#allocation5], %s29
      %s31 = sshll.u32 [#allocation4], 4
      %s32 = int_to_ptr.vmem [resolvable:$true] %s31
      %37 = dma.hbm_to_vmem [thread:$0]  %s2, 8192, %s32, [#allocation5], 512, 512, 32
    $region13: #{_lstm_forward.1} parent=1 // pred_fallthru
      _
    // Predicated region
    $region14: #{_lstm_forward.1} parent=1 // pred_check
      _
    $region15: #{_lstm_forward.1} parent=1 // pred_check_branch
      %39 = sbr.rel (0) target = $region17
    $region16: #{_lstm_forward.1} parent=1 // pred_region
      _
    $region17: #{_lstm_forward.1} parent=1 // pred_fallthru
      _
    // Predicated region
    $region18: #{_lstm_forward.1} parent=1 // pred_check
      _
    $region19: #{_lstm_forward.1} parent=1 // pred_check_branch
      %41 = sbr.rel (0) target = $region21
    $region20: #{_lstm_forward.1} parent=1 // pred_region
      %s43 = ssub.s32 8192, 8192
      %44 = vsyncadd [#allocation7], %s43
      %s45 = sshll.u32 [#allocation6], 4
      %s46 = int_to_ptr.vmem [resolvable:$true] %s45
      %51 = dma.hbm_to_vmem [thread:$0]  %s4, 8192, %s46, [#allocation7], 512, 512, 32
    $region21: #{_lstm_forward.1} parent=1 // pred_fallthru
      _
    // Predicated region
    $region22: #{_lstm_forward.1} parent=1 // pred_check
      _
    $region23: #{_lstm_forward.1} parent=1 // pred_check_branch
      %53 = sbr.rel (0) target = $region25
    $region24: #{_lstm_forward.1} parent=1 // pred_region
      %s55 = ssub.s32 8192, 8192
      %56 = vsyncadd [#allocation7], %s55
      %s57 = sshll.u32 [#allocation8], 4
      %s58 = int_to_ptr.vmem [resolvable:$true] %s57
      %63 = dma.hbm_to_vmem [thread:$0]  %s5, 8192, %s58, [#allocation7], 512, 512, 32
    $region25: #{_lstm_forward.1} parent=1 // pred_fallthru
      _
    // Predicated region
    $region26: #{_lstm_forward.1} parent=1 // pred_check
      _
    $region27: #{_lstm_forward.1} parent=1 // pred_check_branch
      %65 = sbr.rel (0) target = $region29
    $region28: #{_lstm_forward.1} parent=1 // pred_region
      _
    $region29: #{_lstm_forward.1} parent=1 // pred_fallthru
      _
    // Predicated region
    $region30: #{_lstm_forward.1} parent=1 // pred_check
      _
    $region31: #{_lstm_forward.1} parent=1 // pred_check_branch
      %67 = sbr.rel (0) target = $region33
    $region32: #{_lstm_forward.1} parent=1 // pred_region
      %s69 = ssub.s32 8192, 8192
      %70 = vsyncadd [#allocation10], %s69
      %s71 = sshll.u32 [#allocation9], 4
      %s72 = int_to_ptr.vmem [resolvable:$true] %s71
      %77 = dma.hbm_to_vmem [thread:$0]  %s7, 8192, %s72, [#allocation10], 512, 512, 32
    $region33: #{_lstm_forward.1} parent=1 // pred_fallthru
      _
    // Predicated region
    $region34: #{_lstm_forward.1} parent=1 // pred_check
      _
    $region35: #{_lstm_forward.1} parent=1 // pred_check_branch
      %79 = sbr.rel (0) target = $region37
    $region36: #{_lstm_forward.1} parent=1 // pred_region
      %s81 = ssub.s32 8192, 8192
      %82 = vsyncadd [#allocation10], %s81
      %s83 = sshll.u32 [#allocation11], 4
      %s84 = int_to_ptr.vmem [resolvable:$true] %s83
      %89 = dma.hbm_to_vmem [thread:$0]  %s8, 8192, %s84, [#allocation10], 512, 512, 32
    $region37: #{_lstm_forward.1} parent=1 // pred_fallthru
      _
    // Predicated region
    $region38: #{_lstm_forward.1} parent=1 // pred_check
      _
    $region39: #{_lstm_forward.1} parent=1 // pred_check_branch
      %91 = sbr.rel (0) target = $region41
    $region40: #{_lstm_forward.1} parent=1 // pred_region
      _
    $region41: #{_lstm_forward.1} parent=1 // pred_fallthru
      _
    // Predicated region
    $region42: #{_lstm_forward.1} parent=1 // pred_check
      _
    $region43: #{_lstm_forward.1} parent=1 // pred_check_branch
      %93 = sbr.rel (0) target = $region45
    $region44: #{_lstm_forward.1} parent=1 // pred_region
      _
    $region45: #{_lstm_forward.1} parent=1 // pred_fallthru
      _
    // Predicated region
    $region46: #{_lstm_forward.1} parent=1 // pred_check
      _
    $region47: #{_lstm_forward.1} parent=1 // pred_check_branch
      %95 = sbr.rel (0) target = $region49
    $region48: #{_lstm_forward.1} parent=1 // pred_region
      _
    $region49: #{_lstm_forward.1} parent=1 // pred_fallthru
      _
    // Predicated region
    $region50: #{_lstm_forward.1} parent=1 // pred_check
      _
    $region51: #{_lstm_forward.1} parent=1 // pred_check_branch
      %97 = sbr.rel (0) target = $region53
    $region52: #{_lstm_forward.1} parent=1 // pred_region
      %98 = dma.done [#allocation5], 8192
    $region53: #{_lstm_forward.1} parent=1 // pred_fallthru
      _
    // Predicated region
    $region54: #{_lstm_forward.1} parent=1 // pred_check
      _
    $region55: #{_lstm_forward.1} parent=1 // pred_check_branch
      %100 = sbr.rel (0) target = $region57
    $region56: #{_lstm_forward.1} parent=1 // pred_region
      %101 = dma.done [#allocation7], 8192
    $region57: #{_lstm_forward.1} parent=1 // pred_fallthru
      _
    // Predicated region
    $region58: #{_lstm_forward.1} parent=1 // pred_check
      _
    $region59: #{_lstm_forward.1} parent=1 // pred_check_branch
      %103 = sbr.rel (0) target = $region61
    $region60: #{_lstm_forward.1} parent=1 // pred_region
      %104 = dma.done [#allocation7], 8192
    $region61: #{_lstm_forward.1} parent=1 // pred_fallthru
      _
    // Predicated region
    $region62: #{_lstm_forward.1} parent=1 // pred_check
      _
    $region63: #{_lstm_forward.1} parent=1 // pred_check_branch
      %106 = sbr.rel (0) target = $region65
    $region64: #{_lstm_forward.1} parent=1 // pred_region
      %107 = dma.done [#allocation10], 8192
    $region65: #{_lstm_forward.1} parent=1 // pred_fallthru
      _
    // Predicated region
    $region66: #{_lstm_forward.1} parent=1 // pred_check
      _
    $region67: #{_lstm_forward.1} parent=1 // pred_check_branch
      %109 = sbr.rel (0) target = $region69
    $region68: #{_lstm_forward.1} parent=1 // pred_region
      %110 = dma.done [#allocation10], 8192
    $region69: #{_lstm_forward.1} parent=1 // pred_fallthru
      _
    %v111 = vld [vmem:[%s0] sm:$0xff]
    %v112 = vld [vmem:[%s0 + $0x8] sm:$0xff]
    %v113 = vld [vmem:[%s1] sm:$0xf]
    %v114 = vld [vmem:[%s3] sm:$0xf]
    %v115 = vld [vmem:[#allocation4] sm:$0xff]
    %v116 = vld [vmem:[#allocation4 + $0x8] sm:$0xff]
    %v117 = vld [vmem:[#allocation4 + $0x10] sm:$0xff]
    %v118 = vld [vmem:[#allocation4 + $0x18] sm:$0xff]
    %v119 = vld [vmem:[#allocation4 + $0x20] sm:$0xff]
    %v120 = vld [vmem:[#allocation4 + $0x28] sm:$0xff]
    %v121 = vld [vmem:[#allocation4 + $0x30] sm:$0xff]
    %v122 = vld [vmem:[#allocation4 + $0x38] sm:$0xff]
    %v123 = vld [vmem:[#allocation4 + $0x40] sm:$0xff]
    %v124 = vld [vmem:[#allocation4 + $0x48] sm:$0xff]
    %v125 = vld [vmem:[#allocation4 + $0x50] sm:$0xff]
    %v126 = vld [vmem:[#allocation4 + $0x58] sm:$0xff]
    %v127 = vld [vmem:[#allocation4 + $0x60] sm:$0xff]
    %v128 = vld [vmem:[#allocation4 + $0x68] sm:$0xff]
    %v129 = vld [vmem:[#allocation4 + $0x70] sm:$0xff]
    %v130 = vld [vmem:[#allocation4 + $0x78] sm:$0xff]
    %v131 = vld [vmem:[#allocation4 + $0x80] sm:$0xff]
    %v132 = vld [vmem:[#allocation4 + $0x88] sm:$0xff]
    %v133 = vld [vmem:[#allocation4 + $0x90] sm:$0xff]
    %v134 = vld [vmem:[#allocation4 + $0x98] sm:$0xff]
    %v135 = vld [vmem:[#allocation4 + $0xa0] sm:$0xff]
    %v136 = vld [vmem:[#allocation4 + $0xa8] sm:$0xff]
    %v137 = vld [vmem:[#allocation4 + $0xb0] sm:$0xff]
    %v138 = vld [vmem:[#allocation4 + $0xb8] sm:$0xff]
    %v139 = vld [vmem:[#allocation4 + $0xc0] sm:$0xff]
    %v140 = vld [vmem:[#allocation4 + $0xc8] sm:$0xff]
    %v141 = vld [vmem:[#allocation4 + $0xd0] sm:$0xff]
    %v142 = vld [vmem:[#allocation4 + $0xd8] sm:$0xff]
    %v143 = vld [vmem:[#allocation4 + $0xe0] sm:$0xff]
    %v144 = vld [vmem:[#allocation4 + $0xe8] sm:$0xff]
    %v145 = vld [vmem:[#allocation4 + $0xf0] sm:$0xff]
    %v146 = vld [vmem:[#allocation4 + $0xf8] sm:$0xff]
    %v147 = vld [vmem:[#allocation4 + $0x100] sm:$0xff]
    %v148 = vld [vmem:[#allocation4 + $0x108] sm:$0xff]
    %v149 = vld [vmem:[#allocation4 + $0x110] sm:$0xff]
    %v150 = vld [vmem:[#allocation4 + $0x118] sm:$0xff]
    %v151 = vld [vmem:[#allocation4 + $0x120] sm:$0xff]
    %v152 = vld [vmem:[#allocation4 + $0x128] sm:$0xff]
    %v153 = vld [vmem:[#allocation4 + $0x130] sm:$0xff]
    %v154 = vld [vmem:[#allocation4 + $0x138] sm:$0xff]
    %v155 = vld [vmem:[#allocation4 + $0x140] sm:$0xff]
    %v156 = vld [vmem:[#allocation4 + $0x148] sm:$0xff]
    %v157 = vld [vmem:[#allocation4 + $0x150] sm:$0xff]
    %v158 = vld [vmem:[#allocation4 + $0x158] sm:$0xff]
    %v159 = vld [vmem:[#allocation4 + $0x160] sm:$0xff]
    %v160 = vld [vmem:[#allocation4 + $0x168] sm:$0xff]
    %v161 = vld [vmem:[#allocation4 + $0x170] sm:$0xff]
    %v162 = vld [vmem:[#allocation4 + $0x178] sm:$0xff]
    %v163 = vld [vmem:[#allocation4 + $0x180] sm:$0xff]
    %v164 = vld [vmem:[#allocation4 + $0x188] sm:$0xff]
    %v165 = vld [vmem:[#allocation4 + $0x190] sm:$0xff]
    %v166 = vld [vmem:[#allocation4 + $0x198] sm:$0xff]
    %v167 = vld [vmem:[#allocation4 + $0x1a0] sm:$0xff]
    %v168 = vld [vmem:[#allocation4 + $0x1a8] sm:$0xff]
    %v169 = vld [vmem:[#allocation4 + $0x1b0] sm:$0xff]
    %v170 = vld [vmem:[#allocation4 + $0x1b8] sm:$0xff]
    %v171 = vld [vmem:[#allocation4 + $0x1c0] sm:$0xff]
    %v172 = vld [vmem:[#allocation4 + $0x1c8] sm:$0xff]
    %v173 = vld [vmem:[#allocation4 + $0x1d0] sm:$0xff]
    %v174 = vld [vmem:[#allocation4 + $0x1d8] sm:$0xff]
    %v175 = vld [vmem:[#allocation4 + $0x1e0] sm:$0xff]
    %v176 = vld [vmem:[#allocation4 + $0x1e8] sm:$0xff]
    %v177 = vld [vmem:[#allocation4 + $0x1f0] sm:$0xff]
    %v178 = vld [vmem:[#allocation4 + $0x1f8] sm:$0xff]
    %180 = vset.pattern.permute.xlu0 0
    %181 = vperm.xlu0 %180, %v111
    %v182 = vpop.permute.xlu0 %181
    %185 = vset.pattern.permute.xlu0 0
    %186 = vperm.xlu0 %185, %v112
    %v187 = vpop.permute.xlu0 %186
    %v190 = vlaneseq
    %v191 = vshrl.u32 %v190, 7
    %v192 = vsub.s32 0, %v191
    %v193 = vrot.slane %v113, %v192
    %v194 = vlaneseq
    %v195 = vshrl.u32 %v194, 7
    %v196 = vsub.s32 1, %v195
    %v197 = vrot.slane %v113, %v196
    %v198 = vlaneseq
    %v199 = vshrl.u32 %v198, 7
    %v200 = vsub.s32 2, %v199
    %v201 = vrot.slane %v113, %v200
    %v202 = vlaneseq
    %v203 = vshrl.u32 %v202, 7
    %v204 = vsub.s32 3, %v203
    %v205 = vrot.slane %v113, %v204
    %v210 = vmul.f32 %v182, %v193
    %v211 = vmul.f32 %v182, %v197
    %v212 = vmul.f32 %v182, %v201
    %v213 = vmul.f32 %v182, %v205
    %v214 = vmul.f32 %v187, %v193
    %v215 = vmul.f32 %v187, %v197
    %v216 = vmul.f32 %v187, %v201
    %v217 = vmul.f32 %v187, %v205
    %v219 = vlaneseq
    %v220 = vshrl.u32 %v219, 7
    %v221 = vsub.s32 0, %v220
    %v222 = vrot.slane %v114, %v221
    %v223 = vlaneseq
    %v224 = vshrl.u32 %v223, 7
    %v225 = vsub.s32 1, %v224
    %v226 = vrot.slane %v114, %v225
    %v227 = vlaneseq
    %v228 = vshrl.u32 %v227, 7
    %v229 = vsub.s32 2, %v228
    %v230 = vrot.slane %v114, %v229
    %v231 = vlaneseq
    %v232 = vshrl.u32 %v231, 7
    %v233 = vsub.s32 3, %v232
    %v234 = vrot.slane %v114, %v233
    %v239 = vadd.f32 %v210, %v222
    %v240 = vadd.f32 %v211, %v226
    %v241 = vadd.f32 %v212, %v230
    %v242 = vadd.f32 %v213, %v234
    %v243 = vadd.f32 %v214, %v222
    %v244 = vadd.f32 %v215, %v226
    %v245 = vadd.f32 %v216, %v230
    %v246 = vadd.f32 %v217, %v234
    %247 = vmatprep.subr.mxu0 %v116
    %248 = vmatpush1.msra.mxu0 %v115
    %249 = vmatprep.subr.mxu0 %v120
    %250 = vmatpush1.msra.mxu0 %v119
    %251 = vmatprep.subr.mxu0 %v124
    %252 = vmatpush1.msra.mxu0 %v123
    %253 = vmatprep.subr.mxu0 %v128
    %254 = vmatpush1.msra.mxu0 %v127
    %255 = vmatprep.subr.mxu0 %v132
    %256 = vmatpush1.msra.mxu0 %v131
    %257 = vmatprep.subr.mxu0 %v136
    %258 = vmatpush1.msra.mxu0 %v135
    %259 = vmatprep.subr.mxu0 %v140
    %260 = vmatpush1.msra.mxu0 %v139
    %261 = vmatprep.subr.mxu0 %v144
    %262 = vmatpush1.msra.mxu0 %v143
    %263 = vmatprep.subr.mxu0 %v148
    %264 = vmatpush1.msra.mxu0 %v147
    %265 = vmatprep.subr.mxu0 %v152
    %266 = vmatpush1.msra.mxu0 %v151
    %267 = vmatprep.subr.mxu0 %v156
    %268 = vmatpush1.msra.mxu0 %v155
    %269 = vmatprep.subr.mxu0 %v160
    %270 = vmatpush1.msra.mxu0 %v159
    %271 = vmatprep.subr.mxu0 %v164
    %272 = vmatpush1.msra.mxu0 %v163
    %273 = vmatprep.subr.mxu0 %v168
    %274 = vmatpush1.msra.mxu0 %v167
    %275 = vmatprep.subr.mxu0 %v172
    %276 = vmatpush1.msra.mxu0 %v171
    %277 = vmatprep.subr.mxu0 %v176
    %278 = vmatpush1.msra.mxu0 %v175
    %279 = vmatprep.subr.mxu0 0.0
    %280 = vmatpush1.msra.mxu0 0.0
    %281 = vmatprep.subr.mxu0 0.0
    %282 = vmatpush1.msra.mxu0 0.0
    %283 = vmatprep.subr.mxu0 0.0
    %284 = vmatpush1.msra.mxu0 0.0
    %285 = vmatprep.subr.mxu0 0.0
    %286 = vmatpush1.msra.mxu0 0.0
    %287 = vmatprep.subr.mxu0 0.0
    %288 = vmatpush1.msra.mxu0 0.0
    %289 = vmatprep.subr.mxu0 0.0
    %290 = vmatpush1.msra.mxu0 0.0
    %291 = vmatprep.subr.mxu0 0.0
    %292 = vmatpush1.msra.mxu0 0.0
    %293 = vmatprep.subr.mxu0 0.0
    %294 = vmatpush1.msra.mxu0 0.0
    %295 = vmatprep.subr.mxu0 0.0
    %296 = vmatpush1.msra.mxu0 0.0
    %297 = vmatprep.subr.mxu0 0.0
    %298 = vmatpush1.msra.mxu0 0.0
    %299 = vmatprep.subr.mxu0 0.0
    %300 = vmatpush1.msra.mxu0 0.0
    %301 = vmatprep.subr.mxu0 0.0
    %302 = vmatpush1.msra.mxu0 0.0
    %303 = vmatprep.subr.mxu0 0.0
    %304 = vmatpush1.msra.mxu0 0.0
    %305 = vmatprep.subr.mxu0 0.0
    %306 = vmatpush1.msra.mxu0 0.0
    %307 = vmatprep.subr.mxu0 0.0
    %308 = vmatpush1.msra.mxu0 0.0
    %309 = vmatprep.subr.mxu0 0.0
    %310 = vmatpush1.msra.mxu0 0.0
    %311 = vmatprep.mubr.f32.mxu0 0.0
    %312 = vmatmul.mubr.f32.gmra.mrb[0].mxu0 0.0
    %v313 = vpop.f32.mrb[0].mxu0
    %v314 = vadd.f32 0.0, %v313
    %v315 = vpop.f32.mrb[0].mxu0
    %v316 = vadd.f32 0.0, %v315
    %317 = vdwg.mxu0
    %318 = vmatprep.subr.mxu0 %v118
    %319 = vmatpush1.msra.mxu0 %v117
    %320 = vmatprep.subr.mxu0 %v122
    %321 = vmatpush1.msra.mxu0 %v121
    %322 = vmatprep.subr.mxu0 %v126
    %323 = vmatpush1.msra.mxu0 %v125
    %324 = vmatprep.subr.mxu0 %v130
    %325 = vmatpush1.msra.mxu0 %v129
    %326 = vmatprep.subr.mxu0 %v134
    %327 = vmatpush1.msra.mxu0 %v133
    %328 = vmatprep.subr.mxu0 %v138
    %329 = vmatpush1.msra.mxu0 %v137
    %330 = vmatprep.subr.mxu0 %v142
    %331 = vmatpush1.msra.mxu0 %v141
    %332 = vmatprep.subr.mxu0 %v146
    %333 = vmatpush1.msra.mxu0 %v145
    %334 = vmatprep.subr.mxu0 %v150
    %335 = vmatpush1.msra.mxu0 %v149
    %336 = vmatprep.subr.mxu0 %v154
    %337 = vmatpush1.msra.mxu0 %v153
    %338 = vmatprep.subr.mxu0 %v158
    %339 = vmatpush1.msra.mxu0 %v157
    %340 = vmatprep.subr.mxu0 %v162
    %341 = vmatpush1.msra.mxu0 %v161
    %342 = vmatprep.subr.mxu0 %v166
    %343 = vmatpush1.msra.mxu0 %v165
    %344 = vmatprep.subr.mxu0 %v170
    %345 = vmatpush1.msra.mxu0 %v169
    %346 = vmatprep.subr.mxu0 %v174
    %347 = vmatpush1.msra.mxu0 %v173
    %348 = vmatprep.subr.mxu0 %v178
    %349 = vmatpush1.msra.mxu0 %v177
    %350 = vmatprep.subr.mxu0 0.0
    %351 = vmatpush1.msra.mxu0 0.0
    %352 = vmatprep.subr.mxu0 0.0
    %353 = vmatpush1.msra.mxu0 0.0
    %354 = vmatprep.subr.mxu0 0.0
    %355 = vmatpush1.msra.mxu0 0.0
    %356 = vmatprep.subr.mxu0 0.0
    %357 = vmatpush1.msra.mxu0 0.0
    %358 = vmatprep.subr.mxu0 0.0
    %359 = vmatpush1.msra.mxu0 0.0
    %360 = vmatprep.subr.mxu0 0.0
    %361 = vmatpush1.msra.mxu0 0.0
    %362 = vmatprep.subr.mxu0 0.0
    %363 = vmatpush1.msra.mxu0 0.0
    %364 = vmatprep.subr.mxu0 0.0
    %365 = vmatpush1.msra.mxu0 0.0
    %366 = vmatprep.subr.mxu0 0.0
    %367 = vmatpush1.msra.mxu0 0.0
    %368 = vmatprep.subr.mxu0 0.0
    %369 = vmatpush1.msra.mxu0 0.0
    %370 = vmatprep.subr.mxu0 0.0
    %371 = vmatpush1.msra.mxu0 0.0
    %372 = vmatprep.subr.mxu0 0.0
    %373 = vmatpush1.msra.mxu0 0.0
    %374 = vmatprep.subr.mxu0 0.0
    %375 = vmatpush1.msra.mxu0 0.0
    %376 = vmatprep.subr.mxu0 0.0
    %377 = vmatpush1.msra.mxu0 0.0
    %378 = vmatprep.subr.mxu0 0.0
    %379 = vmatpush1.msra.mxu0 0.0
    %380 = vmatprep.subr.mxu0 0.0
    %381 = vmatpush1.msra.mxu0 0.0
    %382 = vmatprep.mubr.f32.mxu0 0.0
    %383 = vmatmul.mubr.f32.gmra.mrb[0].mxu0 0.0
    %v384 = vpop.f32.mrb[0].mxu0
    %v385 = vadd.f32 0.0, %v384
    %v386 = vpop.f32.mrb[0].mxu0
    %v387 = vadd.f32 0.0, %v386
    %388 = vdwg.mxu0
    %v393 = vrot.slane %v314, 1
    %v394 = vrot.slane %v316, 1
    %v395 = vrot.slane %v385, 1
    %v396 = vrot.slane %v387, 1
    %v405 = vadd.f32 %v239, %v314
    %v406 = vadd.f32 %v240, %v316
    %v407 = vadd.f32 %v241, %v385
    %v408 = vadd.f32 %v242, %v387
    %v409 = vadd.f32 %v243, %v393
    %v410 = vadd.f32 %v244, %v394
    %v411 = vadd.f32 %v245, %v395
    %v412 = vadd.f32 %v246, %v396
    %v413 = vxor.u32 %v405, 2147483648
    %v414 = vxor.u32 %v409, 2147483648
    %v415 = vmul.f32 %v413, 1.442695
    %v416 = vpow.pop %v415
    %v417 = vmul.f32 %v414, 1.442695
    %v418 = vpow.pop %v417
    %v419 = vadd.f32 %v416, 1.0
    %v420 = vadd.f32 %v418, 1.0
    %v421 = vrcp.pop %v419
    %v422 = vmul.f32 1.0, %v421
    %v423 = vrcp.pop %v420
    %v424 = vmul.f32 1.0, %v423
    %v425 = vxor.u32 %v406, 2147483648
    %v426 = vxor.u32 %v410, 2147483648
    %v427 = vmul.f32 %v425, 1.442695
    %v428 = vpow.pop %v427
    %v429 = vmul.f32 %v426, 1.442695
    %v430 = vpow.pop %v429
    %v431 = vadd.f32 %v428, 1.0
    %v432 = vadd.f32 %v430, 1.0
    %v433 = vrcp.pop %v431
    %v434 = vmul.f32 1.0, %v433
    %v435 = vrcp.pop %v432
    %v436 = vmul.f32 1.0, %v435
    %v437 = vtanh.pop %v407
    %v438 = vtanh.pop %v411
    %v439 = vxor.u32 %v408, 2147483648
    %v440 = vxor.u32 %v412, 2147483648
    %v441 = vmul.f32 %v439, 1.442695
    %v442 = vpow.pop %v441
    %v443 = vmul.f32 %v440, 1.442695
    %v444 = vpow.pop %v443
    %v445 = vadd.f32 %v442, 1.0
    %v446 = vadd.f32 %v444, 1.0
    %v447 = vrcp.pop %v445
    %v448 = vmul.f32 1.0, %v447
    %v449 = vrcp.pop %v446
    %v450 = vmul.f32 1.0, %v449
    %v451 = vmul.f32 %v434, 0.0
    %v452 = vmul.f32 %v436, 0.0
    %v453 = vmul.f32 %v422, %v437
    %v454 = vmul.f32 %v424, %v438
    %v455 = vadd.f32 %v451, %v453
    %v456 = vadd.f32 %v452, %v454
    %v457 = vtanh.pop %v455
    %v458 = vtanh.pop %v456
    %v459 = vmul.f32 %v448, %v457
    %v460 = vmul.f32 %v450, %v458
    %v463 = vrot.slane %v460, 7
    %vm464 = vcmask 1041409
    %v465 = vsel %vm464, %v463, %v459
    %467 = vst [vmem:[#allocation2] sm:$0x3] %v465
    %468 = vmatprep.subr.mxu0 %v116
    %469 = vmatpush1.msra.mxu0 %v115
    %470 = vmatprep.subr.mxu0 %v120
    %471 = vmatpush1.msra.mxu0 %v119
    %472 = vmatprep.subr.mxu0 %v124
    %473 = vmatpush1.msra.mxu0 %v123
    %474 = vmatprep.subr.mxu0 %v128
    %475 = vmatpush1.msra.mxu0 %v127
    %476 = vmatprep.subr.mxu0 %v132
    %477 = vmatpush1.msra.mxu0 %v131
    %478 = vmatprep.subr.mxu0 %v136
    %479 = vmatpush1.msra.mxu0 %v135
    %480 = vmatprep.subr.mxu0 %v140
    %481 = vmatpush1.msra.mxu0 %v139
    %482 = vmatprep.subr.mxu0 %v144
    %483 = vmatpush1.msra.mxu0 %v143
    %484 = vmatprep.subr.mxu0 %v148
    %485 = vmatpush1.msra.mxu0 %v147
    %486 = vmatprep.subr.mxu0 %v152
    %487 = vmatpush1.msra.mxu0 %v151
    %488 = vmatprep.subr.mxu0 %v156
    %489 = vmatpush1.msra.mxu0 %v155
    %490 = vmatprep.subr.mxu0 %v160
    %491 = vmatpush1.msra.mxu0 %v159
    %492 = vmatprep.subr.mxu0 %v164
    %493 = vmatpush1.msra.mxu0 %v163
    %494 = vmatprep.subr.mxu0 %v168
    %495 = vmatpush1.msra.mxu0 %v167
    %496 = vmatprep.subr.mxu0 %v172
    %497 = vmatpush1.msra.mxu0 %v171
    %498 = vmatprep.subr.mxu0 %v176
    %499 = vmatpush1.msra.mxu0 %v175
    %500 = vmatprep.subr.mxu0 0.0
    %501 = vmatpush1.msra.mxu0 0.0
    %502 = vmatprep.subr.mxu0 0.0
    %503 = vmatpush1.msra.mxu0 0.0
    %504 = vmatprep.subr.mxu0 0.0
    %505 = vmatpush1.msra.mxu0 0.0
    %506 = vmatprep.subr.mxu0 0.0
    %507 = vmatpush1.msra.mxu0 0.0
    %508 = vmatprep.subr.mxu0 0.0
    %509 = vmatpush1.msra.mxu0 0.0
    %510 = vmatprep.subr.mxu0 0.0
    %511 = vmatpush1.msra.mxu0 0.0
    %512 = vmatprep.subr.mxu0 0.0
    %513 = vmatpush1.msra.mxu0 0.0
    %514 = vmatprep.subr.mxu0 0.0
    %515 = vmatpush1.msra.mxu0 0.0
    %516 = vmatprep.subr.mxu0 0.0
    %517 = vmatpush1.msra.mxu0 0.0
    %518 = vmatprep.subr.mxu0 0.0
    %519 = vmatpush1.msra.mxu0 0.0
    %520 = vmatprep.subr.mxu0 0.0
    %521 = vmatpush1.msra.mxu0 0.0
    %522 = vmatprep.subr.mxu0 0.0
    %523 = vmatpush1.msra.mxu0 0.0
    %524 = vmatprep.subr.mxu0 0.0
    %525 = vmatpush1.msra.mxu0 0.0
    %526 = vmatprep.subr.mxu0 0.0
    %527 = vmatpush1.msra.mxu0 0.0
    %528 = vmatprep.subr.mxu0 0.0
    %529 = vmatpush1.msra.mxu0 0.0
    %530 = vmatprep.subr.mxu0 0.0
    %531 = vmatpush1.msra.mxu0 0.0
    %532 = vmatprep.mubr.f32.mxu0 0.0
    %533 = vmatmul.mubr.f32.gmra.mrb[0].mxu0 %v465
    %v534 = vpop.f32.mrb[0].mxu0
    %v535 = vadd.f32 0.0, %v534
    %v536 = vpop.f32.mrb[0].mxu0
    %v537 = vadd.f32 0.0, %v536
    %538 = vdwg.mxu0
    %539 = vmatprep.subr.mxu0 %v118
    %540 = vmatpush1.msra.mxu0 %v117
    %541 = vmatprep.subr.mxu0 %v122
    %542 = vmatpush1.msra.mxu0 %v121
    %543 = vmatprep.subr.mxu0 %v126
    %544 = vmatpush1.msra.mxu0 %v125
    %545 = vmatprep.subr.mxu0 %v130
    %546 = vmatpush1.msra.mxu0 %v129
    %547 = vmatprep.subr.mxu0 %v134
    %548 = vmatpush1.msra.mxu0 %v133
    %549 = vmatprep.subr.mxu0 %v138
    %550 = vmatpush1.msra.mxu0 %v137
    %551 = vmatprep.subr.mxu0 %v142
    %552 = vmatpush1.msra.mxu0 %v141
    %553 = vmatprep.subr.mxu0 %v146
    %554 = vmatpush1.msra.mxu0 %v145
    %555 = vmatprep.subr.mxu0 %v150
    %556 = vmatpush1.msra.mxu0 %v149
    %557 = vmatprep.subr.mxu0 %v154
    %558 = vmatpush1.msra.mxu0 %v153
    %559 = vmatprep.subr.mxu0 %v158
    %560 = vmatpush1.msra.mxu0 %v157
    %561 = vmatprep.subr.mxu0 %v162
    %562 = vmatpush1.msra.mxu0 %v161
    %563 = vmatprep.subr.mxu0 %v166
    %564 = vmatpush1.msra.mxu0 %v165
    %565 = vmatprep.subr.mxu0 %v170
    %566 = vmatpush1.msra.mxu0 %v169
    %567 = vmatprep.subr.mxu0 %v174
    %568 = vmatpush1.msra.mxu0 %v173
    %569 = vmatprep.subr.mxu0 %v178
    %570 = vmatpush1.msra.mxu0 %v177
    %571 = vmatprep.subr.mxu0 0.0
    %572 = vmatpush1.msra.mxu0 0.0
    %573 = vmatprep.subr.mxu0 0.0
    %574 = vmatpush1.msra.mxu0 0.0
    %575 = vmatprep.subr.mxu0 0.0
    %576 = vmatpush1.msra.mxu0 0.0
    %577 = vmatprep.subr.mxu0 0.0
    %578 = vmatpush1.msra.mxu0 0.0
    %579 = vmatprep.subr.mxu0 0.0
    %580 = vmatpush1.msra.mxu0 0.0
    %581 = vmatprep.subr.mxu0 0.0
    %582 = vmatpush1.msra.mxu0 0.0
    %583 = vmatprep.subr.mxu0 0.0
    %584 = vmatpush1.msra.mxu0 0.0
    %585 = vmatprep.subr.mxu0 0.0
    %586 = vmatpush1.msra.mxu0 0.0
    %587 = vmatprep.subr.mxu0 0.0
    %588 = vmatpush1.msra.mxu0 0.0
    %589 = vmatprep.subr.mxu0 0.0
    %590 = vmatpush1.msra.mxu0 0.0
    %591 = vmatprep.subr.mxu0 0.0
    %592 = vmatpush1.msra.mxu0 0.0
    %593 = vmatprep.subr.mxu0 0.0
    %594 = vmatpush1.msra.mxu0 0.0
    %595 = vmatprep.subr.mxu0 0.0
    %596 = vmatpush1.msra.mxu0 0.0
    %597 = vmatprep.subr.mxu0 0.0
    %598 = vmatpush1.msra.mxu0 0.0
    %599 = vmatprep.subr.mxu0 0.0
    %600 = vmatpush1.msra.mxu0 0.0
    %601 = vmatprep.subr.mxu0 0.0
    %602 = vmatpush1.msra.mxu0 0.0
    %603 = vmatprep.mubr.f32.mxu0 0.0
    %604 = vmatmul.mubr.f32.gmra.mrb[0].mxu0 %v465
    %v605 = vpop.f32.mrb[0].mxu0
    %v606 = vadd.f32 0.0, %v605
    %v607 = vpop.f32.mrb[0].mxu0
    %v608 = vadd.f32 0.0, %v607
    %609 = vdwg.mxu0
    %v614 = vrot.slane %v535, 7
    %v615 = vrot.slane %v537, 7
    %v616 = vrot.slane %v606, 7
    %v617 = vrot.slane %v608, 7
    %v626 = vadd.f32 %v239, %v614
    %v627 = vadd.f32 %v240, %v615
    %v628 = vadd.f32 %v241, %v616
    %v629 = vadd.f32 %v242, %v617
    %v630 = vadd.f32 %v243, %v535
    %v631 = vadd.f32 %v244, %v537
    %v632 = vadd.f32 %v245, %v606
    %v633 = vadd.f32 %v246, %v608
    %v634 = vxor.u32 %v626, 2147483648
    %v635 = vxor.u32 %v630, 2147483648
    %v636 = vmul.f32 %v634, 1.442695
    %v637 = vpow.pop %v636
    %v638 = vmul.f32 %v635, 1.442695
    %v639 = vpow.pop %v638
    %v640 = vadd.f32 %v637, 1.0
    %v641 = vadd.f32 %v639, 1.0
    %v642 = vrcp.pop %v640
    %v643 = vmul.f32 1.0, %v642
    %v644 = vrcp.pop %v641
    %v645 = vmul.f32 1.0, %v644
    %v646 = vxor.u32 %v627, 2147483648
    %v647 = vxor.u32 %v631, 2147483648
    %v648 = vmul.f32 %v646, 1.442695
    %v649 = vpow.pop %v648
    %v650 = vmul.f32 %v647, 1.442695
    %v651 = vpow.pop %v650
    %v652 = vadd.f32 %v649, 1.0
    %v653 = vadd.f32 %v651, 1.0
    %v654 = vrcp.pop %v652
    %v655 = vmul.f32 1.0, %v654
    %v656 = vrcp.pop %v653
    %v657 = vmul.f32 1.0, %v656
    %v658 = vtanh.pop %v628
    %v659 = vtanh.pop %v632
    %v660 = vxor.u32 %v629, 2147483648
    %v661 = vxor.u32 %v633, 2147483648
    %v662 = vmul.f32 %v660, 1.442695
    %v663 = vpow.pop %v662
    %v664 = vmul.f32 %v661, 1.442695
    %v665 = vpow.pop %v664
    %v666 = vadd.f32 %v663, 1.0
    %v667 = vadd.f32 %v665, 1.0
    %v668 = vrcp.pop %v666
    %v669 = vmul.f32 1.0, %v668
    %v670 = vrcp.pop %v667
    %v671 = vmul.f32 1.0, %v670
    %v674 = vrot.slane %v455, 7
    %v675 = vrot.slane %v456, 7
    %v678 = vmul.f32 %v655, %v674
    %v679 = vmul.f32 %v657, %v675
    %v680 = vmul.f32 %v643, %v658
    %v681 = vmul.f32 %v645, %v659
    %v682 = vadd.f32 %v678, %v680
    %v683 = vadd.f32 %v679, %v681
    %v684 = vtanh.pop %v682
    %v685 = vtanh.pop %v683
    %v686 = vmul.f32 %v669, %v684
    %v687 = vmul.f32 %v671, %v685
    %v690 = vrot.slane %v687, 7
    %vm691 = vcmask 1042434
    %v692 = vsel %vm691, %v690, %v686
    %694 = vst [vmem:[#allocation2 + $0x1] sm:$0x6] %v692
    %v695 = vrot.slane %v686, 1
    %v696 = vsel %vm464, %v687, %v695
    %698 = vmatprep.subr.mxu0 %v116
    %699 = vmatpush1.msra.mxu0 %v115
    %700 = vmatprep.subr.mxu0 %v120
    %701 = vmatpush1.msra.mxu0 %v119
    %702 = vmatprep.subr.mxu0 %v124
    %703 = vmatpush1.msra.mxu0 %v123
    %704 = vmatprep.subr.mxu0 %v128
    %705 = vmatpush1.msra.mxu0 %v127
    %706 = vmatprep.subr.mxu0 %v132
    %707 = vmatpush1.msra.mxu0 %v131
    %708 = vmatprep.subr.mxu0 %v136
    %709 = vmatpush1.msra.mxu0 %v135
    %710 = vmatprep.subr.mxu0 %v140
    %711 = vmatpush1.msra.mxu0 %v139
    %712 = vmatprep.subr.mxu0 %v144
    %713 = vmatpush1.msra.mxu0 %v143
    %714 = vmatprep.subr.mxu0 %v148
    %715 = vmatpush1.msra.mxu0 %v147
    %716 = vmatprep.subr.mxu0 %v152
    %717 = vmatpush1.msra.mxu0 %v151
    %718 = vmatprep.subr.mxu0 %v156
    %719 = vmatpush1.msra.mxu0 %v155
    %720 = vmatprep.subr.mxu0 %v160
    %721 = vmatpush1.msra.mxu0 %v159
    %722 = vmatprep.subr.mxu0 %v164
    %723 = vmatpush1.msra.mxu0 %v163
    %724 = vmatprep.subr.mxu0 %v168
    %725 = vmatpush1.msra.mxu0 %v167
    %726 = vmatprep.subr.mxu0 %v172
    %727 = vmatpush1.msra.mxu0 %v171
    %728 = vmatprep.subr.mxu0 %v176
    %729 = vmatpush1.msra.mxu0 %v175
    %730 = vmatprep.subr.mxu0 0.0
    %731 = vmatpush1.msra.mxu0 0.0
    %732 = vmatprep.subr.mxu0 0.0
    %733 = vmatpush1.msra.mxu0 0.0
    %734 = vmatprep.subr.mxu0 0.0
    %735 = vmatpush1.msra.mxu0 0.0
    %736 = vmatprep.subr.mxu0 0.0
    %737 = vmatpush1.msra.mxu0 0.0
    %738 = vmatprep.subr.mxu0 0.0
    %739 = vmatpush1.msra.mxu0 0.0
    %740 = vmatprep.subr.mxu0 0.0
    %741 = vmatpush1.msra.mxu0 0.0
    %742 = vmatprep.subr.mxu0 0.0
    %743 = vmatpush1.msra.mxu0 0.0
    %744 = vmatprep.subr.mxu0 0.0
    %745 = vmatpush1.msra.mxu0 0.0
    %746 = vmatprep.subr.mxu0 0.0
    %747 = vmatpush1.msra.mxu0 0.0
    %748 = vmatprep.subr.mxu0 0.0
    %749 = vmatpush1.msra.mxu0 0.0
    %750 = vmatprep.subr.mxu0 0.0
    %751 = vmatpush1.msra.mxu0 0.0
    %752 = vmatprep.subr.mxu0 0.0
    %753 = vmatpush1.msra.mxu0 0.0
    %754 = vmatprep.subr.mxu0 0.0
    %755 = vmatpush1.msra.mxu0 0.0
    %756 = vmatprep.subr.mxu0 0.0
    %757 = vmatpush1.msra.mxu0 0.0
    %758 = vmatprep.subr.mxu0 0.0
    %759 = vmatpush1.msra.mxu0 0.0
    %760 = vmatprep.subr.mxu0 0.0
    %761 = vmatpush1.msra.mxu0 0.0
    %762 = vmatprep.mubr.f32.mxu0 0.0
    %763 = vmatmul.mubr.f32.gmra.mrb[0].mxu0 %v696
    %v764 = vpop.f32.mrb[0].mxu0
    %v765 = vadd.f32 0.0, %v764
    %v766 = vpop.f32.mrb[0].mxu0
    %v767 = vadd.f32 0.0, %v766
    %768 = vdwg.mxu0
    %769 = vmatprep.subr.mxu0 %v118
    %770 = vmatpush1.msra.mxu0 %v117
    %771 = vmatprep.subr.mxu0 %v122
    %772 = vmatpush1.msra.mxu0 %v121
    %773 = vmatprep.subr.mxu0 %v126
    %774 = vmatpush1.msra.mxu0 %v125
    %775 = vmatprep.subr.mxu0 %v130
    %776 = vmatpush1.msra.mxu0 %v129
    %777 = vmatprep.subr.mxu0 %v134
    %778 = vmatpush1.msra.mxu0 %v133
    %779 = vmatprep.subr.mxu0 %v138
    %780 = vmatpush1.msra.mxu0 %v137
    %781 = vmatprep.subr.mxu0 %v142
    %782 = vmatpush1.msra.mxu0 %v141
    %783 = vmatprep.subr.mxu0 %v146
    %784 = vmatpush1.msra.mxu0 %v145
    %785 = vmatprep.subr.mxu0 %v150
    %786 = vmatpush1.msra.mxu0 %v149
    %787 = vmatprep.subr.mxu0 %v154
    %788 = vmatpush1.msra.mxu0 %v153
    %789 = vmatprep.subr.mxu0 %v158
    %790 = vmatpush1.msra.mxu0 %v157
    %791 = vmatprep.subr.mxu0 %v162
    %792 = vmatpush1.msra.mxu0 %v161
    %793 = vmatprep.subr.mxu0 %v166
    %794 = vmatpush1.msra.mxu0 %v165
    %795 = vmatprep.subr.mxu0 %v170
    %796 = vmatpush1.msra.mxu0 %v169
    %797 = vmatprep.subr.mxu0 %v174
    %798 = vmatpush1.msra.mxu0 %v173
    %799 = vmatprep.subr.mxu0 %v178
    %800 = vmatpush1.msra.mxu0 %v177
    %801 = vmatprep.subr.mxu0 0.0
    %802 = vmatpush1.msra.mxu0 0.0
    %803 = vmatprep.subr.mxu0 0.0
    %804 = vmatpush1.msra.mxu0 0.0
    %805 = vmatprep.subr.mxu0 0.0
    %806 = vmatpush1.msra.mxu0 0.0
    %807 = vmatprep.subr.mxu0 0.0
    %808 = vmatpush1.msra.mxu0 0.0
    %809 = vmatprep.subr.mxu0 0.0
    %810 = vmatpush1.msra.mxu0 0.0
    %811 = vmatprep.subr.mxu0 0.0
    %812 = vmatpush1.msra.mxu0 0.0
    %813 = vmatprep.subr.mxu0 0.0
    %814 = vmatpush1.msra.mxu0 0.0
    %815 = vmatprep.subr.mxu0 0.0
    %816 = vmatpush1.msra.mxu0 0.0
    %817 = vmatprep.subr.mxu0 0.0
    %818 = vmatpush1.msra.mxu0 0.0
    %819 = vmatprep.subr.mxu0 0.0
    %820 = vmatpush1.msra.mxu0 0.0
    %821 = vmatprep.subr.mxu0 0.0
    %822 = vmatpush1.msra.mxu0 0.0
    %823 = vmatprep.subr.mxu0 0.0
    %824 = vmatpush1.msra.mxu0 0.0
    %825 = vmatprep.subr.mxu0 0.0
    %826 = vmatpush1.msra.mxu0 0.0
    %827 = vmatprep.subr.mxu0 0.0
    %828 = vmatpush1.msra.mxu0 0.0
    %829 = vmatprep.subr.mxu0 0.0
    %830 = vmatpush1.msra.mxu0 0.0
    %831 = vmatprep.subr.mxu0 0.0
    %832 = vmatpush1.msra.mxu0 0.0
    %833 = vmatprep.mubr.f32.mxu0 0.0
    %834 = vmatmul.mubr.f32.gmra.mrb[0].mxu0 %v696
    %v835 = vpop.f32.mrb[0].mxu0
    %v836 = vadd.f32 0.0, %v835
    %v837 = vpop.f32.mrb[0].mxu0
    %v838 = vadd.f32 0.0, %v837
    %839 = vdwg.mxu0
    %v844 = vrot.slane %v765, 6
    %v845 = vrot.slane %v767, 6
    %v846 = vrot.slane %v836, 6
    %v847 = vrot.slane %v838, 6
    %v848 = vrot.slane %v765, 7
    %v849 = vrot.slane %v767, 7
    %v850 = vrot.slane %v836, 7
    %v851 = vrot.slane %v838, 7
    %v860 = vadd.f32 %v239, %v844
    %v861 = vadd.f32 %v240, %v845
    %v862 = vadd.f32 %v241, %v846
    %v863 = vadd.f32 %v242, %v847
    %v864 = vadd.f32 %v243, %v848
    %v865 = vadd.f32 %v244, %v849
    %v866 = vadd.f32 %v245, %v850
    %v867 = vadd.f32 %v246, %v851
    %v868 = vxor.u32 %v860, 2147483648
    %v869 = vxor.u32 %v864, 2147483648
    %v870 = vmul.f32 %v868, 1.442695
    %v871 = vpow.pop %v870
    %v872 = vmul.f32 %v869, 1.442695
    %v873 = vpow.pop %v872
    %v874 = vadd.f32 %v871, 1.0
    %v875 = vadd.f32 %v873, 1.0
    %v876 = vrcp.pop %v874
    %v877 = vmul.f32 1.0, %v876
    %v878 = vrcp.pop %v875
    %v879 = vmul.f32 1.0, %v878
    %v880 = vxor.u32 %v861, 2147483648
    %v881 = vxor.u32 %v865, 2147483648
    %v882 = vmul.f32 %v880, 1.442695
    %v883 = vpow.pop %v882
    %v884 = vmul.f32 %v881, 1.442695
    %v885 = vpow.pop %v884
    %v886 = vadd.f32 %v883, 1.0
    %v887 = vadd.f32 %v885, 1.0
    %v888 = vrcp.pop %v886
    %v889 = vmul.f32 1.0, %v888
    %v890 = vrcp.pop %v887
    %v891 = vmul.f32 1.0, %v890
    %v892 = vtanh.pop %v862
    %v893 = vtanh.pop %v866
    %v894 = vxor.u32 %v863, 2147483648
    %v895 = vxor.u32 %v867, 2147483648
    %v896 = vmul.f32 %v894, 1.442695
    %v897 = vpow.pop %v896
    %v898 = vmul.f32 %v895, 1.442695
    %v899 = vpow.pop %v898
    %v900 = vadd.f32 %v897, 1.0
    %v901 = vadd.f32 %v899, 1.0
    %v902 = vrcp.pop %v900
    %v903 = vmul.f32 1.0, %v902
    %v904 = vrcp.pop %v901
    %v905 = vmul.f32 1.0, %v904
    %v908 = vrot.slane %v682, 7
    %v909 = vrot.slane %v683, 7
    %v912 = vmul.f32 %v889, %v908
    %v913 = vmul.f32 %v891, %v909
    %v914 = vmul.f32 %v877, %v892
    %v915 = vmul.f32 %v879, %v893
    %v916 = vadd.f32 %v912, %v914
    %v917 = vadd.f32 %v913, %v915
    %v918 = vtanh.pop %v916
    %v919 = vtanh.pop %v917
    %v920 = vmul.f32 %v903, %v918
    %v921 = vmul.f32 %v905, %v919
    %v924 = vrot.slane %v921, 7
    %vm925 = vcmask 1043459
    %v926 = vsel %vm925, %v924, %v920
    %928 = vst [vmem:[#allocation2 + $0x2] sm:$0xc] %v926
    %v929 = vrot.slane %v920, 2
    %v930 = vrot.slane %v921, 1
    %v931 = vsel %vm464, %v930, %v929
    %933 = vmatprep.subr.mxu0 %v116
    %934 = vmatpush1.msra.mxu0 %v115
    %935 = vmatprep.subr.mxu0 %v120
    %936 = vmatpush1.msra.mxu0 %v119
    %937 = vmatprep.subr.mxu0 %v124
    %938 = vmatpush1.msra.mxu0 %v123
    %939 = vmatprep.subr.mxu0 %v128
    %940 = vmatpush1.msra.mxu0 %v127
    %941 = vmatprep.subr.mxu0 %v132
    %942 = vmatpush1.msra.mxu0 %v131
    %943 = vmatprep.subr.mxu0 %v136
    %944 = vmatpush1.msra.mxu0 %v135
    %945 = vmatprep.subr.mxu0 %v140
    %946 = vmatpush1.msra.mxu0 %v139
    %947 = vmatprep.subr.mxu0 %v144
    %948 = vmatpush1.msra.mxu0 %v143
    %949 = vmatprep.subr.mxu0 %v148
    %950 = vmatpush1.msra.mxu0 %v147
    %951 = vmatprep.subr.mxu0 %v152
    %952 = vmatpush1.msra.mxu0 %v151
    %953 = vmatprep.subr.mxu0 %v156
    %954 = vmatpush1.msra.mxu0 %v155
    %955 = vmatprep.subr.mxu0 %v160
    %956 = vmatpush1.msra.mxu0 %v159
    %957 = vmatprep.subr.mxu0 %v164
    %958 = vmatpush1.msra.mxu0 %v163
    %959 = vmatprep.subr.mxu0 %v168
    %960 = vmatpush1.msra.mxu0 %v167
    %961 = vmatprep.subr.mxu0 %v172
    %962 = vmatpush1.msra.mxu0 %v171
    %963 = vmatprep.subr.mxu0 %v176
    %964 = vmatpush1.msra.mxu0 %v175
    %965 = vmatprep.subr.mxu0 0.0
    %966 = vmatpush1.msra.mxu0 0.0
    %967 = vmatprep.subr.mxu0 0.0
    %968 = vmatpush1.msra.mxu0 0.0
    %969 = vmatprep.subr.mxu0 0.0
    %970 = vmatpush1.msra.mxu0 0.0
    %971 = vmatprep.subr.mxu0 0.0
    %972 = vmatpush1.msra.mxu0 0.0
    %973 = vmatprep.subr.mxu0 0.0
    %974 = vmatpush1.msra.mxu0 0.0
    %975 = vmatprep.subr.mxu0 0.0
    %976 = vmatpush1.msra.mxu0 0.0
    %977 = vmatprep.subr.mxu0 0.0
    %978 = vmatpush1.msra.mxu0 0.0
    %979 = vmatprep.subr.mxu0 0.0
    %980 = vmatpush1.msra.mxu0 0.0
    %981 = vmatprep.subr.mxu0 0.0
    %982 = vmatpush1.msra.mxu0 0.0
    %983 = vmatprep.subr.mxu0 0.0
    %984 = vmatpush1.msra.mxu0 0.0
    %985 = vmatprep.subr.mxu0 0.0
    %986 = vmatpush1.msra.mxu0 0.0
    %987 = vmatprep.subr.mxu0 0.0
    %988 = vmatpush1.msra.mxu0 0.0
    %989 = vmatprep.subr.mxu0 0.0
    %990 = vmatpush1.msra.mxu0 0.0
    %991 = vmatprep.subr.mxu0 0.0
    %992 = vmatpush1.msra.mxu0 0.0
    %993 = vmatprep.subr.mxu0 0.0
    %994 = vmatpush1.msra.mxu0 0.0
    %995 = vmatprep.subr.mxu0 0.0
    %996 = vmatpush1.msra.mxu0 0.0
    %997 = vmatprep.mubr.f32.mxu0 0.0
    %998 = vmatmul.mubr.f32.gmra.mrb[0].mxu0 %v931
    %v999 = vpop.f32.mrb[0].mxu0
    %v1000 = vadd.f32 0.0, %v999
    %v1001 = vpop.f32.mrb[0].mxu0
    %v1002 = vadd.f32 0.0, %v1001
    %1003 = vdwg.mxu0
    %1004 = vmatprep.subr.mxu0 %v118
    %1005 = vmatpush1.msra.mxu0 %v117
    %1006 = vmatprep.subr.mxu0 %v122
    %1007 = vmatpush1.msra.mxu0 %v121
    %1008 = vmatprep.subr.mxu0 %v126
    %1009 = vmatpush1.msra.mxu0 %v125
    %1010 = vmatprep.subr.mxu0 %v130
    %1011 = vmatpush1.msra.mxu0 %v129
    %1012 = vmatprep.subr.mxu0 %v134
    %1013 = vmatpush1.msra.mxu0 %v133
    %1014 = vmatprep.subr.mxu0 %v138
    %1015 = vmatpush1.msra.mxu0 %v137
    %1016 = vmatprep.subr.mxu0 %v142
    %1017 = vmatpush1.msra.mxu0 %v141
    %1018 = vmatprep.subr.mxu0 %v146
    %1019 = vmatpush1.msra.mxu0 %v145
    %1020 = vmatprep.subr.mxu0 %v150
    %1021 = vmatpush1.msra.mxu0 %v149
    %1022 = vmatprep.subr.mxu0 %v154
    %1023 = vmatpush1.msra.mxu0 %v153
    %1024 = vmatprep.subr.mxu0 %v158
    %1025 = vmatpush1.msra.mxu0 %v157
    %1026 = vmatprep.subr.mxu0 %v162
    %1027 = vmatpush1.msra.mxu0 %v161
    %1028 = vmatprep.subr.mxu0 %v166
    %1029 = vmatpush1.msra.mxu0 %v165
    %1030 = vmatprep.subr.mxu0 %v170
    %1031 = vmatpush1.msra.mxu0 %v169
    %1032 = vmatprep.subr.mxu0 %v174
    %1033 = vmatpush1.msra.mxu0 %v173
    %1034 = vmatprep.subr.mxu0 %v178
    %1035 = vmatpush1.msra.mxu0 %v177
    %1036 = vmatprep.subr.mxu0 0.0
    %1037 = vmatpush1.msra.mxu0 0.0
    %1038 = vmatprep.subr.mxu0 0.0
    %1039 = vmatpush1.msra.mxu0 0.0
    %1040 = vmatprep.subr.mxu0 0.0
    %1041 = vmatpush1.msra.mxu0 0.0
    %1042 = vmatprep.subr.mxu0 0.0
    %1043 = vmatpush1.msra.mxu0 0.0
    %1044 = vmatprep.subr.mxu0 0.0
    %1045 = vmatpush1.msra.mxu0 0.0
    %1046 = vmatprep.subr.mxu0 0.0
    %1047 = vmatpush1.msra.mxu0 0.0
    %1048 = vmatprep.subr.mxu0 0.0
    %1049 = vmatpush1.msra.mxu0 0.0
    %1050 = vmatprep.subr.mxu0 0.0
    %1051 = vmatpush1.msra.mxu0 0.0
    %1052 = vmatprep.subr.mxu0 0.0
    %1053 = vmatpush1.msra.mxu0 0.0
    %1054 = vmatprep.subr.mxu0 0.0
    %1055 = vmatpush1.msra.mxu0 0.0
    %1056 = vmatprep.subr.mxu0 0.0
    %1057 = vmatpush1.msra.mxu0 0.0
    %1058 = vmatprep.subr.mxu0 0.0
    %1059 = vmatpush1.msra.mxu0 0.0
    %1060 = vmatprep.subr.mxu0 0.0
    %1061 = vmatpush1.msra.mxu0 0.0
    %1062 = vmatprep.subr.mxu0 0.0
    %1063 = vmatpush1.msra.mxu0 0.0
    %1064 = vmatprep.subr.mxu0 0.0
    %1065 = vmatpush1.msra.mxu0 0.0
    %1066 = vmatprep.subr.mxu0 0.0
    %1067 = vmatpush1.msra.mxu0 0.0
    %1068 = vmatprep.mubr.f32.mxu0 0.0
    %1069 = vmatmul.mubr.f32.gmra.mrb[0].mxu0 %v931
    %v1070 = vpop.f32.mrb[0].mxu0
    %v1071 = vadd.f32 0.0, %v1070
    %v1072 = vpop.f32.mrb[0].mxu0
    %v1073 = vadd.f32 0.0, %v1072
    %1074 = vdwg.mxu0
    %v1079 = vrot.slane %v1000, 5
    %v1080 = vrot.slane %v1002, 5
    %v1081 = vrot.slane %v1071, 5
    %v1082 = vrot.slane %v1073, 5
    %v1083 = vrot.slane %v1000, 6
    %v1084 = vrot.slane %v1002, 6
    %v1085 = vrot.slane %v1071, 6
    %v1086 = vrot.slane %v1073, 6
    %v1095 = vadd.f32 %v239, %v1079
    %v1096 = vadd.f32 %v240, %v1080
    %v1097 = vadd.f32 %v241, %v1081
    %v1098 = vadd.f32 %v242, %v1082
    %v1099 = vadd.f32 %v243, %v1083
    %v1100 = vadd.f32 %v244, %v1084
    %v1101 = vadd.f32 %v245, %v1085
    %v1102 = vadd.f32 %v246, %v1086
    %v1103 = vxor.u32 %v1095, 2147483648
    %v1104 = vxor.u32 %v1099, 2147483648
    %v1105 = vmul.f32 %v1103, 1.442695
    %v1106 = vpow.pop %v1105
    %v1107 = vmul.f32 %v1104, 1.442695
    %v1108 = vpow.pop %v1107
    %v1109 = vadd.f32 %v1106, 1.0
    %v1110 = vadd.f32 %v1108, 1.0
    %v1111 = vrcp.pop %v1109
    %v1112 = vmul.f32 1.0, %v1111
    %v1113 = vrcp.pop %v1110
    %v1114 = vmul.f32 1.0, %v1113
    %v1115 = vxor.u32 %v1096, 2147483648
    %v1116 = vxor.u32 %v1100, 2147483648
    %v1117 = vmul.f32 %v1115, 1.442695
    %v1118 = vpow.pop %v1117
    %v1119 = vmul.f32 %v1116, 1.442695
    %v1120 = vpow.pop %v1119
    %v1121 = vadd.f32 %v1118, 1.0
    %v1122 = vadd.f32 %v1120, 1.0
    %v1123 = vrcp.pop %v1121
    %v1124 = vmul.f32 1.0, %v1123
    %v1125 = vrcp.pop %v1122
    %v1126 = vmul.f32 1.0, %v1125
    %v1127 = vtanh.pop %v1097
    %v1128 = vtanh.pop %v1101
    %v1129 = vxor.u32 %v1098, 2147483648
    %v1130 = vxor.u32 %v1102, 2147483648
    %v1131 = vmul.f32 %v1129, 1.442695
    %v1132 = vpow.pop %v1131
    %v1133 = vmul.f32 %v1130, 1.442695
    %v1134 = vpow.pop %v1133
    %v1135 = vadd.f32 %v1132, 1.0
    %v1136 = vadd.f32 %v1134, 1.0
    %v1137 = vrcp.pop %v1135
    %v1138 = vmul.f32 1.0, %v1137
    %v1139 = vrcp.pop %v1136
    %v1140 = vmul.f32 1.0, %v1139
    %v1143 = vrot.slane %v916, 7
    %v1144 = vrot.slane %v917, 7
    %v1147 = vmul.f32 %v1124, %v1143
    %v1148 = vmul.f32 %v1126, %v1144
    %v1149 = vmul.f32 %v1112, %v1127
    %v1150 = vmul.f32 %v1114, %v1128
    %v1151 = vadd.f32 %v1147, %v1149
    %v1152 = vadd.f32 %v1148, %v1150
    %v1153 = vtanh.pop %v1151
    %v1154 = vtanh.pop %v1152
    %v1155 = vmul.f32 %v1138, %v1153
    %v1156 = vmul.f32 %v1140, %v1154
    %v1159 = vrot.slane %v1156, 7
    %vm1160 = vcmask 1044484
    %v1161 = vsel %vm1160, %v1159, %v1155
    %1163 = vst [vmem:[#allocation2 + $0x3] sm:$0x18] %v1161
    %v1164 = vrot.slane %v1155, 3
    %v1165 = vrot.slane %v1156, 2
    %v1166 = vsel %vm464, %v1165, %v1164
    %1168 = vmatprep.subr.mxu0 %v116
    %1169 = vmatpush1.msra.mxu0 %v115
    %1170 = vmatprep.subr.mxu0 %v120
    %1171 = vmatpush1.msra.mxu0 %v119
    %1172 = vmatprep.subr.mxu0 %v124
    %1173 = vmatpush1.msra.mxu0 %v123
    %1174 = vmatprep.subr.mxu0 %v128
    %1175 = vmatpush1.msra.mxu0 %v127
    %1176 = vmatprep.subr.mxu0 %v132
    %1177 = vmatpush1.msra.mxu0 %v131
    %1178 = vmatprep.subr.mxu0 %v136
    %1179 = vmatpush1.msra.mxu0 %v135
    %1180 = vmatprep.subr.mxu0 %v140
    %1181 = vmatpush1.msra.mxu0 %v139
    %1182 = vmatprep.subr.mxu0 %v144
    %1183 = vmatpush1.msra.mxu0 %v143
    %1184 = vmatprep.subr.mxu0 %v148
    %1185 = vmatpush1.msra.mxu0 %v147
    %1186 = vmatprep.subr.mxu0 %v152
    %1187 = vmatpush1.msra.mxu0 %v151
    %1188 = vmatprep.subr.mxu0 %v156
    %1189 = vmatpush1.msra.mxu0 %v155
    %1190 = vmatprep.subr.mxu0 %v160
    %1191 = vmatpush1.msra.mxu0 %v159
    %1192 = vmatprep.subr.mxu0 %v164
    %1193 = vmatpush1.msra.mxu0 %v163
    %1194 = vmatprep.subr.mxu0 %v168
    %1195 = vmatpush1.msra.mxu0 %v167
    %1196 = vmatprep.subr.mxu0 %v172
    %1197 = vmatpush1.msra.mxu0 %v171
    %1198 = vmatprep.subr.mxu0 %v176
    %1199 = vmatpush1.msra.mxu0 %v175
    %1200 = vmatprep.subr.mxu0 0.0
    %1201 = vmatpush1.msra.mxu0 0.0
    %1202 = vmatprep.subr.mxu0 0.0
    %1203 = vmatpush1.msra.mxu0 0.0
    %1204 = vmatprep.subr.mxu0 0.0
    %1205 = vmatpush1.msra.mxu0 0.0
    %1206 = vmatprep.subr.mxu0 0.0
    %1207 = vmatpush1.msra.mxu0 0.0
    %1208 = vmatprep.subr.mxu0 0.0
    %1209 = vmatpush1.msra.mxu0 0.0
    %1210 = vmatprep.subr.mxu0 0.0
    %1211 = vmatpush1.msra.mxu0 0.0
    %1212 = vmatprep.subr.mxu0 0.0
    %1213 = vmatpush1.msra.mxu0 0.0
    %1214 = vmatprep.subr.mxu0 0.0
    %1215 = vmatpush1.msra.mxu0 0.0
    %1216 = vmatprep.subr.mxu0 0.0
    %1217 = vmatpush1.msra.mxu0 0.0
    %1218 = vmatprep.subr.mxu0 0.0
    %1219 = vmatpush1.msra.mxu0 0.0
    %1220 = vmatprep.subr.mxu0 0.0
    %1221 = vmatpush1.msra.mxu0 0.0
    %1222 = vmatprep.subr.mxu0 0.0
    %1223 = vmatpush1.msra.mxu0 0.0
    %1224 = vmatprep.subr.mxu0 0.0
    %1225 = vmatpush1.msra.mxu0 0.0
    %1226 = vmatprep.subr.mxu0 0.0
    %1227 = vmatpush1.msra.mxu0 0.0
    %1228 = vmatprep.subr.mxu0 0.0
    %1229 = vmatpush1.msra.mxu0 0.0
    %1230 = vmatprep.subr.mxu0 0.0
    %1231 = vmatpush1.msra.mxu0 0.0
    %1232 = vmatprep.mubr.f32.mxu0 0.0
    %1233 = vmatmul.mubr.f32.gmra.mrb[0].mxu0 %v1166
    %v1234 = vpop.f32.mrb[0].mxu0
    %v1235 = vadd.f32 0.0, %v1234
    %v1236 = vpop.f32.mrb[0].mxu0
    %v1237 = vadd.f32 0.0, %v1236
    %1238 = vdwg.mxu0
    %1239 = vmatprep.subr.mxu0 %v118
    %1240 = vmatpush1.msra.mxu0 %v117
    %1241 = vmatprep.subr.mxu0 %v122
    %1242 = vmatpush1.msra.mxu0 %v121
    %1243 = vmatprep.subr.mxu0 %v126
    %1244 = vmatpush1.msra.mxu0 %v125
    %1245 = vmatprep.subr.mxu0 %v130
    %1246 = vmatpush1.msra.mxu0 %v129
    %1247 = vmatprep.subr.mxu0 %v134
    %1248 = vmatpush1.msra.mxu0 %v133
    %1249 = vmatprep.subr.mxu0 %v138
    %1250 = vmatpush1.msra.mxu0 %v137
    %1251 = vmatprep.subr.mxu0 %v142
    %1252 = vmatpush1.msra.mxu0 %v141
    %1253 = vmatprep.subr.mxu0 %v146
    %1254 = vmatpush1.msra.mxu0 %v145
    %1255 = vmatprep.subr.mxu0 %v150
    %1256 = vmatpush1.msra.mxu0 %v149
    %1257 = vmatprep.subr.mxu0 %v154
    %1258 = vmatpush1.msra.mxu0 %v153
    %1259 = vmatprep.subr.mxu0 %v158
    %1260 = vmatpush1.msra.mxu0 %v157
    %1261 = vmatprep.subr.mxu0 %v162
    %1262 = vmatpush1.msra.mxu0 %v161
    %1263 = vmatprep.subr.mxu0 %v166
    %1264 = vmatpush1.msra.mxu0 %v165
    %1265 = vmatprep.subr.mxu0 %v170
    %1266 = vmatpush1.msra.mxu0 %v169
    %1267 = vmatprep.subr.mxu0 %v174
    %1268 = vmatpush1.msra.mxu0 %v173
    %1269 = vmatprep.subr.mxu0 %v178
    %1270 = vmatpush1.msra.mxu0 %v177
    %1271 = vmatprep.subr.mxu0 0.0
    %1272 = vmatpush1.msra.mxu0 0.0
    %1273 = vmatprep.subr.mxu0 0.0
    %1274 = vmatpush1.msra.mxu0 0.0
    %1275 = vmatprep.subr.mxu0 0.0
    %1276 = vmatpush1.msra.mxu0 0.0
    %1277 = vmatprep.subr.mxu0 0.0
    %1278 = vmatpush1.msra.mxu0 0.0
    %1279 = vmatprep.subr.mxu0 0.0
    %1280 = vmatpush1.msra.mxu0 0.0
    %1281 = vmatprep.subr.mxu0 0.0
    %1282 = vmatpush1.msra.mxu0 0.0
    %1283 = vmatprep.subr.mxu0 0.0
    %1284 = vmatpush1.msra.mxu0 0.0
    %1285 = vmatprep.subr.mxu0 0.0
    %1286 = vmatpush1.msra.mxu0 0.0
    %1287 = vmatprep.subr.mxu0 0.0
    %1288 = vmatpush1.msra.mxu0 0.0
    %1289 = vmatprep.subr.mxu0 0.0
    %1290 = vmatpush1.msra.mxu0 0.0
    %1291 = vmatprep.subr.mxu0 0.0
    %1292 = vmatpush1.msra.mxu0 0.0
    %1293 = vmatprep.subr.mxu0 0.0
    %1294 = vmatpush1.msra.mxu0 0.0
    %1295 = vmatprep.subr.mxu0 0.0
    %1296 = vmatpush1.msra.mxu0 0.0
    %1297 = vmatprep.subr.mxu0 0.0
    %1298 = vmatpush1.msra.mxu0 0.0
    %1299 = vmatprep.subr.mxu0 0.0
    %1300 = vmatpush1.msra.mxu0 0.0
    %1301 = vmatprep.subr.mxu0 0.0
    %1302 = vmatpush1.msra.mxu0 0.0
    %1303 = vmatprep.mubr.f32.mxu0 0.0
    %1304 = vmatmul.mubr.f32.gmra.mrb[0].mxu0 %v1166
    %v1305 = vpop.f32.mrb[0].mxu0
    %v1306 = vadd.f32 0.0, %v1305
    %v1307 = vpop.f32.mrb[0].mxu0
    %v1308 = vadd.f32 0.0, %v1307
    %1309 = vdwg.mxu0
    %v1314 = vrot.slane %v1235, 4
    %v1315 = vrot.slane %v1237, 4
    %v1316 = vrot.slane %v1306, 4
    %v1317 = vrot.slane %v1308, 4
    %v1318 = vrot.slane %v1235, 5
    %v1319 = vrot.slane %v1237, 5
    %v1320 = vrot.slane %v1306, 5
    %v1321 = vrot.slane %v1308, 5
    %v1330 = vadd.f32 %v239, %v1314
    %v1331 = vadd.f32 %v240, %v1315
    %v1332 = vadd.f32 %v241, %v1316
    %v1333 = vadd.f32 %v242, %v1317
    %v1334 = vadd.f32 %v243, %v1318
    %v1335 = vadd.f32 %v244, %v1319
    %v1336 = vadd.f32 %v245, %v1320
    %v1337 = vadd.f32 %v246, %v1321
    %v1338 = vxor.u32 %v1330, 2147483648
    %v1339 = vxor.u32 %v1334, 2147483648
    %v1340 = vmul.f32 %v1338, 1.442695
    %v1341 = vpow.pop %v1340
    %v1342 = vmul.f32 %v1339, 1.442695
    %v1343 = vpow.pop %v1342
    %v1344 = vadd.f32 %v1341, 1.0
    %v1345 = vadd.f32 %v1343, 1.0
    %v1346 = vrcp.pop %v1344
    %v1347 = vmul.f32 1.0, %v1346
    %v1348 = vrcp.pop %v1345
    %v1349 = vmul.f32 1.0, %v1348
    %v1350 = vxor.u32 %v1331, 2147483648
    %v1351 = vxor.u32 %v1335, 2147483648
    %v1352 = vmul.f32 %v1350, 1.442695
    %v1353 = vpow.pop %v1352
    %v1354 = vmul.f32 %v1351, 1.442695
    %v1355 = vpow.pop %v1354
    %v1356 = vadd.f32 %v1353, 1.0
    %v1357 = vadd.f32 %v1355, 1.0
    %v1358 = vrcp.pop %v1356
    %v1359 = vmul.f32 1.0, %v1358
    %v1360 = vrcp.pop %v1357
    %v1361 = vmul.f32 1.0, %v1360
    %v1362 = vtanh.pop %v1332
    %v1363 = vtanh.pop %v1336
    %v1364 = vxor.u32 %v1333, 2147483648
    %v1365 = vxor.u32 %v1337, 2147483648
    %v1366 = vmul.f32 %v1364, 1.442695
    %v1367 = vpow.pop %v1366
    %v1368 = vmul.f32 %v1365, 1.442695
    %v1369 = vpow.pop %v1368
    %v1370 = vadd.f32 %v1367, 1.0
    %v1371 = vadd.f32 %v1369, 1.0
    %v1372 = vrcp.pop %v1370
    %v1373 = vmul.f32 1.0, %v1372
    %v1374 = vrcp.pop %v1371
    %v1375 = vmul.f32 1.0, %v1374
    %v1378 = vrot.slane %v1151, 7
    %v1379 = vrot.slane %v1152, 7
    %v1382 = vmul.f32 %v1359, %v1378
    %v1383 = vmul.f32 %v1361, %v1379
    %v1384 = vmul.f32 %v1347, %v1362
    %v1385 = vmul.f32 %v1349, %v1363
    %v1386 = vadd.f32 %v1382, %v1384
    %v1387 = vadd.f32 %v1383, %v1385
    %v1388 = vtanh.pop %v1386
    %v1389 = vtanh.pop %v1387
    %v1390 = vmul.f32 %v1373, %v1388
    %v1391 = vmul.f32 %v1375, %v1389
    %v1394 = vrot.slane %v1391, 7
    %vm1395 = vcmask 1045509
    %v1396 = vsel %vm1395, %v1394, %v1390
    %1398 = vst [vmem:[#allocation2 + $0x4] sm:$0x30] %v1396
    %v1399 = vrot.slane %v1390, 4
    %v1400 = vrot.slane %v1391, 3
    %v1401 = vsel %vm464, %v1400, %v1399
    %1403 = vmatprep.subr.mxu0 %v116
    %1404 = vmatpush1.msra.mxu0 %v115
    %1405 = vmatprep.subr.mxu0 %v120
    %1406 = vmatpush1.msra.mxu0 %v119
    %1407 = vmatprep.subr.mxu0 %v124
    %1408 = vmatpush1.msra.mxu0 %v123
    %1409 = vmatprep.subr.mxu0 %v128
    %1410 = vmatpush1.msra.mxu0 %v127
    %1411 = vmatprep.subr.mxu0 %v132
    %1412 = vmatpush1.msra.mxu0 %v131
    %1413 = vmatprep.subr.mxu0 %v136
    %1414 = vmatpush1.msra.mxu0 %v135
    %1415 = vmatprep.subr.mxu0 %v140
    %1416 = vmatpush1.msra.mxu0 %v139
    %1417 = vmatprep.subr.mxu0 %v144
    %1418 = vmatpush1.msra.mxu0 %v143
    %1419 = vmatprep.subr.mxu0 %v148
    %1420 = vmatpush1.msra.mxu0 %v147
    %1421 = vmatprep.subr.mxu0 %v152
    %1422 = vmatpush1.msra.mxu0 %v151
    %1423 = vmatprep.subr.mxu0 %v156
    %1424 = vmatpush1.msra.mxu0 %v155
    %1425 = vmatprep.subr.mxu0 %v160
    %1426 = vmatpush1.msra.mxu0 %v159
    %1427 = vmatprep.subr.mxu0 %v164
    %1428 = vmatpush1.msra.mxu0 %v163
    %1429 = vmatprep.subr.mxu0 %v168
    %1430 = vmatpush1.msra.mxu0 %v167
    %1431 = vmatprep.subr.mxu0 %v172
    %1432 = vmatpush1.msra.mxu0 %v171
    %1433 = vmatprep.subr.mxu0 %v176
    %1434 = vmatpush1.msra.mxu0 %v175
    %1435 = vmatprep.subr.mxu0 0.0
    %1436 = vmatpush1.msra.mxu0 0.0
    %1437 = vmatprep.subr.mxu0 0.0
    %1438 = vmatpush1.msra.mxu0 0.0
    %1439 = vmatprep.subr.mxu0 0.0
    %1440 = vmatpush1.msra.mxu0 0.0
    %1441 = vmatprep.subr.mxu0 0.0
    %1442 = vmatpush1.msra.mxu0 0.0
    %1443 = vmatprep.subr.mxu0 0.0
    %1444 = vmatpush1.msra.mxu0 0.0
    %1445 = vmatprep.subr.mxu0 0.0
    %1446 = vmatpush1.msra.mxu0 0.0
    %1447 = vmatprep.subr.mxu0 0.0
    %1448 = vmatpush1.msra.mxu0 0.0
    %1449 = vmatprep.subr.mxu0 0.0
    %1450 = vmatpush1.msra.mxu0 0.0
    %1451 = vmatprep.subr.mxu0 0.0
    %1452 = vmatpush1.msra.mxu0 0.0
    %1453 = vmatprep.subr.mxu0 0.0
    %1454 = vmatpush1.msra.mxu0 0.0
    %1455 = vmatprep.subr.mxu0 0.0
    %1456 = vmatpush1.msra.mxu0 0.0
    %1457 = vmatprep.subr.mxu0 0.0
    %1458 = vmatpush1.msra.mxu0 0.0
    %1459 = vmatprep.subr.mxu0 0.0
    %1460 = vmatpush1.msra.mxu0 0.0
    %1461 = vmatprep.subr.mxu0 0.0
    %1462 = vmatpush1.msra.mxu0 0.0
    %1463 = vmatprep.subr.mxu0 0.0
    %1464 = vmatpush1.msra.mxu0 0.0
    %1465 = vmatprep.subr.mxu0 0.0
    %1466 = vmatpush1.msra.mxu0 0.0
    %1467 = vmatprep.mubr.f32.mxu0 0.0
    %1468 = vmatmul.mubr.f32.gmra.mrb[0].mxu0 %v1401
    %v1469 = vpop.f32.mrb[0].mxu0
    %v1470 = vadd.f32 0.0, %v1469
    %v1471 = vpop.f32.mrb[0].mxu0
    %v1472 = vadd.f32 0.0, %v1471
    %1473 = vdwg.mxu0
    %1474 = vmatprep.subr.mxu0 %v118
    %1475 = vmatpush1.msra.mxu0 %v117
    %1476 = vmatprep.subr.mxu0 %v122
    %1477 = vmatpush1.msra.mxu0 %v121
    %1478 = vmatprep.subr.mxu0 %v126
    %1479 = vmatpush1.msra.mxu0 %v125
    %1480 = vmatprep.subr.mxu0 %v130
    %1481 = vmatpush1.msra.mxu0 %v129
    %1482 = vmatprep.subr.mxu0 %v134
    %1483 = vmatpush1.msra.mxu0 %v133
    %1484 = vmatprep.subr.mxu0 %v138
    %1485 = vmatpush1.msra.mxu0 %v137
    %1486 = vmatprep.subr.mxu0 %v142
    %1487 = vmatpush1.msra.mxu0 %v141
    %1488 = vmatprep.subr.mxu0 %v146
    %1489 = vmatpush1.msra.mxu0 %v145
    %1490 = vmatprep.subr.mxu0 %v150
    %1491 = vmatpush1.msra.mxu0 %v149
    %1492 = vmatprep.subr.mxu0 %v154
    %1493 = vmatpush1.msra.mxu0 %v153
    %1494 = vmatprep.subr.mxu0 %v158
    %1495 = vmatpush1.msra.mxu0 %v157
    %1496 = vmatprep.subr.mxu0 %v162
    %1497 = vmatpush1.msra.mxu0 %v161
    %1498 = vmatprep.subr.mxu0 %v166
    %1499 = vmatpush1.msra.mxu0 %v165
    %1500 = vmatprep.subr.mxu0 %v170
    %1501 = vmatpush1.msra.mxu0 %v169
    %1502 = vmatprep.subr.mxu0 %v174
    %1503 = vmatpush1.msra.mxu0 %v173
    %1504 = vmatprep.subr.mxu0 %v178
    %1505 = vmatpush1.msra.mxu0 %v177
    %1506 = vmatprep.subr.mxu0 0.0
    %1507 = vmatpush1.msra.mxu0 0.0
    %1508 = vmatprep.subr.mxu0 0.0
    %1509 = vmatpush1.msra.mxu0 0.0
    %1510 = vmatprep.subr.mxu0 0.0
    %1511 = vmatpush1.msra.mxu0 0.0
    %1512 = vmatprep.subr.mxu0 0.0
    %1513 = vmatpush1.msra.mxu0 0.0
    %1514 = vmatprep.subr.mxu0 0.0
    %1515 = vmatpush1.msra.mxu0 0.0
    %1516 = vmatprep.subr.mxu0 0.0
    %1517 = vmatpush1.msra.mxu0 0.0
    %1518 = vmatprep.subr.mxu0 0.0
    %1519 = vmatpush1.msra.mxu0 0.0
    %1520 = vmatprep.subr.mxu0 0.0
    %1521 = vmatpush1.msra.mxu0 0.0
    %1522 = vmatprep.subr.mxu0 0.0
    %1523 = vmatpush1.msra.mxu0 0.0
    %1524 = vmatprep.subr.mxu0 0.0
    %1525 = vmatpush1.msra.mxu0 0.0
    %1526 = vmatprep.subr.mxu0 0.0
    %1527 = vmatpush1.msra.mxu0 0.0
    %1528 = vmatprep.subr.mxu0 0.0
    %1529 = vmatpush1.msra.mxu0 0.0
    %1530 = vmatprep.subr.mxu0 0.0
    %1531 = vmatpush1.msra.mxu0 0.0
    %1532 = vmatprep.subr.mxu0 0.0
    %1533 = vmatpush1.msra.mxu0 0.0
    %1534 = vmatprep.subr.mxu0 0.0
    %1535 = vmatpush1.msra.mxu0 0.0
    %1536 = vmatprep.subr.mxu0 0.0
    %1537 = vmatpush1.msra.mxu0 0.0
    %1538 = vmatprep.mubr.f32.mxu0 0.0
    %1539 = vmatmul.mubr.f32.gmra.mrb[0].mxu0 %v1401
    %v1540 = vpop.f32.mrb[0].mxu0
    %v1541 = vadd.f32 0.0, %v1540
    %v1542 = vpop.f32.mrb[0].mxu0
    %v1543 = vadd.f32 0.0, %v1542
    %1544 = vdwg.mxu0
    %v1549 = vrot.slane %v1470, 3
    %v1550 = vrot.slane %v1472, 3
    %v1551 = vrot.slane %v1541, 3
    %v1552 = vrot.slane %v1543, 3
    %v1553 = vrot.slane %v1470, 4
    %v1554 = vrot.slane %v1472, 4
    %v1555 = vrot.slane %v1541, 4
    %v1556 = vrot.slane %v1543, 4
    %v1565 = vadd.f32 %v239, %v1549
    %v1566 = vadd.f32 %v240, %v1550
    %v1567 = vadd.f32 %v241, %v1551
    %v1568 = vadd.f32 %v242, %v1552
    %v1569 = vadd.f32 %v243, %v1553
    %v1570 = vadd.f32 %v244, %v1554
    %v1571 = vadd.f32 %v245, %v1555
    %v1572 = vadd.f32 %v246, %v1556
    %v1573 = vxor.u32 %v1565, 2147483648
    %v1574 = vxor.u32 %v1569, 2147483648
    %v1575 = vmul.f32 %v1573, 1.442695
    %v1576 = vpow.pop %v1575
    %v1577 = vmul.f32 %v1574, 1.442695
    %v1578 = vpow.pop %v1577
    %v1579 = vadd.f32 %v1576, 1.0
    %v1580 = vadd.f32 %v1578, 1.0
    %v1581 = vrcp.pop %v1579
    %v1582 = vmul.f32 1.0, %v1581
    %v1583 = vrcp.pop %v1580
    %v1584 = vmul.f32 1.0, %v1583
    %v1585 = vxor.u32 %v1566, 2147483648
    %v1586 = vxor.u32 %v1570, 2147483648
    %v1587 = vmul.f32 %v1585, 1.442695
    %v1588 = vpow.pop %v1587
    %v1589 = vmul.f32 %v1586, 1.442695
    %v1590 = vpow.pop %v1589
    %v1591 = vadd.f32 %v1588, 1.0
    %v1592 = vadd.f32 %v1590, 1.0
    %v1593 = vrcp.pop %v1591
    %v1594 = vmul.f32 1.0, %v1593
    %v1595 = vrcp.pop %v1592
    %v1596 = vmul.f32 1.0, %v1595
    %v1597 = vtanh.pop %v1567
    %v1598 = vtanh.pop %v1571
    %v1599 = vxor.u32 %v1568, 2147483648
    %v1600 = vxor.u32 %v1572, 2147483648
    %v1601 = vmul.f32 %v1599, 1.442695
    %v1602 = vpow.pop %v1601
    %v1603 = vmul.f32 %v1600, 1.442695
    %v1604 = vpow.pop %v1603
    %v1605 = vadd.f32 %v1602, 1.0
    %v1606 = vadd.f32 %v1604, 1.0
    %v1607 = vrcp.pop %v1605
    %v1608 = vmul.f32 1.0, %v1607
    %v1609 = vrcp.pop %v1606
    %v1610 = vmul.f32 1.0, %v1609
    %v1613 = vrot.slane %v1386, 7
    %v1614 = vrot.slane %v1387, 7
    %v1617 = vmul.f32 %v1594, %v1613
    %v1618 = vmul.f32 %v1596, %v1614
    %v1619 = vmul.f32 %v1582, %v1597
    %v1620 = vmul.f32 %v1584, %v1598
    %v1621 = vadd.f32 %v1617, %v1619
    %v1622 = vadd.f32 %v1618, %v1620
    %v1623 = vtanh.pop %v1621
    %v1624 = vtanh.pop %v1622
    %v1625 = vmul.f32 %v1608, %v1623
    %v1626 = vmul.f32 %v1610, %v1624
    %v1629 = vrot.slane %v1626, 7
    %vm1630 = vcmask 1046534
    %v1631 = vsel %vm1630, %v1629, %v1625
    %1633 = vst [vmem:[#allocation2 + $0x5] sm:$0x60] %v1631
    %v1634 = vrot.slane %v1625, 5
    %v1635 = vrot.slane %v1626, 4
    %v1636 = vsel %vm464, %v1635, %v1634
    %1638 = vmatprep.subr.mxu0 %v116
    %1639 = vmatpush1.msra.mxu0 %v115
    %1640 = vmatprep.subr.mxu0 %v120
    %1641 = vmatpush1.msra.mxu0 %v119
    %1642 = vmatprep.subr.mxu0 %v124
    %1643 = vmatpush1.msra.mxu0 %v123
    %1644 = vmatprep.subr.mxu0 %v128
    %1645 = vmatpush1.msra.mxu0 %v127
    %1646 = vmatprep.subr.mxu0 %v132
    %1647 = vmatpush1.msra.mxu0 %v131
    %1648 = vmatprep.subr.mxu0 %v136
    %1649 = vmatpush1.msra.mxu0 %v135
    %1650 = vmatprep.subr.mxu0 %v140
    %1651 = vmatpush1.msra.mxu0 %v139
    %1652 = vmatprep.subr.mxu0 %v144
    %1653 = vmatpush1.msra.mxu0 %v143
    %1654 = vmatprep.subr.mxu0 %v148
    %1655 = vmatpush1.msra.mxu0 %v147
    %1656 = vmatprep.subr.mxu0 %v152
    %1657 = vmatpush1.msra.mxu0 %v151
    %1658 = vmatprep.subr.mxu0 %v156
    %1659 = vmatpush1.msra.mxu0 %v155
    %1660 = vmatprep.subr.mxu0 %v160
    %1661 = vmatpush1.msra.mxu0 %v159
    %1662 = vmatprep.subr.mxu0 %v164
    %1663 = vmatpush1.msra.mxu0 %v163
    %1664 = vmatprep.subr.mxu0 %v168
    %1665 = vmatpush1.msra.mxu0 %v167
    %1666 = vmatprep.subr.mxu0 %v172
    %1667 = vmatpush1.msra.mxu0 %v171
    %1668 = vmatprep.subr.mxu0 %v176
    %1669 = vmatpush1.msra.mxu0 %v175
    %1670 = vmatprep.subr.mxu0 0.0
    %1671 = vmatpush1.msra.mxu0 0.0
    %1672 = vmatprep.subr.mxu0 0.0
    %1673 = vmatpush1.msra.mxu0 0.0
    %1674 = vmatprep.subr.mxu0 0.0
    %1675 = vmatpush1.msra.mxu0 0.0
    %1676 = vmatprep.subr.mxu0 0.0
    %1677 = vmatpush1.msra.mxu0 0.0
    %1678 = vmatprep.subr.mxu0 0.0
    %1679 = vmatpush1.msra.mxu0 0.0
    %1680 = vmatprep.subr.mxu0 0.0
    %1681 = vmatpush1.msra.mxu0 0.0
    %1682 = vmatprep.subr.mxu0 0.0
    %1683 = vmatpush1.msra.mxu0 0.0
    %1684 = vmatprep.subr.mxu0 0.0
    %1685 = vmatpush1.msra.mxu0 0.0
    %1686 = vmatprep.subr.mxu0 0.0
    %1687 = vmatpush1.msra.mxu0 0.0
    %1688 = vmatprep.subr.mxu0 0.0
    %1689 = vmatpush1.msra.mxu0 0.0
    %1690 = vmatprep.subr.mxu0 0.0
    %1691 = vmatpush1.msra.mxu0 0.0
    %1692 = vmatprep.subr.mxu0 0.0
    %1693 = vmatpush1.msra.mxu0 0.0
    %1694 = vmatprep.subr.mxu0 0.0
    %1695 = vmatpush1.msra.mxu0 0.0
    %1696 = vmatprep.subr.mxu0 0.0
    %1697 = vmatpush1.msra.mxu0 0.0
    %1698 = vmatprep.subr.mxu0 0.0
    %1699 = vmatpush1.msra.mxu0 0.0
    %1700 = vmatprep.subr.mxu0 0.0
    %1701 = vmatpush1.msra.mxu0 0.0
    %1702 = vmatprep.mubr.f32.mxu0 0.0
    %1703 = vmatmul.mubr.f32.gmra.mrb[0].mxu0 %v1636
    %v1704 = vpop.f32.mrb[0].mxu0
    %v1705 = vadd.f32 0.0, %v1704
    %v1706 = vpop.f32.mrb[0].mxu0
    %v1707 = vadd.f32 0.0, %v1706
    %1708 = vdwg.mxu0
    %1709 = vmatprep.subr.mxu0 %v118
    %1710 = vmatpush1.msra.mxu0 %v117
    %1711 = vmatprep.subr.mxu0 %v122
    %1712 = vmatpush1.msra.mxu0 %v121
    %1713 = vmatprep.subr.mxu0 %v126
    %1714 = vmatpush1.msra.mxu0 %v125
    %1715 = vmatprep.subr.mxu0 %v130
    %1716 = vmatpush1.msra.mxu0 %v129
    %1717 = vmatprep.subr.mxu0 %v134
    %1718 = vmatpush1.msra.mxu0 %v133
    %1719 = vmatprep.subr.mxu0 %v138
    %1720 = vmatpush1.msra.mxu0 %v137
    %1721 = vmatprep.subr.mxu0 %v142
    %1722 = vmatpush1.msra.mxu0 %v141
    %1723 = vmatprep.subr.mxu0 %v146
    %1724 = vmatpush1.msra.mxu0 %v145
    %1725 = vmatprep.subr.mxu0 %v150
    %1726 = vmatpush1.msra.mxu0 %v149
    %1727 = vmatprep.subr.mxu0 %v154
    %1728 = vmatpush1.msra.mxu0 %v153
    %1729 = vmatprep.subr.mxu0 %v158
    %1730 = vmatpush1.msra.mxu0 %v157
    %1731 = vmatprep.subr.mxu0 %v162
    %1732 = vmatpush1.msra.mxu0 %v161
    %1733 = vmatprep.subr.mxu0 %v166
    %1734 = vmatpush1.msra.mxu0 %v165
    %1735 = vmatprep.subr.mxu0 %v170
    %1736 = vmatpush1.msra.mxu0 %v169
    %1737 = vmatprep.subr.mxu0 %v174
    %1738 = vmatpush1.msra.mxu0 %v173
    %1739 = vmatprep.subr.mxu0 %v178
    %1740 = vmatpush1.msra.mxu0 %v177
    %1741 = vmatprep.subr.mxu0 0.0
    %1742 = vmatpush1.msra.mxu0 0.0
    %1743 = vmatprep.subr.mxu0 0.0
    %1744 = vmatpush1.msra.mxu0 0.0
    %1745 = vmatprep.subr.mxu0 0.0
    %1746 = vmatpush1.msra.mxu0 0.0
    %1747 = vmatprep.subr.mxu0 0.0
    %1748 = vmatpush1.msra.mxu0 0.0
    %1749 = vmatprep.subr.mxu0 0.0
    %1750 = vmatpush1.msra.mxu0 0.0
    %1751 = vmatprep.subr.mxu0 0.0
    %1752 = vmatpush1.msra.mxu0 0.0
    %1753 = vmatprep.subr.mxu0 0.0
    %1754 = vmatpush1.msra.mxu0 0.0
    %1755 = vmatprep.subr.mxu0 0.0
    %1756 = vmatpush1.msra.mxu0 0.0
    %1757 = vmatprep.subr.mxu0 0.0
    %1758 = vmatpush1.msra.mxu0 0.0
    %1759 = vmatprep.subr.mxu0 0.0
    %1760 = vmatpush1.msra.mxu0 0.0
    %1761 = vmatprep.subr.mxu0 0.0
    %1762 = vmatpush1.msra.mxu0 0.0
    %1763 = vmatprep.subr.mxu0 0.0
    %1764 = vmatpush1.msra.mxu0 0.0
    %1765 = vmatprep.subr.mxu0 0.0
    %1766 = vmatpush1.msra.mxu0 0.0
    %1767 = vmatprep.subr.mxu0 0.0
    %1768 = vmatpush1.msra.mxu0 0.0
    %1769 = vmatprep.subr.mxu0 0.0
    %1770 = vmatpush1.msra.mxu0 0.0
    %1771 = vmatprep.subr.mxu0 0.0
    %1772 = vmatpush1.msra.mxu0 0.0
    %1773 = vmatprep.mubr.f32.mxu0 0.0
    %1774 = vmatmul.mubr.f32.gmra.mrb[0].mxu0 %v1636
    %v1775 = vpop.f32.mrb[0].mxu0
    %v1776 = vadd.f32 0.0, %v1775
    %v1777 = vpop.f32.mrb[0].mxu0
    %v1778 = vadd.f32 0.0, %v1777
    %1779 = vdwg.mxu0
    %v1784 = vrot.slane %v1705, 2
    %v1785 = vrot.slane %v1707, 2
    %v1786 = vrot.slane %v1776, 2
    %v1787 = vrot.slane %v1778, 2
    %v1788 = vrot.slane %v1705, 3
    %v1789 = vrot.slane %v1707, 3
    %v1790 = vrot.slane %v1776, 3
    %v1791 = vrot.slane %v1778, 3
    %v1800 = vadd.f32 %v239, %v1784
    %v1801 = vadd.f32 %v240, %v1785
    %v1802 = vadd.f32 %v241, %v1786
    %v1803 = vadd.f32 %v242, %v1787
    %v1804 = vadd.f32 %v243, %v1788
    %v1805 = vadd.f32 %v244, %v1789
    %v1806 = vadd.f32 %v245, %v1790
    %v1807 = vadd.f32 %v246, %v1791
    %v1808 = vxor.u32 %v1800, 2147483648
    %v1809 = vxor.u32 %v1804, 2147483648
    %v1810 = vmul.f32 %v1808, 1.442695
    %v1811 = vpow.pop %v1810
    %v1812 = vmul.f32 %v1809, 1.442695
    %v1813 = vpow.pop %v1812
    %v1814 = vadd.f32 %v1811, 1.0
    %v1815 = vadd.f32 %v1813, 1.0
    %v1816 = vrcp.pop %v1814
    %v1817 = vmul.f32 1.0, %v1816
    %v1818 = vrcp.pop %v1815
    %v1819 = vmul.f32 1.0, %v1818
    %v1820 = vxor.u32 %v1801, 2147483648
    %v1821 = vxor.u32 %v1805, 2147483648
    %v1822 = vmul.f32 %v1820, 1.442695
    %v1823 = vpow.pop %v1822
    %v1824 = vmul.f32 %v1821, 1.442695
    %v1825 = vpow.pop %v1824
    %v1826 = vadd.f32 %v1823, 1.0
    %v1827 = vadd.f32 %v1825, 1.0
    %v1828 = vrcp.pop %v1826
    %v1829 = vmul.f32 1.0, %v1828
    %v1830 = vrcp.pop %v1827
    %v1831 = vmul.f32 1.0, %v1830
    %v1832 = vtanh.pop %v1802
    %v1833 = vtanh.pop %v1806
    %v1834 = vxor.u32 %v1803, 2147483648
    %v1835 = vxor.u32 %v1807, 2147483648
    %v1836 = vmul.f32 %v1834, 1.442695
    %v1837 = vpow.pop %v1836
    %v1838 = vmul.f32 %v1835, 1.442695
    %v1839 = vpow.pop %v1838
    %v1840 = vadd.f32 %v1837, 1.0
    %v1841 = vadd.f32 %v1839, 1.0
    %v1842 = vrcp.pop %v1840
    %v1843 = vmul.f32 1.0, %v1842
    %v1844 = vrcp.pop %v1841
    %v1845 = vmul.f32 1.0, %v1844
    %v1848 = vrot.slane %v1621, 7
    %v1849 = vrot.slane %v1622, 7
    %v1852 = vmul.f32 %v1829, %v1848
    %v1853 = vmul.f32 %v1831, %v1849
    %v1854 = vmul.f32 %v1817, %v1832
    %v1855 = vmul.f32 %v1819, %v1833
    %v1856 = vadd.f32 %v1852, %v1854
    %v1857 = vadd.f32 %v1853, %v1855
    %v1858 = vtanh.pop %v1856
    %v1859 = vtanh.pop %v1857
    %v1860 = vmul.f32 %v1843, %v1858
    %v1861 = vmul.f32 %v1845, %v1859
    %v1864 = vrot.slane %v1861, 7
    %vm1865 = vcmask 1047559
    %v1866 = vsel %vm1865, %v1864, %v1860
    %1868 = vst [vmem:[#allocation2 + $0x6] sm:$0xc0] %v1866
    %v1869 = vrot.slane %v1860, 6
    %v1870 = vrot.slane %v1861, 5
    %v1871 = vsel %vm464, %v1870, %v1869
    %1873 = vmatprep.subr.mxu0 %v116
    %1874 = vmatpush1.msra.mxu0 %v115
    %1875 = vmatprep.subr.mxu0 %v120
    %1876 = vmatpush1.msra.mxu0 %v119
    %1877 = vmatprep.subr.mxu0 %v124
    %1878 = vmatpush1.msra.mxu0 %v123
    %1879 = vmatprep.subr.mxu0 %v128
    %1880 = vmatpush1.msra.mxu0 %v127
    %1881 = vmatprep.subr.mxu0 %v132
    %1882 = vmatpush1.msra.mxu0 %v131
    %1883 = vmatprep.subr.mxu0 %v136
    %1884 = vmatpush1.msra.mxu0 %v135
    %1885 = vmatprep.subr.mxu0 %v140
    %1886 = vmatpush1.msra.mxu0 %v139
    %1887 = vmatprep.subr.mxu0 %v144
    %1888 = vmatpush1.msra.mxu0 %v143
    %1889 = vmatprep.subr.mxu0 %v148
    %1890 = vmatpush1.msra.mxu0 %v147
    %1891 = vmatprep.subr.mxu0 %v152
    %1892 = vmatpush1.msra.mxu0 %v151
    %1893 = vmatprep.subr.mxu0 %v156
    %1894 = vmatpush1.msra.mxu0 %v155
    %1895 = vmatprep.subr.mxu0 %v160
    %1896 = vmatpush1.msra.mxu0 %v159
    %1897 = vmatprep.subr.mxu0 %v164
    %1898 = vmatpush1.msra.mxu0 %v163
    %1899 = vmatprep.subr.mxu0 %v168
    %1900 = vmatpush1.msra.mxu0 %v167
    %1901 = vmatprep.subr.mxu0 %v172
    %1902 = vmatpush1.msra.mxu0 %v171
    %1903 = vmatprep.subr.mxu0 %v176
    %1904 = vmatpush1.msra.mxu0 %v175
    %1905 = vmatprep.subr.mxu0 0.0
    %1906 = vmatpush1.msra.mxu0 0.0
    %1907 = vmatprep.subr.mxu0 0.0
    %1908 = vmatpush1.msra.mxu0 0.0
    %1909 = vmatprep.subr.mxu0 0.0
    %1910 = vmatpush1.msra.mxu0 0.0
    %1911 = vmatprep.subr.mxu0 0.0
    %1912 = vmatpush1.msra.mxu0 0.0
    %1913 = vmatprep.subr.mxu0 0.0
    %1914 = vmatpush1.msra.mxu0 0.0
    %1915 = vmatprep.subr.mxu0 0.0
    %1916 = vmatpush1.msra.mxu0 0.0
    %1917 = vmatprep.subr.mxu0 0.0
    %1918 = vmatpush1.msra.mxu0 0.0
    %1919 = vmatprep.subr.mxu0 0.0
    %1920 = vmatpush1.msra.mxu0 0.0
    %1921 = vmatprep.subr.mxu0 0.0
    %1922 = vmatpush1.msra.mxu0 0.0
    %1923 = vmatprep.subr.mxu0 0.0
    %1924 = vmatpush1.msra.mxu0 0.0
    %1925 = vmatprep.subr.mxu0 0.0
    %1926 = vmatpush1.msra.mxu0 0.0
    %1927 = vmatprep.subr.mxu0 0.0
    %1928 = vmatpush1.msra.mxu0 0.0
    %1929 = vmatprep.subr.mxu0 0.0
    %1930 = vmatpush1.msra.mxu0 0.0
    %1931 = vmatprep.subr.mxu0 0.0
    %1932 = vmatpush1.msra.mxu0 0.0
    %1933 = vmatprep.subr.mxu0 0.0
    %1934 = vmatpush1.msra.mxu0 0.0
    %1935 = vmatprep.subr.mxu0 0.0
    %1936 = vmatpush1.msra.mxu0 0.0
    %1937 = vmatprep.mubr.f32.mxu0 0.0
    %1938 = vmatmul.mubr.f32.gmra.mrb[0].mxu0 %v1871
    %v1939 = vpop.f32.mrb[0].mxu0
    %v1940 = vadd.f32 0.0, %v1939
    %v1941 = vpop.f32.mrb[0].mxu0
    %v1942 = vadd.f32 0.0, %v1941
    %1943 = vdwg.mxu0
    %1944 = vmatprep.subr.mxu0 %v118
    %1945 = vmatpush1.msra.mxu0 %v117
    %1946 = vmatprep.subr.mxu0 %v122
    %1947 = vmatpush1.msra.mxu0 %v121
    %1948 = vmatprep.subr.mxu0 %v126
    %1949 = vmatpush1.msra.mxu0 %v125
    %1950 = vmatprep.subr.mxu0 %v130
    %1951 = vmatpush1.msra.mxu0 %v129
    %1952 = vmatprep.subr.mxu0 %v134
    %1953 = vmatpush1.msra.mxu0 %v133
    %1954 = vmatprep.subr.mxu0 %v138
    %1955 = vmatpush1.msra.mxu0 %v137
    %1956 = vmatprep.subr.mxu0 %v142
    %1957 = vmatpush1.msra.mxu0 %v141
    %1958 = vmatprep.subr.mxu0 %v146
    %1959 = vmatpush1.msra.mxu0 %v145
    %1960 = vmatprep.subr.mxu0 %v150
    %1961 = vmatpush1.msra.mxu0 %v149
    %1962 = vmatprep.subr.mxu0 %v154
    %1963 = vmatpush1.msra.mxu0 %v153
    %1964 = vmatprep.subr.mxu0 %v158
    %1965 = vmatpush1.msra.mxu0 %v157
    %1966 = vmatprep.subr.mxu0 %v162
    %1967 = vmatpush1.msra.mxu0 %v161
    %1968 = vmatprep.subr.mxu0 %v166
    %1969 = vmatpush1.msra.mxu0 %v165
    %1970 = vmatprep.subr.mxu0 %v170
    %1971 = vmatpush1.msra.mxu0 %v169
    %1972 = vmatprep.subr.mxu0 %v174
    %1973 = vmatpush1.msra.mxu0 %v173
    %1974 = vmatprep.subr.mxu0 %v178
    %1975 = vmatpush1.msra.mxu0 %v177
    %1976 = vmatprep.subr.mxu0 0.0
    %1977 = vmatpush1.msra.mxu0 0.0
    %1978 = vmatprep.subr.mxu0 0.0
    %1979 = vmatpush1.msra.mxu0 0.0
    %1980 = vmatprep.subr.mxu0 0.0
    %1981 = vmatpush1.msra.mxu0 0.0
    %1982 = vmatprep.subr.mxu0 0.0
    %1983 = vmatpush1.msra.mxu0 0.0
    %1984 = vmatprep.subr.mxu0 0.0
    %1985 = vmatpush1.msra.mxu0 0.0
    %1986 = vmatprep.subr.mxu0 0.0
    %1987 = vmatpush1.msra.mxu0 0.0
    %1988 = vmatprep.subr.mxu0 0.0
    %1989 = vmatpush1.msra.mxu0 0.0
    %1990 = vmatprep.subr.mxu0 0.0
    %1991 = vmatpush1.msra.mxu0 0.0
    %1992 = vmatprep.subr.mxu0 0.0
    %1993 = vmatpush1.msra.mxu0 0.0
    %1994 = vmatprep.subr.mxu0 0.0
    %1995 = vmatpush1.msra.mxu0 0.0
    %1996 = vmatprep.subr.mxu0 0.0
    %1997 = vmatpush1.msra.mxu0 0.0
    %1998 = vmatprep.subr.mxu0 0.0
    %1999 = vmatpush1.msra.mxu0 0.0
    %2000 = vmatprep.subr.mxu0 0.0
    %2001 = vmatpush1.msra.mxu0 0.0
    %2002 = vmatprep.subr.mxu0 0.0
    %2003 = vmatpush1.msra.mxu0 0.0
    %2004 = vmatprep.subr.mxu0 0.0
    %2005 = vmatpush1.msra.mxu0 0.0
    %2006 = vmatprep.subr.mxu0 0.0
    %2007 = vmatpush1.msra.mxu0 0.0
    %2008 = vmatprep.mubr.f32.mxu0 0.0
    %2009 = vmatmul.mubr.f32.gmra.mrb[0].mxu0 %v1871
    %v2010 = vpop.f32.mrb[0].mxu0
    %v2011 = vadd.f32 0.0, %v2010
    %v2012 = vpop.f32.mrb[0].mxu0
    %v2013 = vadd.f32 0.0, %v2012
    %2014 = vdwg.mxu0
    %v2019 = vrot.slane %v1940, 1
    %v2020 = vrot.slane %v1942, 1
    %v2021 = vrot.slane %v2011, 1
    %v2022 = vrot.slane %v2013, 1
    %v2023 = vrot.slane %v1940, 2
    %v2024 = vrot.slane %v1942, 2
    %v2025 = vrot.slane %v2011, 2
    %v2026 = vrot.slane %v2013, 2
    %v2035 = vadd.f32 %v239, %v2019
    %v2036 = vadd.f32 %v240, %v2020
    %v2037 = vadd.f32 %v241, %v2021
    %v2038 = vadd.f32 %v242, %v2022
    %v2039 = vadd.f32 %v243, %v2023
    %v2040 = vadd.f32 %v244, %v2024
    %v2041 = vadd.f32 %v245, %v2025
    %v2042 = vadd.f32 %v246, %v2026
    %v2043 = vxor.u32 %v2035, 2147483648
    %v2044 = vxor.u32 %v2039, 2147483648
    %v2045 = vmul.f32 %v2043, 1.442695
    %v2046 = vpow.pop %v2045
    %v2047 = vmul.f32 %v2044, 1.442695
    %v2048 = vpow.pop %v2047
    %v2049 = vadd.f32 %v2046, 1.0
    %v2050 = vadd.f32 %v2048, 1.0
    %v2051 = vrcp.pop %v2049
    %v2052 = vmul.f32 1.0, %v2051
    %v2053 = vrcp.pop %v2050
    %v2054 = vmul.f32 1.0, %v2053
    %v2055 = vxor.u32 %v2036, 2147483648
    %v2056 = vxor.u32 %v2040, 2147483648
    %v2057 = vmul.f32 %v2055, 1.442695
    %v2058 = vpow.pop %v2057
    %v2059 = vmul.f32 %v2056, 1.442695
    %v2060 = vpow.pop %v2059
    %v2061 = vadd.f32 %v2058, 1.0
    %v2062 = vadd.f32 %v2060, 1.0
    %v2063 = vrcp.pop %v2061
    %v2064 = vmul.f32 1.0, %v2063
    %v2065 = vrcp.pop %v2062
    %v2066 = vmul.f32 1.0, %v2065
    %v2067 = vtanh.pop %v2037
    %v2068 = vtanh.pop %v2041
    %v2069 = vxor.u32 %v2038, 2147483648
    %v2070 = vxor.u32 %v2042, 2147483648
    %v2071 = vmul.f32 %v2069, 1.442695
    %v2072 = vpow.pop %v2071
    %v2073 = vmul.f32 %v2070, 1.442695
    %v2074 = vpow.pop %v2073
    %v2075 = vadd.f32 %v2072, 1.0
    %v2076 = vadd.f32 %v2074, 1.0
    %v2077 = vrcp.pop %v2075
    %v2078 = vmul.f32 1.0, %v2077
    %v2079 = vrcp.pop %v2076
    %v2080 = vmul.f32 1.0, %v2079
    %v2083 = vrot.slane %v1856, 7
    %v2084 = vrot.slane %v1857, 7
    %v2087 = vmul.f32 %v2064, %v2083
    %v2088 = vmul.f32 %v2066, %v2084
    %v2089 = vmul.f32 %v2052, %v2067
    %v2090 = vmul.f32 %v2054, %v2068
    %v2091 = vadd.f32 %v2087, %v2089
    %v2092 = vadd.f32 %v2088, %v2090
    %v2093 = vtanh.pop %v2091
    %v2094 = vtanh.pop %v2092
    %v2095 = vmul.f32 %v2078, %v2093
    %v2096 = vmul.f32 %v2080, %v2094
    %v2099 = vrot.slane %v2096, 7
    %2102 = vst [vmem:[#allocation2 + $0x7] sm:$0x80] %v2095
    %2103 = vst [vmem:[#allocation2 + $0xf] sm:$0x1] %v2099
    %v2104 = vld [vmem:[#allocation2] sm:$0xff]
    %v2105 = vld [vmem:[#allocation2 + $0x8] sm:$0xff]
    %v2106 = vld [vmem:[#allocation6] sm:$0xff]
    %v2107 = vld [vmem:[#allocation6 + $0x8] sm:$0xff]
    %v2108 = vld [vmem:[#allocation6 + $0x10] sm:$0xff]
    %v2109 = vld [vmem:[#allocation6 + $0x18] sm:$0xff]
    %v2110 = vld [vmem:[#allocation6 + $0x20] sm:$0xff]
    %v2111 = vld [vmem:[#allocation6 + $0x28] sm:$0xff]
    %v2112 = vld [vmem:[#allocation6 + $0x30] sm:$0xff]
    %v2113 = vld [vmem:[#allocation6 + $0x38] sm:$0xff]
    %v2114 = vld [vmem:[#allocation6 + $0x40] sm:$0xff]
    %v2115 = vld [vmem:[#allocation6 + $0x48] sm:$0xff]
    %v2116 = vld [vmem:[#allocation6 + $0x50] sm:$0xff]
    %v2117 = vld [vmem:[#allocation6 + $0x58] sm:$0xff]
    %v2118 = vld [vmem:[#allocation6 + $0x60] sm:$0xff]
    %v2119 = vld [vmem:[#allocation6 + $0x68] sm:$0xff]
    %v2120 = vld [vmem:[#allocation6 + $0x70] sm:$0xff]
    %v2121 = vld [vmem:[#allocation6 + $0x78] sm:$0xff]
    %v2122 = vld [vmem:[#allocation6 + $0x80] sm:$0xff]
    %v2123 = vld [vmem:[#allocation6 + $0x88] sm:$0xff]
    %v2124 = vld [vmem:[#allocation6 + $0x90] sm:$0xff]
    %v2125 = vld [vmem:[#allocation6 + $0x98] sm:$0xff]
    %v2126 = vld [vmem:[#allocation6 + $0xa0] sm:$0xff]
    %v2127 = vld [vmem:[#allocation6 + $0xa8] sm:$0xff]
    %v2128 = vld [vmem:[#allocation6 + $0xb0] sm:$0xff]
    %v2129 = vld [vmem:[#allocation6 + $0xb8] sm:$0xff]
    %v2130 = vld [vmem:[#allocation6 + $0xc0] sm:$0xff]
    %v2131 = vld [vmem:[#allocation6 + $0xc8] sm:$0xff]
    %v2132 = vld [vmem:[#allocation6 + $0xd0] sm:$0xff]
    %v2133 = vld [vmem:[#allocation6 + $0xd8] sm:$0xff]
    %v2134 = vld [vmem:[#allocation6 + $0xe0] sm:$0xff]
    %v2135 = vld [vmem:[#allocation6 + $0xe8] sm:$0xff]
    %v2136 = vld [vmem:[#allocation6 + $0xf0] sm:$0xff]
    %v2137 = vld [vmem:[#allocation6 + $0xf8] sm:$0xff]
    %v2138 = vld [vmem:[#allocation6 + $0x100] sm:$0xff]
    %v2139 = vld [vmem:[#allocation6 + $0x108] sm:$0xff]
    %v2140 = vld [vmem:[#allocation6 + $0x110] sm:$0xff]
    %v2141 = vld [vmem:[#allocation6 + $0x118] sm:$0xff]
    %v2142 = vld [vmem:[#allocation6 + $0x120] sm:$0xff]
    %v2143 = vld [vmem:[#allocation6 + $0x128] sm:$0xff]
    %v2144 = vld [vmem:[#allocation6 + $0x130] sm:$0xff]
    %v2145 = vld [vmem:[#allocation6 + $0x138] sm:$0xff]
    %v2146 = vld [vmem:[#allocation6 + $0x140] sm:$0xff]
    %v2147 = vld [vmem:[#allocation6 + $0x148] sm:$0xff]
    %v2148 = vld [vmem:[#allocation6 + $0x150] sm:$0xff]
    %v2149 = vld [vmem:[#allocation6 + $0x158] sm:$0xff]
    %v2150 = vld [vmem:[#allocation6 + $0x160] sm:$0xff]
    %v2151 = vld [vmem:[#allocation6 + $0x168] sm:$0xff]
    %v2152 = vld [vmem:[#allocation6 + $0x170] sm:$0xff]
    %v2153 = vld [vmem:[#allocation6 + $0x178] sm:$0xff]
    %v2154 = vld [vmem:[#allocation6 + $0x180] sm:$0xff]
    %v2155 = vld [vmem:[#allocation6 + $0x188] sm:$0xff]
    %v2156 = vld [vmem:[#allocation6 + $0x190] sm:$0xff]
    %v2157 = vld [vmem:[#allocation6 + $0x198] sm:$0xff]
    %v2158 = vld [vmem:[#allocation6 + $0x1a0] sm:$0xff]
    %v2159 = vld [vmem:[#allocation6 + $0x1a8] sm:$0xff]
    %v2160 = vld [vmem:[#allocation6 + $0x1b0] sm:$0xff]
    %v2161 = vld [vmem:[#allocation6 + $0x1b8] sm:$0xff]
    %v2162 = vld [vmem:[#allocation6 + $0x1c0] sm:$0xff]
    %v2163 = vld [vmem:[#allocation6 + $0x1c8] sm:$0xff]
    %v2164 = vld [vmem:[#allocation6 + $0x1d0] sm:$0xff]
    %v2165 = vld [vmem:[#allocation6 + $0x1d8] sm:$0xff]
    %v2166 = vld [vmem:[#allocation6 + $0x1e0] sm:$0xff]
    %v2167 = vld [vmem:[#allocation6 + $0x1e8] sm:$0xff]
    %v2168 = vld [vmem:[#allocation6 + $0x1f0] sm:$0xff]
    %v2169 = vld [vmem:[#allocation6 + $0x1f8] sm:$0xff]
    %v2170 = vld [vmem:[%s6] sm:$0xf]
    %v2172 = vlaneseq
    %v2173 = vshrl.u32 %v2172, 7
    %v2174 = vsub.s32 0, %v2173
    %v2175 = vrot.slane %v2170, %v2174
    %v2176 = vlaneseq
    %v2177 = vshrl.u32 %v2176, 7
    %v2178 = vsub.s32 1, %v2177
    %v2179 = vrot.slane %v2170, %v2178
    %v2180 = vlaneseq
    %v2181 = vshrl.u32 %v2180, 7
    %v2182 = vsub.s32 2, %v2181
    %v2183 = vrot.slane %v2170, %v2182
    %v2184 = vlaneseq
    %v2185 = vshrl.u32 %v2184, 7
    %v2186 = vsub.s32 3, %v2185
    %v2187 = vrot.slane %v2170, %v2186
    %2192 = vmatprep.subr.mxu0 %v2107
    %2193 = vmatpush1.msra.mxu0 %v2106
    %2194 = vmatprep.subr.mxu0 %v2111
    %2195 = vmatpush1.msra.mxu0 %v2110
    %2196 = vmatprep.subr.mxu0 %v2115
    %2197 = vmatpush1.msra.mxu0 %v2114
    %2198 = vmatprep.subr.mxu0 %v2119
    %2199 = vmatpush1.msra.mxu0 %v2118
    %2200 = vmatprep.subr.mxu0 %v2123
    %2201 = vmatpush1.msra.mxu0 %v2122
    %2202 = vmatprep.subr.mxu0 %v2127
    %2203 = vmatpush1.msra.mxu0 %v2126
    %2204 = vmatprep.subr.mxu0 %v2131
    %2205 = vmatpush1.msra.mxu0 %v2130
    %2206 = vmatprep.subr.mxu0 %v2135
    %2207 = vmatpush1.msra.mxu0 %v2134
    %2208 = vmatprep.subr.mxu0 %v2139
    %2209 = vmatpush1.msra.mxu0 %v2138
    %2210 = vmatprep.subr.mxu0 %v2143
    %2211 = vmatpush1.msra.mxu0 %v2142
    %2212 = vmatprep.subr.mxu0 %v2147
    %2213 = vmatpush1.msra.mxu0 %v2146
    %2214 = vmatprep.subr.mxu0 %v2151
    %2215 = vmatpush1.msra.mxu0 %v2150
    %2216 = vmatprep.subr.mxu0 %v2155
    %2217 = vmatpush1.msra.mxu0 %v2154
    %2218 = vmatprep.subr.mxu0 %v2159
    %2219 = vmatpush1.msra.mxu0 %v2158
    %2220 = vmatprep.subr.mxu0 %v2163
    %2221 = vmatpush1.msra.mxu0 %v2162
    %2222 = vmatprep.subr.mxu0 %v2167
    %2223 = vmatpush1.msra.mxu0 %v2166
    %2224 = vmatprep.subr.mxu0 0.0
    %2225 = vmatpush1.msra.mxu0 0.0
    %2226 = vmatprep.subr.mxu0 0.0
    %2227 = vmatpush1.msra.mxu0 0.0
    %2228 = vmatprep.subr.mxu0 0.0
    %2229 = vmatpush1.msra.mxu0 0.0
    %2230 = vmatprep.subr.mxu0 0.0
    %2231 = vmatpush1.msra.mxu0 0.0
    %2232 = vmatprep.subr.mxu0 0.0
    %2233 = vmatpush1.msra.mxu0 0.0
    %2234 = vmatprep.subr.mxu0 0.0
    %2235 = vmatpush1.msra.mxu0 0.0
    %2236 = vmatprep.subr.mxu0 0.0
    %2237 = vmatpush1.msra.mxu0 0.0
    %2238 = vmatprep.subr.mxu0 0.0
    %2239 = vmatpush1.msra.mxu0 0.0
    %2240 = vmatprep.subr.mxu0 0.0
    %2241 = vmatpush1.msra.mxu0 0.0
    %2242 = vmatprep.subr.mxu0 0.0
    %2243 = vmatpush1.msra.mxu0 0.0
    %2244 = vmatprep.subr.mxu0 0.0
    %2245 = vmatpush1.msra.mxu0 0.0
    %2246 = vmatprep.subr.mxu0 0.0
    %2247 = vmatpush1.msra.mxu0 0.0
    %2248 = vmatprep.subr.mxu0 0.0
    %2249 = vmatpush1.msra.mxu0 0.0
    %2250 = vmatprep.subr.mxu0 0.0
    %2251 = vmatpush1.msra.mxu0 0.0
    %2252 = vmatprep.subr.mxu0 0.0
    %2253 = vmatpush1.msra.mxu0 0.0
    %2254 = vmatprep.subr.mxu0 0.0
    %2255 = vmatpush1.msra.mxu0 0.0
    %2256 = vmatprep.mubr.f32.mxu0 0.0
    %2257 = vmatmul.mubr.f32.gmra.mrb[0].mxu0 %v2104
    %v2258 = vpop.f32.mrb[0].mxu0
    %v2259 = vadd.f32 %v2175, %v2258
    %v2260 = vpop.f32.mrb[0].mxu0
    %v2261 = vadd.f32 %v2179, %v2260
    %2262 = vmatprep.mubr.f32.mxu0 0.0
    %2263 = vmatmul.mubr.f32.gmra.mrb[0].mxu0 %v2105
    %v2264 = vpop.f32.mrb[0].mxu0
    %v2265 = vadd.f32 %v2175, %v2264
    %v2266 = vpop.f32.mrb[0].mxu0
    %v2267 = vadd.f32 %v2179, %v2266
    %2268 = vdwg.mxu0
    %2269 = vmatprep.subr.mxu0 %v2109
    %2270 = vmatpush1.msra.mxu0 %v2108
    %2271 = vmatprep.subr.mxu0 %v2113
    %2272 = vmatpush1.msra.mxu0 %v2112
    %2273 = vmatprep.subr.mxu0 %v2117
    %2274 = vmatpush1.msra.mxu0 %v2116
    %2275 = vmatprep.subr.mxu0 %v2121
    %2276 = vmatpush1.msra.mxu0 %v2120
    %2277 = vmatprep.subr.mxu0 %v2125
    %2278 = vmatpush1.msra.mxu0 %v2124
    %2279 = vmatprep.subr.mxu0 %v2129
    %2280 = vmatpush1.msra.mxu0 %v2128
    %2281 = vmatprep.subr.mxu0 %v2133
    %2282 = vmatpush1.msra.mxu0 %v2132
    %2283 = vmatprep.subr.mxu0 %v2137
    %2284 = vmatpush1.msra.mxu0 %v2136
    %2285 = vmatprep.subr.mxu0 %v2141
    %2286 = vmatpush1.msra.mxu0 %v2140
    %2287 = vmatprep.subr.mxu0 %v2145
    %2288 = vmatpush1.msra.mxu0 %v2144
    %2289 = vmatprep.subr.mxu0 %v2149
    %2290 = vmatpush1.msra.mxu0 %v2148
    %2291 = vmatprep.subr.mxu0 %v2153
    %2292 = vmatpush1.msra.mxu0 %v2152
    %2293 = vmatprep.subr.mxu0 %v2157
    %2294 = vmatpush1.msra.mxu0 %v2156
    %2295 = vmatprep.subr.mxu0 %v2161
    %2296 = vmatpush1.msra.mxu0 %v2160
    %2297 = vmatprep.subr.mxu0 %v2165
    %2298 = vmatpush1.msra.mxu0 %v2164
    %2299 = vmatprep.subr.mxu0 %v2169
    %2300 = vmatpush1.msra.mxu0 %v2168
    %2301 = vmatprep.subr.mxu0 0.0
    %2302 = vmatpush1.msra.mxu0 0.0
    %2303 = vmatprep.subr.mxu0 0.0
    %2304 = vmatpush1.msra.mxu0 0.0
    %2305 = vmatprep.subr.mxu0 0.0
    %2306 = vmatpush1.msra.mxu0 0.0
    %2307 = vmatprep.subr.mxu0 0.0
    %2308 = vmatpush1.msra.mxu0 0.0
    %2309 = vmatprep.subr.mxu0 0.0
    %2310 = vmatpush1.msra.mxu0 0.0
    %2311 = vmatprep.subr.mxu0 0.0
    %2312 = vmatpush1.msra.mxu0 0.0
    %2313 = vmatprep.subr.mxu0 0.0
    %2314 = vmatpush1.msra.mxu0 0.0
    %2315 = vmatprep.subr.mxu0 0.0
    %2316 = vmatpush1.msra.mxu0 0.0
    %2317 = vmatprep.subr.mxu0 0.0
    %2318 = vmatpush1.msra.mxu0 0.0
    %2319 = vmatprep.subr.mxu0 0.0
    %2320 = vmatpush1.msra.mxu0 0.0
    %2321 = vmatprep.subr.mxu0 0.0
    %2322 = vmatpush1.msra.mxu0 0.0
    %2323 = vmatprep.subr.mxu0 0.0
    %2324 = vmatpush1.msra.mxu0 0.0
    %2325 = vmatprep.subr.mxu0 0.0
    %2326 = vmatpush1.msra.mxu0 0.0
    %2327 = vmatprep.subr.mxu0 0.0
    %2328 = vmatpush1.msra.mxu0 0.0
    %2329 = vmatprep.subr.mxu0 0.0
    %2330 = vmatpush1.msra.mxu0 0.0
    %2331 = vmatprep.subr.mxu0 0.0
    %2332 = vmatpush1.msra.mxu0 0.0
    %2333 = vmatprep.mubr.f32.mxu0 0.0
    %2334 = vmatmul.mubr.f32.gmra.mrb[0].mxu0 %v2104
    %v2335 = vpop.f32.mrb[0].mxu0
    %v2336 = vadd.f32 %v2183, %v2335
    %v2337 = vpop.f32.mrb[0].mxu0
    %v2338 = vadd.f32 %v2187, %v2337
    %2339 = vmatprep.mubr.f32.mxu0 0.0
    %2340 = vmatmul.mubr.f32.gmra.mrb[0].mxu0 %v2105
    %v2341 = vpop.f32.mrb[0].mxu0
    %v2342 = vadd.f32 %v2183, %v2341
    %v2343 = vpop.f32.mrb[0].mxu0
    %v2344 = vadd.f32 %v2187, %v2343
    %2345 = vdwg.mxu0
    %v2346 = vld [vmem:[#allocation8] sm:$0xff]
    %v2347 = vld [vmem:[#allocation8 + $0x8] sm:$0xff]
    %v2348 = vld [vmem:[#allocation8 + $0x10] sm:$0xff]
    %v2349 = vld [vmem:[#allocation8 + $0x18] sm:$0xff]
    %v2350 = vld [vmem:[#allocation8 + $0x20] sm:$0xff]
    %v2351 = vld [vmem:[#allocation8 + $0x28] sm:$0xff]
    %v2352 = vld [vmem:[#allocation8 + $0x30] sm:$0xff]
    %v2353 = vld [vmem:[#allocation8 + $0x38] sm:$0xff]
    %v2354 = vld [vmem:[#allocation8 + $0x40] sm:$0xff]
    %v2355 = vld [vmem:[#allocation8 + $0x48] sm:$0xff]
    %v2356 = vld [vmem:[#allocation8 + $0x50] sm:$0xff]
    %v2357 = vld [vmem:[#allocation8 + $0x58] sm:$0xff]
    %v2358 = vld [vmem:[#allocation8 + $0x60] sm:$0xff]
    %v2359 = vld [vmem:[#allocation8 + $0x68] sm:$0xff]
    %v2360 = vld [vmem:[#allocation8 + $0x70] sm:$0xff]
    %v2361 = vld [vmem:[#allocation8 + $0x78] sm:$0xff]
    %v2362 = vld [vmem:[#allocation8 + $0x80] sm:$0xff]
    %v2363 = vld [vmem:[#allocation8 + $0x88] sm:$0xff]
    %v2364 = vld [vmem:[#allocation8 + $0x90] sm:$0xff]
    %v2365 = vld [vmem:[#allocation8 + $0x98] sm:$0xff]
    %v2366 = vld [vmem:[#allocation8 + $0xa0] sm:$0xff]
    %v2367 = vld [vmem:[#allocation8 + $0xa8] sm:$0xff]
    %v2368 = vld [vmem:[#allocation8 + $0xb0] sm:$0xff]
    %v2369 = vld [vmem:[#allocation8 + $0xb8] sm:$0xff]
    %v2370 = vld [vmem:[#allocation8 + $0xc0] sm:$0xff]
    %v2371 = vld [vmem:[#allocation8 + $0xc8] sm:$0xff]
    %v2372 = vld [vmem:[#allocation8 + $0xd0] sm:$0xff]
    %v2373 = vld [vmem:[#allocation8 + $0xd8] sm:$0xff]
    %v2374 = vld [vmem:[#allocation8 + $0xe0] sm:$0xff]
    %v2375 = vld [vmem:[#allocation8 + $0xe8] sm:$0xff]
    %v2376 = vld [vmem:[#allocation8 + $0xf0] sm:$0xff]
    %v2377 = vld [vmem:[#allocation8 + $0xf8] sm:$0xff]
    %v2378 = vld [vmem:[#allocation8 + $0x100] sm:$0xff]
    %v2379 = vld [vmem:[#allocation8 + $0x108] sm:$0xff]
    %v2380 = vld [vmem:[#allocation8 + $0x110] sm:$0xff]
    %v2381 = vld [vmem:[#allocation8 + $0x118] sm:$0xff]
    %v2382 = vld [vmem:[#allocation8 + $0x120] sm:$0xff]
    %v2383 = vld [vmem:[#allocation8 + $0x128] sm:$0xff]
    %v2384 = vld [vmem:[#allocation8 + $0x130] sm:$0xff]
    %v2385 = vld [vmem:[#allocation8 + $0x138] sm:$0xff]
    %v2386 = vld [vmem:[#allocation8 + $0x140] sm:$0xff]
    %v2387 = vld [vmem:[#allocation8 + $0x148] sm:$0xff]
    %v2388 = vld [vmem:[#allocation8 + $0x150] sm:$0xff]
    %v2389 = vld [vmem:[#allocation8 + $0x158] sm:$0xff]
    %v2390 = vld [vmem:[#allocation8 + $0x160] sm:$0xff]
    %v2391 = vld [vmem:[#allocation8 + $0x168] sm:$0xff]
    %v2392 = vld [vmem:[#allocation8 + $0x170] sm:$0xff]
    %v2393 = vld [vmem:[#allocation8 + $0x178] sm:$0xff]
    %v2394 = vld [vmem:[#allocation8 + $0x180] sm:$0xff]
    %v2395 = vld [vmem:[#allocation8 + $0x188] sm:$0xff]
    %v2396 = vld [vmem:[#allocation8 + $0x190] sm:$0xff]
    %v2397 = vld [vmem:[#allocation8 + $0x198] sm:$0xff]
    %v2398 = vld [vmem:[#allocation8 + $0x1a0] sm:$0xff]
    %v2399 = vld [vmem:[#allocation8 + $0x1a8] sm:$0xff]
    %v2400 = vld [vmem:[#allocation8 + $0x1b0] sm:$0xff]
    %v2401 = vld [vmem:[#allocation8 + $0x1b8] sm:$0xff]
    %v2402 = vld [vmem:[#allocation8 + $0x1c0] sm:$0xff]
    %v2403 = vld [vmem:[#allocation8 + $0x1c8] sm:$0xff]
    %v2404 = vld [vmem:[#allocation8 + $0x1d0] sm:$0xff]
    %v2405 = vld [vmem:[#allocation8 + $0x1d8] sm:$0xff]
    %v2406 = vld [vmem:[#allocation8 + $0x1e0] sm:$0xff]
    %v2407 = vld [vmem:[#allocation8 + $0x1e8] sm:$0xff]
    %v2408 = vld [vmem:[#allocation8 + $0x1f0] sm:$0xff]
    %v2409 = vld [vmem:[#allocation8 + $0x1f8] sm:$0xff]
    %2410 = vmatprep.subr.mxu0 %v2347
    %2411 = vmatpush1.msra.mxu0 %v2346
    %2412 = vmatprep.subr.mxu0 %v2351
    %2413 = vmatpush1.msra.mxu0 %v2350
    %2414 = vmatprep.subr.mxu0 %v2355
    %2415 = vmatpush1.msra.mxu0 %v2354
    %2416 = vmatprep.subr.mxu0 %v2359
    %2417 = vmatpush1.msra.mxu0 %v2358
    %2418 = vmatprep.subr.mxu0 %v2363
    %2419 = vmatpush1.msra.mxu0 %v2362
    %2420 = vmatprep.subr.mxu0 %v2367
    %2421 = vmatpush1.msra.mxu0 %v2366
    %2422 = vmatprep.subr.mxu0 %v2371
    %2423 = vmatpush1.msra.mxu0 %v2370
    %2424 = vmatprep.subr.mxu0 %v2375
    %2425 = vmatpush1.msra.mxu0 %v2374
    %2426 = vmatprep.subr.mxu0 %v2379
    %2427 = vmatpush1.msra.mxu0 %v2378
    %2428 = vmatprep.subr.mxu0 %v2383
    %2429 = vmatpush1.msra.mxu0 %v2382
    %2430 = vmatprep.subr.mxu0 %v2387
    %2431 = vmatpush1.msra.mxu0 %v2386
    %2432 = vmatprep.subr.mxu0 %v2391
    %2433 = vmatpush1.msra.mxu0 %v2390
    %2434 = vmatprep.subr.mxu0 %v2395
    %2435 = vmatpush1.msra.mxu0 %v2394
    %2436 = vmatprep.subr.mxu0 %v2399
    %2437 = vmatpush1.msra.mxu0 %v2398
    %2438 = vmatprep.subr.mxu0 %v2403
    %2439 = vmatpush1.msra.mxu0 %v2402
    %2440 = vmatprep.subr.mxu0 %v2407
    %2441 = vmatpush1.msra.mxu0 %v2406
    %2442 = vmatprep.subr.mxu0 0.0
    %2443 = vmatpush1.msra.mxu0 0.0
    %2444 = vmatprep.subr.mxu0 0.0
    %2445 = vmatpush1.msra.mxu0 0.0
    %2446 = vmatprep.subr.mxu0 0.0
    %2447 = vmatpush1.msra.mxu0 0.0
    %2448 = vmatprep.subr.mxu0 0.0
    %2449 = vmatpush1.msra.mxu0 0.0
    %2450 = vmatprep.subr.mxu0 0.0
    %2451 = vmatpush1.msra.mxu0 0.0
    %2452 = vmatprep.subr.mxu0 0.0
    %2453 = vmatpush1.msra.mxu0 0.0
    %2454 = vmatprep.subr.mxu0 0.0
    %2455 = vmatpush1.msra.mxu0 0.0
    %2456 = vmatprep.subr.mxu0 0.0
    %2457 = vmatpush1.msra.mxu0 0.0
    %2458 = vmatprep.subr.mxu0 0.0
    %2459 = vmatpush1.msra.mxu0 0.0
    %2460 = vmatprep.subr.mxu0 0.0
    %2461 = vmatpush1.msra.mxu0 0.0
    %2462 = vmatprep.subr.mxu0 0.0
    %2463 = vmatpush1.msra.mxu0 0.0
    %2464 = vmatprep.subr.mxu0 0.0
    %2465 = vmatpush1.msra.mxu0 0.0
    %2466 = vmatprep.subr.mxu0 0.0
    %2467 = vmatpush1.msra.mxu0 0.0
    %2468 = vmatprep.subr.mxu0 0.0
    %2469 = vmatpush1.msra.mxu0 0.0
    %2470 = vmatprep.subr.mxu0 0.0
    %2471 = vmatpush1.msra.mxu0 0.0
    %2472 = vmatprep.subr.mxu0 0.0
    %2473 = vmatpush1.msra.mxu0 0.0
    %2474 = vmatprep.mubr.f32.mxu0 0.0
    %2475 = vmatmul.mubr.f32.gmra.mrb[0].mxu0 0.0
    %v2476 = vpop.f32.mrb[0].mxu0
    %v2477 = vadd.f32 0.0, %v2476
    %v2478 = vpop.f32.mrb[0].mxu0
    %v2479 = vadd.f32 0.0, %v2478
    %2480 = vdwg.mxu0
    %2481 = vmatprep.subr.mxu0 %v2349
    %2482 = vmatpush1.msra.mxu0 %v2348
    %2483 = vmatprep.subr.mxu0 %v2353
    %2484 = vmatpush1.msra.mxu0 %v2352
    %2485 = vmatprep.subr.mxu0 %v2357
    %2486 = vmatpush1.msra.mxu0 %v2356
    %2487 = vmatprep.subr.mxu0 %v2361
    %2488 = vmatpush1.msra.mxu0 %v2360
    %2489 = vmatprep.subr.mxu0 %v2365
    %2490 = vmatpush1.msra.mxu0 %v2364
    %2491 = vmatprep.subr.mxu0 %v2369
    %2492 = vmatpush1.msra.mxu0 %v2368
    %2493 = vmatprep.subr.mxu0 %v2373
    %2494 = vmatpush1.msra.mxu0 %v2372
    %2495 = vmatprep.subr.mxu0 %v2377
    %2496 = vmatpush1.msra.mxu0 %v2376
    %2497 = vmatprep.subr.mxu0 %v2381
    %2498 = vmatpush1.msra.mxu0 %v2380
    %2499 = vmatprep.subr.mxu0 %v2385
    %2500 = vmatpush1.msra.mxu0 %v2384
    %2501 = vmatprep.subr.mxu0 %v2389
    %2502 = vmatpush1.msra.mxu0 %v2388
    %2503 = vmatprep.subr.mxu0 %v2393
    %2504 = vmatpush1.msra.mxu0 %v2392
    %2505 = vmatprep.subr.mxu0 %v2397
    %2506 = vmatpush1.msra.mxu0 %v2396
    %2507 = vmatprep.subr.mxu0 %v2401
    %2508 = vmatpush1.msra.mxu0 %v2400
    %2509 = vmatprep.subr.mxu0 %v2405
    %2510 = vmatpush1.msra.mxu0 %v2404
    %2511 = vmatprep.subr.mxu0 %v2409
    %2512 = vmatpush1.msra.mxu0 %v2408
    %2513 = vmatprep.subr.mxu0 0.0
    %2514 = vmatpush1.msra.mxu0 0.0
    %2515 = vmatprep.subr.mxu0 0.0
    %2516 = vmatpush1.msra.mxu0 0.0
    %2517 = vmatprep.subr.mxu0 0.0
    %2518 = vmatpush1.msra.mxu0 0.0
    %2519 = vmatprep.subr.mxu0 0.0
    %2520 = vmatpush1.msra.mxu0 0.0
    %2521 = vmatprep.subr.mxu0 0.0
    %2522 = vmatpush1.msra.mxu0 0.0
    %2523 = vmatprep.subr.mxu0 0.0
    %2524 = vmatpush1.msra.mxu0 0.0
    %2525 = vmatprep.subr.mxu0 0.0
    %2526 = vmatpush1.msra.mxu0 0.0
    %2527 = vmatprep.subr.mxu0 0.0
    %2528 = vmatpush1.msra.mxu0 0.0
    %2529 = vmatprep.subr.mxu0 0.0
    %2530 = vmatpush1.msra.mxu0 0.0
    %2531 = vmatprep.subr.mxu0 0.0
    %2532 = vmatpush1.msra.mxu0 0.0
    %2533 = vmatprep.subr.mxu0 0.0
    %2534 = vmatpush1.msra.mxu0 0.0
    %2535 = vmatprep.subr.mxu0 0.0
    %2536 = vmatpush1.msra.mxu0 0.0
    %2537 = vmatprep.subr.mxu0 0.0
    %2538 = vmatpush1.msra.mxu0 0.0
    %2539 = vmatprep.subr.mxu0 0.0
    %2540 = vmatpush1.msra.mxu0 0.0
    %2541 = vmatprep.subr.mxu0 0.0
    %2542 = vmatpush1.msra.mxu0 0.0
    %2543 = vmatprep.subr.mxu0 0.0
    %2544 = vmatpush1.msra.mxu0 0.0
    %2545 = vmatprep.mubr.f32.mxu0 0.0
    %2546 = vmatmul.mubr.f32.gmra.mrb[0].mxu0 0.0
    %v2547 = vpop.f32.mrb[0].mxu0
    %v2548 = vadd.f32 0.0, %v2547
    %v2549 = vpop.f32.mrb[0].mxu0
    %v2550 = vadd.f32 0.0, %v2549
    %2551 = vdwg.mxu0
    %v2552 = vadd.f32 %v2259, %v2477
    %v2553 = vadd.f32 %v2261, %v2479
    %v2554 = vadd.f32 %v2336, %v2548
    %v2555 = vadd.f32 %v2338, %v2550
    %v2556 = vxor.u32 %v2552, 2147483648
    %v2557 = vmul.f32 %v2556, 1.442695
    %v2558 = vpow.pop %v2557
    %v2559 = vadd.f32 %v2558, 1.0
    %v2560 = vrcp.pop %v2559
    %v2561 = vmul.f32 1.0, %v2560
    %v2562 = vxor.u32 %v2553, 2147483648
    %v2563 = vmul.f32 %v2562, 1.442695
    %v2564 = vpow.pop %v2563
    %v2565 = vadd.f32 %v2564, 1.0
    %v2566 = vrcp.pop %v2565
    %v2567 = vmul.f32 1.0, %v2566
    %v2568 = vtanh.pop %v2554
    %v2569 = vxor.u32 %v2555, 2147483648
    %v2570 = vmul.f32 %v2569, 1.442695
    %v2571 = vpow.pop %v2570
    %v2572 = vadd.f32 %v2571, 1.0
    %v2573 = vrcp.pop %v2572
    %v2574 = vmul.f32 1.0, %v2573
    %v2575 = vmul.f32 %v2567, 0.0
    %v2576 = vmul.f32 %v2561, %v2568
    %v2577 = vadd.f32 %v2575, %v2576
    %v2578 = vtanh.pop %v2577
    %v2579 = vmul.f32 %v2574, %v2578
    %2580 = vst [vmem:[#allocation2] sm:$0x3] %v2579
    %2581 = vmatprep.subr.mxu0 %v2347
    %2582 = vmatpush1.msra.mxu0 %v2346
    %2583 = vmatprep.subr.mxu0 %v2351
    %2584 = vmatpush1.msra.mxu0 %v2350
    %2585 = vmatprep.subr.mxu0 %v2355
    %2586 = vmatpush1.msra.mxu0 %v2354
    %2587 = vmatprep.subr.mxu0 %v2359
    %2588 = vmatpush1.msra.mxu0 %v2358
    %2589 = vmatprep.subr.mxu0 %v2363
    %2590 = vmatpush1.msra.mxu0 %v2362
    %2591 = vmatprep.subr.mxu0 %v2367
    %2592 = vmatpush1.msra.mxu0 %v2366
    %2593 = vmatprep.subr.mxu0 %v2371
    %2594 = vmatpush1.msra.mxu0 %v2370
    %2595 = vmatprep.subr.mxu0 %v2375
    %2596 = vmatpush1.msra.mxu0 %v2374
    %2597 = vmatprep.subr.mxu0 %v2379
    %2598 = vmatpush1.msra.mxu0 %v2378
    %2599 = vmatprep.subr.mxu0 %v2383
    %2600 = vmatpush1.msra.mxu0 %v2382
    %2601 = vmatprep.subr.mxu0 %v2387
    %2602 = vmatpush1.msra.mxu0 %v2386
    %2603 = vmatprep.subr.mxu0 %v2391
    %2604 = vmatpush1.msra.mxu0 %v2390
    %2605 = vmatprep.subr.mxu0 %v2395
    %2606 = vmatpush1.msra.mxu0 %v2394
    %2607 = vmatprep.subr.mxu0 %v2399
    %2608 = vmatpush1.msra.mxu0 %v2398
    %2609 = vmatprep.subr.mxu0 %v2403
    %2610 = vmatpush1.msra.mxu0 %v2402
    %2611 = vmatprep.subr.mxu0 %v2407
    %2612 = vmatpush1.msra.mxu0 %v2406
    %2613 = vmatprep.subr.mxu0 0.0
    %2614 = vmatpush1.msra.mxu0 0.0
    %2615 = vmatprep.subr.mxu0 0.0
    %2616 = vmatpush1.msra.mxu0 0.0
    %2617 = vmatprep.subr.mxu0 0.0
    %2618 = vmatpush1.msra.mxu0 0.0
    %2619 = vmatprep.subr.mxu0 0.0
    %2620 = vmatpush1.msra.mxu0 0.0
    %2621 = vmatprep.subr.mxu0 0.0
    %2622 = vmatpush1.msra.mxu0 0.0
    %2623 = vmatprep.subr.mxu0 0.0
    %2624 = vmatpush1.msra.mxu0 0.0
    %2625 = vmatprep.subr.mxu0 0.0
    %2626 = vmatpush1.msra.mxu0 0.0
    %2627 = vmatprep.subr.mxu0 0.0
    %2628 = vmatpush1.msra.mxu0 0.0
    %2629 = vmatprep.subr.mxu0 0.0
    %2630 = vmatpush1.msra.mxu0 0.0
    %2631 = vmatprep.subr.mxu0 0.0
    %2632 = vmatpush1.msra.mxu0 0.0
    %2633 = vmatprep.subr.mxu0 0.0
    %2634 = vmatpush1.msra.mxu0 0.0
    %2635 = vmatprep.subr.mxu0 0.0
    %2636 = vmatpush1.msra.mxu0 0.0
    %2637 = vmatprep.subr.mxu0 0.0
    %2638 = vmatpush1.msra.mxu0 0.0
    %2639 = vmatprep.subr.mxu0 0.0
    %2640 = vmatpush1.msra.mxu0 0.0
    %2641 = vmatprep.subr.mxu0 0.0
    %2642 = vmatpush1.msra.mxu0 0.0
    %2643 = vmatprep.subr.mxu0 0.0
    %2644 = vmatpush1.msra.mxu0 0.0
    %2645 = vmatprep.mubr.f32.mxu0 0.0
    %2646 = vmatmul.mubr.f32.gmra.mrb[0].mxu0 %v2579
    %v2647 = vpop.f32.mrb[0].mxu0
    %v2648 = vadd.f32 0.0, %v2647
    %v2649 = vpop.f32.mrb[0].mxu0
    %v2650 = vadd.f32 0.0, %v2649
    %2651 = vdwg.mxu0
    %2652 = vmatprep.subr.mxu0 %v2349
    %2653 = vmatpush1.msra.mxu0 %v2348
    %2654 = vmatprep.subr.mxu0 %v2353
    %2655 = vmatpush1.msra.mxu0 %v2352
    %2656 = vmatprep.subr.mxu0 %v2357
    %2657 = vmatpush1.msra.mxu0 %v2356
    %2658 = vmatprep.subr.mxu0 %v2361
    %2659 = vmatpush1.msra.mxu0 %v2360
    %2660 = vmatprep.subr.mxu0 %v2365
    %2661 = vmatpush1.msra.mxu0 %v2364
    %2662 = vmatprep.subr.mxu0 %v2369
    %2663 = vmatpush1.msra.mxu0 %v2368
    %2664 = vmatprep.subr.mxu0 %v2373
    %2665 = vmatpush1.msra.mxu0 %v2372
    %2666 = vmatprep.subr.mxu0 %v2377
    %2667 = vmatpush1.msra.mxu0 %v2376
    %2668 = vmatprep.subr.mxu0 %v2381
    %2669 = vmatpush1.msra.mxu0 %v2380
    %2670 = vmatprep.subr.mxu0 %v2385
    %2671 = vmatpush1.msra.mxu0 %v2384
    %2672 = vmatprep.subr.mxu0 %v2389
    %2673 = vmatpush1.msra.mxu0 %v2388
    %2674 = vmatprep.subr.mxu0 %v2393
    %2675 = vmatpush1.msra.mxu0 %v2392
    %2676 = vmatprep.subr.mxu0 %v2397
    %2677 = vmatpush1.msra.mxu0 %v2396
    %2678 = vmatprep.subr.mxu0 %v2401
    %2679 = vmatpush1.msra.mxu0 %v2400
    %2680 = vmatprep.subr.mxu0 %v2405
    %2681 = vmatpush1.msra.mxu0 %v2404
    %2682 = vmatprep.subr.mxu0 %v2409
    %2683 = vmatpush1.msra.mxu0 %v2408
    %2684 = vmatprep.subr.mxu0 0.0
    %2685 = vmatpush1.msra.mxu0 0.0
    %2686 = vmatprep.subr.mxu0 0.0
    %2687 = vmatpush1.msra.mxu0 0.0
    %2688 = vmatprep.subr.mxu0 0.0
    %2689 = vmatpush1.msra.mxu0 0.0
    %2690 = vmatprep.subr.mxu0 0.0
    %2691 = vmatpush1.msra.mxu0 0.0
    %2692 = vmatprep.subr.mxu0 0.0
    %2693 = vmatpush1.msra.mxu0 0.0
    %2694 = vmatprep.subr.mxu0 0.0
    %2695 = vmatpush1.msra.mxu0 0.0
    %2696 = vmatprep.subr.mxu0 0.0
    %2697 = vmatpush1.msra.mxu0 0.0
    %2698 = vmatprep.subr.mxu0 0.0
    %2699 = vmatpush1.msra.mxu0 0.0
    %2700 = vmatprep.subr.mxu0 0.0
    %2701 = vmatpush1.msra.mxu0 0.0
    %2702 = vmatprep.subr.mxu0 0.0
    %2703 = vmatpush1.msra.mxu0 0.0
    %2704 = vmatprep.subr.mxu0 0.0
    %2705 = vmatpush1.msra.mxu0 0.0
    %2706 = vmatprep.subr.mxu0 0.0
    %2707 = vmatpush1.msra.mxu0 0.0
    %2708 = vmatprep.subr.mxu0 0.0
    %2709 = vmatpush1.msra.mxu0 0.0
    %2710 = vmatprep.subr.mxu0 0.0
    %2711 = vmatpush1.msra.mxu0 0.0
    %2712 = vmatprep.subr.mxu0 0.0
    %2713 = vmatpush1.msra.mxu0 0.0
    %2714 = vmatprep.subr.mxu0 0.0
    %2715 = vmatpush1.msra.mxu0 0.0
    %2716 = vmatprep.mubr.f32.mxu0 0.0
    %2717 = vmatmul.mubr.f32.gmra.mrb[0].mxu0 %v2579
    %v2718 = vpop.f32.mrb[0].mxu0
    %v2719 = vadd.f32 0.0, %v2718
    %v2720 = vpop.f32.mrb[0].mxu0
    %v2721 = vadd.f32 0.0, %v2720
    %2722 = vdwg.mxu0
    %v2727 = vrot.slane %v2648, 6
    %v2728 = vrot.slane %v2650, 6
    %v2729 = vrot.slane %v2719, 6
    %v2730 = vrot.slane %v2721, 6
    %v2735 = vadd.f32 %v2259, %v2727
    %v2736 = vadd.f32 %v2261, %v2728
    %v2737 = vadd.f32 %v2336, %v2729
    %v2738 = vadd.f32 %v2338, %v2730
    %v2739 = vxor.u32 %v2735, 2147483648
    %v2740 = vmul.f32 %v2739, 1.442695
    %v2741 = vpow.pop %v2740
    %v2742 = vadd.f32 %v2741, 1.0
    %v2743 = vrcp.pop %v2742
    %v2744 = vmul.f32 1.0, %v2743
    %v2745 = vxor.u32 %v2736, 2147483648
    %v2746 = vmul.f32 %v2745, 1.442695
    %v2747 = vpow.pop %v2746
    %v2748 = vadd.f32 %v2747, 1.0
    %v2749 = vrcp.pop %v2748
    %v2750 = vmul.f32 1.0, %v2749
    %v2751 = vtanh.pop %v2737
    %v2752 = vxor.u32 %v2738, 2147483648
    %v2753 = vmul.f32 %v2752, 1.442695
    %v2754 = vpow.pop %v2753
    %v2755 = vadd.f32 %v2754, 1.0
    %v2756 = vrcp.pop %v2755
    %v2757 = vmul.f32 1.0, %v2756
    %v2759 = vrot.slane %v2577, 6
    %v2761 = vmul.f32 %v2750, %v2759
    %v2762 = vmul.f32 %v2744, %v2751
    %v2763 = vadd.f32 %v2761, %v2762
    %v2764 = vtanh.pop %v2763
    %v2765 = vmul.f32 %v2757, %v2764
    %2766 = vst [vmem:[#allocation2] sm:$0xc] %v2765
    %v2768 = vrot.slane %v2765, 2
    %2770 = vmatprep.subr.mxu0 %v2347
    %2771 = vmatpush1.msra.mxu0 %v2346
    %2772 = vmatprep.subr.mxu0 %v2351
    %2773 = vmatpush1.msra.mxu0 %v2350
    %2774 = vmatprep.subr.mxu0 %v2355
    %2775 = vmatpush1.msra.mxu0 %v2354
    %2776 = vmatprep.subr.mxu0 %v2359
    %2777 = vmatpush1.msra.mxu0 %v2358
    %2778 = vmatprep.subr.mxu0 %v2363
    %2779 = vmatpush1.msra.mxu0 %v2362
    %2780 = vmatprep.subr.mxu0 %v2367
    %2781 = vmatpush1.msra.mxu0 %v2366
    %2782 = vmatprep.subr.mxu0 %v2371
    %2783 = vmatpush1.msra.mxu0 %v2370
    %2784 = vmatprep.subr.mxu0 %v2375
    %2785 = vmatpush1.msra.mxu0 %v2374
    %2786 = vmatprep.subr.mxu0 %v2379
    %2787 = vmatpush1.msra.mxu0 %v2378
    %2788 = vmatprep.subr.mxu0 %v2383
    %2789 = vmatpush1.msra.mxu0 %v2382
    %2790 = vmatprep.subr.mxu0 %v2387
    %2791 = vmatpush1.msra.mxu0 %v2386
    %2792 = vmatprep.subr.mxu0 %v2391
    %2793 = vmatpush1.msra.mxu0 %v2390
    %2794 = vmatprep.subr.mxu0 %v2395
    %2795 = vmatpush1.msra.mxu0 %v2394
    %2796 = vmatprep.subr.mxu0 %v2399
    %2797 = vmatpush1.msra.mxu0 %v2398
    %2798 = vmatprep.subr.mxu0 %v2403
    %2799 = vmatpush1.msra.mxu0 %v2402
    %2800 = vmatprep.subr.mxu0 %v2407
    %2801 = vmatpush1.msra.mxu0 %v2406
    %2802 = vmatprep.subr.mxu0 0.0
    %2803 = vmatpush1.msra.mxu0 0.0
    %2804 = vmatprep.subr.mxu0 0.0
    %2805 = vmatpush1.msra.mxu0 0.0
    %2806 = vmatprep.subr.mxu0 0.0
    %2807 = vmatpush1.msra.mxu0 0.0
    %2808 = vmatprep.subr.mxu0 0.0
    %2809 = vmatpush1.msra.mxu0 0.0
    %2810 = vmatprep.subr.mxu0 0.0
    %2811 = vmatpush1.msra.mxu0 0.0
    %2812 = vmatprep.subr.mxu0 0.0
    %2813 = vmatpush1.msra.mxu0 0.0
    %2814 = vmatprep.subr.mxu0 0.0
    %2815 = vmatpush1.msra.mxu0 0.0
    %2816 = vmatprep.subr.mxu0 0.0
    %2817 = vmatpush1.msra.mxu0 0.0
    %2818 = vmatprep.subr.mxu0 0.0
    %2819 = vmatpush1.msra.mxu0 0.0
    %2820 = vmatprep.subr.mxu0 0.0
    %2821 = vmatpush1.msra.mxu0 0.0
    %2822 = vmatprep.subr.mxu0 0.0
    %2823 = vmatpush1.msra.mxu0 0.0
    %2824 = vmatprep.subr.mxu0 0.0
    %2825 = vmatpush1.msra.mxu0 0.0
    %2826 = vmatprep.subr.mxu0 0.0
    %2827 = vmatpush1.msra.mxu0 0.0
    %2828 = vmatprep.subr.mxu0 0.0
    %2829 = vmatpush1.msra.mxu0 0.0
    %2830 = vmatprep.subr.mxu0 0.0
    %2831 = vmatpush1.msra.mxu0 0.0
    %2832 = vmatprep.subr.mxu0 0.0
    %2833 = vmatpush1.msra.mxu0 0.0
    %2834 = vmatprep.mubr.f32.mxu0 0.0
    %2835 = vmatmul.mubr.f32.gmra.mrb[0].mxu0 %v2768
    %v2836 = vpop.f32.mrb[0].mxu0
    %v2837 = vadd.f32 0.0, %v2836
    %v2838 = vpop.f32.mrb[0].mxu0
    %v2839 = vadd.f32 0.0, %v2838
    %2840 = vdwg.mxu0
    %2841 = vmatprep.subr.mxu0 %v2349
    %2842 = vmatpush1.msra.mxu0 %v2348
    %2843 = vmatprep.subr.mxu0 %v2353
    %2844 = vmatpush1.msra.mxu0 %v2352
    %2845 = vmatprep.subr.mxu0 %v2357
    %2846 = vmatpush1.msra.mxu0 %v2356
    %2847 = vmatprep.subr.mxu0 %v2361
    %2848 = vmatpush1.msra.mxu0 %v2360
    %2849 = vmatprep.subr.mxu0 %v2365
    %2850 = vmatpush1.msra.mxu0 %v2364
    %2851 = vmatprep.subr.mxu0 %v2369
    %2852 = vmatpush1.msra.mxu0 %v2368
    %2853 = vmatprep.subr.mxu0 %v2373
    %2854 = vmatpush1.msra.mxu0 %v2372
    %2855 = vmatprep.subr.mxu0 %v2377
    %2856 = vmatpush1.msra.mxu0 %v2376
    %2857 = vmatprep.subr.mxu0 %v2381
    %2858 = vmatpush1.msra.mxu0 %v2380
    %2859 = vmatprep.subr.mxu0 %v2385
    %2860 = vmatpush1.msra.mxu0 %v2384
    %2861 = vmatprep.subr.mxu0 %v2389
    %2862 = vmatpush1.msra.mxu0 %v2388
    %2863 = vmatprep.subr.mxu0 %v2393
    %2864 = vmatpush1.msra.mxu0 %v2392
    %2865 = vmatprep.subr.mxu0 %v2397
    %2866 = vmatpush1.msra.mxu0 %v2396
    %2867 = vmatprep.subr.mxu0 %v2401
    %2868 = vmatpush1.msra.mxu0 %v2400
    %2869 = vmatprep.subr.mxu0 %v2405
    %2870 = vmatpush1.msra.mxu0 %v2404
    %2871 = vmatprep.subr.mxu0 %v2409
    %2872 = vmatpush1.msra.mxu0 %v2408
    %2873 = vmatprep.subr.mxu0 0.0
    %2874 = vmatpush1.msra.mxu0 0.0
    %2875 = vmatprep.subr.mxu0 0.0
    %2876 = vmatpush1.msra.mxu0 0.0
    %2877 = vmatprep.subr.mxu0 0.0
    %2878 = vmatpush1.msra.mxu0 0.0
    %2879 = vmatprep.subr.mxu0 0.0
    %2880 = vmatpush1.msra.mxu0 0.0
    %2881 = vmatprep.subr.mxu0 0.0
    %2882 = vmatpush1.msra.mxu0 0.0
    %2883 = vmatprep.subr.mxu0 0.0
    %2884 = vmatpush1.msra.mxu0 0.0
    %2885 = vmatprep.subr.mxu0 0.0
    %2886 = vmatpush1.msra.mxu0 0.0
    %2887 = vmatprep.subr.mxu0 0.0
    %2888 = vmatpush1.msra.mxu0 0.0
    %2889 = vmatprep.subr.mxu0 0.0
    %2890 = vmatpush1.msra.mxu0 0.0
    %2891 = vmatprep.subr.mxu0 0.0
    %2892 = vmatpush1.msra.mxu0 0.0
    %2893 = vmatprep.subr.mxu0 0.0
    %2894 = vmatpush1.msra.mxu0 0.0
    %2895 = vmatprep.subr.mxu0 0.0
    %2896 = vmatpush1.msra.mxu0 0.0
    %2897 = vmatprep.subr.mxu0 0.0
    %2898 = vmatpush1.msra.mxu0 0.0
    %2899 = vmatprep.subr.mxu0 0.0
    %2900 = vmatpush1.msra.mxu0 0.0
    %2901 = vmatprep.subr.mxu0 0.0
    %2902 = vmatpush1.msra.mxu0 0.0
    %2903 = vmatprep.subr.mxu0 0.0
    %2904 = vmatpush1.msra.mxu0 0.0
    %2905 = vmatprep.mubr.f32.mxu0 0.0
    %2906 = vmatmul.mubr.f32.gmra.mrb[0].mxu0 %v2768
    %v2907 = vpop.f32.mrb[0].mxu0
    %v2908 = vadd.f32 0.0, %v2907
    %v2909 = vpop.f32.mrb[0].mxu0
    %v2910 = vadd.f32 0.0, %v2909
    %2911 = vdwg.mxu0
    %v2916 = vrot.slane %v2837, 4
    %v2917 = vrot.slane %v2839, 4
    %v2918 = vrot.slane %v2908, 4
    %v2919 = vrot.slane %v2910, 4
    %v2924 = vadd.f32 %v2259, %v2916
    %v2925 = vadd.f32 %v2261, %v2917
    %v2926 = vadd.f32 %v2336, %v2918
    %v2927 = vadd.f32 %v2338, %v2919
    %v2928 = vxor.u32 %v2924, 2147483648
    %v2929 = vmul.f32 %v2928, 1.442695
    %v2930 = vpow.pop %v2929
    %v2931 = vadd.f32 %v2930, 1.0
    %v2932 = vrcp.pop %v2931
    %v2933 = vmul.f32 1.0, %v2932
    %v2934 = vxor.u32 %v2925, 2147483648
    %v2935 = vmul.f32 %v2934, 1.442695
    %v2936 = vpow.pop %v2935
    %v2937 = vadd.f32 %v2936, 1.0
    %v2938 = vrcp.pop %v2937
    %v2939 = vmul.f32 1.0, %v2938
    %v2940 = vtanh.pop %v2926
    %v2941 = vxor.u32 %v2927, 2147483648
    %v2942 = vmul.f32 %v2941, 1.442695
    %v2943 = vpow.pop %v2942
    %v2944 = vadd.f32 %v2943, 1.0
    %v2945 = vrcp.pop %v2944
    %v2946 = vmul.f32 1.0, %v2945
    %v2948 = vrot.slane %v2763, 6
    %v2950 = vmul.f32 %v2939, %v2948
    %v2951 = vmul.f32 %v2933, %v2940
    %v2952 = vadd.f32 %v2950, %v2951
    %v2953 = vtanh.pop %v2952
    %v2954 = vmul.f32 %v2946, %v2953
    %2955 = vst [vmem:[#allocation2] sm:$0x30] %v2954
    %v2957 = vrot.slane %v2954, 4
    %2959 = vmatprep.subr.mxu0 %v2347
    %2960 = vmatpush1.msra.mxu0 %v2346
    %2961 = vmatprep.subr.mxu0 %v2351
    %2962 = vmatpush1.msra.mxu0 %v2350
    %2963 = vmatprep.subr.mxu0 %v2355
    %2964 = vmatpush1.msra.mxu0 %v2354
    %2965 = vmatprep.subr.mxu0 %v2359
    %2966 = vmatpush1.msra.mxu0 %v2358
    %2967 = vmatprep.subr.mxu0 %v2363
    %2968 = vmatpush1.msra.mxu0 %v2362
    %2969 = vmatprep.subr.mxu0 %v2367
    %2970 = vmatpush1.msra.mxu0 %v2366
    %2971 = vmatprep.subr.mxu0 %v2371
    %2972 = vmatpush1.msra.mxu0 %v2370
    %2973 = vmatprep.subr.mxu0 %v2375
    %2974 = vmatpush1.msra.mxu0 %v2374
    %2975 = vmatprep.subr.mxu0 %v2379
    %2976 = vmatpush1.msra.mxu0 %v2378
    %2977 = vmatprep.subr.mxu0 %v2383
    %2978 = vmatpush1.msra.mxu0 %v2382
    %2979 = vmatprep.subr.mxu0 %v2387
    %2980 = vmatpush1.msra.mxu0 %v2386
    %2981 = vmatprep.subr.mxu0 %v2391
    %2982 = vmatpush1.msra.mxu0 %v2390
    %2983 = vmatprep.subr.mxu0 %v2395
    %2984 = vmatpush1.msra.mxu0 %v2394
    %2985 = vmatprep.subr.mxu0 %v2399
    %2986 = vmatpush1.msra.mxu0 %v2398
    %2987 = vmatprep.subr.mxu0 %v2403
    %2988 = vmatpush1.msra.mxu0 %v2402
    %2989 = vmatprep.subr.mxu0 %v2407
    %2990 = vmatpush1.msra.mxu0 %v2406
    %2991 = vmatprep.subr.mxu0 0.0
    %2992 = vmatpush1.msra.mxu0 0.0
    %2993 = vmatprep.subr.mxu0 0.0
    %2994 = vmatpush1.msra.mxu0 0.0
    %2995 = vmatprep.subr.mxu0 0.0
    %2996 = vmatpush1.msra.mxu0 0.0
    %2997 = vmatprep.subr.mxu0 0.0
    %2998 = vmatpush1.msra.mxu0 0.0
    %2999 = vmatprep.subr.mxu0 0.0
    %3000 = vmatpush1.msra.mxu0 0.0
    %3001 = vmatprep.subr.mxu0 0.0
    %3002 = vmatpush1.msra.mxu0 0.0
    %3003 = vmatprep.subr.mxu0 0.0
    %3004 = vmatpush1.msra.mxu0 0.0
    %3005 = vmatprep.subr.mxu0 0.0
    %3006 = vmatpush1.msra.mxu0 0.0
    %3007 = vmatprep.subr.mxu0 0.0
    %3008 = vmatpush1.msra.mxu0 0.0
    %3009 = vmatprep.subr.mxu0 0.0
    %3010 = vmatpush1.msra.mxu0 0.0
    %3011 = vmatprep.subr.mxu0 0.0
    %3012 = vmatpush1.msra.mxu0 0.0
    %3013 = vmatprep.subr.mxu0 0.0
    %3014 = vmatpush1.msra.mxu0 0.0
    %3015 = vmatprep.subr.mxu0 0.0
    %3016 = vmatpush1.msra.mxu0 0.0
    %3017 = vmatprep.subr.mxu0 0.0
    %3018 = vmatpush1.msra.mxu0 0.0
    %3019 = vmatprep.subr.mxu0 0.0
    %3020 = vmatpush1.msra.mxu0 0.0
    %3021 = vmatprep.subr.mxu0 0.0
    %3022 = vmatpush1.msra.mxu0 0.0
    %3023 = vmatprep.mubr.f32.mxu0 0.0
    %3024 = vmatmul.mubr.f32.gmra.mrb[0].mxu0 %v2957
    %v3025 = vpop.f32.mrb[0].mxu0
    %v3026 = vadd.f32 0.0, %v3025
    %v3027 = vpop.f32.mrb[0].mxu0
    %v3028 = vadd.f32 0.0, %v3027
    %3029 = vdwg.mxu0
    %3030 = vmatprep.subr.mxu0 %v2349
    %3031 = vmatpush1.msra.mxu0 %v2348
    %3032 = vmatprep.subr.mxu0 %v2353
    %3033 = vmatpush1.msra.mxu0 %v2352
    %3034 = vmatprep.subr.mxu0 %v2357
    %3035 = vmatpush1.msra.mxu0 %v2356
    %3036 = vmatprep.subr.mxu0 %v2361
    %3037 = vmatpush1.msra.mxu0 %v2360
    %3038 = vmatprep.subr.mxu0 %v2365
    %3039 = vmatpush1.msra.mxu0 %v2364
    %3040 = vmatprep.subr.mxu0 %v2369
    %3041 = vmatpush1.msra.mxu0 %v2368
    %3042 = vmatprep.subr.mxu0 %v2373
    %3043 = vmatpush1.msra.mxu0 %v2372
    %3044 = vmatprep.subr.mxu0 %v2377
    %3045 = vmatpush1.msra.mxu0 %v2376
    %3046 = vmatprep.subr.mxu0 %v2381
    %3047 = vmatpush1.msra.mxu0 %v2380
    %3048 = vmatprep.subr.mxu0 %v2385
    %3049 = vmatpush1.msra.mxu0 %v2384
    %3050 = vmatprep.subr.mxu0 %v2389
    %3051 = vmatpush1.msra.mxu0 %v2388
    %3052 = vmatprep.subr.mxu0 %v2393
    %3053 = vmatpush1.msra.mxu0 %v2392
    %3054 = vmatprep.subr.mxu0 %v2397
    %3055 = vmatpush1.msra.mxu0 %v2396
    %3056 = vmatprep.subr.mxu0 %v2401
    %3057 = vmatpush1.msra.mxu0 %v2400
    %3058 = vmatprep.subr.mxu0 %v2405
    %3059 = vmatpush1.msra.mxu0 %v2404
    %3060 = vmatprep.subr.mxu0 %v2409
    %3061 = vmatpush1.msra.mxu0 %v2408
    %3062 = vmatprep.subr.mxu0 0.0
    %3063 = vmatpush1.msra.mxu0 0.0
    %3064 = vmatprep.subr.mxu0 0.0
    %3065 = vmatpush1.msra.mxu0 0.0
    %3066 = vmatprep.subr.mxu0 0.0
    %3067 = vmatpush1.msra.mxu0 0.0
    %3068 = vmatprep.subr.mxu0 0.0
    %3069 = vmatpush1.msra.mxu0 0.0
    %3070 = vmatprep.subr.mxu0 0.0
    %3071 = vmatpush1.msra.mxu0 0.0
    %3072 = vmatprep.subr.mxu0 0.0
    %3073 = vmatpush1.msra.mxu0 0.0
    %3074 = vmatprep.subr.mxu0 0.0
    %3075 = vmatpush1.msra.mxu0 0.0
    %3076 = vmatprep.subr.mxu0 0.0
    %3077 = vmatpush1.msra.mxu0 0.0
    %3078 = vmatprep.subr.mxu0 0.0
    %3079 = vmatpush1.msra.mxu0 0.0
    %3080 = vmatprep.subr.mxu0 0.0
    %3081 = vmatpush1.msra.mxu0 0.0
    %3082 = vmatprep.subr.mxu0 0.0
    %3083 = vmatpush1.msra.mxu0 0.0
    %3084 = vmatprep.subr.mxu0 0.0
    %3085 = vmatpush1.msra.mxu0 0.0
    %3086 = vmatprep.subr.mxu0 0.0
    %3087 = vmatpush1.msra.mxu0 0.0
    %3088 = vmatprep.subr.mxu0 0.0
    %3089 = vmatpush1.msra.mxu0 0.0
    %3090 = vmatprep.subr.mxu0 0.0
    %3091 = vmatpush1.msra.mxu0 0.0
    %3092 = vmatprep.subr.mxu0 0.0
    %3093 = vmatpush1.msra.mxu0 0.0
    %3094 = vmatprep.mubr.f32.mxu0 0.0
    %3095 = vmatmul.mubr.f32.gmra.mrb[0].mxu0 %v2957
    %v3096 = vpop.f32.mrb[0].mxu0
    %v3097 = vadd.f32 0.0, %v3096
    %v3098 = vpop.f32.mrb[0].mxu0
    %v3099 = vadd.f32 0.0, %v3098
    %3100 = vdwg.mxu0
    %v3105 = vrot.slane %v3026, 2
    %v3106 = vrot.slane %v3028, 2
    %v3107 = vrot.slane %v3097, 2
    %v3108 = vrot.slane %v3099, 2
    %v3113 = vadd.f32 %v2259, %v3105
    %v3114 = vadd.f32 %v2261, %v3106
    %v3115 = vadd.f32 %v2336, %v3107
    %v3116 = vadd.f32 %v2338, %v3108
    %v3117 = vxor.u32 %v3113, 2147483648
    %v3118 = vmul.f32 %v3117, 1.442695
    %v3119 = vpow.pop %v3118
    %v3120 = vadd.f32 %v3119, 1.0
    %v3121 = vrcp.pop %v3120
    %v3122 = vmul.f32 1.0, %v3121
    %v3123 = vxor.u32 %v3114, 2147483648
    %v3124 = vmul.f32 %v3123, 1.442695
    %v3125 = vpow.pop %v3124
    %v3126 = vadd.f32 %v3125, 1.0
    %v3127 = vrcp.pop %v3126
    %v3128 = vmul.f32 1.0, %v3127
    %v3129 = vtanh.pop %v3115
    %v3130 = vxor.u32 %v3116, 2147483648
    %v3131 = vmul.f32 %v3130, 1.442695
    %v3132 = vpow.pop %v3131
    %v3133 = vadd.f32 %v3132, 1.0
    %v3134 = vrcp.pop %v3133
    %v3135 = vmul.f32 1.0, %v3134
    %v3137 = vrot.slane %v2952, 6
    %v3139 = vmul.f32 %v3128, %v3137
    %v3140 = vmul.f32 %v3122, %v3129
    %v3141 = vadd.f32 %v3139, %v3140
    %v3142 = vtanh.pop %v3141
    %v3143 = vmul.f32 %v3135, %v3142
    %3144 = vst [vmem:[#allocation2] sm:$0xc0] %v3143
    %v3146 = vrot.slane %v3143, 6
    %3148 = vmatprep.subr.mxu0 %v2347
    %3149 = vmatpush1.msra.mxu0 %v2346
    %3150 = vmatprep.subr.mxu0 %v2351
    %3151 = vmatpush1.msra.mxu0 %v2350
    %3152 = vmatprep.subr.mxu0 %v2355
    %3153 = vmatpush1.msra.mxu0 %v2354
    %3154 = vmatprep.subr.mxu0 %v2359
    %3155 = vmatpush1.msra.mxu0 %v2358
    %3156 = vmatprep.subr.mxu0 %v2363
    %3157 = vmatpush1.msra.mxu0 %v2362
    %3158 = vmatprep.subr.mxu0 %v2367
    %3159 = vmatpush1.msra.mxu0 %v2366
    %3160 = vmatprep.subr.mxu0 %v2371
    %3161 = vmatpush1.msra.mxu0 %v2370
    %3162 = vmatprep.subr.mxu0 %v2375
    %3163 = vmatpush1.msra.mxu0 %v2374
    %3164 = vmatprep.subr.mxu0 %v2379
    %3165 = vmatpush1.msra.mxu0 %v2378
    %3166 = vmatprep.subr.mxu0 %v2383
    %3167 = vmatpush1.msra.mxu0 %v2382
    %3168 = vmatprep.subr.mxu0 %v2387
    %3169 = vmatpush1.msra.mxu0 %v2386
    %3170 = vmatprep.subr.mxu0 %v2391
    %3171 = vmatpush1.msra.mxu0 %v2390
    %3172 = vmatprep.subr.mxu0 %v2395
    %3173 = vmatpush1.msra.mxu0 %v2394
    %3174 = vmatprep.subr.mxu0 %v2399
    %3175 = vmatpush1.msra.mxu0 %v2398
    %3176 = vmatprep.subr.mxu0 %v2403
    %3177 = vmatpush1.msra.mxu0 %v2402
    %3178 = vmatprep.subr.mxu0 %v2407
    %3179 = vmatpush1.msra.mxu0 %v2406
    %3180 = vmatprep.subr.mxu0 0.0
    %3181 = vmatpush1.msra.mxu0 0.0
    %3182 = vmatprep.subr.mxu0 0.0
    %3183 = vmatpush1.msra.mxu0 0.0
    %3184 = vmatprep.subr.mxu0 0.0
    %3185 = vmatpush1.msra.mxu0 0.0
    %3186 = vmatprep.subr.mxu0 0.0
    %3187 = vmatpush1.msra.mxu0 0.0
    %3188 = vmatprep.subr.mxu0 0.0
    %3189 = vmatpush1.msra.mxu0 0.0
    %3190 = vmatprep.subr.mxu0 0.0
    %3191 = vmatpush1.msra.mxu0 0.0
    %3192 = vmatprep.subr.mxu0 0.0
    %3193 = vmatpush1.msra.mxu0 0.0
    %3194 = vmatprep.subr.mxu0 0.0
    %3195 = vmatpush1.msra.mxu0 0.0
    %3196 = vmatprep.subr.mxu0 0.0
    %3197 = vmatpush1.msra.mxu0 0.0
    %3198 = vmatprep.subr.mxu0 0.0
    %3199 = vmatpush1.msra.mxu0 0.0
    %3200 = vmatprep.subr.mxu0 0.0
    %3201 = vmatpush1.msra.mxu0 0.0
    %3202 = vmatprep.subr.mxu0 0.0
    %3203 = vmatpush1.msra.mxu0 0.0
    %3204 = vmatprep.subr.mxu0 0.0
    %3205 = vmatpush1.msra.mxu0 0.0
    %3206 = vmatprep.subr.mxu0 0.0
    %3207 = vmatpush1.msra.mxu0 0.0
    %3208 = vmatprep.subr.mxu0 0.0
    %3209 = vmatpush1.msra.mxu0 0.0
    %3210 = vmatprep.subr.mxu0 0.0
    %3211 = vmatpush1.msra.mxu0 0.0
    %3212 = vmatprep.mubr.f32.mxu0 0.0
    %3213 = vmatmul.mubr.f32.gmra.mrb[0].mxu0 %v3146
    %v3214 = vpop.f32.mrb[0].mxu0
    %v3215 = vadd.f32 0.0, %v3214
    %v3216 = vpop.f32.mrb[0].mxu0
    %v3217 = vadd.f32 0.0, %v3216
    %3218 = vdwg.mxu0
    %3219 = vmatprep.subr.mxu0 %v2349
    %3220 = vmatpush1.msra.mxu0 %v2348
    %3221 = vmatprep.subr.mxu0 %v2353
    %3222 = vmatpush1.msra.mxu0 %v2352
    %3223 = vmatprep.subr.mxu0 %v2357
    %3224 = vmatpush1.msra.mxu0 %v2356
    %3225 = vmatprep.subr.mxu0 %v2361
    %3226 = vmatpush1.msra.mxu0 %v2360
    %3227 = vmatprep.subr.mxu0 %v2365
    %3228 = vmatpush1.msra.mxu0 %v2364
    %3229 = vmatprep.subr.mxu0 %v2369
    %3230 = vmatpush1.msra.mxu0 %v2368
    %3231 = vmatprep.subr.mxu0 %v2373
    %3232 = vmatpush1.msra.mxu0 %v2372
    %3233 = vmatprep.subr.mxu0 %v2377
    %3234 = vmatpush1.msra.mxu0 %v2376
    %3235 = vmatprep.subr.mxu0 %v2381
    %3236 = vmatpush1.msra.mxu0 %v2380
    %3237 = vmatprep.subr.mxu0 %v2385
    %3238 = vmatpush1.msra.mxu0 %v2384
    %3239 = vmatprep.subr.mxu0 %v2389
    %3240 = vmatpush1.msra.mxu0 %v2388
    %3241 = vmatprep.subr.mxu0 %v2393
    %3242 = vmatpush1.msra.mxu0 %v2392
    %3243 = vmatprep.subr.mxu0 %v2397
    %3244 = vmatpush1.msra.mxu0 %v2396
    %3245 = vmatprep.subr.mxu0 %v2401
    %3246 = vmatpush1.msra.mxu0 %v2400
    %3247 = vmatprep.subr.mxu0 %v2405
    %3248 = vmatpush1.msra.mxu0 %v2404
    %3249 = vmatprep.subr.mxu0 %v2409
    %3250 = vmatpush1.msra.mxu0 %v2408
    %3251 = vmatprep.subr.mxu0 0.0
    %3252 = vmatpush1.msra.mxu0 0.0
    %3253 = vmatprep.subr.mxu0 0.0
    %3254 = vmatpush1.msra.mxu0 0.0
    %3255 = vmatprep.subr.mxu0 0.0
    %3256 = vmatpush1.msra.mxu0 0.0
    %3257 = vmatprep.subr.mxu0 0.0
    %3258 = vmatpush1.msra.mxu0 0.0
    %3259 = vmatprep.subr.mxu0 0.0
    %3260 = vmatpush1.msra.mxu0 0.0
    %3261 = vmatprep.subr.mxu0 0.0
    %3262 = vmatpush1.msra.mxu0 0.0
    %3263 = vmatprep.subr.mxu0 0.0
    %3264 = vmatpush1.msra.mxu0 0.0
    %3265 = vmatprep.subr.mxu0 0.0
    %3266 = vmatpush1.msra.mxu0 0.0
    %3267 = vmatprep.subr.mxu0 0.0
    %3268 = vmatpush1.msra.mxu0 0.0
    %3269 = vmatprep.subr.mxu0 0.0
    %3270 = vmatpush1.msra.mxu0 0.0
    %3271 = vmatprep.subr.mxu0 0.0
    %3272 = vmatpush1.msra.mxu0 0.0
    %3273 = vmatprep.subr.mxu0 0.0
    %3274 = vmatpush1.msra.mxu0 0.0
    %3275 = vmatprep.subr.mxu0 0.0
    %3276 = vmatpush1.msra.mxu0 0.0
    %3277 = vmatprep.subr.mxu0 0.0
    %3278 = vmatpush1.msra.mxu0 0.0
    %3279 = vmatprep.subr.mxu0 0.0
    %3280 = vmatpush1.msra.mxu0 0.0
    %3281 = vmatprep.subr.mxu0 0.0
    %3282 = vmatpush1.msra.mxu0 0.0
    %3283 = vmatprep.mubr.f32.mxu0 0.0
    %3284 = vmatmul.mubr.f32.gmra.mrb[0].mxu0 %v3146
    %v3285 = vpop.f32.mrb[0].mxu0
    %v3286 = vadd.f32 0.0, %v3285
    %v3287 = vpop.f32.mrb[0].mxu0
    %v3288 = vadd.f32 0.0, %v3287
    %3289 = vdwg.mxu0
    %v3290 = vadd.f32 %v2265, %v3215
    %v3291 = vadd.f32 %v2267, %v3217
    %v3292 = vadd.f32 %v2342, %v3286
    %v3293 = vadd.f32 %v2344, %v3288
    %v3294 = vxor.u32 %v3290, 2147483648
    %v3295 = vmul.f32 %v3294, 1.442695
    %v3296 = vpow.pop %v3295
    %v3297 = vadd.f32 %v3296, 1.0
    %v3298 = vrcp.pop %v3297
    %v3299 = vmul.f32 1.0, %v3298
    %v3300 = vxor.u32 %v3291, 2147483648
    %v3301 = vmul.f32 %v3300, 1.442695
    %v3302 = vpow.pop %v3301
    %v3303 = vadd.f32 %v3302, 1.0
    %v3304 = vrcp.pop %v3303
    %v3305 = vmul.f32 1.0, %v3304
    %v3306 = vtanh.pop %v3292
    %v3307 = vxor.u32 %v3293, 2147483648
    %v3308 = vmul.f32 %v3307, 1.442695
    %v3309 = vpow.pop %v3308
    %v3310 = vadd.f32 %v3309, 1.0
    %v3311 = vrcp.pop %v3310
    %v3312 = vmul.f32 1.0, %v3311
    %v3314 = vrot.slane %v3141, 6
    %v3316 = vmul.f32 %v3305, %v3314
    %v3317 = vmul.f32 %v3299, %v3306
    %v3318 = vadd.f32 %v3316, %v3317
    %v3319 = vtanh.pop %v3318
    %v3320 = vmul.f32 %v3312, %v3319
    %3321 = vst [vmem:[#allocation2 + $0x8] sm:$0x3] %v3320
    %3322 = vmatprep.subr.mxu0 %v2347
    %3323 = vmatpush1.msra.mxu0 %v2346
    %3324 = vmatprep.subr.mxu0 %v2351
    %3325 = vmatpush1.msra.mxu0 %v2350
    %3326 = vmatprep.subr.mxu0 %v2355
    %3327 = vmatpush1.msra.mxu0 %v2354
    %3328 = vmatprep.subr.mxu0 %v2359
    %3329 = vmatpush1.msra.mxu0 %v2358
    %3330 = vmatprep.subr.mxu0 %v2363
    %3331 = vmatpush1.msra.mxu0 %v2362
    %3332 = vmatprep.subr.mxu0 %v2367
    %3333 = vmatpush1.msra.mxu0 %v2366
    %3334 = vmatprep.subr.mxu0 %v2371
    %3335 = vmatpush1.msra.mxu0 %v2370
    %3336 = vmatprep.subr.mxu0 %v2375
    %3337 = vmatpush1.msra.mxu0 %v2374
    %3338 = vmatprep.subr.mxu0 %v2379
    %3339 = vmatpush1.msra.mxu0 %v2378
    %3340 = vmatprep.subr.mxu0 %v2383
    %3341 = vmatpush1.msra.mxu0 %v2382
    %3342 = vmatprep.subr.mxu0 %v2387
    %3343 = vmatpush1.msra.mxu0 %v2386
    %3344 = vmatprep.subr.mxu0 %v2391
    %3345 = vmatpush1.msra.mxu0 %v2390
    %3346 = vmatprep.subr.mxu0 %v2395
    %3347 = vmatpush1.msra.mxu0 %v2394
    %3348 = vmatprep.subr.mxu0 %v2399
    %3349 = vmatpush1.msra.mxu0 %v2398
    %3350 = vmatprep.subr.mxu0 %v2403
    %3351 = vmatpush1.msra.mxu0 %v2402
    %3352 = vmatprep.subr.mxu0 %v2407
    %3353 = vmatpush1.msra.mxu0 %v2406
    %3354 = vmatprep.subr.mxu0 0.0
    %3355 = vmatpush1.msra.mxu0 0.0
    %3356 = vmatprep.subr.mxu0 0.0
    %3357 = vmatpush1.msra.mxu0 0.0
    %3358 = vmatprep.subr.mxu0 0.0
    %3359 = vmatpush1.msra.mxu0 0.0
    %3360 = vmatprep.subr.mxu0 0.0
    %3361 = vmatpush1.msra.mxu0 0.0
    %3362 = vmatprep.subr.mxu0 0.0
    %3363 = vmatpush1.msra.mxu0 0.0
    %3364 = vmatprep.subr.mxu0 0.0
    %3365 = vmatpush1.msra.mxu0 0.0
    %3366 = vmatprep.subr.mxu0 0.0
    %3367 = vmatpush1.msra.mxu0 0.0
    %3368 = vmatprep.subr.mxu0 0.0
    %3369 = vmatpush1.msra.mxu0 0.0
    %3370 = vmatprep.subr.mxu0 0.0
    %3371 = vmatpush1.msra.mxu0 0.0
    %3372 = vmatprep.subr.mxu0 0.0
    %3373 = vmatpush1.msra.mxu0 0.0
    %3374 = vmatprep.subr.mxu0 0.0
    %3375 = vmatpush1.msra.mxu0 0.0
    %3376 = vmatprep.subr.mxu0 0.0
    %3377 = vmatpush1.msra.mxu0 0.0
    %3378 = vmatprep.subr.mxu0 0.0
    %3379 = vmatpush1.msra.mxu0 0.0
    %3380 = vmatprep.subr.mxu0 0.0
    %3381 = vmatpush1.msra.mxu0 0.0
    %3382 = vmatprep.subr.mxu0 0.0
    %3383 = vmatpush1.msra.mxu0 0.0
    %3384 = vmatprep.subr.mxu0 0.0
    %3385 = vmatpush1.msra.mxu0 0.0
    %3386 = vmatprep.mubr.f32.mxu0 0.0
    %3387 = vmatmul.mubr.f32.gmra.mrb[0].mxu0 %v3320
    %v3388 = vpop.f32.mrb[0].mxu0
    %v3389 = vadd.f32 0.0, %v3388
    %v3390 = vpop.f32.mrb[0].mxu0
    %v3391 = vadd.f32 0.0, %v3390
    %3392 = vdwg.mxu0
    %3393 = vmatprep.subr.mxu0 %v2349
    %3394 = vmatpush1.msra.mxu0 %v2348
    %3395 = vmatprep.subr.mxu0 %v2353
    %3396 = vmatpush1.msra.mxu0 %v2352
    %3397 = vmatprep.subr.mxu0 %v2357
    %3398 = vmatpush1.msra.mxu0 %v2356
    %3399 = vmatprep.subr.mxu0 %v2361
    %3400 = vmatpush1.msra.mxu0 %v2360
    %3401 = vmatprep.subr.mxu0 %v2365
    %3402 = vmatpush1.msra.mxu0 %v2364
    %3403 = vmatprep.subr.mxu0 %v2369
    %3404 = vmatpush1.msra.mxu0 %v2368
    %3405 = vmatprep.subr.mxu0 %v2373
    %3406 = vmatpush1.msra.mxu0 %v2372
    %3407 = vmatprep.subr.mxu0 %v2377
    %3408 = vmatpush1.msra.mxu0 %v2376
    %3409 = vmatprep.subr.mxu0 %v2381
    %3410 = vmatpush1.msra.mxu0 %v2380
    %3411 = vmatprep.subr.mxu0 %v2385
    %3412 = vmatpush1.msra.mxu0 %v2384
    %3413 = vmatprep.subr.mxu0 %v2389
    %3414 = vmatpush1.msra.mxu0 %v2388
    %3415 = vmatprep.subr.mxu0 %v2393
    %3416 = vmatpush1.msra.mxu0 %v2392
    %3417 = vmatprep.subr.mxu0 %v2397
    %3418 = vmatpush1.msra.mxu0 %v2396
    %3419 = vmatprep.subr.mxu0 %v2401
    %3420 = vmatpush1.msra.mxu0 %v2400
    %3421 = vmatprep.subr.mxu0 %v2405
    %3422 = vmatpush1.msra.mxu0 %v2404
    %3423 = vmatprep.subr.mxu0 %v2409
    %3424 = vmatpush1.msra.mxu0 %v2408
    %3425 = vmatprep.subr.mxu0 0.0
    %3426 = vmatpush1.msra.mxu0 0.0
    %3427 = vmatprep.subr.mxu0 0.0
    %3428 = vmatpush1.msra.mxu0 0.0
    %3429 = vmatprep.subr.mxu0 0.0
    %3430 = vmatpush1.msra.mxu0 0.0
    %3431 = vmatprep.subr.mxu0 0.0
    %3432 = vmatpush1.msra.mxu0 0.0
    %3433 = vmatprep.subr.mxu0 0.0
    %3434 = vmatpush1.msra.mxu0 0.0
    %3435 = vmatprep.subr.mxu0 0.0
    %3436 = vmatpush1.msra.mxu0 0.0
    %3437 = vmatprep.subr.mxu0 0.0
    %3438 = vmatpush1.msra.mxu0 0.0
    %3439 = vmatprep.subr.mxu0 0.0
    %3440 = vmatpush1.msra.mxu0 0.0
    %3441 = vmatprep.subr.mxu0 0.0
    %3442 = vmatpush1.msra.mxu0 0.0
    %3443 = vmatprep.subr.mxu0 0.0
    %3444 = vmatpush1.msra.mxu0 0.0
    %3445 = vmatprep.subr.mxu0 0.0
    %3446 = vmatpush1.msra.mxu0 0.0
    %3447 = vmatprep.subr.mxu0 0.0
    %3448 = vmatpush1.msra.mxu0 0.0
    %3449 = vmatprep.subr.mxu0 0.0
    %3450 = vmatpush1.msra.mxu0 0.0
    %3451 = vmatprep.subr.mxu0 0.0
    %3452 = vmatpush1.msra.mxu0 0.0
    %3453 = vmatprep.subr.mxu0 0.0
    %3454 = vmatpush1.msra.mxu0 0.0
    %3455 = vmatprep.subr.mxu0 0.0
    %3456 = vmatpush1.msra.mxu0 0.0
    %3457 = vmatprep.mubr.f32.mxu0 0.0
    %3458 = vmatmul.mubr.f32.gmra.mrb[0].mxu0 %v3320
    %v3459 = vpop.f32.mrb[0].mxu0
    %v3460 = vadd.f32 0.0, %v3459
    %v3461 = vpop.f32.mrb[0].mxu0
    %v3462 = vadd.f32 0.0, %v3461
    %3463 = vdwg.mxu0
    %v3468 = vrot.slane %v3389, 6
    %v3469 = vrot.slane %v3391, 6
    %v3470 = vrot.slane %v3460, 6
    %v3471 = vrot.slane %v3462, 6
    %v3476 = vadd.f32 %v2265, %v3468
    %v3477 = vadd.f32 %v2267, %v3469
    %v3478 = vadd.f32 %v2342, %v3470
    %v3479 = vadd.f32 %v2344, %v3471
    %v3480 = vxor.u32 %v3476, 2147483648
    %v3481 = vmul.f32 %v3480, 1.442695
    %v3482 = vpow.pop %v3481
    %v3483 = vadd.f32 %v3482, 1.0
    %v3484 = vrcp.pop %v3483
    %v3485 = vmul.f32 1.0, %v3484
    %v3486 = vxor.u32 %v3477, 2147483648
    %v3487 = vmul.f32 %v3486, 1.442695
    %v3488 = vpow.pop %v3487
    %v3489 = vadd.f32 %v3488, 1.0
    %v3490 = vrcp.pop %v3489
    %v3491 = vmul.f32 1.0, %v3490
    %v3492 = vtanh.pop %v3478
    %v3493 = vxor.u32 %v3479, 2147483648
    %v3494 = vmul.f32 %v3493, 1.442695
    %v3495 = vpow.pop %v3494
    %v3496 = vadd.f32 %v3495, 1.0
    %v3497 = vrcp.pop %v3496
    %v3498 = vmul.f32 1.0, %v3497
    %v3500 = vrot.slane %v3318, 6
    %v3502 = vmul.f32 %v3491, %v3500
    %v3503 = vmul.f32 %v3485, %v3492
    %v3504 = vadd.f32 %v3502, %v3503
    %v3505 = vtanh.pop %v3504
    %v3506 = vmul.f32 %v3498, %v3505
    %3507 = vst [vmem:[#allocation2 + $0x8] sm:$0xc] %v3506
    %v3509 = vrot.slane %v3506, 2
    %3511 = vmatprep.subr.mxu0 %v2347
    %3512 = vmatpush1.msra.mxu0 %v2346
    %3513 = vmatprep.subr.mxu0 %v2351
    %3514 = vmatpush1.msra.mxu0 %v2350
    %3515 = vmatprep.subr.mxu0 %v2355
    %3516 = vmatpush1.msra.mxu0 %v2354
    %3517 = vmatprep.subr.mxu0 %v2359
    %3518 = vmatpush1.msra.mxu0 %v2358
    %3519 = vmatprep.subr.mxu0 %v2363
    %3520 = vmatpush1.msra.mxu0 %v2362
    %3521 = vmatprep.subr.mxu0 %v2367
    %3522 = vmatpush1.msra.mxu0 %v2366
    %3523 = vmatprep.subr.mxu0 %v2371
    %3524 = vmatpush1.msra.mxu0 %v2370
    %3525 = vmatprep.subr.mxu0 %v2375
    %3526 = vmatpush1.msra.mxu0 %v2374
    %3527 = vmatprep.subr.mxu0 %v2379
    %3528 = vmatpush1.msra.mxu0 %v2378
    %3529 = vmatprep.subr.mxu0 %v2383
    %3530 = vmatpush1.msra.mxu0 %v2382
    %3531 = vmatprep.subr.mxu0 %v2387
    %3532 = vmatpush1.msra.mxu0 %v2386
    %3533 = vmatprep.subr.mxu0 %v2391
    %3534 = vmatpush1.msra.mxu0 %v2390
    %3535 = vmatprep.subr.mxu0 %v2395
    %3536 = vmatpush1.msra.mxu0 %v2394
    %3537 = vmatprep.subr.mxu0 %v2399
    %3538 = vmatpush1.msra.mxu0 %v2398
    %3539 = vmatprep.subr.mxu0 %v2403
    %3540 = vmatpush1.msra.mxu0 %v2402
    %3541 = vmatprep.subr.mxu0 %v2407
    %3542 = vmatpush1.msra.mxu0 %v2406
    %3543 = vmatprep.subr.mxu0 0.0
    %3544 = vmatpush1.msra.mxu0 0.0
    %3545 = vmatprep.subr.mxu0 0.0
    %3546 = vmatpush1.msra.mxu0 0.0
    %3547 = vmatprep.subr.mxu0 0.0
    %3548 = vmatpush1.msra.mxu0 0.0
    %3549 = vmatprep.subr.mxu0 0.0
    %3550 = vmatpush1.msra.mxu0 0.0
    %3551 = vmatprep.subr.mxu0 0.0
    %3552 = vmatpush1.msra.mxu0 0.0
    %3553 = vmatprep.subr.mxu0 0.0
    %3554 = vmatpush1.msra.mxu0 0.0
    %3555 = vmatprep.subr.mxu0 0.0
    %3556 = vmatpush1.msra.mxu0 0.0
    %3557 = vmatprep.subr.mxu0 0.0
    %3558 = vmatpush1.msra.mxu0 0.0
    %3559 = vmatprep.subr.mxu0 0.0
    %3560 = vmatpush1.msra.mxu0 0.0
    %3561 = vmatprep.subr.mxu0 0.0
    %3562 = vmatpush1.msra.mxu0 0.0
    %3563 = vmatprep.subr.mxu0 0.0
    %3564 = vmatpush1.msra.mxu0 0.0
    %3565 = vmatprep.subr.mxu0 0.0
    %3566 = vmatpush1.msra.mxu0 0.0
    %3567 = vmatprep.subr.mxu0 0.0
    %3568 = vmatpush1.msra.mxu0 0.0
    %3569 = vmatprep.subr.mxu0 0.0
    %3570 = vmatpush1.msra.mxu0 0.0
    %3571 = vmatprep.subr.mxu0 0.0
    %3572 = vmatpush1.msra.mxu0 0.0
    %3573 = vmatprep.subr.mxu0 0.0
    %3574 = vmatpush1.msra.mxu0 0.0
    %3575 = vmatprep.mubr.f32.mxu0 0.0
    %3576 = vmatmul.mubr.f32.gmra.mrb[0].mxu0 %v3509
    %v3577 = vpop.f32.mrb[0].mxu0
    %v3578 = vadd.f32 0.0, %v3577
    %v3579 = vpop.f32.mrb[0].mxu0
    %v3580 = vadd.f32 0.0, %v3579
    %3581 = vdwg.mxu0
    %3582 = vmatprep.subr.mxu0 %v2349
    %3583 = vmatpush1.msra.mxu0 %v2348
    %3584 = vmatprep.subr.mxu0 %v2353
    %3585 = vmatpush1.msra.mxu0 %v2352
    %3586 = vmatprep.subr.mxu0 %v2357
    %3587 = vmatpush1.msra.mxu0 %v2356
    %3588 = vmatprep.subr.mxu0 %v2361
    %3589 = vmatpush1.msra.mxu0 %v2360
    %3590 = vmatprep.subr.mxu0 %v2365
    %3591 = vmatpush1.msra.mxu0 %v2364
    %3592 = vmatprep.subr.mxu0 %v2369
    %3593 = vmatpush1.msra.mxu0 %v2368
    %3594 = vmatprep.subr.mxu0 %v2373
    %3595 = vmatpush1.msra.mxu0 %v2372
    %3596 = vmatprep.subr.mxu0 %v2377
    %3597 = vmatpush1.msra.mxu0 %v2376
    %3598 = vmatprep.subr.mxu0 %v2381
    %3599 = vmatpush1.msra.mxu0 %v2380
    %3600 = vmatprep.subr.mxu0 %v2385
    %3601 = vmatpush1.msra.mxu0 %v2384
    %3602 = vmatprep.subr.mxu0 %v2389
    %3603 = vmatpush1.msra.mxu0 %v2388
    %3604 = vmatprep.subr.mxu0 %v2393
    %3605 = vmatpush1.msra.mxu0 %v2392
    %3606 = vmatprep.subr.mxu0 %v2397
    %3607 = vmatpush1.msra.mxu0 %v2396
    %3608 = vmatprep.subr.mxu0 %v2401
    %3609 = vmatpush1.msra.mxu0 %v2400
    %3610 = vmatprep.subr.mxu0 %v2405
    %3611 = vmatpush1.msra.mxu0 %v2404
    %3612 = vmatprep.subr.mxu0 %v2409
    %3613 = vmatpush1.msra.mxu0 %v2408
    %3614 = vmatprep.subr.mxu0 0.0
    %3615 = vmatpush1.msra.mxu0 0.0
    %3616 = vmatprep.subr.mxu0 0.0
    %3617 = vmatpush1.msra.mxu0 0.0
    %3618 = vmatprep.subr.mxu0 0.0
    %3619 = vmatpush1.msra.mxu0 0.0
    %3620 = vmatprep.subr.mxu0 0.0
    %3621 = vmatpush1.msra.mxu0 0.0
    %3622 = vmatprep.subr.mxu0 0.0
    %3623 = vmatpush1.msra.mxu0 0.0
    %3624 = vmatprep.subr.mxu0 0.0
    %3625 = vmatpush1.msra.mxu0 0.0
    %3626 = vmatprep.subr.mxu0 0.0
    %3627 = vmatpush1.msra.mxu0 0.0
    %3628 = vmatprep.subr.mxu0 0.0
    %3629 = vmatpush1.msra.mxu0 0.0
    %3630 = vmatprep.subr.mxu0 0.0
    %3631 = vmatpush1.msra.mxu0 0.0
    %3632 = vmatprep.subr.mxu0 0.0
    %3633 = vmatpush1.msra.mxu0 0.0
    %3634 = vmatprep.subr.mxu0 0.0
    %3635 = vmatpush1.msra.mxu0 0.0
    %3636 = vmatprep.subr.mxu0 0.0
    %3637 = vmatpush1.msra.mxu0 0.0
    %3638 = vmatprep.subr.mxu0 0.0
    %3639 = vmatpush1.msra.mxu0 0.0
    %3640 = vmatprep.subr.mxu0 0.0
    %3641 = vmatpush1.msra.mxu0 0.0
    %3642 = vmatprep.subr.mxu0 0.0
    %3643 = vmatpush1.msra.mxu0 0.0
    %3644 = vmatprep.subr.mxu0 0.0
    %3645 = vmatpush1.msra.mxu0 0.0
    %3646 = vmatprep.mubr.f32.mxu0 0.0
    %3647 = vmatmul.mubr.f32.gmra.mrb[0].mxu0 %v3509
    %v3648 = vpop.f32.mrb[0].mxu0
    %v3649 = vadd.f32 0.0, %v3648
    %v3650 = vpop.f32.mrb[0].mxu0
    %v3651 = vadd.f32 0.0, %v3650
    %3652 = vdwg.mxu0
    %v3657 = vrot.slane %v3578, 4
    %v3658 = vrot.slane %v3580, 4
    %v3659 = vrot.slane %v3649, 4
    %v3660 = vrot.slane %v3651, 4
    %v3665 = vadd.f32 %v2265, %v3657
    %v3666 = vadd.f32 %v2267, %v3658
    %v3667 = vadd.f32 %v2342, %v3659
    %v3668 = vadd.f32 %v2344, %v3660
    %v3669 = vxor.u32 %v3665, 2147483648
    %v3670 = vmul.f32 %v3669, 1.442695
    %v3671 = vpow.pop %v3670
    %v3672 = vadd.f32 %v3671, 1.0
    %v3673 = vrcp.pop %v3672
    %v3674 = vmul.f32 1.0, %v3673
    %v3675 = vxor.u32 %v3666, 2147483648
    %v3676 = vmul.f32 %v3675, 1.442695
    %v3677 = vpow.pop %v3676
    %v3678 = vadd.f32 %v3677, 1.0
    %v3679 = vrcp.pop %v3678
    %v3680 = vmul.f32 1.0, %v3679
    %v3681 = vtanh.pop %v3667
    %v3682 = vxor.u32 %v3668, 2147483648
    %v3683 = vmul.f32 %v3682, 1.442695
    %v3684 = vpow.pop %v3683
    %v3685 = vadd.f32 %v3684, 1.0
    %v3686 = vrcp.pop %v3685
    %v3687 = vmul.f32 1.0, %v3686
    %v3689 = vrot.slane %v3504, 6
    %v3691 = vmul.f32 %v3680, %v3689
    %v3692 = vmul.f32 %v3674, %v3681
    %v3693 = vadd.f32 %v3691, %v3692
    %v3694 = vtanh.pop %v3693
    %v3695 = vmul.f32 %v3687, %v3694
    %3696 = vst [vmem:[#allocation2 + $0x8] sm:$0x30] %v3695
    %v3698 = vrot.slane %v3695, 4
    %3700 = vmatprep.subr.mxu0 %v2347
    %3701 = vmatpush1.msra.mxu0 %v2346
    %3702 = vmatprep.subr.mxu0 %v2351
    %3703 = vmatpush1.msra.mxu0 %v2350
    %3704 = vmatprep.subr.mxu0 %v2355
    %3705 = vmatpush1.msra.mxu0 %v2354
    %3706 = vmatprep.subr.mxu0 %v2359
    %3707 = vmatpush1.msra.mxu0 %v2358
    %3708 = vmatprep.subr.mxu0 %v2363
    %3709 = vmatpush1.msra.mxu0 %v2362
    %3710 = vmatprep.subr.mxu0 %v2367
    %3711 = vmatpush1.msra.mxu0 %v2366
    %3712 = vmatprep.subr.mxu0 %v2371
    %3713 = vmatpush1.msra.mxu0 %v2370
    %3714 = vmatprep.subr.mxu0 %v2375
    %3715 = vmatpush1.msra.mxu0 %v2374
    %3716 = vmatprep.subr.mxu0 %v2379
    %3717 = vmatpush1.msra.mxu0 %v2378
    %3718 = vmatprep.subr.mxu0 %v2383
    %3719 = vmatpush1.msra.mxu0 %v2382
    %3720 = vmatprep.subr.mxu0 %v2387
    %3721 = vmatpush1.msra.mxu0 %v2386
    %3722 = vmatprep.subr.mxu0 %v2391
    %3723 = vmatpush1.msra.mxu0 %v2390
    %3724 = vmatprep.subr.mxu0 %v2395
    %3725 = vmatpush1.msra.mxu0 %v2394
    %3726 = vmatprep.subr.mxu0 %v2399
    %3727 = vmatpush1.msra.mxu0 %v2398
    %3728 = vmatprep.subr.mxu0 %v2403
    %3729 = vmatpush1.msra.mxu0 %v2402
    %3730 = vmatprep.subr.mxu0 %v2407
    %3731 = vmatpush1.msra.mxu0 %v2406
    %3732 = vmatprep.subr.mxu0 0.0
    %3733 = vmatpush1.msra.mxu0 0.0
    %3734 = vmatprep.subr.mxu0 0.0
    %3735 = vmatpush1.msra.mxu0 0.0
    %3736 = vmatprep.subr.mxu0 0.0
    %3737 = vmatpush1.msra.mxu0 0.0
    %3738 = vmatprep.subr.mxu0 0.0
    %3739 = vmatpush1.msra.mxu0 0.0
    %3740 = vmatprep.subr.mxu0 0.0
    %3741 = vmatpush1.msra.mxu0 0.0
    %3742 = vmatprep.subr.mxu0 0.0
    %3743 = vmatpush1.msra.mxu0 0.0
    %3744 = vmatprep.subr.mxu0 0.0
    %3745 = vmatpush1.msra.mxu0 0.0
    %3746 = vmatprep.subr.mxu0 0.0
    %3747 = vmatpush1.msra.mxu0 0.0
    %3748 = vmatprep.subr.mxu0 0.0
    %3749 = vmatpush1.msra.mxu0 0.0
    %3750 = vmatprep.subr.mxu0 0.0
    %3751 = vmatpush1.msra.mxu0 0.0
    %3752 = vmatprep.subr.mxu0 0.0
    %3753 = vmatpush1.msra.mxu0 0.0
    %3754 = vmatprep.subr.mxu0 0.0
    %3755 = vmatpush1.msra.mxu0 0.0
    %3756 = vmatprep.subr.mxu0 0.0
    %3757 = vmatpush1.msra.mxu0 0.0
    %3758 = vmatprep.subr.mxu0 0.0
    %3759 = vmatpush1.msra.mxu0 0.0
    %3760 = vmatprep.subr.mxu0 0.0
    %3761 = vmatpush1.msra.mxu0 0.0
    %3762 = vmatprep.subr.mxu0 0.0
    %3763 = vmatpush1.msra.mxu0 0.0
    %3764 = vmatprep.mubr.f32.mxu0 0.0
    %3765 = vmatmul.mubr.f32.gmra.mrb[0].mxu0 %v3698
    %v3766 = vpop.f32.mrb[0].mxu0
    %v3767 = vadd.f32 0.0, %v3766
    %v3768 = vpop.f32.mrb[0].mxu0
    %v3769 = vadd.f32 0.0, %v3768
    %3770 = vdwg.mxu0
    %3771 = vmatprep.subr.mxu0 %v2349
    %3772 = vmatpush1.msra.mxu0 %v2348
    %3773 = vmatprep.subr.mxu0 %v2353
    %3774 = vmatpush1.msra.mxu0 %v2352
    %3775 = vmatprep.subr.mxu0 %v2357
    %3776 = vmatpush1.msra.mxu0 %v2356
    %3777 = vmatprep.subr.mxu0 %v2361
    %3778 = vmatpush1.msra.mxu0 %v2360
    %3779 = vmatprep.subr.mxu0 %v2365
    %3780 = vmatpush1.msra.mxu0 %v2364
    %3781 = vmatprep.subr.mxu0 %v2369
    %3782 = vmatpush1.msra.mxu0 %v2368
    %3783 = vmatprep.subr.mxu0 %v2373
    %3784 = vmatpush1.msra.mxu0 %v2372
    %3785 = vmatprep.subr.mxu0 %v2377
    %3786 = vmatpush1.msra.mxu0 %v2376
    %3787 = vmatprep.subr.mxu0 %v2381
    %3788 = vmatpush1.msra.mxu0 %v2380
    %3789 = vmatprep.subr.mxu0 %v2385
    %3790 = vmatpush1.msra.mxu0 %v2384
    %3791 = vmatprep.subr.mxu0 %v2389
    %3792 = vmatpush1.msra.mxu0 %v2388
    %3793 = vmatprep.subr.mxu0 %v2393
    %3794 = vmatpush1.msra.mxu0 %v2392
    %3795 = vmatprep.subr.mxu0 %v2397
    %3796 = vmatpush1.msra.mxu0 %v2396
    %3797 = vmatprep.subr.mxu0 %v2401
    %3798 = vmatpush1.msra.mxu0 %v2400
    %3799 = vmatprep.subr.mxu0 %v2405
    %3800 = vmatpush1.msra.mxu0 %v2404
    %3801 = vmatprep.subr.mxu0 %v2409
    %3802 = vmatpush1.msra.mxu0 %v2408
    %3803 = vmatprep.subr.mxu0 0.0
    %3804 = vmatpush1.msra.mxu0 0.0
    %3805 = vmatprep.subr.mxu0 0.0
    %3806 = vmatpush1.msra.mxu0 0.0
    %3807 = vmatprep.subr.mxu0 0.0
    %3808 = vmatpush1.msra.mxu0 0.0
    %3809 = vmatprep.subr.mxu0 0.0
    %3810 = vmatpush1.msra.mxu0 0.0
    %3811 = vmatprep.subr.mxu0 0.0
    %3812 = vmatpush1.msra.mxu0 0.0
    %3813 = vmatprep.subr.mxu0 0.0
    %3814 = vmatpush1.msra.mxu0 0.0
    %3815 = vmatprep.subr.mxu0 0.0
    %3816 = vmatpush1.msra.mxu0 0.0
    %3817 = vmatprep.subr.mxu0 0.0
    %3818 = vmatpush1.msra.mxu0 0.0
    %3819 = vmatprep.subr.mxu0 0.0
    %3820 = vmatpush1.msra.mxu0 0.0
    %3821 = vmatprep.subr.mxu0 0.0
    %3822 = vmatpush1.msra.mxu0 0.0
    %3823 = vmatprep.subr.mxu0 0.0
    %3824 = vmatpush1.msra.mxu0 0.0
    %3825 = vmatprep.subr.mxu0 0.0
    %3826 = vmatpush1.msra.mxu0 0.0
    %3827 = vmatprep.subr.mxu0 0.0
    %3828 = vmatpush1.msra.mxu0 0.0
    %3829 = vmatprep.subr.mxu0 0.0
    %3830 = vmatpush1.msra.mxu0 0.0
    %3831 = vmatprep.subr.mxu0 0.0
    %3832 = vmatpush1.msra.mxu0 0.0
    %3833 = vmatprep.subr.mxu0 0.0
    %3834 = vmatpush1.msra.mxu0 0.0
    %3835 = vmatprep.mubr.f32.mxu0 0.0
    %3836 = vmatmul.mubr.f32.gmra.mrb[0].mxu0 %v3698
    %v3837 = vpop.f32.mrb[0].mxu0
    %v3838 = vadd.f32 0.0, %v3837
    %v3839 = vpop.f32.mrb[0].mxu0
    %v3840 = vadd.f32 0.0, %v3839
    %3841 = vdwg.mxu0
    %v3846 = vrot.slane %v3767, 2
    %v3847 = vrot.slane %v3769, 2
    %v3848 = vrot.slane %v3838, 2
    %v3849 = vrot.slane %v3840, 2
    %v3854 = vadd.f32 %v2265, %v3846
    %v3855 = vadd.f32 %v2267, %v3847
    %v3856 = vadd.f32 %v2342, %v3848
    %v3857 = vadd.f32 %v2344, %v3849
    %v3858 = vxor.u32 %v3854, 2147483648
    %v3859 = vmul.f32 %v3858, 1.442695
    %v3860 = vpow.pop %v3859
    %v3861 = vadd.f32 %v3860, 1.0
    %v3862 = vrcp.pop %v3861
    %v3863 = vmul.f32 1.0, %v3862
    %v3864 = vxor.u32 %v3855, 2147483648
    %v3865 = vmul.f32 %v3864, 1.442695
    %v3866 = vpow.pop %v3865
    %v3867 = vadd.f32 %v3866, 1.0
    %v3868 = vrcp.pop %v3867
    %v3869 = vmul.f32 1.0, %v3868
    %v3870 = vtanh.pop %v3856
    %v3871 = vxor.u32 %v3857, 2147483648
    %v3872 = vmul.f32 %v3871, 1.442695
    %v3873 = vpow.pop %v3872
    %v3874 = vadd.f32 %v3873, 1.0
    %v3875 = vrcp.pop %v3874
    %v3876 = vmul.f32 1.0, %v3875
    %v3878 = vrot.slane %v3693, 6
    %v3880 = vmul.f32 %v3869, %v3878
    %v3881 = vmul.f32 %v3863, %v3870
    %v3882 = vadd.f32 %v3880, %v3881
    %v3883 = vtanh.pop %v3882
    %v3884 = vmul.f32 %v3876, %v3883
    %3885 = vst [vmem:[#allocation2 + $0x8] sm:$0xc0] %v3884
    %v3886 = vld [vmem:[#allocation2] sm:$0xff]
    %v3887 = vld [vmem:[#allocation2 + $0x8] sm:$0xff]
    %v3888 = vld [vmem:[#allocation9] sm:$0xff]
    %v3889 = vld [vmem:[#allocation9 + $0x8] sm:$0xff]
    %v3890 = vld [vmem:[#allocation9 + $0x10] sm:$0xff]
    %v3891 = vld [vmem:[#allocation9 + $0x18] sm:$0xff]
    %v3892 = vld [vmem:[#allocation9 + $0x20] sm:$0xff]
    %v3893 = vld [vmem:[#allocation9 + $0x28] sm:$0xff]
    %v3894 = vld [vmem:[#allocation9 + $0x30] sm:$0xff]
    %v3895 = vld [vmem:[#allocation9 + $0x38] sm:$0xff]
    %v3896 = vld [vmem:[#allocation9 + $0x40] sm:$0xff]
    %v3897 = vld [vmem:[#allocation9 + $0x48] sm:$0xff]
    %v3898 = vld [vmem:[#allocation9 + $0x50] sm:$0xff]
    %v3899 = vld [vmem:[#allocation9 + $0x58] sm:$0xff]
    %v3900 = vld [vmem:[#allocation9 + $0x60] sm:$0xff]
    %v3901 = vld [vmem:[#allocation9 + $0x68] sm:$0xff]
    %v3902 = vld [vmem:[#allocation9 + $0x70] sm:$0xff]
    %v3903 = vld [vmem:[#allocation9 + $0x78] sm:$0xff]
    %v3904 = vld [vmem:[#allocation9 + $0x80] sm:$0xff]
    %v3905 = vld [vmem:[#allocation9 + $0x88] sm:$0xff]
    %v3906 = vld [vmem:[#allocation9 + $0x90] sm:$0xff]
    %v3907 = vld [vmem:[#allocation9 + $0x98] sm:$0xff]
    %v3908 = vld [vmem:[#allocation9 + $0xa0] sm:$0xff]
    %v3909 = vld [vmem:[#allocation9 + $0xa8] sm:$0xff]
    %v3910 = vld [vmem:[#allocation9 + $0xb0] sm:$0xff]
    %v3911 = vld [vmem:[#allocation9 + $0xb8] sm:$0xff]
    %v3912 = vld [vmem:[#allocation9 + $0xc0] sm:$0xff]
    %v3913 = vld [vmem:[#allocation9 + $0xc8] sm:$0xff]
    %v3914 = vld [vmem:[#allocation9 + $0xd0] sm:$0xff]
    %v3915 = vld [vmem:[#allocation9 + $0xd8] sm:$0xff]
    %v3916 = vld [vmem:[#allocation9 + $0xe0] sm:$0xff]
    %v3917 = vld [vmem:[#allocation9 + $0xe8] sm:$0xff]
    %v3918 = vld [vmem:[#allocation9 + $0xf0] sm:$0xff]
    %v3919 = vld [vmem:[#allocation9 + $0xf8] sm:$0xff]
    %v3920 = vld [vmem:[#allocation9 + $0x100] sm:$0xff]
    %v3921 = vld [vmem:[#allocation9 + $0x108] sm:$0xff]
    %v3922 = vld [vmem:[#allocation9 + $0x110] sm:$0xff]
    %v3923 = vld [vmem:[#allocation9 + $0x118] sm:$0xff]
    %v3924 = vld [vmem:[#allocation9 + $0x120] sm:$0xff]
    %v3925 = vld [vmem:[#allocation9 + $0x128] sm:$0xff]
    %v3926 = vld [vmem:[#allocation9 + $0x130] sm:$0xff]
    %v3927 = vld [vmem:[#allocation9 + $0x138] sm:$0xff]
    %v3928 = vld [vmem:[#allocation9 + $0x140] sm:$0xff]
    %v3929 = vld [vmem:[#allocation9 + $0x148] sm:$0xff]
    %v3930 = vld [vmem:[#allocation9 + $0x150] sm:$0xff]
    %v3931 = vld [vmem:[#allocation9 + $0x158] sm:$0xff]
    %v3932 = vld [vmem:[#allocation9 + $0x160] sm:$0xff]
    %v3933 = vld [vmem:[#allocation9 + $0x168] sm:$0xff]
    %v3934 = vld [vmem:[#allocation9 + $0x170] sm:$0xff]
    %v3935 = vld [vmem:[#allocation9 + $0x178] sm:$0xff]
    %v3936 = vld [vmem:[#allocation9 + $0x180] sm:$0xff]
    %v3937 = vld [vmem:[#allocation9 + $0x188] sm:$0xff]
    %v3938 = vld [vmem:[#allocation9 + $0x190] sm:$0xff]
    %v3939 = vld [vmem:[#allocation9 + $0x198] sm:$0xff]
    %v3940 = vld [vmem:[#allocation9 + $0x1a0] sm:$0xff]
    %v3941 = vld [vmem:[#allocation9 + $0x1a8] sm:$0xff]
    %v3942 = vld [vmem:[#allocation9 + $0x1b0] sm:$0xff]
    %v3943 = vld [vmem:[#allocation9 + $0x1b8] sm:$0xff]
    %v3944 = vld [vmem:[#allocation9 + $0x1c0] sm:$0xff]
    %v3945 = vld [vmem:[#allocation9 + $0x1c8] sm:$0xff]
    %v3946 = vld [vmem:[#allocation9 + $0x1d0] sm:$0xff]
    %v3947 = vld [vmem:[#allocation9 + $0x1d8] sm:$0xff]
    %v3948 = vld [vmem:[#allocation9 + $0x1e0] sm:$0xff]
    %v3949 = vld [vmem:[#allocation9 + $0x1e8] sm:$0xff]
    %v3950 = vld [vmem:[#allocation9 + $0x1f0] sm:$0xff]
    %v3951 = vld [vmem:[#allocation9 + $0x1f8] sm:$0xff]
    %v3952 = vld [vmem:[%s9] sm:$0xf]
    %v3954 = vlaneseq
    %v3955 = vshrl.u32 %v3954, 7
    %v3956 = vsub.s32 0, %v3955
    %v3957 = vrot.slane %v3952, %v3956
    %v3958 = vlaneseq
    %v3959 = vshrl.u32 %v3958, 7
    %v3960 = vsub.s32 1, %v3959
    %v3961 = vrot.slane %v3952, %v3960
    %v3962 = vlaneseq
    %v3963 = vshrl.u32 %v3962, 7
    %v3964 = vsub.s32 2, %v3963
    %v3965 = vrot.slane %v3952, %v3964
    %v3966 = vlaneseq
    %v3967 = vshrl.u32 %v3966, 7
    %v3968 = vsub.s32 3, %v3967
    %v3969 = vrot.slane %v3952, %v3968
    %3974 = vmatprep.subr.mxu0 %v3889
    %3975 = vmatpush1.msra.mxu0 %v3888
    %3976 = vmatprep.subr.mxu0 %v3893
    %3977 = vmatpush1.msra.mxu0 %v3892
    %3978 = vmatprep.subr.mxu0 %v3897
    %3979 = vmatpush1.msra.mxu0 %v3896
    %3980 = vmatprep.subr.mxu0 %v3901
    %3981 = vmatpush1.msra.mxu0 %v3900
    %3982 = vmatprep.subr.mxu0 %v3905
    %3983 = vmatpush1.msra.mxu0 %v3904
    %3984 = vmatprep.subr.mxu0 %v3909
    %3985 = vmatpush1.msra.mxu0 %v3908
    %3986 = vmatprep.subr.mxu0 %v3913
    %3987 = vmatpush1.msra.mxu0 %v3912
    %3988 = vmatprep.subr.mxu0 %v3917
    %3989 = vmatpush1.msra.mxu0 %v3916
    %3990 = vmatprep.subr.mxu0 %v3921
    %3991 = vmatpush1.msra.mxu0 %v3920
    %3992 = vmatprep.subr.mxu0 %v3925
    %3993 = vmatpush1.msra.mxu0 %v3924
    %3994 = vmatprep.subr.mxu0 %v3929
    %3995 = vmatpush1.msra.mxu0 %v3928
    %3996 = vmatprep.subr.mxu0 %v3933
    %3997 = vmatpush1.msra.mxu0 %v3932
    %3998 = vmatprep.subr.mxu0 %v3937
    %3999 = vmatpush1.msra.mxu0 %v3936
    %4000 = vmatprep.subr.mxu0 %v3941
    %4001 = vmatpush1.msra.mxu0 %v3940
    %4002 = vmatprep.subr.mxu0 %v3945
    %4003 = vmatpush1.msra.mxu0 %v3944
    %4004 = vmatprep.subr.mxu0 %v3949
    %4005 = vmatpush1.msra.mxu0 %v3948
    %4006 = vmatprep.subr.mxu0 0.0
    %4007 = vmatpush1.msra.mxu0 0.0
    %4008 = vmatprep.subr.mxu0 0.0
    %4009 = vmatpush1.msra.mxu0 0.0
    %4010 = vmatprep.subr.mxu0 0.0
    %4011 = vmatpush1.msra.mxu0 0.0
    %4012 = vmatprep.subr.mxu0 0.0
    %4013 = vmatpush1.msra.mxu0 0.0
    %4014 = vmatprep.subr.mxu0 0.0
    %4015 = vmatpush1.msra.mxu0 0.0
    %4016 = vmatprep.subr.mxu0 0.0
    %4017 = vmatpush1.msra.mxu0 0.0
    %4018 = vmatprep.subr.mxu0 0.0
    %4019 = vmatpush1.msra.mxu0 0.0
    %4020 = vmatprep.subr.mxu0 0.0
    %4021 = vmatpush1.msra.mxu0 0.0
    %4022 = vmatprep.subr.mxu0 0.0
    %4023 = vmatpush1.msra.mxu0 0.0
    %4024 = vmatprep.subr.mxu0 0.0
    %4025 = vmatpush1.msra.mxu0 0.0
    %4026 = vmatprep.subr.mxu0 0.0
    %4027 = vmatpush1.msra.mxu0 0.0
    %4028 = vmatprep.subr.mxu0 0.0
    %4029 = vmatpush1.msra.mxu0 0.0
    %4030 = vmatprep.subr.mxu0 0.0
    %4031 = vmatpush1.msra.mxu0 0.0
    %4032 = vmatprep.subr.mxu0 0.0
    %4033 = vmatpush1.msra.mxu0 0.0
    %4034 = vmatprep.subr.mxu0 0.0
    %4035 = vmatpush1.msra.mxu0 0.0
    %4036 = vmatprep.subr.mxu0 0.0
    %4037 = vmatpush1.msra.mxu0 0.0
    %4038 = vmatprep.mubr.f32.mxu0 0.0
    %4039 = vmatmul.mubr.f32.gmra.mrb[0].mxu0 %v3886
    %v4040 = vpop.f32.mrb[0].mxu0
    %v4041 = vadd.f32 %v3957, %v4040
    %v4042 = vpop.f32.mrb[0].mxu0
    %v4043 = vadd.f32 %v3961, %v4042
    %4044 = vmatprep.mubr.f32.mxu0 0.0
    %4045 = vmatmul.mubr.f32.gmra.mrb[0].mxu0 %v3887
    %v4046 = vpop.f32.mrb[0].mxu0
    %v4047 = vadd.f32 %v3957, %v4046
    %v4048 = vpop.f32.mrb[0].mxu0
    %v4049 = vadd.f32 %v3961, %v4048
    %4050 = vdwg.mxu0
    %4051 = vmatprep.subr.mxu0 %v3891
    %4052 = vmatpush1.msra.mxu0 %v3890
    %4053 = vmatprep.subr.mxu0 %v3895
    %4054 = vmatpush1.msra.mxu0 %v3894
    %4055 = vmatprep.subr.mxu0 %v3899
    %4056 = vmatpush1.msra.mxu0 %v3898
    %4057 = vmatprep.subr.mxu0 %v3903
    %4058 = vmatpush1.msra.mxu0 %v3902
    %4059 = vmatprep.subr.mxu0 %v3907
    %4060 = vmatpush1.msra.mxu0 %v3906
    %4061 = vmatprep.subr.mxu0 %v3911
    %4062 = vmatpush1.msra.mxu0 %v3910
    %4063 = vmatprep.subr.mxu0 %v3915
    %4064 = vmatpush1.msra.mxu0 %v3914
    %4065 = vmatprep.subr.mxu0 %v3919
    %4066 = vmatpush1.msra.mxu0 %v3918
    %4067 = vmatprep.subr.mxu0 %v3923
    %4068 = vmatpush1.msra.mxu0 %v3922
    %4069 = vmatprep.subr.mxu0 %v3927
    %4070 = vmatpush1.msra.mxu0 %v3926
    %4071 = vmatprep.subr.mxu0 %v3931
    %4072 = vmatpush1.msra.mxu0 %v3930
    %4073 = vmatprep.subr.mxu0 %v3935
    %4074 = vmatpush1.msra.mxu0 %v3934
    %4075 = vmatprep.subr.mxu0 %v3939
    %4076 = vmatpush1.msra.mxu0 %v3938
    %4077 = vmatprep.subr.mxu0 %v3943
    %4078 = vmatpush1.msra.mxu0 %v3942
    %4079 = vmatprep.subr.mxu0 %v3947
    %4080 = vmatpush1.msra.mxu0 %v3946
    %4081 = vmatprep.subr.mxu0 %v3951
    %4082 = vmatpush1.msra.mxu0 %v3950
    %4083 = vmatprep.subr.mxu0 0.0
    %4084 = vmatpush1.msra.mxu0 0.0
    %4085 = vmatprep.subr.mxu0 0.0
    %4086 = vmatpush1.msra.mxu0 0.0
    %4087 = vmatprep.subr.mxu0 0.0
    %4088 = vmatpush1.msra.mxu0 0.0
    %4089 = vmatprep.subr.mxu0 0.0
    %4090 = vmatpush1.msra.mxu0 0.0
    %4091 = vmatprep.subr.mxu0 0.0
    %4092 = vmatpush1.msra.mxu0 0.0
    %4093 = vmatprep.subr.mxu0 0.0
    %4094 = vmatpush1.msra.mxu0 0.0
    %4095 = vmatprep.subr.mxu0 0.0
    %4096 = vmatpush1.msra.mxu0 0.0
    %4097 = vmatprep.subr.mxu0 0.0
    %4098 = vmatpush1.msra.mxu0 0.0
    %4099 = vmatprep.subr.mxu0 0.0
    %4100 = vmatpush1.msra.mxu0 0.0
    %4101 = vmatprep.subr.mxu0 0.0
    %4102 = vmatpush1.msra.mxu0 0.0
    %4103 = vmatprep.subr.mxu0 0.0
    %4104 = vmatpush1.msra.mxu0 0.0
    %4105 = vmatprep.subr.mxu0 0.0
    %4106 = vmatpush1.msra.mxu0 0.0
    %4107 = vmatprep.subr.mxu0 0.0
    %4108 = vmatpush1.msra.mxu0 0.0
    %4109 = vmatprep.subr.mxu0 0.0
    %4110 = vmatpush1.msra.mxu0 0.0
    %4111 = vmatprep.subr.mxu0 0.0
    %4112 = vmatpush1.msra.mxu0 0.0
    %4113 = vmatprep.subr.mxu0 0.0
    %4114 = vmatpush1.msra.mxu0 0.0
    %4115 = vmatprep.mubr.f32.mxu0 0.0
    %4116 = vmatmul.mubr.f32.gmra.mrb[0].mxu0 %v3886
    %v4117 = vpop.f32.mrb[0].mxu0
    %v4118 = vadd.f32 %v3965, %v4117
    %v4119 = vpop.f32.mrb[0].mxu0
    %v4120 = vadd.f32 %v3969, %v4119
    %4121 = vmatprep.mubr.f32.mxu0 0.0
    %4122 = vmatmul.mubr.f32.gmra.mrb[0].mxu0 %v3887
    %v4123 = vpop.f32.mrb[0].mxu0
    %v4124 = vadd.f32 %v3965, %v4123
    %v4125 = vpop.f32.mrb[0].mxu0
    %v4126 = vadd.f32 %v3969, %v4125
    %4127 = vdwg.mxu0
    %v4128 = vld [vmem:[#allocation11] sm:$0xff]
    %v4129 = vld [vmem:[#allocation11 + $0x8] sm:$0xff]
    %v4130 = vld [vmem:[#allocation11 + $0x10] sm:$0xff]
    %v4131 = vld [vmem:[#allocation11 + $0x18] sm:$0xff]
    %v4132 = vld [vmem:[#allocation11 + $0x20] sm:$0xff]
    %v4133 = vld [vmem:[#allocation11 + $0x28] sm:$0xff]
    %v4134 = vld [vmem:[#allocation11 + $0x30] sm:$0xff]
    %v4135 = vld [vmem:[#allocation11 + $0x38] sm:$0xff]
    %v4136 = vld [vmem:[#allocation11 + $0x40] sm:$0xff]
    %v4137 = vld [vmem:[#allocation11 + $0x48] sm:$0xff]
    %v4138 = vld [vmem:[#allocation11 + $0x50] sm:$0xff]
    %v4139 = vld [vmem:[#allocation11 + $0x58] sm:$0xff]
    %v4140 = vld [vmem:[#allocation11 + $0x60] sm:$0xff]
    %v4141 = vld [vmem:[#allocation11 + $0x68] sm:$0xff]
    %v4142 = vld [vmem:[#allocation11 + $0x70] sm:$0xff]
    %v4143 = vld [vmem:[#allocation11 + $0x78] sm:$0xff]
    %v4144 = vld [vmem:[#allocation11 + $0x80] sm:$0xff]
    %v4145 = vld [vmem:[#allocation11 + $0x88] sm:$0xff]
    %v4146 = vld [vmem:[#allocation11 + $0x90] sm:$0xff]
    %v4147 = vld [vmem:[#allocation11 + $0x98] sm:$0xff]
    %v4148 = vld [vmem:[#allocation11 + $0xa0] sm:$0xff]
    %v4149 = vld [vmem:[#allocation11 + $0xa8] sm:$0xff]
    %v4150 = vld [vmem:[#allocation11 + $0xb0] sm:$0xff]
    %v4151 = vld [vmem:[#allocation11 + $0xb8] sm:$0xff]
    %v4152 = vld [vmem:[#allocation11 + $0xc0] sm:$0xff]
    %v4153 = vld [vmem:[#allocation11 + $0xc8] sm:$0xff]
    %v4154 = vld [vmem:[#allocation11 + $0xd0] sm:$0xff]
    %v4155 = vld [vmem:[#allocation11 + $0xd8] sm:$0xff]
    %v4156 = vld [vmem:[#allocation11 + $0xe0] sm:$0xff]
    %v4157 = vld [vmem:[#allocation11 + $0xe8] sm:$0xff]
    %v4158 = vld [vmem:[#allocation11 + $0xf0] sm:$0xff]
    %v4159 = vld [vmem:[#allocation11 + $0xf8] sm:$0xff]
    %v4160 = vld [vmem:[#allocation11 + $0x100] sm:$0xff]
    %v4161 = vld [vmem:[#allocation11 + $0x108] sm:$0xff]
    %v4162 = vld [vmem:[#allocation11 + $0x110] sm:$0xff]
    %v4163 = vld [vmem:[#allocation11 + $0x118] sm:$0xff]
    %v4164 = vld [vmem:[#allocation11 + $0x120] sm:$0xff]
    %v4165 = vld [vmem:[#allocation11 + $0x128] sm:$0xff]
    %v4166 = vld [vmem:[#allocation11 + $0x130] sm:$0xff]
    %v4167 = vld [vmem:[#allocation11 + $0x138] sm:$0xff]
    %v4168 = vld [vmem:[#allocation11 + $0x140] sm:$0xff]
    %v4169 = vld [vmem:[#allocation11 + $0x148] sm:$0xff]
    %v4170 = vld [vmem:[#allocation11 + $0x150] sm:$0xff]
    %v4171 = vld [vmem:[#allocation11 + $0x158] sm:$0xff]
    %v4172 = vld [vmem:[#allocation11 + $0x160] sm:$0xff]
    %v4173 = vld [vmem:[#allocation11 + $0x168] sm:$0xff]
    %v4174 = vld [vmem:[#allocation11 + $0x170] sm:$0xff]
    %v4175 = vld [vmem:[#allocation11 + $0x178] sm:$0xff]
    %v4176 = vld [vmem:[#allocation11 + $0x180] sm:$0xff]
    %v4177 = vld [vmem:[#allocation11 + $0x188] sm:$0xff]
    %v4178 = vld [vmem:[#allocation11 + $0x190] sm:$0xff]
    %v4179 = vld [vmem:[#allocation11 + $0x198] sm:$0xff]
    %v4180 = vld [vmem:[#allocation11 + $0x1a0] sm:$0xff]
    %v4181 = vld [vmem:[#allocation11 + $0x1a8] sm:$0xff]
    %v4182 = vld [vmem:[#allocation11 + $0x1b0] sm:$0xff]
    %v4183 = vld [vmem:[#allocation11 + $0x1b8] sm:$0xff]
    %v4184 = vld [vmem:[#allocation11 + $0x1c0] sm:$0xff]
    %v4185 = vld [vmem:[#allocation11 + $0x1c8] sm:$0xff]
    %v4186 = vld [vmem:[#allocation11 + $0x1d0] sm:$0xff]
    %v4187 = vld [vmem:[#allocation11 + $0x1d8] sm:$0xff]
    %v4188 = vld [vmem:[#allocation11 + $0x1e0] sm:$0xff]
    %v4189 = vld [vmem:[#allocation11 + $0x1e8] sm:$0xff]
    %v4190 = vld [vmem:[#allocation11 + $0x1f0] sm:$0xff]
    %v4191 = vld [vmem:[#allocation11 + $0x1f8] sm:$0xff]
    %4192 = vmatprep.subr.mxu0 %v4129
    %4193 = vmatpush1.msra.mxu0 %v4128
    %4194 = vmatprep.subr.mxu0 %v4133
    %4195 = vmatpush1.msra.mxu0 %v4132
    %4196 = vmatprep.subr.mxu0 %v4137
    %4197 = vmatpush1.msra.mxu0 %v4136
    %4198 = vmatprep.subr.mxu0 %v4141
    %4199 = vmatpush1.msra.mxu0 %v4140
    %4200 = vmatprep.subr.mxu0 %v4145
    %4201 = vmatpush1.msra.mxu0 %v4144
    %4202 = vmatprep.subr.mxu0 %v4149
    %4203 = vmatpush1.msra.mxu0 %v4148
    %4204 = vmatprep.subr.mxu0 %v4153
    %4205 = vmatpush1.msra.mxu0 %v4152
    %4206 = vmatprep.subr.mxu0 %v4157
    %4207 = vmatpush1.msra.mxu0 %v4156
    %4208 = vmatprep.subr.mxu0 %v4161
    %4209 = vmatpush1.msra.mxu0 %v4160
    %4210 = vmatprep.subr.mxu0 %v4165
    %4211 = vmatpush1.msra.mxu0 %v4164
    %4212 = vmatprep.subr.mxu0 %v4169
    %4213 = vmatpush1.msra.mxu0 %v4168
    %4214 = vmatprep.subr.mxu0 %v4173
    %4215 = vmatpush1.msra.mxu0 %v4172
    %4216 = vmatprep.subr.mxu0 %v4177
    %4217 = vmatpush1.msra.mxu0 %v4176
    %4218 = vmatprep.subr.mxu0 %v4181
    %4219 = vmatpush1.msra.mxu0 %v4180
    %4220 = vmatprep.subr.mxu0 %v4185
    %4221 = vmatpush1.msra.mxu0 %v4184
    %4222 = vmatprep.subr.mxu0 %v4189
    %4223 = vmatpush1.msra.mxu0 %v4188
    %4224 = vmatprep.subr.mxu0 0.0
    %4225 = vmatpush1.msra.mxu0 0.0
    %4226 = vmatprep.subr.mxu0 0.0
    %4227 = vmatpush1.msra.mxu0 0.0
    %4228 = vmatprep.subr.mxu0 0.0
    %4229 = vmatpush1.msra.mxu0 0.0
    %4230 = vmatprep.subr.mxu0 0.0
    %4231 = vmatpush1.msra.mxu0 0.0
    %4232 = vmatprep.subr.mxu0 0.0
    %4233 = vmatpush1.msra.mxu0 0.0
    %4234 = vmatprep.subr.mxu0 0.0
    %4235 = vmatpush1.msra.mxu0 0.0
    %4236 = vmatprep.subr.mxu0 0.0
    %4237 = vmatpush1.msra.mxu0 0.0
    %4238 = vmatprep.subr.mxu0 0.0
    %4239 = vmatpush1.msra.mxu0 0.0
    %4240 = vmatprep.subr.mxu0 0.0
    %4241 = vmatpush1.msra.mxu0 0.0
    %4242 = vmatprep.subr.mxu0 0.0
    %4243 = vmatpush1.msra.mxu0 0.0
    %4244 = vmatprep.subr.mxu0 0.0
    %4245 = vmatpush1.msra.mxu0 0.0
    %4246 = vmatprep.subr.mxu0 0.0
    %4247 = vmatpush1.msra.mxu0 0.0
    %4248 = vmatprep.subr.mxu0 0.0
    %4249 = vmatpush1.msra.mxu0 0.0
    %4250 = vmatprep.subr.mxu0 0.0
    %4251 = vmatpush1.msra.mxu0 0.0
    %4252 = vmatprep.subr.mxu0 0.0
    %4253 = vmatpush1.msra.mxu0 0.0
    %4254 = vmatprep.subr.mxu0 0.0
    %4255 = vmatpush1.msra.mxu0 0.0
    %4256 = vmatprep.mubr.f32.mxu0 0.0
    %4257 = vmatmul.mubr.f32.gmra.mrb[0].mxu0 0.0
    %v4258 = vpop.f32.mrb[0].mxu0
    %v4259 = vadd.f32 0.0, %v4258
    %v4260 = vpop.f32.mrb[0].mxu0
    %v4261 = vadd.f32 0.0, %v4260
    %4262 = vdwg.mxu0
    %4263 = vmatprep.subr.mxu0 %v4131
    %4264 = vmatpush1.msra.mxu0 %v4130
    %4265 = vmatprep.subr.mxu0 %v4135
    %4266 = vmatpush1.msra.mxu0 %v4134
    %4267 = vmatprep.subr.mxu0 %v4139
    %4268 = vmatpush1.msra.mxu0 %v4138
    %4269 = vmatprep.subr.mxu0 %v4143
    %4270 = vmatpush1.msra.mxu0 %v4142
    %4271 = vmatprep.subr.mxu0 %v4147
    %4272 = vmatpush1.msra.mxu0 %v4146
    %4273 = vmatprep.subr.mxu0 %v4151
    %4274 = vmatpush1.msra.mxu0 %v4150
    %4275 = vmatprep.subr.mxu0 %v4155
    %4276 = vmatpush1.msra.mxu0 %v4154
    %4277 = vmatprep.subr.mxu0 %v4159
    %4278 = vmatpush1.msra.mxu0 %v4158
    %4279 = vmatprep.subr.mxu0 %v4163
    %4280 = vmatpush1.msra.mxu0 %v4162
    %4281 = vmatprep.subr.mxu0 %v4167
    %4282 = vmatpush1.msra.mxu0 %v4166
    %4283 = vmatprep.subr.mxu0 %v4171
    %4284 = vmatpush1.msra.mxu0 %v4170
    %4285 = vmatprep.subr.mxu0 %v4175
    %4286 = vmatpush1.msra.mxu0 %v4174
    %4287 = vmatprep.subr.mxu0 %v4179
    %4288 = vmatpush1.msra.mxu0 %v4178
    %4289 = vmatprep.subr.mxu0 %v4183
    %4290 = vmatpush1.msra.mxu0 %v4182
    %4291 = vmatprep.subr.mxu0 %v4187
    %4292 = vmatpush1.msra.mxu0 %v4186
    %4293 = vmatprep.subr.mxu0 %v4191
    %4294 = vmatpush1.msra.mxu0 %v4190
    %4295 = vmatprep.subr.mxu0 0.0
    %4296 = vmatpush1.msra.mxu0 0.0
    %4297 = vmatprep.subr.mxu0 0.0
    %4298 = vmatpush1.msra.mxu0 0.0
    %4299 = vmatprep.subr.mxu0 0.0
    %4300 = vmatpush1.msra.mxu0 0.0
    %4301 = vmatprep.subr.mxu0 0.0
    %4302 = vmatpush1.msra.mxu0 0.0
    %4303 = vmatprep.subr.mxu0 0.0
    %4304 = vmatpush1.msra.mxu0 0.0
    %4305 = vmatprep.subr.mxu0 0.0
    %4306 = vmatpush1.msra.mxu0 0.0
    %4307 = vmatprep.subr.mxu0 0.0
    %4308 = vmatpush1.msra.mxu0 0.0
    %4309 = vmatprep.subr.mxu0 0.0
    %4310 = vmatpush1.msra.mxu0 0.0
    %4311 = vmatprep.subr.mxu0 0.0
    %4312 = vmatpush1.msra.mxu0 0.0
    %4313 = vmatprep.subr.mxu0 0.0
    %4314 = vmatpush1.msra.mxu0 0.0
    %4315 = vmatprep.subr.mxu0 0.0
    %4316 = vmatpush1.msra.mxu0 0.0
    %4317 = vmatprep.subr.mxu0 0.0
    %4318 = vmatpush1.msra.mxu0 0.0
    %4319 = vmatprep.subr.mxu0 0.0
    %4320 = vmatpush1.msra.mxu0 0.0
    %4321 = vmatprep.subr.mxu0 0.0
    %4322 = vmatpush1.msra.mxu0 0.0
    %4323 = vmatprep.subr.mxu0 0.0
    %4324 = vmatpush1.msra.mxu0 0.0
    %4325 = vmatprep.subr.mxu0 0.0
    %4326 = vmatpush1.msra.mxu0 0.0
    %4327 = vmatprep.mubr.f32.mxu0 0.0
    %4328 = vmatmul.mubr.f32.gmra.mrb[0].mxu0 0.0
    %v4329 = vpop.f32.mrb[0].mxu0
    %v4330 = vadd.f32 0.0, %v4329
    %v4331 = vpop.f32.mrb[0].mxu0
    %v4332 = vadd.f32 0.0, %v4331
    %4333 = vdwg.mxu0
    %v4334 = vadd.f32 %v4041, %v4259
    %v4335 = vadd.f32 %v4043, %v4261
    %v4336 = vadd.f32 %v4118, %v4330
    %v4337 = vadd.f32 %v4120, %v4332
    %v4338 = vxor.u32 %v4334, 2147483648
    %v4339 = vmul.f32 %v4338, 1.442695
    %v4340 = vpow.pop %v4339
    %v4341 = vadd.f32 %v4340, 1.0
    %v4342 = vrcp.pop %v4341
    %v4343 = vmul.f32 1.0, %v4342
    %v4344 = vxor.u32 %v4335, 2147483648
    %v4345 = vmul.f32 %v4344, 1.442695
    %v4346 = vpow.pop %v4345
    %v4347 = vadd.f32 %v4346, 1.0
    %v4348 = vrcp.pop %v4347
    %v4349 = vmul.f32 1.0, %v4348
    %v4350 = vtanh.pop %v4336
    %v4351 = vxor.u32 %v4337, 2147483648
    %v4352 = vmul.f32 %v4351, 1.442695
    %v4353 = vpow.pop %v4352
    %v4354 = vadd.f32 %v4353, 1.0
    %v4355 = vrcp.pop %v4354
    %v4356 = vmul.f32 1.0, %v4355
    %v4357 = vmul.f32 %v4349, 0.0
    %v4358 = vmul.f32 %v4343, %v4350
    %v4359 = vadd.f32 %v4357, %v4358
    %v4360 = vtanh.pop %v4359
    %v4361 = vmul.f32 %v4356, %v4360
    %4362 = vmatprep.subr.mxu0 %v4129
    %4363 = vmatpush1.msra.mxu0 %v4128
    %4364 = vmatprep.subr.mxu0 %v4133
    %4365 = vmatpush1.msra.mxu0 %v4132
    %4366 = vmatprep.subr.mxu0 %v4137
    %4367 = vmatpush1.msra.mxu0 %v4136
    %4368 = vmatprep.subr.mxu0 %v4141
    %4369 = vmatpush1.msra.mxu0 %v4140
    %4370 = vmatprep.subr.mxu0 %v4145
    %4371 = vmatpush1.msra.mxu0 %v4144
    %4372 = vmatprep.subr.mxu0 %v4149
    %4373 = vmatpush1.msra.mxu0 %v4148
    %4374 = vmatprep.subr.mxu0 %v4153
    %4375 = vmatpush1.msra.mxu0 %v4152
    %4376 = vmatprep.subr.mxu0 %v4157
    %4377 = vmatpush1.msra.mxu0 %v4156
    %4378 = vmatprep.subr.mxu0 %v4161
    %4379 = vmatpush1.msra.mxu0 %v4160
    %4380 = vmatprep.subr.mxu0 %v4165
    %4381 = vmatpush1.msra.mxu0 %v4164
    %4382 = vmatprep.subr.mxu0 %v4169
    %4383 = vmatpush1.msra.mxu0 %v4168
    %4384 = vmatprep.subr.mxu0 %v4173
    %4385 = vmatpush1.msra.mxu0 %v4172
    %4386 = vmatprep.subr.mxu0 %v4177
    %4387 = vmatpush1.msra.mxu0 %v4176
    %4388 = vmatprep.subr.mxu0 %v4181
    %4389 = vmatpush1.msra.mxu0 %v4180
    %4390 = vmatprep.subr.mxu0 %v4185
    %4391 = vmatpush1.msra.mxu0 %v4184
    %4392 = vmatprep.subr.mxu0 %v4189
    %4393 = vmatpush1.msra.mxu0 %v4188
    %4394 = vmatprep.subr.mxu0 0.0
    %4395 = vmatpush1.msra.mxu0 0.0
    %4396 = vmatprep.subr.mxu0 0.0
    %4397 = vmatpush1.msra.mxu0 0.0
    %4398 = vmatprep.subr.mxu0 0.0
    %4399 = vmatpush1.msra.mxu0 0.0
    %4400 = vmatprep.subr.mxu0 0.0
    %4401 = vmatpush1.msra.mxu0 0.0
    %4402 = vmatprep.subr.mxu0 0.0
    %4403 = vmatpush1.msra.mxu0 0.0
    %4404 = vmatprep.subr.mxu0 0.0
    %4405 = vmatpush1.msra.mxu0 0.0
    %4406 = vmatprep.subr.mxu0 0.0
    %4407 = vmatpush1.msra.mxu0 0.0
    %4408 = vmatprep.subr.mxu0 0.0
    %4409 = vmatpush1.msra.mxu0 0.0
    %4410 = vmatprep.subr.mxu0 0.0
    %4411 = vmatpush1.msra.mxu0 0.0
    %4412 = vmatprep.subr.mxu0 0.0
    %4413 = vmatpush1.msra.mxu0 0.0
    %4414 = vmatprep.subr.mxu0 0.0
    %4415 = vmatpush1.msra.mxu0 0.0
    %4416 = vmatprep.subr.mxu0 0.0
    %4417 = vmatpush1.msra.mxu0 0.0
    %4418 = vmatprep.subr.mxu0 0.0
    %4419 = vmatpush1.msra.mxu0 0.0
    %4420 = vmatprep.subr.mxu0 0.0
    %4421 = vmatpush1.msra.mxu0 0.0
    %4422 = vmatprep.subr.mxu0 0.0
    %4423 = vmatpush1.msra.mxu0 0.0
    %4424 = vmatprep.subr.mxu0 0.0
    %4425 = vmatpush1.msra.mxu0 0.0
    %4426 = vmatprep.mubr.f32.mxu0 0.0
    %4427 = vmatmul.mubr.f32.gmra.mrb[0].mxu0 %v4361
    %v4428 = vpop.f32.mrb[0].mxu0
    %v4429 = vadd.f32 0.0, %v4428
    %v4430 = vpop.f32.mrb[0].mxu0
    %v4431 = vadd.f32 0.0, %v4430
    %4432 = vdwg.mxu0
    %4433 = vmatprep.subr.mxu0 %v4131
    %4434 = vmatpush1.msra.mxu0 %v4130
    %4435 = vmatprep.subr.mxu0 %v4135
    %4436 = vmatpush1.msra.mxu0 %v4134
    %4437 = vmatprep.subr.mxu0 %v4139
    %4438 = vmatpush1.msra.mxu0 %v4138
    %4439 = vmatprep.subr.mxu0 %v4143
    %4440 = vmatpush1.msra.mxu0 %v4142
    %4441 = vmatprep.subr.mxu0 %v4147
    %4442 = vmatpush1.msra.mxu0 %v4146
    %4443 = vmatprep.subr.mxu0 %v4151
    %4444 = vmatpush1.msra.mxu0 %v4150
    %4445 = vmatprep.subr.mxu0 %v4155
    %4446 = vmatpush1.msra.mxu0 %v4154
    %4447 = vmatprep.subr.mxu0 %v4159
    %4448 = vmatpush1.msra.mxu0 %v4158
    %4449 = vmatprep.subr.mxu0 %v4163
    %4450 = vmatpush1.msra.mxu0 %v4162
    %4451 = vmatprep.subr.mxu0 %v4167
    %4452 = vmatpush1.msra.mxu0 %v4166
    %4453 = vmatprep.subr.mxu0 %v4171
    %4454 = vmatpush1.msra.mxu0 %v4170
    %4455 = vmatprep.subr.mxu0 %v4175
    %4456 = vmatpush1.msra.mxu0 %v4174
    %4457 = vmatprep.subr.mxu0 %v4179
    %4458 = vmatpush1.msra.mxu0 %v4178
    %4459 = vmatprep.subr.mxu0 %v4183
    %4460 = vmatpush1.msra.mxu0 %v4182
    %4461 = vmatprep.subr.mxu0 %v4187
    %4462 = vmatpush1.msra.mxu0 %v4186
    %4463 = vmatprep.subr.mxu0 %v4191
    %4464 = vmatpush1.msra.mxu0 %v4190
    %4465 = vmatprep.subr.mxu0 0.0
    %4466 = vmatpush1.msra.mxu0 0.0
    %4467 = vmatprep.subr.mxu0 0.0
    %4468 = vmatpush1.msra.mxu0 0.0
    %4469 = vmatprep.subr.mxu0 0.0
    %4470 = vmatpush1.msra.mxu0 0.0
    %4471 = vmatprep.subr.mxu0 0.0
    %4472 = vmatpush1.msra.mxu0 0.0
    %4473 = vmatprep.subr.mxu0 0.0
    %4474 = vmatpush1.msra.mxu0 0.0
    %4475 = vmatprep.subr.mxu0 0.0
    %4476 = vmatpush1.msra.mxu0 0.0
    %4477 = vmatprep.subr.mxu0 0.0
    %4478 = vmatpush1.msra.mxu0 0.0
    %4479 = vmatprep.subr.mxu0 0.0
    %4480 = vmatpush1.msra.mxu0 0.0
    %4481 = vmatprep.subr.mxu0 0.0
    %4482 = vmatpush1.msra.mxu0 0.0
    %4483 = vmatprep.subr.mxu0 0.0
    %4484 = vmatpush1.msra.mxu0 0.0
    %4485 = vmatprep.subr.mxu0 0.0
    %4486 = vmatpush1.msra.mxu0 0.0
    %4487 = vmatprep.subr.mxu0 0.0
    %4488 = vmatpush1.msra.mxu0 0.0
    %4489 = vmatprep.subr.mxu0 0.0
    %4490 = vmatpush1.msra.mxu0 0.0
    %4491 = vmatprep.subr.mxu0 0.0
    %4492 = vmatpush1.msra.mxu0 0.0
    %4493 = vmatprep.subr.mxu0 0.0
    %4494 = vmatpush1.msra.mxu0 0.0
    %4495 = vmatprep.subr.mxu0 0.0
    %4496 = vmatpush1.msra.mxu0 0.0
    %4497 = vmatprep.mubr.f32.mxu0 0.0
    %4498 = vmatmul.mubr.f32.gmra.mrb[0].mxu0 %v4361
    %v4499 = vpop.f32.mrb[0].mxu0
    %v4500 = vadd.f32 0.0, %v4499
    %v4501 = vpop.f32.mrb[0].mxu0
    %v4502 = vadd.f32 0.0, %v4501
    %4503 = vdwg.mxu0
    %v4508 = vrot.slane %v4429, 6
    %v4509 = vrot.slane %v4431, 6
    %v4510 = vrot.slane %v4500, 6
    %v4511 = vrot.slane %v4502, 6
    %v4516 = vadd.f32 %v4041, %v4508
    %v4517 = vadd.f32 %v4043, %v4509
    %v4518 = vadd.f32 %v4118, %v4510
    %v4519 = vadd.f32 %v4120, %v4511
    %v4520 = vxor.u32 %v4516, 2147483648
    %v4521 = vmul.f32 %v4520, 1.442695
    %v4522 = vpow.pop %v4521
    %v4523 = vadd.f32 %v4522, 1.0
    %v4524 = vrcp.pop %v4523
    %v4525 = vmul.f32 1.0, %v4524
    %v4526 = vxor.u32 %v4517, 2147483648
    %v4527 = vmul.f32 %v4526, 1.442695
    %v4528 = vpow.pop %v4527
    %v4529 = vadd.f32 %v4528, 1.0
    %v4530 = vrcp.pop %v4529
    %v4531 = vmul.f32 1.0, %v4530
    %v4532 = vtanh.pop %v4518
    %v4533 = vxor.u32 %v4519, 2147483648
    %v4534 = vmul.f32 %v4533, 1.442695
    %v4535 = vpow.pop %v4534
    %v4536 = vadd.f32 %v4535, 1.0
    %v4537 = vrcp.pop %v4536
    %v4538 = vmul.f32 1.0, %v4537
    %v4540 = vrot.slane %v4359, 6
    %v4542 = vmul.f32 %v4531, %v4540
    %v4543 = vmul.f32 %v4525, %v4532
    %v4544 = vadd.f32 %v4542, %v4543
    %v4545 = vtanh.pop %v4544
    %v4546 = vmul.f32 %v4538, %v4545
    %v4548 = vrot.slane %v4546, 2
    %4550 = vmatprep.subr.mxu0 %v4129
    %4551 = vmatpush1.msra.mxu0 %v4128
    %4552 = vmatprep.subr.mxu0 %v4133
    %4553 = vmatpush1.msra.mxu0 %v4132
    %4554 = vmatprep.subr.mxu0 %v4137
    %4555 = vmatpush1.msra.mxu0 %v4136
    %4556 = vmatprep.subr.mxu0 %v4141
    %4557 = vmatpush1.msra.mxu0 %v4140
    %4558 = vmatprep.subr.mxu0 %v4145
    %4559 = vmatpush1.msra.mxu0 %v4144
    %4560 = vmatprep.subr.mxu0 %v4149
    %4561 = vmatpush1.msra.mxu0 %v4148
    %4562 = vmatprep.subr.mxu0 %v4153
    %4563 = vmatpush1.msra.mxu0 %v4152
    %4564 = vmatprep.subr.mxu0 %v4157
    %4565 = vmatpush1.msra.mxu0 %v4156
    %4566 = vmatprep.subr.mxu0 %v4161
    %4567 = vmatpush1.msra.mxu0 %v4160
    %4568 = vmatprep.subr.mxu0 %v4165
    %4569 = vmatpush1.msra.mxu0 %v4164
    %4570 = vmatprep.subr.mxu0 %v4169
    %4571 = vmatpush1.msra.mxu0 %v4168
    %4572 = vmatprep.subr.mxu0 %v4173
    %4573 = vmatpush1.msra.mxu0 %v4172
    %4574 = vmatprep.subr.mxu0 %v4177
    %4575 = vmatpush1.msra.mxu0 %v4176
    %4576 = vmatprep.subr.mxu0 %v4181
    %4577 = vmatpush1.msra.mxu0 %v4180
    %4578 = vmatprep.subr.mxu0 %v4185
    %4579 = vmatpush1.msra.mxu0 %v4184
    %4580 = vmatprep.subr.mxu0 %v4189
    %4581 = vmatpush1.msra.mxu0 %v4188
    %4582 = vmatprep.subr.mxu0 0.0
    %4583 = vmatpush1.msra.mxu0 0.0
    %4584 = vmatprep.subr.mxu0 0.0
    %4585 = vmatpush1.msra.mxu0 0.0
    %4586 = vmatprep.subr.mxu0 0.0
    %4587 = vmatpush1.msra.mxu0 0.0
    %4588 = vmatprep.subr.mxu0 0.0
    %4589 = vmatpush1.msra.mxu0 0.0
    %4590 = vmatprep.subr.mxu0 0.0
    %4591 = vmatpush1.msra.mxu0 0.0
    %4592 = vmatprep.subr.mxu0 0.0
    %4593 = vmatpush1.msra.mxu0 0.0
    %4594 = vmatprep.subr.mxu0 0.0
    %4595 = vmatpush1.msra.mxu0 0.0
    %4596 = vmatprep.subr.mxu0 0.0
    %4597 = vmatpush1.msra.mxu0 0.0
    %4598 = vmatprep.subr.mxu0 0.0
    %4599 = vmatpush1.msra.mxu0 0.0
    %4600 = vmatprep.subr.mxu0 0.0
    %4601 = vmatpush1.msra.mxu0 0.0
    %4602 = vmatprep.subr.mxu0 0.0
    %4603 = vmatpush1.msra.mxu0 0.0
    %4604 = vmatprep.subr.mxu0 0.0
    %4605 = vmatpush1.msra.mxu0 0.0
    %4606 = vmatprep.subr.mxu0 0.0
    %4607 = vmatpush1.msra.mxu0 0.0
    %4608 = vmatprep.subr.mxu0 0.0
    %4609 = vmatpush1.msra.mxu0 0.0
    %4610 = vmatprep.subr.mxu0 0.0
    %4611 = vmatpush1.msra.mxu0 0.0
    %4612 = vmatprep.subr.mxu0 0.0
    %4613 = vmatpush1.msra.mxu0 0.0
    %4614 = vmatprep.mubr.f32.mxu0 0.0
    %4615 = vmatmul.mubr.f32.gmra.mrb[0].mxu0 %v4548
    %v4616 = vpop.f32.mrb[0].mxu0
    %v4617 = vadd.f32 0.0, %v4616
    %v4618 = vpop.f32.mrb[0].mxu0
    %v4619 = vadd.f32 0.0, %v4618
    %4620 = vdwg.mxu0
    %4621 = vmatprep.subr.mxu0 %v4131
    %4622 = vmatpush1.msra.mxu0 %v4130
    %4623 = vmatprep.subr.mxu0 %v4135
    %4624 = vmatpush1.msra.mxu0 %v4134
    %4625 = vmatprep.subr.mxu0 %v4139
    %4626 = vmatpush1.msra.mxu0 %v4138
    %4627 = vmatprep.subr.mxu0 %v4143
    %4628 = vmatpush1.msra.mxu0 %v4142
    %4629 = vmatprep.subr.mxu0 %v4147
    %4630 = vmatpush1.msra.mxu0 %v4146
    %4631 = vmatprep.subr.mxu0 %v4151
    %4632 = vmatpush1.msra.mxu0 %v4150
    %4633 = vmatprep.subr.mxu0 %v4155
    %4634 = vmatpush1.msra.mxu0 %v4154
    %4635 = vmatprep.subr.mxu0 %v4159
    %4636 = vmatpush1.msra.mxu0 %v4158
    %4637 = vmatprep.subr.mxu0 %v4163
    %4638 = vmatpush1.msra.mxu0 %v4162
    %4639 = vmatprep.subr.mxu0 %v4167
    %4640 = vmatpush1.msra.mxu0 %v4166
    %4641 = vmatprep.subr.mxu0 %v4171
    %4642 = vmatpush1.msra.mxu0 %v4170
    %4643 = vmatprep.subr.mxu0 %v4175
    %4644 = vmatpush1.msra.mxu0 %v4174
    %4645 = vmatprep.subr.mxu0 %v4179
    %4646 = vmatpush1.msra.mxu0 %v4178
    %4647 = vmatprep.subr.mxu0 %v4183
    %4648 = vmatpush1.msra.mxu0 %v4182
    %4649 = vmatprep.subr.mxu0 %v4187
    %4650 = vmatpush1.msra.mxu0 %v4186
    %4651 = vmatprep.subr.mxu0 %v4191
    %4652 = vmatpush1.msra.mxu0 %v4190
    %4653 = vmatprep.subr.mxu0 0.0
    %4654 = vmatpush1.msra.mxu0 0.0
    %4655 = vmatprep.subr.mxu0 0.0
    %4656 = vmatpush1.msra.mxu0 0.0
    %4657 = vmatprep.subr.mxu0 0.0
    %4658 = vmatpush1.msra.mxu0 0.0
    %4659 = vmatprep.subr.mxu0 0.0
    %4660 = vmatpush1.msra.mxu0 0.0
    %4661 = vmatprep.subr.mxu0 0.0
    %4662 = vmatpush1.msra.mxu0 0.0
    %4663 = vmatprep.subr.mxu0 0.0
    %4664 = vmatpush1.msra.mxu0 0.0
    %4665 = vmatprep.subr.mxu0 0.0
    %4666 = vmatpush1.msra.mxu0 0.0
    %4667 = vmatprep.subr.mxu0 0.0
    %4668 = vmatpush1.msra.mxu0 0.0
    %4669 = vmatprep.subr.mxu0 0.0
    %4670 = vmatpush1.msra.mxu0 0.0
    %4671 = vmatprep.subr.mxu0 0.0
    %4672 = vmatpush1.msra.mxu0 0.0
    %4673 = vmatprep.subr.mxu0 0.0
    %4674 = vmatpush1.msra.mxu0 0.0
    %4675 = vmatprep.subr.mxu0 0.0
    %4676 = vmatpush1.msra.mxu0 0.0
    %4677 = vmatprep.subr.mxu0 0.0
    %4678 = vmatpush1.msra.mxu0 0.0
    %4679 = vmatprep.subr.mxu0 0.0
    %4680 = vmatpush1.msra.mxu0 0.0
    %4681 = vmatprep.subr.mxu0 0.0
    %4682 = vmatpush1.msra.mxu0 0.0
    %4683 = vmatprep.subr.mxu0 0.0
    %4684 = vmatpush1.msra.mxu0 0.0
    %4685 = vmatprep.mubr.f32.mxu0 0.0
    %4686 = vmatmul.mubr.f32.gmra.mrb[0].mxu0 %v4548
    %v4687 = vpop.f32.mrb[0].mxu0
    %v4688 = vadd.f32 0.0, %v4687
    %v4689 = vpop.f32.mrb[0].mxu0
    %v4690 = vadd.f32 0.0, %v4689
    %4691 = vdwg.mxu0
    %v4696 = vrot.slane %v4617, 4
    %v4697 = vrot.slane %v4619, 4
    %v4698 = vrot.slane %v4688, 4
    %v4699 = vrot.slane %v4690, 4
    %v4704 = vadd.f32 %v4041, %v4696
    %v4705 = vadd.f32 %v4043, %v4697
    %v4706 = vadd.f32 %v4118, %v4698
    %v4707 = vadd.f32 %v4120, %v4699
    %v4708 = vxor.u32 %v4704, 2147483648
    %v4709 = vmul.f32 %v4708, 1.442695
    %v4710 = vpow.pop %v4709
    %v4711 = vadd.f32 %v4710, 1.0
    %v4712 = vrcp.pop %v4711
    %v4713 = vmul.f32 1.0, %v4712
    %v4714 = vxor.u32 %v4705, 2147483648
    %v4715 = vmul.f32 %v4714, 1.442695
    %v4716 = vpow.pop %v4715
    %v4717 = vadd.f32 %v4716, 1.0
    %v4718 = vrcp.pop %v4717
    %v4719 = vmul.f32 1.0, %v4718
    %v4720 = vtanh.pop %v4706
    %v4721 = vxor.u32 %v4707, 2147483648
    %v4722 = vmul.f32 %v4721, 1.442695
    %v4723 = vpow.pop %v4722
    %v4724 = vadd.f32 %v4723, 1.0
    %v4725 = vrcp.pop %v4724
    %v4726 = vmul.f32 1.0, %v4725
    %v4728 = vrot.slane %v4544, 6
    %v4730 = vmul.f32 %v4719, %v4728
    %v4731 = vmul.f32 %v4713, %v4720
    %v4732 = vadd.f32 %v4730, %v4731
    %v4733 = vtanh.pop %v4732
    %v4734 = vmul.f32 %v4726, %v4733
    %v4736 = vrot.slane %v4734, 4
    %4738 = vmatprep.subr.mxu0 %v4129
    %4739 = vmatpush1.msra.mxu0 %v4128
    %4740 = vmatprep.subr.mxu0 %v4133
    %4741 = vmatpush1.msra.mxu0 %v4132
    %4742 = vmatprep.subr.mxu0 %v4137
    %4743 = vmatpush1.msra.mxu0 %v4136
    %4744 = vmatprep.subr.mxu0 %v4141
    %4745 = vmatpush1.msra.mxu0 %v4140
    %4746 = vmatprep.subr.mxu0 %v4145
    %4747 = vmatpush1.msra.mxu0 %v4144
    %4748 = vmatprep.subr.mxu0 %v4149
    %4749 = vmatpush1.msra.mxu0 %v4148
    %4750 = vmatprep.subr.mxu0 %v4153
    %4751 = vmatpush1.msra.mxu0 %v4152
    %4752 = vmatprep.subr.mxu0 %v4157
    %4753 = vmatpush1.msra.mxu0 %v4156
    %4754 = vmatprep.subr.mxu0 %v4161
    %4755 = vmatpush1.msra.mxu0 %v4160
    %4756 = vmatprep.subr.mxu0 %v4165
    %4757 = vmatpush1.msra.mxu0 %v4164
    %4758 = vmatprep.subr.mxu0 %v4169
    %4759 = vmatpush1.msra.mxu0 %v4168
    %4760 = vmatprep.subr.mxu0 %v4173
    %4761 = vmatpush1.msra.mxu0 %v4172
    %4762 = vmatprep.subr.mxu0 %v4177
    %4763 = vmatpush1.msra.mxu0 %v4176
    %4764 = vmatprep.subr.mxu0 %v4181
    %4765 = vmatpush1.msra.mxu0 %v4180
    %4766 = vmatprep.subr.mxu0 %v4185
    %4767 = vmatpush1.msra.mxu0 %v4184
    %4768 = vmatprep.subr.mxu0 %v4189
    %4769 = vmatpush1.msra.mxu0 %v4188
    %4770 = vmatprep.subr.mxu0 0.0
    %4771 = vmatpush1.msra.mxu0 0.0
    %4772 = vmatprep.subr.mxu0 0.0
    %4773 = vmatpush1.msra.mxu0 0.0
    %4774 = vmatprep.subr.mxu0 0.0
    %4775 = vmatpush1.msra.mxu0 0.0
    %4776 = vmatprep.subr.mxu0 0.0
    %4777 = vmatpush1.msra.mxu0 0.0
    %4778 = vmatprep.subr.mxu0 0.0
    %4779 = vmatpush1.msra.mxu0 0.0
    %4780 = vmatprep.subr.mxu0 0.0
    %4781 = vmatpush1.msra.mxu0 0.0
    %4782 = vmatprep.subr.mxu0 0.0
    %4783 = vmatpush1.msra.mxu0 0.0
    %4784 = vmatprep.subr.mxu0 0.0
    %4785 = vmatpush1.msra.mxu0 0.0
    %4786 = vmatprep.subr.mxu0 0.0
    %4787 = vmatpush1.msra.mxu0 0.0
    %4788 = vmatprep.subr.mxu0 0.0
    %4789 = vmatpush1.msra.mxu0 0.0
    %4790 = vmatprep.subr.mxu0 0.0
    %4791 = vmatpush1.msra.mxu0 0.0
    %4792 = vmatprep.subr.mxu0 0.0
    %4793 = vmatpush1.msra.mxu0 0.0
    %4794 = vmatprep.subr.mxu0 0.0
    %4795 = vmatpush1.msra.mxu0 0.0
    %4796 = vmatprep.subr.mxu0 0.0
    %4797 = vmatpush1.msra.mxu0 0.0
    %4798 = vmatprep.subr.mxu0 0.0
    %4799 = vmatpush1.msra.mxu0 0.0
    %4800 = vmatprep.subr.mxu0 0.0
    %4801 = vmatpush1.msra.mxu0 0.0
    %4802 = vmatprep.mubr.f32.mxu0 0.0
    %4803 = vmatmul.mubr.f32.gmra.mrb[0].mxu0 %v4736
    %v4804 = vpop.f32.mrb[0].mxu0
    %v4805 = vadd.f32 0.0, %v4804
    %v4806 = vpop.f32.mrb[0].mxu0
    %v4807 = vadd.f32 0.0, %v4806
    %4808 = vdwg.mxu0
    %4809 = vmatprep.subr.mxu0 %v4131
    %4810 = vmatpush1.msra.mxu0 %v4130
    %4811 = vmatprep.subr.mxu0 %v4135
    %4812 = vmatpush1.msra.mxu0 %v4134
    %4813 = vmatprep.subr.mxu0 %v4139
    %4814 = vmatpush1.msra.mxu0 %v4138
    %4815 = vmatprep.subr.mxu0 %v4143
    %4816 = vmatpush1.msra.mxu0 %v4142
    %4817 = vmatprep.subr.mxu0 %v4147
    %4818 = vmatpush1.msra.mxu0 %v4146
    %4819 = vmatprep.subr.mxu0 %v4151
    %4820 = vmatpush1.msra.mxu0 %v4150
    %4821 = vmatprep.subr.mxu0 %v4155
    %4822 = vmatpush1.msra.mxu0 %v4154
    %4823 = vmatprep.subr.mxu0 %v4159
    %4824 = vmatpush1.msra.mxu0 %v4158
    %4825 = vmatprep.subr.mxu0 %v4163
    %4826 = vmatpush1.msra.mxu0 %v4162
    %4827 = vmatprep.subr.mxu0 %v4167
    %4828 = vmatpush1.msra.mxu0 %v4166
    %4829 = vmatprep.subr.mxu0 %v4171
    %4830 = vmatpush1.msra.mxu0 %v4170
    %4831 = vmatprep.subr.mxu0 %v4175
    %4832 = vmatpush1.msra.mxu0 %v4174
    %4833 = vmatprep.subr.mxu0 %v4179
    %4834 = vmatpush1.msra.mxu0 %v4178
    %4835 = vmatprep.subr.mxu0 %v4183
    %4836 = vmatpush1.msra.mxu0 %v4182
    %4837 = vmatprep.subr.mxu0 %v4187
    %4838 = vmatpush1.msra.mxu0 %v4186
    %4839 = vmatprep.subr.mxu0 %v4191
    %4840 = vmatpush1.msra.mxu0 %v4190
    %4841 = vmatprep.subr.mxu0 0.0
    %4842 = vmatpush1.msra.mxu0 0.0
    %4843 = vmatprep.subr.mxu0 0.0
    %4844 = vmatpush1.msra.mxu0 0.0
    %4845 = vmatprep.subr.mxu0 0.0
    %4846 = vmatpush1.msra.mxu0 0.0
    %4847 = vmatprep.subr.mxu0 0.0
    %4848 = vmatpush1.msra.mxu0 0.0
    %4849 = vmatprep.subr.mxu0 0.0
    %4850 = vmatpush1.msra.mxu0 0.0
    %4851 = vmatprep.subr.mxu0 0.0
    %4852 = vmatpush1.msra.mxu0 0.0
    %4853 = vmatprep.subr.mxu0 0.0
    %4854 = vmatpush1.msra.mxu0 0.0
    %4855 = vmatprep.subr.mxu0 0.0
    %4856 = vmatpush1.msra.mxu0 0.0
    %4857 = vmatprep.subr.mxu0 0.0
    %4858 = vmatpush1.msra.mxu0 0.0
    %4859 = vmatprep.subr.mxu0 0.0
    %4860 = vmatpush1.msra.mxu0 0.0
    %4861 = vmatprep.subr.mxu0 0.0
    %4862 = vmatpush1.msra.mxu0 0.0
    %4863 = vmatprep.subr.mxu0 0.0
    %4864 = vmatpush1.msra.mxu0 0.0
    %4865 = vmatprep.subr.mxu0 0.0
    %4866 = vmatpush1.msra.mxu0 0.0
    %4867 = vmatprep.subr.mxu0 0.0
    %4868 = vmatpush1.msra.mxu0 0.0
    %4869 = vmatprep.subr.mxu0 0.0
    %4870 = vmatpush1.msra.mxu0 0.0
    %4871 = vmatprep.subr.mxu0 0.0
    %4872 = vmatpush1.msra.mxu0 0.0
    %4873 = vmatprep.mubr.f32.mxu0 0.0
    %4874 = vmatmul.mubr.f32.gmra.mrb[0].mxu0 %v4736
    %v4875 = vpop.f32.mrb[0].mxu0
    %v4876 = vadd.f32 0.0, %v4875
    %v4877 = vpop.f32.mrb[0].mxu0
    %v4878 = vadd.f32 0.0, %v4877
    %4879 = vdwg.mxu0
    %v4884 = vrot.slane %v4805, 2
    %v4885 = vrot.slane %v4807, 2
    %v4886 = vrot.slane %v4876, 2
    %v4887 = vrot.slane %v4878, 2
    %v4892 = vadd.f32 %v4041, %v4884
    %v4893 = vadd.f32 %v4043, %v4885
    %v4894 = vadd.f32 %v4118, %v4886
    %v4895 = vadd.f32 %v4120, %v4887
    %v4896 = vxor.u32 %v4892, 2147483648
    %v4897 = vmul.f32 %v4896, 1.442695
    %v4898 = vpow.pop %v4897
    %v4899 = vadd.f32 %v4898, 1.0
    %v4900 = vrcp.pop %v4899
    %v4901 = vmul.f32 1.0, %v4900
    %v4902 = vxor.u32 %v4893, 2147483648
    %v4903 = vmul.f32 %v4902, 1.442695
    %v4904 = vpow.pop %v4903
    %v4905 = vadd.f32 %v4904, 1.0
    %v4906 = vrcp.pop %v4905
    %v4907 = vmul.f32 1.0, %v4906
    %v4908 = vtanh.pop %v4894
    %v4909 = vxor.u32 %v4895, 2147483648
    %v4910 = vmul.f32 %v4909, 1.442695
    %v4911 = vpow.pop %v4910
    %v4912 = vadd.f32 %v4911, 1.0
    %v4913 = vrcp.pop %v4912
    %v4914 = vmul.f32 1.0, %v4913
    %v4916 = vrot.slane %v4732, 6
    %v4918 = vmul.f32 %v4907, %v4916
    %v4919 = vmul.f32 %v4901, %v4908
    %v4920 = vadd.f32 %v4918, %v4919
    %v4921 = vtanh.pop %v4920
    %v4922 = vmul.f32 %v4914, %v4921
    %v4924 = vrot.slane %v4922, 6
    %4926 = vmatprep.subr.mxu0 %v4129
    %4927 = vmatpush1.msra.mxu0 %v4128
    %4928 = vmatprep.subr.mxu0 %v4133
    %4929 = vmatpush1.msra.mxu0 %v4132
    %4930 = vmatprep.subr.mxu0 %v4137
    %4931 = vmatpush1.msra.mxu0 %v4136
    %4932 = vmatprep.subr.mxu0 %v4141
    %4933 = vmatpush1.msra.mxu0 %v4140
    %4934 = vmatprep.subr.mxu0 %v4145
    %4935 = vmatpush1.msra.mxu0 %v4144
    %4936 = vmatprep.subr.mxu0 %v4149
    %4937 = vmatpush1.msra.mxu0 %v4148
    %4938 = vmatprep.subr.mxu0 %v4153
    %4939 = vmatpush1.msra.mxu0 %v4152
    %4940 = vmatprep.subr.mxu0 %v4157
    %4941 = vmatpush1.msra.mxu0 %v4156
    %4942 = vmatprep.subr.mxu0 %v4161
    %4943 = vmatpush1.msra.mxu0 %v4160
    %4944 = vmatprep.subr.mxu0 %v4165
    %4945 = vmatpush1.msra.mxu0 %v4164
    %4946 = vmatprep.subr.mxu0 %v4169
    %4947 = vmatpush1.msra.mxu0 %v4168
    %4948 = vmatprep.subr.mxu0 %v4173
    %4949 = vmatpush1.msra.mxu0 %v4172
    %4950 = vmatprep.subr.mxu0 %v4177
    %4951 = vmatpush1.msra.mxu0 %v4176
    %4952 = vmatprep.subr.mxu0 %v4181
    %4953 = vmatpush1.msra.mxu0 %v4180
    %4954 = vmatprep.subr.mxu0 %v4185
    %4955 = vmatpush1.msra.mxu0 %v4184
    %4956 = vmatprep.subr.mxu0 %v4189
    %4957 = vmatpush1.msra.mxu0 %v4188
    %4958 = vmatprep.subr.mxu0 0.0
    %4959 = vmatpush1.msra.mxu0 0.0
    %4960 = vmatprep.subr.mxu0 0.0
    %4961 = vmatpush1.msra.mxu0 0.0
    %4962 = vmatprep.subr.mxu0 0.0
    %4963 = vmatpush1.msra.mxu0 0.0
    %4964 = vmatprep.subr.mxu0 0.0
    %4965 = vmatpush1.msra.mxu0 0.0
    %4966 = vmatprep.subr.mxu0 0.0
    %4967 = vmatpush1.msra.mxu0 0.0
    %4968 = vmatprep.subr.mxu0 0.0
    %4969 = vmatpush1.msra.mxu0 0.0
    %4970 = vmatprep.subr.mxu0 0.0
    %4971 = vmatpush1.msra.mxu0 0.0
    %4972 = vmatprep.subr.mxu0 0.0
    %4973 = vmatpush1.msra.mxu0 0.0
    %4974 = vmatprep.subr.mxu0 0.0
    %4975 = vmatpush1.msra.mxu0 0.0
    %4976 = vmatprep.subr.mxu0 0.0
    %4977 = vmatpush1.msra.mxu0 0.0
    %4978 = vmatprep.subr.mxu0 0.0
    %4979 = vmatpush1.msra.mxu0 0.0
    %4980 = vmatprep.subr.mxu0 0.0
    %4981 = vmatpush1.msra.mxu0 0.0
    %4982 = vmatprep.subr.mxu0 0.0
    %4983 = vmatpush1.msra.mxu0 0.0
    %4984 = vmatprep.subr.mxu0 0.0
    %4985 = vmatpush1.msra.mxu0 0.0
    %4986 = vmatprep.subr.mxu0 0.0
    %4987 = vmatpush1.msra.mxu0 0.0
    %4988 = vmatprep.subr.mxu0 0.0
    %4989 = vmatpush1.msra.mxu0 0.0
    %4990 = vmatprep.mubr.f32.mxu0 0.0
    %4991 = vmatmul.mubr.f32.gmra.mrb[0].mxu0 %v4924
    %v4992 = vpop.f32.mrb[0].mxu0
    %v4993 = vadd.f32 0.0, %v4992
    %v4994 = vpop.f32.mrb[0].mxu0
    %v4995 = vadd.f32 0.0, %v4994
    %4996 = vdwg.mxu0
    %4997 = vmatprep.subr.mxu0 %v4131
    %4998 = vmatpush1.msra.mxu0 %v4130
    %4999 = vmatprep.subr.mxu0 %v4135
    %5000 = vmatpush1.msra.mxu0 %v4134
    %5001 = vmatprep.subr.mxu0 %v4139
    %5002 = vmatpush1.msra.mxu0 %v4138
    %5003 = vmatprep.subr.mxu0 %v4143
    %5004 = vmatpush1.msra.mxu0 %v4142
    %5005 = vmatprep.subr.mxu0 %v4147
    %5006 = vmatpush1.msra.mxu0 %v4146
    %5007 = vmatprep.subr.mxu0 %v4151
    %5008 = vmatpush1.msra.mxu0 %v4150
    %5009 = vmatprep.subr.mxu0 %v4155
    %5010 = vmatpush1.msra.mxu0 %v4154
    %5011 = vmatprep.subr.mxu0 %v4159
    %5012 = vmatpush1.msra.mxu0 %v4158
    %5013 = vmatprep.subr.mxu0 %v4163
    %5014 = vmatpush1.msra.mxu0 %v4162
    %5015 = vmatprep.subr.mxu0 %v4167
    %5016 = vmatpush1.msra.mxu0 %v4166
    %5017 = vmatprep.subr.mxu0 %v4171
    %5018 = vmatpush1.msra.mxu0 %v4170
    %5019 = vmatprep.subr.mxu0 %v4175
    %5020 = vmatpush1.msra.mxu0 %v4174
    %5021 = vmatprep.subr.mxu0 %v4179
    %5022 = vmatpush1.msra.mxu0 %v4178
    %5023 = vmatprep.subr.mxu0 %v4183
    %5024 = vmatpush1.msra.mxu0 %v4182
    %5025 = vmatprep.subr.mxu0 %v4187
    %5026 = vmatpush1.msra.mxu0 %v4186
    %5027 = vmatprep.subr.mxu0 %v4191
    %5028 = vmatpush1.msra.mxu0 %v4190
    %5029 = vmatprep.subr.mxu0 0.0
    %5030 = vmatpush1.msra.mxu0 0.0
    %5031 = vmatprep.subr.mxu0 0.0
    %5032 = vmatpush1.msra.mxu0 0.0
    %5033 = vmatprep.subr.mxu0 0.0
    %5034 = vmatpush1.msra.mxu0 0.0
    %5035 = vmatprep.subr.mxu0 0.0
    %5036 = vmatpush1.msra.mxu0 0.0
    %5037 = vmatprep.subr.mxu0 0.0
    %5038 = vmatpush1.msra.mxu0 0.0
    %5039 = vmatprep.subr.mxu0 0.0
    %5040 = vmatpush1.msra.mxu0 0.0
    %5041 = vmatprep.subr.mxu0 0.0
    %5042 = vmatpush1.msra.mxu0 0.0
    %5043 = vmatprep.subr.mxu0 0.0
    %5044 = vmatpush1.msra.mxu0 0.0
    %5045 = vmatprep.subr.mxu0 0.0
    %5046 = vmatpush1.msra.mxu0 0.0
    %5047 = vmatprep.subr.mxu0 0.0
    %5048 = vmatpush1.msra.mxu0 0.0
    %5049 = vmatprep.subr.mxu0 0.0
    %5050 = vmatpush1.msra.mxu0 0.0
    %5051 = vmatprep.subr.mxu0 0.0
    %5052 = vmatpush1.msra.mxu0 0.0
    %5053 = vmatprep.subr.mxu0 0.0
    %5054 = vmatpush1.msra.mxu0 0.0
    %5055 = vmatprep.subr.mxu0 0.0
    %5056 = vmatpush1.msra.mxu0 0.0
    %5057 = vmatprep.subr.mxu0 0.0
    %5058 = vmatpush1.msra.mxu0 0.0
    %5059 = vmatprep.subr.mxu0 0.0
    %5060 = vmatpush1.msra.mxu0 0.0
    %5061 = vmatprep.mubr.f32.mxu0 0.0
    %5062 = vmatmul.mubr.f32.gmra.mrb[0].mxu0 %v4924
    %v5063 = vpop.f32.mrb[0].mxu0
    %v5064 = vadd.f32 0.0, %v5063
    %v5065 = vpop.f32.mrb[0].mxu0
    %v5066 = vadd.f32 0.0, %v5065
    %5067 = vdwg.mxu0
    %v5068 = vadd.f32 %v4047, %v4993
    %v5069 = vadd.f32 %v4049, %v4995
    %v5070 = vadd.f32 %v4124, %v5064
    %v5071 = vadd.f32 %v4126, %v5066
    %v5072 = vxor.u32 %v5068, 2147483648
    %v5073 = vmul.f32 %v5072, 1.442695
    %v5074 = vpow.pop %v5073
    %v5075 = vadd.f32 %v5074, 1.0
    %v5076 = vrcp.pop %v5075
    %v5077 = vmul.f32 1.0, %v5076
    %v5078 = vxor.u32 %v5069, 2147483648
    %v5079 = vmul.f32 %v5078, 1.442695
    %v5080 = vpow.pop %v5079
    %v5081 = vadd.f32 %v5080, 1.0
    %v5082 = vrcp.pop %v5081
    %v5083 = vmul.f32 1.0, %v5082
    %v5084 = vtanh.pop %v5070
    %v5085 = vxor.u32 %v5071, 2147483648
    %v5086 = vmul.f32 %v5085, 1.442695
    %v5087 = vpow.pop %v5086
    %v5088 = vadd.f32 %v5087, 1.0
    %v5089 = vrcp.pop %v5088
    %v5090 = vmul.f32 1.0, %v5089
    %v5092 = vrot.slane %v4920, 6
    %v5094 = vmul.f32 %v5083, %v5092
    %v5095 = vmul.f32 %v5077, %v5084
    %v5096 = vadd.f32 %v5094, %v5095
    %v5097 = vtanh.pop %v5096
    %v5098 = vmul.f32 %v5090, %v5097
    %5099 = vmatprep.subr.mxu0 %v4129
    %5100 = vmatpush1.msra.mxu0 %v4128
    %5101 = vmatprep.subr.mxu0 %v4133
    %5102 = vmatpush1.msra.mxu0 %v4132
    %5103 = vmatprep.subr.mxu0 %v4137
    %5104 = vmatpush1.msra.mxu0 %v4136
    %5105 = vmatprep.subr.mxu0 %v4141
    %5106 = vmatpush1.msra.mxu0 %v4140
    %5107 = vmatprep.subr.mxu0 %v4145
    %5108 = vmatpush1.msra.mxu0 %v4144
    %5109 = vmatprep.subr.mxu0 %v4149
    %5110 = vmatpush1.msra.mxu0 %v4148
    %5111 = vmatprep.subr.mxu0 %v4153
    %5112 = vmatpush1.msra.mxu0 %v4152
    %5113 = vmatprep.subr.mxu0 %v4157
    %5114 = vmatpush1.msra.mxu0 %v4156
    %5115 = vmatprep.subr.mxu0 %v4161
    %5116 = vmatpush1.msra.mxu0 %v4160
    %5117 = vmatprep.subr.mxu0 %v4165
    %5118 = vmatpush1.msra.mxu0 %v4164
    %5119 = vmatprep.subr.mxu0 %v4169
    %5120 = vmatpush1.msra.mxu0 %v4168
    %5121 = vmatprep.subr.mxu0 %v4173
    %5122 = vmatpush1.msra.mxu0 %v4172
    %5123 = vmatprep.subr.mxu0 %v4177
    %5124 = vmatpush1.msra.mxu0 %v4176
    %5125 = vmatprep.subr.mxu0 %v4181
    %5126 = vmatpush1.msra.mxu0 %v4180
    %5127 = vmatprep.subr.mxu0 %v4185
    %5128 = vmatpush1.msra.mxu0 %v4184
    %5129 = vmatprep.subr.mxu0 %v4189
    %5130 = vmatpush1.msra.mxu0 %v4188
    %5131 = vmatprep.subr.mxu0 0.0
    %5132 = vmatpush1.msra.mxu0 0.0
    %5133 = vmatprep.subr.mxu0 0.0
    %5134 = vmatpush1.msra.mxu0 0.0
    %5135 = vmatprep.subr.mxu0 0.0
    %5136 = vmatpush1.msra.mxu0 0.0
    %5137 = vmatprep.subr.mxu0 0.0
    %5138 = vmatpush1.msra.mxu0 0.0
    %5139 = vmatprep.subr.mxu0 0.0
    %5140 = vmatpush1.msra.mxu0 0.0
    %5141 = vmatprep.subr.mxu0 0.0
    %5142 = vmatpush1.msra.mxu0 0.0
    %5143 = vmatprep.subr.mxu0 0.0
    %5144 = vmatpush1.msra.mxu0 0.0
    %5145 = vmatprep.subr.mxu0 0.0
    %5146 = vmatpush1.msra.mxu0 0.0
    %5147 = vmatprep.subr.mxu0 0.0
    %5148 = vmatpush1.msra.mxu0 0.0
    %5149 = vmatprep.subr.mxu0 0.0
    %5150 = vmatpush1.msra.mxu0 0.0
    %5151 = vmatprep.subr.mxu0 0.0
    %5152 = vmatpush1.msra.mxu0 0.0
    %5153 = vmatprep.subr.mxu0 0.0
    %5154 = vmatpush1.msra.mxu0 0.0
    %5155 = vmatprep.subr.mxu0 0.0
    %5156 = vmatpush1.msra.mxu0 0.0
    %5157 = vmatprep.subr.mxu0 0.0
    %5158 = vmatpush1.msra.mxu0 0.0
    %5159 = vmatprep.subr.mxu0 0.0
    %5160 = vmatpush1.msra.mxu0 0.0
    %5161 = vmatprep.subr.mxu0 0.0
    %5162 = vmatpush1.msra.mxu0 0.0
    %5163 = vmatprep.mubr.f32.mxu0 0.0
    %5164 = vmatmul.mubr.f32.gmra.mrb[0].mxu0 %v5098
    %v5165 = vpop.f32.mrb[0].mxu0
    %v5166 = vadd.f32 0.0, %v5165
    %v5167 = vpop.f32.mrb[0].mxu0
    %v5168 = vadd.f32 0.0, %v5167
    %5169 = vdwg.mxu0
    %5170 = vmatprep.subr.mxu0 %v4131
    %5171 = vmatpush1.msra.mxu0 %v4130
    %5172 = vmatprep.subr.mxu0 %v4135
    %5173 = vmatpush1.msra.mxu0 %v4134
    %5174 = vmatprep.subr.mxu0 %v4139
    %5175 = vmatpush1.msra.mxu0 %v4138
    %5176 = vmatprep.subr.mxu0 %v4143
    %5177 = vmatpush1.msra.mxu0 %v4142
    %5178 = vmatprep.subr.mxu0 %v4147
    %5179 = vmatpush1.msra.mxu0 %v4146
    %5180 = vmatprep.subr.mxu0 %v4151
    %5181 = vmatpush1.msra.mxu0 %v4150
    %5182 = vmatprep.subr.mxu0 %v4155
    %5183 = vmatpush1.msra.mxu0 %v4154
    %5184 = vmatprep.subr.mxu0 %v4159
    %5185 = vmatpush1.msra.mxu0 %v4158
    %5186 = vmatprep.subr.mxu0 %v4163
    %5187 = vmatpush1.msra.mxu0 %v4162
    %5188 = vmatprep.subr.mxu0 %v4167
    %5189 = vmatpush1.msra.mxu0 %v4166
    %5190 = vmatprep.subr.mxu0 %v4171
    %5191 = vmatpush1.msra.mxu0 %v4170
    %5192 = vmatprep.subr.mxu0 %v4175
    %5193 = vmatpush1.msra.mxu0 %v4174
    %5194 = vmatprep.subr.mxu0 %v4179
    %5195 = vmatpush1.msra.mxu0 %v4178
    %5196 = vmatprep.subr.mxu0 %v4183
    %5197 = vmatpush1.msra.mxu0 %v4182
    %5198 = vmatprep.subr.mxu0 %v4187
    %5199 = vmatpush1.msra.mxu0 %v4186
    %5200 = vmatprep.subr.mxu0 %v4191
    %5201 = vmatpush1.msra.mxu0 %v4190
    %5202 = vmatprep.subr.mxu0 0.0
    %5203 = vmatpush1.msra.mxu0 0.0
    %5204 = vmatprep.subr.mxu0 0.0
    %5205 = vmatpush1.msra.mxu0 0.0
    %5206 = vmatprep.subr.mxu0 0.0
    %5207 = vmatpush1.msra.mxu0 0.0
    %5208 = vmatprep.subr.mxu0 0.0
    %5209 = vmatpush1.msra.mxu0 0.0
    %5210 = vmatprep.subr.mxu0 0.0
    %5211 = vmatpush1.msra.mxu0 0.0
    %5212 = vmatprep.subr.mxu0 0.0
    %5213 = vmatpush1.msra.mxu0 0.0
    %5214 = vmatprep.subr.mxu0 0.0
    %5215 = vmatpush1.msra.mxu0 0.0
    %5216 = vmatprep.subr.mxu0 0.0
    %5217 = vmatpush1.msra.mxu0 0.0
    %5218 = vmatprep.subr.mxu0 0.0
    %5219 = vmatpush1.msra.mxu0 0.0
    %5220 = vmatprep.subr.mxu0 0.0
    %5221 = vmatpush1.msra.mxu0 0.0
    %5222 = vmatprep.subr.mxu0 0.0
    %5223 = vmatpush1.msra.mxu0 0.0
    %5224 = vmatprep.subr.mxu0 0.0
    %5225 = vmatpush1.msra.mxu0 0.0
    %5226 = vmatprep.subr.mxu0 0.0
    %5227 = vmatpush1.msra.mxu0 0.0
    %5228 = vmatprep.subr.mxu0 0.0
    %5229 = vmatpush1.msra.mxu0 0.0
    %5230 = vmatprep.subr.mxu0 0.0
    %5231 = vmatpush1.msra.mxu0 0.0
    %5232 = vmatprep.subr.mxu0 0.0
    %5233 = vmatpush1.msra.mxu0 0.0
    %5234 = vmatprep.mubr.f32.mxu0 0.0
    %5235 = vmatmul.mubr.f32.gmra.mrb[0].mxu0 %v5098
    %v5236 = vpop.f32.mrb[0].mxu0
    %v5237 = vadd.f32 0.0, %v5236
    %v5238 = vpop.f32.mrb[0].mxu0
    %v5239 = vadd.f32 0.0, %v5238
    %5240 = vdwg.mxu0
    %v5245 = vrot.slane %v5166, 6
    %v5246 = vrot.slane %v5168, 6
    %v5247 = vrot.slane %v5237, 6
    %v5248 = vrot.slane %v5239, 6
    %v5253 = vadd.f32 %v4047, %v5245
    %v5254 = vadd.f32 %v4049, %v5246
    %v5255 = vadd.f32 %v4124, %v5247
    %v5256 = vadd.f32 %v4126, %v5248
    %v5257 = vxor.u32 %v5253, 2147483648
    %v5258 = vmul.f32 %v5257, 1.442695
    %v5259 = vpow.pop %v5258
    %v5260 = vadd.f32 %v5259, 1.0
    %v5261 = vrcp.pop %v5260
    %v5262 = vmul.f32 1.0, %v5261
    %v5263 = vxor.u32 %v5254, 2147483648
    %v5264 = vmul.f32 %v5263, 1.442695
    %v5265 = vpow.pop %v5264
    %v5266 = vadd.f32 %v5265, 1.0
    %v5267 = vrcp.pop %v5266
    %v5268 = vmul.f32 1.0, %v5267
    %v5269 = vtanh.pop %v5255
    %v5270 = vxor.u32 %v5256, 2147483648
    %v5271 = vmul.f32 %v5270, 1.442695
    %v5272 = vpow.pop %v5271
    %v5273 = vadd.f32 %v5272, 1.0
    %v5274 = vrcp.pop %v5273
    %v5275 = vmul.f32 1.0, %v5274
    %v5277 = vrot.slane %v5096, 6
    %v5279 = vmul.f32 %v5268, %v5277
    %v5280 = vmul.f32 %v5262, %v5269
    %v5281 = vadd.f32 %v5279, %v5280
    %v5282 = vtanh.pop %v5281
    %v5283 = vmul.f32 %v5275, %v5282
    %v5285 = vrot.slane %v5283, 2
    %5287 = vmatprep.subr.mxu0 %v4129
    %5288 = vmatpush1.msra.mxu0 %v4128
    %5289 = vmatprep.subr.mxu0 %v4133
    %5290 = vmatpush1.msra.mxu0 %v4132
    %5291 = vmatprep.subr.mxu0 %v4137
    %5292 = vmatpush1.msra.mxu0 %v4136
    %5293 = vmatprep.subr.mxu0 %v4141
    %5294 = vmatpush1.msra.mxu0 %v4140
    %5295 = vmatprep.subr.mxu0 %v4145
    %5296 = vmatpush1.msra.mxu0 %v4144
    %5297 = vmatprep.subr.mxu0 %v4149
    %5298 = vmatpush1.msra.mxu0 %v4148
    %5299 = vmatprep.subr.mxu0 %v4153
    %5300 = vmatpush1.msra.mxu0 %v4152
    %5301 = vmatprep.subr.mxu0 %v4157
    %5302 = vmatpush1.msra.mxu0 %v4156
    %5303 = vmatprep.subr.mxu0 %v4161
    %5304 = vmatpush1.msra.mxu0 %v4160
    %5305 = vmatprep.subr.mxu0 %v4165
    %5306 = vmatpush1.msra.mxu0 %v4164
    %5307 = vmatprep.subr.mxu0 %v4169
    %5308 = vmatpush1.msra.mxu0 %v4168
    %5309 = vmatprep.subr.mxu0 %v4173
    %5310 = vmatpush1.msra.mxu0 %v4172
    %5311 = vmatprep.subr.mxu0 %v4177
    %5312 = vmatpush1.msra.mxu0 %v4176
    %5313 = vmatprep.subr.mxu0 %v4181
    %5314 = vmatpush1.msra.mxu0 %v4180
    %5315 = vmatprep.subr.mxu0 %v4185
    %5316 = vmatpush1.msra.mxu0 %v4184
    %5317 = vmatprep.subr.mxu0 %v4189
    %5318 = vmatpush1.msra.mxu0 %v4188
    %5319 = vmatprep.subr.mxu0 0.0
    %5320 = vmatpush1.msra.mxu0 0.0
    %5321 = vmatprep.subr.mxu0 0.0
    %5322 = vmatpush1.msra.mxu0 0.0
    %5323 = vmatprep.subr.mxu0 0.0
    %5324 = vmatpush1.msra.mxu0 0.0
    %5325 = vmatprep.subr.mxu0 0.0
    %5326 = vmatpush1.msra.mxu0 0.0
    %5327 = vmatprep.subr.mxu0 0.0
    %5328 = vmatpush1.msra.mxu0 0.0
    %5329 = vmatprep.subr.mxu0 0.0
    %5330 = vmatpush1.msra.mxu0 0.0
    %5331 = vmatprep.subr.mxu0 0.0
    %5332 = vmatpush1.msra.mxu0 0.0
    %5333 = vmatprep.subr.mxu0 0.0
    %5334 = vmatpush1.msra.mxu0 0.0
    %5335 = vmatprep.subr.mxu0 0.0
    %5336 = vmatpush1.msra.mxu0 0.0
    %5337 = vmatprep.subr.mxu0 0.0
    %5338 = vmatpush1.msra.mxu0 0.0
    %5339 = vmatprep.subr.mxu0 0.0
    %5340 = vmatpush1.msra.mxu0 0.0
    %5341 = vmatprep.subr.mxu0 0.0
    %5342 = vmatpush1.msra.mxu0 0.0
    %5343 = vmatprep.subr.mxu0 0.0
    %5344 = vmatpush1.msra.mxu0 0.0
    %5345 = vmatprep.subr.mxu0 0.0
    %5346 = vmatpush1.msra.mxu0 0.0
    %5347 = vmatprep.subr.mxu0 0.0
    %5348 = vmatpush1.msra.mxu0 0.0
    %5349 = vmatprep.subr.mxu0 0.0
    %5350 = vmatpush1.msra.mxu0 0.0
    %5351 = vmatprep.mubr.f32.mxu0 0.0
    %5352 = vmatmul.mubr.f32.gmra.mrb[0].mxu0 %v5285
    %v5353 = vpop.f32.mrb[0].mxu0
    %v5354 = vadd.f32 0.0, %v5353
    %v5355 = vpop.f32.mrb[0].mxu0
    %v5356 = vadd.f32 0.0, %v5355
    %5357 = vdwg.mxu0
    %5358 = vmatprep.subr.mxu0 %v4131
    %5359 = vmatpush1.msra.mxu0 %v4130
    %5360 = vmatprep.subr.mxu0 %v4135
    %5361 = vmatpush1.msra.mxu0 %v4134
    %5362 = vmatprep.subr.mxu0 %v4139
    %5363 = vmatpush1.msra.mxu0 %v4138
    %5364 = vmatprep.subr.mxu0 %v4143
    %5365 = vmatpush1.msra.mxu0 %v4142
    %5366 = vmatprep.subr.mxu0 %v4147
    %5367 = vmatpush1.msra.mxu0 %v4146
    %5368 = vmatprep.subr.mxu0 %v4151
    %5369 = vmatpush1.msra.mxu0 %v4150
    %5370 = vmatprep.subr.mxu0 %v4155
    %5371 = vmatpush1.msra.mxu0 %v4154
    %5372 = vmatprep.subr.mxu0 %v4159
    %5373 = vmatpush1.msra.mxu0 %v4158
    %5374 = vmatprep.subr.mxu0 %v4163
    %5375 = vmatpush1.msra.mxu0 %v4162
    %5376 = vmatprep.subr.mxu0 %v4167
    %5377 = vmatpush1.msra.mxu0 %v4166
    %5378 = vmatprep.subr.mxu0 %v4171
    %5379 = vmatpush1.msra.mxu0 %v4170
    %5380 = vmatprep.subr.mxu0 %v4175
    %5381 = vmatpush1.msra.mxu0 %v4174
    %5382 = vmatprep.subr.mxu0 %v4179
    %5383 = vmatpush1.msra.mxu0 %v4178
    %5384 = vmatprep.subr.mxu0 %v4183
    %5385 = vmatpush1.msra.mxu0 %v4182
    %5386 = vmatprep.subr.mxu0 %v4187
    %5387 = vmatpush1.msra.mxu0 %v4186
    %5388 = vmatprep.subr.mxu0 %v4191
    %5389 = vmatpush1.msra.mxu0 %v4190
    %5390 = vmatprep.subr.mxu0 0.0
    %5391 = vmatpush1.msra.mxu0 0.0
    %5392 = vmatprep.subr.mxu0 0.0
    %5393 = vmatpush1.msra.mxu0 0.0
    %5394 = vmatprep.subr.mxu0 0.0
    %5395 = vmatpush1.msra.mxu0 0.0
    %5396 = vmatprep.subr.mxu0 0.0
    %5397 = vmatpush1.msra.mxu0 0.0
    %5398 = vmatprep.subr.mxu0 0.0
    %5399 = vmatpush1.msra.mxu0 0.0
    %5400 = vmatprep.subr.mxu0 0.0
    %5401 = vmatpush1.msra.mxu0 0.0
    %5402 = vmatprep.subr.mxu0 0.0
    %5403 = vmatpush1.msra.mxu0 0.0
    %5404 = vmatprep.subr.mxu0 0.0
    %5405 = vmatpush1.msra.mxu0 0.0
    %5406 = vmatprep.subr.mxu0 0.0
    %5407 = vmatpush1.msra.mxu0 0.0
    %5408 = vmatprep.subr.mxu0 0.0
    %5409 = vmatpush1.msra.mxu0 0.0
    %5410 = vmatprep.subr.mxu0 0.0
    %5411 = vmatpush1.msra.mxu0 0.0
    %5412 = vmatprep.subr.mxu0 0.0
    %5413 = vmatpush1.msra.mxu0 0.0
    %5414 = vmatprep.subr.mxu0 0.0
    %5415 = vmatpush1.msra.mxu0 0.0
    %5416 = vmatprep.subr.mxu0 0.0
    %5417 = vmatpush1.msra.mxu0 0.0
    %5418 = vmatprep.subr.mxu0 0.0
    %5419 = vmatpush1.msra.mxu0 0.0
    %5420 = vmatprep.subr.mxu0 0.0
    %5421 = vmatpush1.msra.mxu0 0.0
    %5422 = vmatprep.mubr.f32.mxu0 0.0
    %5423 = vmatmul.mubr.f32.gmra.mrb[0].mxu0 %v5285
    %v5424 = vpop.f32.mrb[0].mxu0
    %v5425 = vadd.f32 0.0, %v5424
    %v5426 = vpop.f32.mrb[0].mxu0
    %v5427 = vadd.f32 0.0, %v5426
    %5428 = vdwg.mxu0
    %v5433 = vrot.slane %v5354, 4
    %v5434 = vrot.slane %v5356, 4
    %v5435 = vrot.slane %v5425, 4
    %v5436 = vrot.slane %v5427, 4
    %v5441 = vadd.f32 %v4047, %v5433
    %v5442 = vadd.f32 %v4049, %v5434
    %v5443 = vadd.f32 %v4124, %v5435
    %v5444 = vadd.f32 %v4126, %v5436
    %v5445 = vxor.u32 %v5441, 2147483648
    %v5446 = vmul.f32 %v5445, 1.442695
    %v5447 = vpow.pop %v5446
    %v5448 = vadd.f32 %v5447, 1.0
    %v5449 = vrcp.pop %v5448
    %v5450 = vmul.f32 1.0, %v5449
    %v5451 = vxor.u32 %v5442, 2147483648
    %v5452 = vmul.f32 %v5451, 1.442695
    %v5453 = vpow.pop %v5452
    %v5454 = vadd.f32 %v5453, 1.0
    %v5455 = vrcp.pop %v5454
    %v5456 = vmul.f32 1.0, %v5455
    %v5457 = vtanh.pop %v5443
    %v5458 = vxor.u32 %v5444, 2147483648
    %v5459 = vmul.f32 %v5458, 1.442695
    %v5460 = vpow.pop %v5459
    %v5461 = vadd.f32 %v5460, 1.0
    %v5462 = vrcp.pop %v5461
    %v5463 = vmul.f32 1.0, %v5462
    %v5465 = vrot.slane %v5281, 6
    %v5467 = vmul.f32 %v5456, %v5465
    %v5468 = vmul.f32 %v5450, %v5457
    %v5469 = vadd.f32 %v5467, %v5468
    %v5470 = vtanh.pop %v5469
    %v5471 = vmul.f32 %v5463, %v5470
    %v5473 = vrot.slane %v5471, 4
    %5475 = vmatprep.subr.mxu0 %v4129
    %5476 = vmatpush1.msra.mxu0 %v4128
    %5477 = vmatprep.subr.mxu0 %v4133
    %5478 = vmatpush1.msra.mxu0 %v4132
    %5479 = vmatprep.subr.mxu0 %v4137
    %5480 = vmatpush1.msra.mxu0 %v4136
    %5481 = vmatprep.subr.mxu0 %v4141
    %5482 = vmatpush1.msra.mxu0 %v4140
    %5483 = vmatprep.subr.mxu0 %v4145
    %5484 = vmatpush1.msra.mxu0 %v4144
    %5485 = vmatprep.subr.mxu0 %v4149
    %5486 = vmatpush1.msra.mxu0 %v4148
    %5487 = vmatprep.subr.mxu0 %v4153
    %5488 = vmatpush1.msra.mxu0 %v4152
    %5489 = vmatprep.subr.mxu0 %v4157
    %5490 = vmatpush1.msra.mxu0 %v4156
    %5491 = vmatprep.subr.mxu0 %v4161
    %5492 = vmatpush1.msra.mxu0 %v4160
    %5493 = vmatprep.subr.mxu0 %v4165
    %5494 = vmatpush1.msra.mxu0 %v4164
    %5495 = vmatprep.subr.mxu0 %v4169
    %5496 = vmatpush1.msra.mxu0 %v4168
    %5497 = vmatprep.subr.mxu0 %v4173
    %5498 = vmatpush1.msra.mxu0 %v4172
    %5499 = vmatprep.subr.mxu0 %v4177
    %5500 = vmatpush1.msra.mxu0 %v4176
    %5501 = vmatprep.subr.mxu0 %v4181
    %5502 = vmatpush1.msra.mxu0 %v4180
    %5503 = vmatprep.subr.mxu0 %v4185
    %5504 = vmatpush1.msra.mxu0 %v4184
    %5505 = vmatprep.subr.mxu0 %v4189
    %5506 = vmatpush1.msra.mxu0 %v4188
    %5507 = vmatprep.subr.mxu0 0.0
    %5508 = vmatpush1.msra.mxu0 0.0
    %5509 = vmatprep.subr.mxu0 0.0
    %5510 = vmatpush1.msra.mxu0 0.0
    %5511 = vmatprep.subr.mxu0 0.0
    %5512 = vmatpush1.msra.mxu0 0.0
    %5513 = vmatprep.subr.mxu0 0.0
    %5514 = vmatpush1.msra.mxu0 0.0
    %5515 = vmatprep.subr.mxu0 0.0
    %5516 = vmatpush1.msra.mxu0 0.0
    %5517 = vmatprep.subr.mxu0 0.0
    %5518 = vmatpush1.msra.mxu0 0.0
    %5519 = vmatprep.subr.mxu0 0.0
    %5520 = vmatpush1.msra.mxu0 0.0
    %5521 = vmatprep.subr.mxu0 0.0
    %5522 = vmatpush1.msra.mxu0 0.0
    %5523 = vmatprep.subr.mxu0 0.0
    %5524 = vmatpush1.msra.mxu0 0.0
    %5525 = vmatprep.subr.mxu0 0.0
    %5526 = vmatpush1.msra.mxu0 0.0
    %5527 = vmatprep.subr.mxu0 0.0
    %5528 = vmatpush1.msra.mxu0 0.0
    %5529 = vmatprep.subr.mxu0 0.0
    %5530 = vmatpush1.msra.mxu0 0.0
    %5531 = vmatprep.subr.mxu0 0.0
    %5532 = vmatpush1.msra.mxu0 0.0
    %5533 = vmatprep.subr.mxu0 0.0
    %5534 = vmatpush1.msra.mxu0 0.0
    %5535 = vmatprep.subr.mxu0 0.0
    %5536 = vmatpush1.msra.mxu0 0.0
    %5537 = vmatprep.subr.mxu0 0.0
    %5538 = vmatpush1.msra.mxu0 0.0
    %5539 = vmatprep.mubr.f32.mxu0 0.0
    %5540 = vmatmul.mubr.f32.gmra.mrb[0].mxu0 %v5473
    %v5541 = vpop.f32.mrb[0].mxu0
    %v5542 = vadd.f32 0.0, %v5541
    %v5543 = vpop.f32.mrb[0].mxu0
    %v5544 = vadd.f32 0.0, %v5543
    %5545 = vdwg.mxu0
    %5546 = vmatprep.subr.mxu0 %v4131
    %5547 = vmatpush1.msra.mxu0 %v4130
    %5548 = vmatprep.subr.mxu0 %v4135
    %5549 = vmatpush1.msra.mxu0 %v4134
    %5550 = vmatprep.subr.mxu0 %v4139
    %5551 = vmatpush1.msra.mxu0 %v4138
    %5552 = vmatprep.subr.mxu0 %v4143
    %5553 = vmatpush1.msra.mxu0 %v4142
    %5554 = vmatprep.subr.mxu0 %v4147
    %5555 = vmatpush1.msra.mxu0 %v4146
    %5556 = vmatprep.subr.mxu0 %v4151
    %5557 = vmatpush1.msra.mxu0 %v4150
    %5558 = vmatprep.subr.mxu0 %v4155
    %5559 = vmatpush1.msra.mxu0 %v4154
    %5560 = vmatprep.subr.mxu0 %v4159
    %5561 = vmatpush1.msra.mxu0 %v4158
    %5562 = vmatprep.subr.mxu0 %v4163
    %5563 = vmatpush1.msra.mxu0 %v4162
    %5564 = vmatprep.subr.mxu0 %v4167
    %5565 = vmatpush1.msra.mxu0 %v4166
    %5566 = vmatprep.subr.mxu0 %v4171
    %5567 = vmatpush1.msra.mxu0 %v4170
    %5568 = vmatprep.subr.mxu0 %v4175
    %5569 = vmatpush1.msra.mxu0 %v4174
    %5570 = vmatprep.subr.mxu0 %v4179
    %5571 = vmatpush1.msra.mxu0 %v4178
    %5572 = vmatprep.subr.mxu0 %v4183
    %5573 = vmatpush1.msra.mxu0 %v4182
    %5574 = vmatprep.subr.mxu0 %v4187
    %5575 = vmatpush1.msra.mxu0 %v4186
    %5576 = vmatprep.subr.mxu0 %v4191
    %5577 = vmatpush1.msra.mxu0 %v4190
    %5578 = vmatprep.subr.mxu0 0.0
    %5579 = vmatpush1.msra.mxu0 0.0
    %5580 = vmatprep.subr.mxu0 0.0
    %5581 = vmatpush1.msra.mxu0 0.0
    %5582 = vmatprep.subr.mxu0 0.0
    %5583 = vmatpush1.msra.mxu0 0.0
    %5584 = vmatprep.subr.mxu0 0.0
    %5585 = vmatpush1.msra.mxu0 0.0
    %5586 = vmatprep.subr.mxu0 0.0
    %5587 = vmatpush1.msra.mxu0 0.0
    %5588 = vmatprep.subr.mxu0 0.0
    %5589 = vmatpush1.msra.mxu0 0.0
    %5590 = vmatprep.subr.mxu0 0.0
    %5591 = vmatpush1.msra.mxu0 0.0
    %5592 = vmatprep.subr.mxu0 0.0
    %5593 = vmatpush1.msra.mxu0 0.0
    %5594 = vmatprep.subr.mxu0 0.0
    %5595 = vmatpush1.msra.mxu0 0.0
    %5596 = vmatprep.subr.mxu0 0.0
    %5597 = vmatpush1.msra.mxu0 0.0
    %5598 = vmatprep.subr.mxu0 0.0
    %5599 = vmatpush1.msra.mxu0 0.0
    %5600 = vmatprep.subr.mxu0 0.0
    %5601 = vmatpush1.msra.mxu0 0.0
    %5602 = vmatprep.subr.mxu0 0.0
    %5603 = vmatpush1.msra.mxu0 0.0
    %5604 = vmatprep.subr.mxu0 0.0
    %5605 = vmatpush1.msra.mxu0 0.0
    %5606 = vmatprep.subr.mxu0 0.0
    %5607 = vmatpush1.msra.mxu0 0.0
    %5608 = vmatprep.subr.mxu0 0.0
    %5609 = vmatpush1.msra.mxu0 0.0
    %5610 = vmatprep.mubr.f32.mxu0 0.0
    %5611 = vmatmul.mubr.f32.gmra.mrb[0].mxu0 %v5473
    %v5612 = vpop.f32.mrb[0].mxu0
    %v5613 = vadd.f32 0.0, %v5612
    %v5614 = vpop.f32.mrb[0].mxu0
    %v5615 = vadd.f32 0.0, %v5614
    %5616 = vdwg.mxu0
    %v5621 = vrot.slane %v5542, 2
    %v5622 = vrot.slane %v5544, 2
    %v5623 = vrot.slane %v5613, 2
    %v5624 = vrot.slane %v5615, 2
    %v5629 = vadd.f32 %v4047, %v5621
    %v5630 = vadd.f32 %v4049, %v5622
    %v5631 = vadd.f32 %v4124, %v5623
    %v5632 = vadd.f32 %v4126, %v5624
    %v5633 = vxor.u32 %v5629, 2147483648
    %v5634 = vmul.f32 %v5633, 1.442695
    %v5635 = vpow.pop %v5634
    %v5636 = vadd.f32 %v5635, 1.0
    %v5637 = vrcp.pop %v5636
    %v5638 = vmul.f32 1.0, %v5637
    %v5639 = vxor.u32 %v5630, 2147483648
    %v5640 = vmul.f32 %v5639, 1.442695
    %v5641 = vpow.pop %v5640
    %v5642 = vadd.f32 %v5641, 1.0
    %v5643 = vrcp.pop %v5642
    %v5644 = vmul.f32 1.0, %v5643
    %v5645 = vtanh.pop %v5631
    %v5646 = vxor.u32 %v5632, 2147483648
    %v5647 = vmul.f32 %v5646, 1.442695
    %v5648 = vpow.pop %v5647
    %v5649 = vadd.f32 %v5648, 1.0
    %v5650 = vrcp.pop %v5649
    %v5651 = vmul.f32 1.0, %v5650
    %v5653 = vrot.slane %v5469, 6
    %v5655 = vmul.f32 %v5644, %v5653
    %v5656 = vmul.f32 %v5638, %v5645
    %v5657 = vadd.f32 %v5655, %v5656
    %v5658 = vtanh.pop %v5657
    %v5659 = vmul.f32 %v5651, %v5658
    %v5660 = vld [vmem:[%s10] sm:$0xff]
    %v5661 = vld [vmem:[%s10 + $0x8] sm:$0xff]
    %v5662 = vld [vmem:[%s10 + $0x10] sm:$0xff]
    %v5663 = vld [vmem:[%s10 + $0x18] sm:$0xff]
    %v5664 = vld [vmem:[%s10 + $0x20] sm:$0xff]
    %v5665 = vld [vmem:[%s10 + $0x28] sm:$0xff]
    %v5666 = vld [vmem:[%s10 + $0x30] sm:$0xff]
    %v5667 = vld [vmem:[%s10 + $0x38] sm:$0xff]
    %v5668 = vld [vmem:[%s10 + $0x40] sm:$0xff]
    %v5669 = vld [vmem:[%s10 + $0x48] sm:$0xff]
    %v5670 = vld [vmem:[%s10 + $0x50] sm:$0xff]
    %v5671 = vld [vmem:[%s10 + $0x58] sm:$0xff]
    %v5672 = vld [vmem:[%s10 + $0x60] sm:$0xff]
    %v5673 = vld [vmem:[%s10 + $0x68] sm:$0xff]
    %v5674 = vld [vmem:[%s10 + $0x70] sm:$0xff]
    %v5675 = vld [vmem:[%s10 + $0x78] sm:$0xff]
    %v5676 = vld [vmem:[#allocation3] sm:$0x1]
    %v5678 = vlaneseq
    %v5679 = vshrl.u32 %v5678, 7
    %v5680 = vsub.s32 0, %v5679
    %v5681 = vrot.slane %v5676, %v5680
    %v5684 = vrot.slane %v5659, 6
    %5686 = vmatprep.subr.mxu0 0.0
    %5687 = vmatpush1.msra.mxu0 %v5660
    %5688 = vmatprep.subr.mxu0 0.0
    %5689 = vmatpush1.msra.mxu0 %v5661
    %5690 = vmatprep.subr.mxu0 0.0
    %5691 = vmatpush1.msra.mxu0 %v5662
    %5692 = vmatprep.subr.mxu0 0.0
    %5693 = vmatpush1.msra.mxu0 %v5663
    %5694 = vmatprep.subr.mxu0 0.0
    %5695 = vmatpush1.msra.mxu0 %v5664
    %5696 = vmatprep.subr.mxu0 0.0
    %5697 = vmatpush1.msra.mxu0 %v5665
    %5698 = vmatprep.subr.mxu0 0.0
    %5699 = vmatpush1.msra.mxu0 %v5666
    %5700 = vmatprep.subr.mxu0 0.0
    %5701 = vmatpush1.msra.mxu0 %v5667
    %5702 = vmatprep.subr.mxu0 0.0
    %5703 = vmatpush1.msra.mxu0 %v5668
    %5704 = vmatprep.subr.mxu0 0.0
    %5705 = vmatpush1.msra.mxu0 %v5669
    %5706 = vmatprep.subr.mxu0 0.0
    %5707 = vmatpush1.msra.mxu0 %v5670
    %5708 = vmatprep.subr.mxu0 0.0
    %5709 = vmatpush1.msra.mxu0 %v5671
    %5710 = vmatprep.subr.mxu0 0.0
    %5711 = vmatpush1.msra.mxu0 %v5672
    %5712 = vmatprep.subr.mxu0 0.0
    %5713 = vmatpush1.msra.mxu0 %v5673
    %5714 = vmatprep.subr.mxu0 0.0
    %5715 = vmatpush1.msra.mxu0 %v5674
    %5716 = vmatprep.subr.mxu0 0.0
    %5717 = vmatpush1.msra.mxu0 %v5675
    %5718 = vmatprep.subr.mxu0 0.0
    %5719 = vmatpush1.msra.mxu0 0.0
    %5720 = vmatprep.subr.mxu0 0.0
    %5721 = vmatpush1.msra.mxu0 0.0
    %5722 = vmatprep.subr.mxu0 0.0
    %5723 = vmatpush1.msra.mxu0 0.0
    %5724 = vmatprep.subr.mxu0 0.0
    %5725 = vmatpush1.msra.mxu0 0.0
    %5726 = vmatprep.subr.mxu0 0.0
    %5727 = vmatpush1.msra.mxu0 0.0
    %5728 = vmatprep.subr.mxu0 0.0
    %5729 = vmatpush1.msra.mxu0 0.0
    %5730 = vmatprep.subr.mxu0 0.0
    %5731 = vmatpush1.msra.mxu0 0.0
    %5732 = vmatprep.subr.mxu0 0.0
    %5733 = vmatpush1.msra.mxu0 0.0
    %5734 = vmatprep.subr.mxu0 0.0
    %5735 = vmatpush1.msra.mxu0 0.0
    %5736 = vmatprep.subr.mxu0 0.0
    %5737 = vmatpush1.msra.mxu0 0.0
    %5738 = vmatprep.subr.mxu0 0.0
    %5739 = vmatpush1.msra.mxu0 0.0
    %5740 = vmatprep.subr.mxu0 0.0
    %5741 = vmatpush1.msra.mxu0 0.0
    %5742 = vmatprep.subr.mxu0 0.0
    %5743 = vmatpush1.msra.mxu0 0.0
    %5744 = vmatprep.subr.mxu0 0.0
    %5745 = vmatpush1.msra.mxu0 0.0
    %5746 = vmatprep.subr.mxu0 0.0
    %5747 = vmatpush1.msra.mxu0 0.0
    %5748 = vmatprep.subr.mxu0 0.0
    %5749 = vmatpush1.msra.mxu0 0.0
    %5750 = vmatprep.mubr.f32.mxu0 0.0
    %5751 = vmatmul.mubr.f32.gmra.mrb[0].mxu0 %v5684
    %v5752 = vpop.f32.mrb[0].mxu0
    %v5753 = vadd.f32 %v5681, %v5752
    %v5754 = vpop.f32.mrb[0].mxu0
    %5755 = vdwg.mxu0
    %vm5756 = vcmask 1024
    %5757 = vst.msk [vmem:[%s12] sm:$0x3] %vm5756, %v5753
    // Predicated region
    $region70: #{_lstm_forward.1} parent=1 // pred_check
      _
    $region71: #{_lstm_forward.1} parent=1 // pred_check_branch
      %5759 = sbr.rel (0) target = $region73
    $region72: #{_lstm_forward.1} parent=1 // pred_region
      _
    $region73: #{_lstm_forward.1} parent=1 // pred_fallthru
      _
    // Predicated region
    $region74: #{_lstm_forward.1} parent=1 // pred_check
      _
    $region75: #{_lstm_forward.1} parent=1 // pred_check_branch
      %5761 = sbr.rel (0) target = $region77
    $region76: #{_lstm_forward.1} parent=1 // pred_region
      _
    $region77: #{_lstm_forward.1} parent=1 // pred_fallthru
      _
    %5762 = vsyncpa [#allocation5], 1
    %5763 = vsyncpa [#allocation7], 1
    %5764 = vsyncpa [#allocation10], 1

</llo_original>
